<compile_context>
chip_gen: v5e
topology: v5e:2x2
jax: 0.10.0
libtpu: 0.0.40
codegen_flags: <defaults>
</compile_context>

<pallas_src>
import functools

import jax
import jax.numpy as jnp
from jax.experimental import pallas as pl
from jax.experimental.pallas import tpu as pltpu


# ----------------------------- helpers ---------------------------------------
def _round_up(x, m):
    return (x + m - 1) // m * m


def _pad2d(x, rows, cols):
    r, c = x.shape
    if r == rows and c == cols:
        return x
    return jnp.pad(x, ((0, rows - r), (0, cols - c)))


def _pick_tm(mp):
    """Largest lane tile <= 512 dividing mp, preferring >= 2 grid steps."""
    for tm in (512, 256, 128):
        if mp % tm == 0 and mp // tm >= 2:
            return tm
    return mp  # mp is a multiple of 128; only hit when mp == 128


# ----------------------------- Pallas kernel ----------------------------------
def _gemm_epilogue_kernel(*refs, relu, has_res):
    if has_res:
        w_ref, a_ref, b_ref, r_ref, o_ref = refs
    else:
        w_ref, a_ref, b_ref, o_ref = refs
        r_ref = None
    # Single-shot GEMM: K is small, so the whole contraction is one MXU pass
    # with the weight block resident in VMEM (constant index_map).
    y = jnp.dot(w_ref[...], a_ref[...], preferred_element_type=jnp.float32)
    y = y + b_ref[...]
    if relu:
        y = jnp.maximum(y, 0.0)
    if has_res:
        y = y + r_ref[...].astype(jnp.float32)
    o_ref[...] = y.astype(o_ref.dtype)


def gemm_bn_act(w2d, a_t, bias, *, relu, residual=None, out_dtype=jnp.bfloat16):
    """out[Cout, M] = [relu](w2d[Cout,K] @ a_t[K,M] + bias[:,None]) [+ residual]."""
    cout, k = w2d.shape
    k2, m = a_t.shape
    assert k == k2
    coutp = _round_up(cout, 8)
    kp = _round_up(k, 8)          # usually a no-op (Cin multiples of 8)
    mp = _round_up(m, 128)
    tm = _pick_tm(mp)

    w_p = _pad2d(w2d.astype(jnp.bfloat16), coutp, kp)
    a_p = _pad2d(a_t.astype(jnp.bfloat16), kp, mp)
    b_p = _pad2d(bias.reshape(-1, 1).astype(jnp.float32), coutp, 1)

    inputs = [w_p, a_p, b_p]
    in_specs = [
        pl.BlockSpec((coutp, kp), lambda i: (0, 0)),   # weights: VMEM-resident
        pl.BlockSpec((kp, tm), lambda i: (0, i)),
        pl.BlockSpec((coutp, 1), lambda i: (0, 0)),
    ]
    has_res = residual is not None
    if has_res:
        inputs.append(_pad2d(residual.astype(jnp.bfloat16), coutp, mp))
        in_specs.append(pl.BlockSpec((coutp, tm), lambda i: (0, i)))

    kernel = functools.partial(_gemm_epilogue_kernel, relu=relu, has_res=has_res)
    out = pl.pallas_call(
        kernel,
        out_shape=jax.ShapeDtypeStruct((coutp, mp), out_dtype),
        grid_spec=pltpu.PrefetchScalarGridSpec(
            num_scalar_prefetch=0,
            grid=(mp // tm,),
            in_specs=in_specs,
            out_specs=pl.BlockSpec((coutp, tm), lambda i: (0, i)),
        ),
        compiler_params=pltpu.CompilerParams(
            dimension_semantics=("parallel",)),
    )(*inputs)
    return out[:cout, :m]


# ----------------------------- conv glue (JAX) --------------------------------
def _im2col_t(x, k, stride, pad):
    """x: channel-major [C,N,D,H,W] -> A^T[K=C*ksp, M=N*Do*Ho*Wo] (no transpose).

    K ordering is (c, dz, dy, dx), matching w.reshape(Cout, Cin*kd*kh*kw).
    """
    kd, kh, kw = k
    sd, sh, sw = stride
    pd, ph, pw = pad
    c, n, d, h, w = x.shape
    if pd or ph or pw:
        x = jnp.pad(x, ((0, 0), (0, 0), (pd, pd), (ph, ph), (pw, pw)))
    do = (d + 2 * pd - kd) // sd + 1
    ho = (h + 2 * ph - kh) // sh + 1
    wo = (w + 2 * pw - kw) // sw + 1
    taps = []
    for dz in range(kd):
        for dy in range(kh):
            for dx in range(kw):
                taps.append(x[:, :,
                              dz:dz + do * sd:sd,
                              dy:dy + ho * sh:sh,
                              dx:dx + wo * sw:sw])
    a_t = taps[0] if len(taps) == 1 else jnp.stack(taps, axis=1)
    return a_t.reshape(c * kd * kh * kw, n * do * ho * wo), (n, do, ho, wo)


def conv3d_fused(x, w, scale, bias, *, stride, pad, relu=True, residual=None,
                 out_dtype=jnp.bfloat16):
    """Conv3d on channel-major x[C,N,D,H,W]; w:[Cout,Cin,kd,kh,kw].

    BN scale is folded into w; epilogue adds bias (+ ReLU) (+ residual).
    Returns channel-major [Cout, N, Do, Ho, Wo].
    """
    cout = w.shape[0]
    k = tuple(w.shape[2:])
    x = x.astype(jnp.bfloat16)
    a_t, (n, do, ho, wo) = _im2col_t(x, k, stride, pad)
    w2d = w.reshape(cout, -1) * scale[:, None]       # fold BN scale into weights
    res2d = residual.reshape(cout, -1) if residual is not None else None
    out = gemm_bn_act(w2d, a_t, bias, relu=relu, residual=res2d,
                      out_dtype=out_dtype)
    return out.reshape(cout, n, do, ho, wo)


def deconv3d_fused(x, wt, scale, bias, *, residual):
    """ConvTranspose3d(k=(1,3,3), s=(1,2,2), p=(0,1,1), op=(0,1,1)) + BN + ReLU
    (+ residual) via sub-pixel decomposition into 4 stride-1 convs.

    x: [Cin,N,D,H,W], residual: [Cout,N,D,2H,2W], wt: [Cin,Cout,1,3,3].
    """
    cout = wt.shape[1]
    _, n, d, h, w = x.shape
    wf = wt.transpose(1, 0, 2, 3, 4)                 # [Cout, Cin, 1, 3, 3]
    # output row 2i+a uses: a==0 -> tap ky=1 @ input i
    #                       a==1 -> tap ky=2 @ input i, tap ky=0 @ input i+1
    tap_sets = {0: [1], 1: [2, 0]}
    phases = []
    for a in (0, 1):
        for b in (0, 1):
            kys, kxs = tap_sets[a], tap_sets[b]
            wp = wf[:, :, :, kys, :][:, :, :, :, kxs]  # [Cout,Cin,1,|kys|,|kxs|]
            xp = x
            if a == 1 or b == 1:
                xp = jnp.pad(x, ((0, 0), (0, 0), (0, 0),
                                 (0, 1 if a == 1 else 0),
                                 (0, 1 if b == 1 else 0)))
            res_ab = residual[:, :, :, a::2, b::2]
            phases.append(conv3d_fused(xp, wp, scale, bias,
                                       stride=(1, 1, 1), pad=(0, 0, 0),
                                       relu=True, residual=res_ab))
    ph = jnp.stack(phases, 0).reshape(2, 2, cout, n, d, h, w)
    # interleave: out[c,n,d,2i+a,2j+b] = ph[a,b,c,n,d,i,j]
    return ph.transpose(2, 3, 4, 5, 0, 6, 1).reshape(cout, n, d, 2 * h, 2 * w)


# ----------------------------- parameters -------------------------------------
def _bn_scale_bias(c, eps=1e-5):
    # gamma=1, beta=0, running_mean=0, running_var=1 (PyTorch defaults)
    scale = jnp.ones((c,), jnp.float32) / jnp.sqrt(1.0 + eps)
    bias = jnp.zeros((c,), jnp.float32)
    return scale, bias


def init_params(key, input_channel, base_channel):
    bc = base_channel
    conv_defs = {
        "conv0": (bc, input_channel, (1, 3, 3)),
        "conv1": (2 * bc, bc, (1, 3, 3)),
        "conv2": (2 * bc, 2 * bc, (3, 3, 3)),
        "conv3": (4 * bc, 2 * bc, (1, 3, 3)),
        "conv4": (4 * bc, 4 * bc, (3, 3, 3)),
        "conv5": (8 * bc, 4 * bc, (1, 3, 3)),
        "conv6": (8 * bc, 8 * bc, (3, 3, 3)),
    }
    deconv_defs = {  # (in_channels, out_channels)
        "conv7": (8 * bc, 4 * bc),
        "conv9": (4 * bc, 2 * bc),
        "conv11": (2 * bc, bc),
    }
    params = {}
    keys = jax.random.split(key, len(conv_defs) + len(deconv_defs) + 2)
    ki = 0
    for name, (cout, cin, k) in conv_defs.items():
        fan_in = cin * k[0] * k[1] * k[2]
        w = jax.random.normal(keys[ki], (cout, cin) + k, jnp.float32)
        params[name] = {"w": w * (2.0 / fan_in) ** 0.5}
        params[name]["scale"], params[name]["bias"] = _bn_scale_bias(cout)
        ki += 1
    for name, (cin, cout) in deconv_defs.items():
        fan_in = cin * 9
        w = jax.random.normal(keys[ki], (cin, cout, 1, 3, 3), jnp.float32)
        params[name] = {"w": w * (2.0 / fan_in) ** 0.5}
        params[name]["scale"], params[name]["bias"] = _bn_scale_bias(cout)
        ki += 1
    # prob: Conv3d(bc, 1, kernel=1, bias=True)
    params["prob"] = {
        "w": jax.random.normal(keys[ki], (1, bc, 1, 1, 1), jnp.float32)
        * (2.0 / bc) ** 0.5,
        "b": jax.random.normal(keys[ki + 1], (1,), jnp.float32) * 0.01,
    }
    return params


# ----------------------------- forward -----------------------------------------
def reg2d_forward(x, p):
    # NCDHW -> channel-major [C,N,D,H,W] once; everything stays channel-major.
    x = jnp.transpose(x, (1, 0, 2, 3, 4))
    s1, s2 = (1, 1, 1), (1, 2, 2)
    p011, p111 = (0, 1, 1), (1, 1, 1)

    conv0 = conv3d_fused(x, p["conv0"]["w"], p["conv0"]["scale"],
                         p["conv0"]["bias"], stride=s1, pad=p011)
    c1 = conv3d_fused(conv0, p["conv1"]["w"], p["conv1"]["scale"],
                      p["conv1"]["bias"], stride=s2, pad=p011)
    conv2 = conv3d_fused(c1, p["conv2"]["w"], p["conv2"]["scale"],
                         p["conv2"]["bias"], stride=s1, pad=p111)
    c3 = conv3d_fused(conv2, p["conv3"]["w"], p["conv3"]["scale"],
                      p["conv3"]["bias"], stride=s2, pad=p011)
    conv4 = conv3d_fused(c3, p["conv4"]["w"], p["conv4"]["scale"],
                         p["conv4"]["bias"], stride=s1, pad=p111)
    c5 = conv3d_fused(conv4, p["conv5"]["w"], p["conv5"]["scale"],
                      p["conv5"]["bias"], stride=s2, pad=p011)
    x6 = conv3d_fused(c5, p["conv6"]["w"], p["conv6"]["scale"],
                      p["conv6"]["bias"], stride=s1, pad=p111)

    # decoder: x = skip + ReLU(BN(ConvTranspose(x)))   (residual fused in-kernel)
    x = deconv3d_fused(x6, p["conv7"]["w"], p["conv7"]["scale"],
                       p["conv7"]["bias"], residual=conv4)
    x = deconv3d_fused(x, p["conv9"]["w"], p["conv9"]["scale"],
                       p["conv9"]["bias"], residual=conv2)
    x = deconv3d_fused(x, p["conv11"]["w"], p["conv11"]["scale"],
                       p["conv11"]["bias"], residual=conv0)

    # prob: 1x1x1 conv with bias, no BN, no ReLU
    one = jnp.ones((1,), jnp.float32)
    x = conv3d_fused(x, p["prob"]["w"], one, p["prob"]["b"],
                     stride=s1, pad=(0, 0, 0), relu=False,
                     out_dtype=jnp.float32)
    return x[0]  # [1,N,D,H,W] -> [N,D,H,W]  (== squeeze(1))


if __name__ == "__main__":
    key = jax.random.PRNGKey(0)
    k_param, k_x = jax.random.split(key)

    # small shapes consistent with the module (3x spatial downsampling => H,W % 8 == 0)
    batch, input_channel, base_channel = 1, 16, 8
    depth, height, width = 4, 16, 16

    params = init_params(k_param, input_channel, base_channel)
    x = jax.random.normal(k_x, (batch, input_channel, depth, height, width),
                          jnp.float32)

    fwd = jax.jit(reg2d_forward)
    out = fwd(x, params)
    out = jax.block_until_ready(out)

    assert out.shape == (batch, depth, height, width), out.shape
    assert jnp.isfinite(out).all()
    print("KERNEL_OK")
</pallas_src>

<mosaic_0001>
module attributes {stable_mosaic.version = 11 : i64} {
  func.func @_gemm_epilogue_kernel(%arg0: i32, %arg1: memref<8x144xbf16, #tpu.memory_space<vmem>>, %arg2: memref<144x512xbf16, #tpu.memory_space<vmem>>, %arg3: memref<8x1xf32, #tpu.memory_space<vmem>>, %arg4: memref<8x512xbf16, #tpu.memory_space<vmem>>) attributes {dimension_semantics = [#tpu.dimension_semantics<parallel>], iteration_bounds = array<i64: 2>, scalar_prefetch = 0 : i64, scratch_operands = 0 : i64, tpu.core_type = #tpu.core_type<tc>, window_params = [{pipeline_mode = #tpu.pipeline_mode<synchronous>, transform_indices = @transform_0, window_bounds = array<i64: 8, 144>}, {transform_indices = @transform_1, window_bounds = array<i64: 144, 512>}, {pipeline_mode = #tpu.pipeline_mode<synchronous>, transform_indices = @transform_2, window_bounds = array<i64: 8, 1>}, {transform_indices = @transform_3, window_bounds = array<i64: 8, 512>}]} {
    %c0 = arith.constant 0 : index
    %c0_0 = arith.constant 0 : index
    %0 = vector.load %arg1[%c0, %c0_0] : memref<8x144xbf16, #tpu.memory_space<vmem>>, vector<8x144xbf16>
    %c0_1 = arith.constant 0 : index
    %c0_2 = arith.constant 0 : index
    %1 = vector.load %arg2[%c0_1, %c0_2] : memref<144x512xbf16, #tpu.memory_space<vmem>>, vector<144x512xbf16>
    %cst = arith.constant dense<0.000000e+00> : vector<8x512xf32>
    %2 = tpu.matmul %0, %1, %cst {dimension_numbers = #tpu.dot_dimension_numbers<[1], [0], [0], [1], [0, 0, 1, 1], [], []>} : vector<8x144xbf16>, vector<144x512xbf16>, vector<8x512xf32> -> vector<8x512xf32>
    %c0_3 = arith.constant 0 : index
    %c0_4 = arith.constant 0 : index
    %3 = vector.load %arg3[%c0_3, %c0_4] : memref<8x1xf32, #tpu.memory_space<vmem>>, vector<8x1xf32>
    %4 = vector.broadcast %3 : vector<8x1xf32> to vector<8x512xf32>
    %5 = arith.addf %2, %4 : vector<8x512xf32>
    %cst_5 = arith.constant 0.000000e+00 : f32
    %6 = vector.broadcast %cst_5 : f32 to vector<8x512xf32>
    %7 = arith.maximumf %5, %6 : vector<8x512xf32>
    %8 = arith.truncf %7 : vector<8x512xf32> to vector<8x512xbf16>
    %c0_6 = arith.constant 0 : index
    %c0_7 = arith.constant 0 : index
    %9 = vector.load %arg4[%c0_6, %c0_7] : memref<8x512xbf16, #tpu.memory_space<vmem>>, vector<8x512xbf16>
    tpu.vector_store %arg4[%c0_6, %c0_7], %8 {strides = array<i32>} : memref<8x512xbf16, #tpu.memory_space<vmem>>, vector<8x512xbf16>,
    return
  }
  func.func @transform_0(%arg0: i32) -> (i32, i32) {
    %c0_i32 = arith.constant 0 : i32
    %c0_i32_0 = arith.constant 0 : i32
    %c0_i32_1 = arith.constant 0 : i32
    return %c0_i32, %c0_i32_0 : i32, i32
  }
  func.func @transform_1(%arg0: i32) -> (i32, i32) {
    %c0_i32 = arith.constant 0 : i32
    %c0_i32_0 = arith.constant 0 : i32
    return %c0_i32, %arg0 : i32, i32
  }
  func.func @transform_2(%arg0: i32) -> (i32, i32) {
    %c0_i32 = arith.constant 0 : i32
    %c0_i32_0 = arith.constant 0 : i32
    %c0_i32_1 = arith.constant 0 : i32
    return %c0_i32, %c0_i32_0 : i32, i32
  }
  func.func @transform_3(%arg0: i32) -> (i32, i32) {
    %c0_i32 = arith.constant 0 : i32
    %c0_i32_0 = arith.constant 0 : i32
    return %c0_i32, %arg0 : i32, i32
  }
}

module attributes {stable_mosaic.version = 11 : i64} {
  func.func @_gemm_epilogue_kernel(%arg0: i32, %arg1: memref<16x72xbf16, #tpu.memory_space<vmem>>, %arg2: memref<72x128xbf16, #tpu.memory_space<vmem>>, %arg3: memref<16x1xf32, #tpu.memory_space<vmem>>, %arg4: memref<16x128xbf16, #tpu.memory_space<vmem>>) attributes {dimension_semantics = [#tpu.dimension_semantics<parallel>], iteration_bounds = array<i64: 2>, scalar_prefetch = 0 : i64, scratch_operands = 0 : i64, tpu.core_type = #tpu.core_type<tc>, window_params = [{pipeline_mode = #tpu.pipeline_mode<synchronous>, transform_indices = @transform_0, window_bounds = array<i64: 16, 72>}, {transform_indices = @transform_1, window_bounds = array<i64: 72, 128>}, {pipeline_mode = #tpu.pipeline_mode<synchronous>, transform_indices = @transform_2, window_bounds = array<i64: 16, 1>}, {transform_indices = @transform_3, window_bounds = array<i64: 16, 128>}]} {
    %c0 = arith.constant 0 : index
    %c0_0 = arith.constant 0 : index
    %0 = vector.load %arg1[%c0, %c0_0] : memref<16x72xbf16, #tpu.memory_space<vmem>>, vector<16x72xbf16>
    %c0_1 = arith.constant 0 : index
    %c0_2 = arith.constant 0 : index
    %1 = vector.load %arg2[%c0_1, %c0_2] : memref<72x128xbf16, #tpu.memory_space<vmem>>, vector<72x128xbf16>
    %cst = arith.constant dense<0.000000e+00> : vector<16x128xf32>
    %2 = tpu.matmul %0, %1, %cst {dimension_numbers = #tpu.dot_dimension_numbers<[1], [0], [0], [1], [0, 0, 1, 1], [], []>} : vector<16x72xbf16>, vector<72x128xbf16>, vector<16x128xf32> -> vector<16x128xf32>
    %c0_3 = arith.constant 0 : index
    %c0_4 = arith.constant 0 : index
    %3 = vector.load %arg3[%c0_3, %c0_4] : memref<16x1xf32, #tpu.memory_space<vmem>>, vector<16x1xf32>
    %4 = vector.broadcast %3 : vector<16x1xf32> to vector<16x128xf32>
    %5 = arith.addf %2, %4 : vector<16x128xf32>
    %cst_5 = arith.constant 0.000000e+00 : f32
    %6 = vector.broadcast %cst_5 : f32 to vector<16x128xf32>
    %7 = arith.maximumf %5, %6 : vector<16x128xf32>
    %8 = arith.truncf %7 : vector<16x128xf32> to vector<16x128xbf16>
    %c0_6 = arith.constant 0 : index
    %c0_7 = arith.constant 0 : index
    %9 = vector.load %arg4[%c0_6, %c0_7] : memref<16x128xbf16, #tpu.memory_space<vmem>>, vector<16x128xbf16>
    tpu.vector_store %arg4[%c0_6, %c0_7], %8 {strides = array<i32>} : memref<16x128xbf16, #tpu.memory_space<vmem>>, vector<16x128xbf16>,
    return
  }
  func.func @transform_0(%arg0: i32) -> (i32, i32) {
    %c0_i32 = arith.constant 0 : i32
    %c0_i32_0 = arith.constant 0 : i32
    %c0_i32_1 = arith.constant 0 : i32
    return %c0_i32, %c0_i32_0 : i32, i32
  }
  func.func @transform_1(%arg0: i32) -> (i32, i32) {
    %c0_i32 = arith.constant 0 : i32
    %c0_i32_0 = arith.constant 0 : i32
    return %c0_i32, %arg0 : i32, i32
  }
  func.func @transform_2(%arg0: i32) -> (i32, i32) {
    %c0_i32 = arith.constant 0 : i32
    %c0_i32_0 = arith.constant 0 : i32
    %c0_i32_1 = arith.constant 0 : i32
    return %c0_i32, %c0_i32_0 : i32, i32
  }
  func.func @transform_3(%arg0: i32) -> (i32, i32) {
    %c0_i32 = arith.constant 0 : i32
    %c0_i32_0 = arith.constant 0 : i32
    return %c0_i32, %arg0 : i32, i32
  }
}

module attributes {stable_mosaic.version = 11 : i64} {
  func.func @_gemm_epilogue_kernel(%arg0: i32, %arg1: memref<16x432xbf16, #tpu.memory_space<vmem>>, %arg2: memref<432x128xbf16, #tpu.memory_space<vmem>>, %arg3: memref<16x1xf32, #tpu.memory_space<vmem>>, %arg4: memref<16x128xbf16, #tpu.memory_space<vmem>>) attributes {dimension_semantics = [#tpu.dimension_semantics<parallel>], iteration_bounds = array<i64: 2>, scalar_prefetch = 0 : i64, scratch_operands = 0 : i64, tpu.core_type = #tpu.core_type<tc>, window_params = [{pipeline_mode = #tpu.pipeline_mode<synchronous>, transform_indices = @transform_0, window_bounds = array<i64: 16, 432>}, {transform_indices = @transform_1, window_bounds = array<i64: 432, 128>}, {pipeline_mode = #tpu.pipeline_mode<synchronous>, transform_indices = @transform_2, window_bounds = array<i64: 16, 1>}, {transform_indices = @transform_3, window_bounds = array<i64: 16, 128>}]} {
    %c0 = arith.constant 0 : index
    %c0_0 = arith.constant 0 : index
    %0 = vector.load %arg1[%c0, %c0_0] : memref<16x432xbf16, #tpu.memory_space<vmem>>, vector<16x432xbf16>
    %c0_1 = arith.constant 0 : index
    %c0_2 = arith.constant 0 : index
    %1 = vector.load %arg2[%c0_1, %c0_2] : memref<432x128xbf16, #tpu.memory_space<vmem>>, vector<432x128xbf16>
    %cst = arith.constant dense<0.000000e+00> : vector<16x128xf32>
    %2 = tpu.matmul %0, %1, %cst {dimension_numbers = #tpu.dot_dimension_numbers<[1], [0], [0], [1], [0, 0, 1, 1], [], []>} : vector<16x432xbf16>, vector<432x128xbf16>, vector<16x128xf32> -> vector<16x128xf32>
    %c0_3 = arith.constant 0 : index
    %c0_4 = arith.constant 0 : index
    %3 = vector.load %arg3[%c0_3, %c0_4] : memref<16x1xf32, #tpu.memory_space<vmem>>, vector<16x1xf32>
    %4 = vector.broadcast %3 : vector<16x1xf32> to vector<16x128xf32>
    %5 = arith.addf %2, %4 : vector<16x128xf32>
    %cst_5 = arith.constant 0.000000e+00 : f32
    %6 = vector.broadcast %cst_5 : f32 to vector<16x128xf32>
    %7 = arith.maximumf %5, %6 : vector<16x128xf32>
    %8 = arith.truncf %7 : vector<16x128xf32> to vector<16x128xbf16>
    %c0_6 = arith.constant 0 : index
    %c0_7 = arith.constant 0 : index
    %9 = vector.load %arg4[%c0_6, %c0_7] : memref<16x128xbf16, #tpu.memory_space<vmem>>, vector<16x128xbf16>
    tpu.vector_store %arg4[%c0_6, %c0_7], %8 {strides = array<i32>} : memref<16x128xbf16, #tpu.memory_space<vmem>>, vector<16x128xbf16>,
    return
  }
  func.func @transform_0(%arg0: i32) -> (i32, i32) {
    %c0_i32 = arith.constant 0 : i32
    %c0_i32_0 = arith.constant 0 : i32
    %c0_i32_1 = arith.constant 0 : i32
    return %c0_i32, %c0_i32_0 : i32, i32
  }
  func.func @transform_1(%arg0: i32) -> (i32, i32) {
    %c0_i32 = arith.constant 0 : i32
    %c0_i32_0 = arith.constant 0 : i32
    return %c0_i32, %arg0 : i32, i32
  }
  func.func @transform_2(%arg0: i32) -> (i32, i32) {
    %c0_i32 = arith.constant 0 : i32
    %c0_i32_0 = arith.constant 0 : i32
    %c0_i32_1 = arith.constant 0 : i32
    return %c0_i32, %c0_i32_0 : i32, i32
  }
  func.func @transform_3(%arg0: i32) -> (i32, i32) {
    %c0_i32 = arith.constant 0 : i32
    %c0_i32_0 = arith.constant 0 : i32
    return %c0_i32, %arg0 : i32, i32
  }
}

module attributes {stable_mosaic.version = 11 : i64} {
  func.func @_gemm_epilogue_kernel(%arg0: i32, %arg1: memref<32x144xbf16, #tpu.memory_space<vmem>>, %arg2: memref<144x128xbf16, #tpu.memory_space<vmem>>, %arg3: memref<32x1xf32, #tpu.memory_space<vmem>>, %arg4: memref<32x128xbf16, #tpu.memory_space<vmem>>) attributes {dimension_semantics = [#tpu.dimension_semantics<parallel>], iteration_bounds = array<i64: 1>, scalar_prefetch = 0 : i64, scratch_operands = 0 : i64, tpu.core_type = #tpu.core_type<tc>, window_params = [{pipeline_mode = #tpu.pipeline_mode<synchronous>, transform_indices = @transform_0, window_bounds = array<i64: 32, 144>}, {transform_indices = @transform_1, window_bounds = array<i64: 144, 128>}, {pipeline_mode = #tpu.pipeline_mode<synchronous>, transform_indices = @transform_2, window_bounds = array<i64: 32, 1>}, {transform_indices = @transform_3, window_bounds = array<i64: 32, 128>}]} {
    %c0 = arith.constant 0 : index
    %c0_0 = arith.constant 0 : index
    %0 = vector.load %arg1[%c0, %c0_0] : memref<32x144xbf16, #tpu.memory_space<vmem>>, vector<32x144xbf16>
    %c0_1 = arith.constant 0 : index
    %c0_2 = arith.constant 0 : index
    %1 = vector.load %arg2[%c0_1, %c0_2] : memref<144x128xbf16, #tpu.memory_space<vmem>>, vector<144x128xbf16>
    %cst = arith.constant dense<0.000000e+00> : vector<32x128xf32>
    %2 = tpu.matmul %0, %1, %cst {dimension_numbers = #tpu.dot_dimension_numbers<[1], [0], [0], [1], [0, 0, 1, 1], [], []>} : vector<32x144xbf16>, vector<144x128xbf16>, vector<32x128xf32> -> vector<32x128xf32>
    %c0_3 = arith.constant 0 : index
    %c0_4 = arith.constant 0 : index
    %3 = vector.load %arg3[%c0_3, %c0_4] : memref<32x1xf32, #tpu.memory_space<vmem>>, vector<32x1xf32>
    %4 = vector.broadcast %3 : vector<32x1xf32> to vector<32x128xf32>
    %5 = arith.addf %2, %4 : vector<32x128xf32>
    %cst_5 = arith.constant 0.000000e+00 : f32
    %6 = vector.broadcast %cst_5 : f32 to vector<32x128xf32>
    %7 = arith.maximumf %5, %6 : vector<32x128xf32>
    %8 = arith.truncf %7 : vector<32x128xf32> to vector<32x128xbf16>
    %c0_6 = arith.constant 0 : index
    %c0_7 = arith.constant 0 : index
    %9 = vector.load %arg4[%c0_6, %c0_7] : memref<32x128xbf16, #tpu.memory_space<vmem>>, vector<32x128xbf16>
    tpu.vector_store %arg4[%c0_6, %c0_7], %8 {strides = array<i32>} : memref<32x128xbf16, #tpu.memory_space<vmem>>, vector<32x128xbf16>,
    return
  }
  func.func @transform_0(%arg0: i32) -> (i32, i32) {
    %c0_i32 = arith.constant 0 : i32
    %c0_i32_0 = arith.constant 0 : i32
    %c0_i32_1 = arith.constant 0 : i32
    return %c0_i32, %c0_i32_0 : i32, i32
  }
  func.func @transform_1(%arg0: i32) -> (i32, i32) {
    %c0_i32 = arith.constant 0 : i32
    %c0_i32_0 = arith.constant 0 : i32
    return %c0_i32, %arg0 : i32, i32
  }
  func.func @transform_2(%arg0: i32) -> (i32, i32) {
    %c0_i32 = arith.constant 0 : i32
    %c0_i32_0 = arith.constant 0 : i32
    %c0_i32_1 = arith.constant 0 : i32
    return %c0_i32, %c0_i32_0 : i32, i32
  }
  func.func @transform_3(%arg0: i32) -> (i32, i32) {
    %c0_i32 = arith.constant 0 : i32
    %c0_i32_0 = arith.constant 0 : i32
    return %c0_i32, %arg0 : i32, i32
  }
}

module attributes {stable_mosaic.version = 11 : i64} {
  func.func @_gemm_epilogue_kernel(%arg0: i32, %arg1: memref<32x864xbf16, #tpu.memory_space<vmem>>, %arg2: memref<864x128xbf16, #tpu.memory_space<vmem>>, %arg3: memref<32x1xf32, #tpu.memory_space<vmem>>, %arg4: memref<32x128xbf16, #tpu.memory_space<vmem>>) attributes {dimension_semantics = [#tpu.dimension_semantics<parallel>], iteration_bounds = array<i64: 1>, scalar_prefetch = 0 : i64, scratch_operands = 0 : i64, tpu.core_type = #tpu.core_type<tc>, window_params = [{pipeline_mode = #tpu.pipeline_mode<synchronous>, transform_indices = @transform_0, window_bounds = array<i64: 32, 864>}, {transform_indices = @transform_1, window_bounds = array<i64: 864, 128>}, {pipeline_mode = #tpu.pipeline_mode<synchronous>, transform_indices = @transform_2, window_bounds = array<i64: 32, 1>}, {transform_indices = @transform_3, window_bounds = array<i64: 32, 128>}]} {
    %c0 = arith.constant 0 : index
    %c0_0 = arith.constant 0 : index
    %0 = vector.load %arg1[%c0, %c0_0] : memref<32x864xbf16, #tpu.memory_space<vmem>>, vector<32x864xbf16>
    %c0_1 = arith.constant 0 : index
    %c0_2 = arith.constant 0 : index
    %1 = vector.load %arg2[%c0_1, %c0_2] : memref<864x128xbf16, #tpu.memory_space<vmem>>, vector<864x128xbf16>
    %cst = arith.constant dense<0.000000e+00> : vector<32x128xf32>
    %2 = tpu.matmul %0, %1, %cst {dimension_numbers = #tpu.dot_dimension_numbers<[1], [0], [0], [1], [0, 0, 1, 1], [], []>} : vector<32x864xbf16>, vector<864x128xbf16>, vector<32x128xf32> -> vector<32x128xf32>
    %c0_3 = arith.constant 0 : index
    %c0_4 = arith.constant 0 : index
    %3 = vector.load %arg3[%c0_3, %c0_4] : memref<32x1xf32, #tpu.memory_space<vmem>>, vector<32x1xf32>
    %4 = vector.broadcast %3 : vector<32x1xf32> to vector<32x128xf32>
    %5 = arith.addf %2, %4 : vector<32x128xf32>
    %cst_5 = arith.constant 0.000000e+00 : f32
    %6 = vector.broadcast %cst_5 : f32 to vector<32x128xf32>
    %7 = arith.maximumf %5, %6 : vector<32x128xf32>
    %8 = arith.truncf %7 : vector<32x128xf32> to vector<32x128xbf16>
    %c0_6 = arith.constant 0 : index
    %c0_7 = arith.constant 0 : index
    %9 = vector.load %arg4[%c0_6, %c0_7] : memref<32x128xbf16, #tpu.memory_space<vmem>>, vector<32x128xbf16>
    tpu.vector_store %arg4[%c0_6, %c0_7], %8 {strides = array<i32>} : memref<32x128xbf16, #tpu.memory_space<vmem>>, vector<32x128xbf16>,
    return
  }
  func.func @transform_0(%arg0: i32) -> (i32, i32) {
    %c0_i32 = arith.constant 0 : i32
    %c0_i32_0 = arith.constant 0 : i32
    %c0_i32_1 = arith.constant 0 : i32
    return %c0_i32, %c0_i32_0 : i32, i32
  }
  func.func @transform_1(%arg0: i32) -> (i32, i32) {
    %c0_i32 = arith.constant 0 : i32
    %c0_i32_0 = arith.constant 0 : i32
    return %c0_i32, %arg0 : i32, i32
  }
  func.func @transform_2(%arg0: i32) -> (i32, i32) {
    %c0_i32 = arith.constant 0 : i32
    %c0_i32_0 = arith.constant 0 : i32
    %c0_i32_1 = arith.constant 0 : i32
    return %c0_i32, %c0_i32_0 : i32, i32
  }
  func.func @transform_3(%arg0: i32) -> (i32, i32) {
    %c0_i32 = arith.constant 0 : i32
    %c0_i32_0 = arith.constant 0 : i32
    return %c0_i32, %arg0 : i32, i32
  }
}

module attributes {stable_mosaic.version = 11 : i64} {
  func.func @_gemm_epilogue_kernel(%arg0: i32, %arg1: memref<64x288xbf16, #tpu.memory_space<vmem>>, %arg2: memref<288x128xbf16, #tpu.memory_space<vmem>>, %arg3: memref<64x1xf32, #tpu.memory_space<vmem>>, %arg4: memref<64x128xbf16, #tpu.memory_space<vmem>>) attributes {dimension_semantics = [#tpu.dimension_semantics<parallel>], iteration_bounds = array<i64: 1>, scalar_prefetch = 0 : i64, scratch_operands = 0 : i64, tpu.core_type = #tpu.core_type<tc>, window_params = [{pipeline_mode = #tpu.pipeline_mode<synchronous>, transform_indices = @transform_0, window_bounds = array<i64: 64, 288>}, {transform_indices = @transform_1, window_bounds = array<i64: 288, 128>}, {pipeline_mode = #tpu.pipeline_mode<synchronous>, transform_indices = @transform_2, window_bounds = array<i64: 64, 1>}, {transform_indices = @transform_3, window_bounds = array<i64: 64, 128>}]} {
    %c0 = arith.constant 0 : index
    %c0_0 = arith.constant 0 : index
    %0 = vector.load %arg1[%c0, %c0_0] : memref<64x288xbf16, #tpu.memory_space<vmem>>, vector<64x288xbf16>
    %c0_1 = arith.constant 0 : index
    %c0_2 = arith.constant 0 : index
    %1 = vector.load %arg2[%c0_1, %c0_2] : memref<288x128xbf16, #tpu.memory_space<vmem>>, vector<288x128xbf16>
    %cst = arith.constant dense<0.000000e+00> : vector<64x128xf32>
    %2 = tpu.matmul %0, %1, %cst {dimension_numbers = #tpu.dot_dimension_numbers<[1], [0], [0], [1], [0, 0, 1, 1], [], []>} : vector<64x288xbf16>, vector<288x128xbf16>, vector<64x128xf32> -> vector<64x128xf32>
    %c0_3 = arith.constant 0 : index
    %c0_4 = arith.constant 0 : index
    %3 = vector.load %arg3[%c0_3, %c0_4] : memref<64x1xf32, #tpu.memory_space<vmem>>, vector<64x1xf32>
    %4 = vector.broadcast %3 : vector<64x1xf32> to vector<64x128xf32>
    %5 = arith.addf %2, %4 : vector<64x128xf32>
    %cst_5 = arith.constant 0.000000e+00 : f32
    %6 = vector.broadcast %cst_5 : f32 to vector<64x128xf32>
    %7 = arith.maximumf %5, %6 : vector<64x128xf32>
    %8 = arith.truncf %7 : vector<64x128xf32> to vector<64x128xbf16>
    %c0_6 = arith.constant 0 : index
    %c0_7 = arith.constant 0 : index
    %9 = vector.load %arg4[%c0_6, %c0_7] : memref<64x128xbf16, #tpu.memory_space<vmem>>, vector<64x128xbf16>
    tpu.vector_store %arg4[%c0_6, %c0_7], %8 {strides = array<i32>} : memref<64x128xbf16, #tpu.memory_space<vmem>>, vector<64x128xbf16>,
    return
  }
  func.func @transform_0(%arg0: i32) -> (i32, i32) {
    %c0_i32 = arith.constant 0 : i32
    %c0_i32_0 = arith.constant 0 : i32
    %c0_i32_1 = arith.constant 0 : i32
    return %c0_i32, %c0_i32_0 : i32, i32
  }
  func.func @transform_1(%arg0: i32) -> (i32, i32) {
    %c0_i32 = arith.constant 0 : i32
    %c0_i32_0 = arith.constant 0 : i32
    return %c0_i32, %arg0 : i32, i32
  }
  func.func @transform_2(%arg0: i32) -> (i32, i32) {
    %c0_i32 = arith.constant 0 : i32
    %c0_i32_0 = arith.constant 0 : i32
    %c0_i32_1 = arith.constant 0 : i32
    return %c0_i32, %c0_i32_0 : i32, i32
  }
  func.func @transform_3(%arg0: i32) -> (i32, i32) {
    %c0_i32 = arith.constant 0 : i32
    %c0_i32_0 = arith.constant 0 : i32
    return %c0_i32, %arg0 : i32, i32
  }
}

module attributes {stable_mosaic.version = 11 : i64} {
  func.func @_gemm_epilogue_kernel(%arg0: i32, %arg1: memref<64x1728xbf16, #tpu.memory_space<vmem>>, %arg2: memref<1728x128xbf16, #tpu.memory_space<vmem>>, %arg3: memref<64x1xf32, #tpu.memory_space<vmem>>, %arg4: memref<64x128xbf16, #tpu.memory_space<vmem>>) attributes {dimension_semantics = [#tpu.dimension_semantics<parallel>], iteration_bounds = array<i64: 1>, scalar_prefetch = 0 : i64, scratch_operands = 0 : i64, tpu.core_type = #tpu.core_type<tc>, window_params = [{pipeline_mode = #tpu.pipeline_mode<synchronous>, transform_indices = @transform_0, window_bounds = array<i64: 64, 1728>}, {transform_indices = @transform_1, window_bounds = array<i64: 1728, 128>}, {pipeline_mode = #tpu.pipeline_mode<synchronous>, transform_indices = @transform_2, window_bounds = array<i64: 64, 1>}, {transform_indices = @transform_3, window_bounds = array<i64: 64, 128>}]} {
    %c0 = arith.constant 0 : index
    %c0_0 = arith.constant 0 : index
    %0 = vector.load %arg1[%c0, %c0_0] : memref<64x1728xbf16, #tpu.memory_space<vmem>>, vector<64x1728xbf16>
    %c0_1 = arith.constant 0 : index
    %c0_2 = arith.constant 0 : index
    %1 = vector.load %arg2[%c0_1, %c0_2] : memref<1728x128xbf16, #tpu.memory_space<vmem>>, vector<1728x128xbf16>
    %cst = arith.constant dense<0.000000e+00> : vector<64x128xf32>
    %2 = tpu.matmul %0, %1, %cst {dimension_numbers = #tpu.dot_dimension_numbers<[1], [0], [0], [1], [0, 0, 1, 1], [], []>} : vector<64x1728xbf16>, vector<1728x128xbf16>, vector<64x128xf32> -> vector<64x128xf32>
    %c0_3 = arith.constant 0 : index
    %c0_4 = arith.constant 0 : index
    %3 = vector.load %arg3[%c0_3, %c0_4] : memref<64x1xf32, #tpu.memory_space<vmem>>, vector<64x1xf32>
    %4 = vector.broadcast %3 : vector<64x1xf32> to vector<64x128xf32>
    %5 = arith.addf %2, %4 : vector<64x128xf32>
    %cst_5 = arith.constant 0.000000e+00 : f32
    %6 = vector.broadcast %cst_5 : f32 to vector<64x128xf32>
    %7 = arith.maximumf %5, %6 : vector<64x128xf32>
    %8 = arith.truncf %7 : vector<64x128xf32> to vector<64x128xbf16>
    %c0_6 = arith.constant 0 : index
    %c0_7 = arith.constant 0 : index
    %9 = vector.load %arg4[%c0_6, %c0_7] : memref<64x128xbf16, #tpu.memory_space<vmem>>, vector<64x128xbf16>
    tpu.vector_store %arg4[%c0_6, %c0_7], %8 {strides = array<i32>} : memref<64x128xbf16, #tpu.memory_space<vmem>>, vector<64x128xbf16>,
    return
  }
  func.func @transform_0(%arg0: i32) -> (i32, i32) {
    %c0_i32 = arith.constant 0 : i32
    %c0_i32_0 = arith.constant 0 : i32
    %c0_i32_1 = arith.constant 0 : i32
    return %c0_i32, %c0_i32_0 : i32, i32
  }
  func.func @transform_1(%arg0: i32) -> (i32, i32) {
    %c0_i32 = arith.constant 0 : i32
    %c0_i32_0 = arith.constant 0 : i32
    return %c0_i32, %arg0 : i32, i32
  }
  func.func @transform_2(%arg0: i32) -> (i32, i32) {
    %c0_i32 = arith.constant 0 : i32
    %c0_i32_0 = arith.constant 0 : i32
    %c0_i32_1 = arith.constant 0 : i32
    return %c0_i32, %c0_i32_0 : i32, i32
  }
  func.func @transform_3(%arg0: i32) -> (i32, i32) {
    %c0_i32 = arith.constant 0 : i32
    %c0_i32_0 = arith.constant 0 : i32
    return %c0_i32, %arg0 : i32, i32
  }
}

module attributes {stable_mosaic.version = 11 : i64} {
  func.func @_gemm_epilogue_kernel(%arg0: i32, %arg1: memref<32x64xbf16, #tpu.memory_space<vmem>>, %arg2: memref<64x128xbf16, #tpu.memory_space<vmem>>, %arg3: memref<32x1xf32, #tpu.memory_space<vmem>>, %arg4: memref<32x128xbf16, #tpu.memory_space<vmem>>, %arg5: memref<32x128xbf16, #tpu.memory_space<vmem>>) attributes {dimension_semantics = [#tpu.dimension_semantics<parallel>], iteration_bounds = array<i64: 1>, scalar_prefetch = 0 : i64, scratch_operands = 0 : i64, tpu.core_type = #tpu.core_type<tc>, window_params = [{pipeline_mode = #tpu.pipeline_mode<synchronous>, transform_indices = @transform_0, window_bounds = array<i64: 32, 64>}, {transform_indices = @transform_1, window_bounds = array<i64: 64, 128>}, {pipeline_mode = #tpu.pipeline_mode<synchronous>, transform_indices = @transform_2, window_bounds = array<i64: 32, 1>}, {transform_indices = @transform_3, window_bounds = array<i64: 32, 128>}, {transform_indices = @transform_4, window_bounds = array<i64: 32, 128>}]} {
    %c0 = arith.constant 0 : index
    %c0_0 = arith.constant 0 : index
    %0 = vector.load %arg1[%c0, %c0_0] : memref<32x64xbf16, #tpu.memory_space<vmem>>, vector<32x64xbf16>
    %c0_1 = arith.constant 0 : index
    %c0_2 = arith.constant 0 : index
    %1 = vector.load %arg2[%c0_1, %c0_2] : memref<64x128xbf16, #tpu.memory_space<vmem>>, vector<64x128xbf16>
    %cst = arith.constant dense<0.000000e+00> : vector<32x128xf32>
    %2 = tpu.matmul %0, %1, %cst {dimension_numbers = #tpu.dot_dimension_numbers<[1], [0], [0], [1], [0, 0, 1, 1], [], []>} : vector<32x64xbf16>, vector<64x128xbf16>, vector<32x128xf32> -> vector<32x128xf32>
    %c0_3 = arith.constant 0 : index
    %c0_4 = arith.constant 0 : index
    %3 = vector.load %arg3[%c0_3, %c0_4] : memref<32x1xf32, #tpu.memory_space<vmem>>, vector<32x1xf32>
    %4 = vector.broadcast %3 : vector<32x1xf32> to vector<32x128xf32>
    %5 = arith.addf %2, %4 : vector<32x128xf32>
    %cst_5 = arith.constant 0.000000e+00 : f32
    %6 = vector.broadcast %cst_5 : f32 to vector<32x128xf32>
    %7 = arith.maximumf %5, %6 : vector<32x128xf32>
    %c0_6 = arith.constant 0 : index
    %c0_7 = arith.constant 0 : index
    %8 = vector.load %arg4[%c0_6, %c0_7] : memref<32x128xbf16, #tpu.memory_space<vmem>>, vector<32x128xbf16>
    %9 = arith.extf %8 : vector<32x128xbf16> to vector<32x128xf32>
    %10 = arith.addf %7, %9 : vector<32x128xf32>
    %11 = arith.truncf %10 : vector<32x128xf32> to vector<32x128xbf16>
    %c0_8 = arith.constant 0 : index
    %c0_9 = arith.constant 0 : index
    %12 = vector.load %arg5[%c0_8, %c0_9] : memref<32x128xbf16, #tpu.memory_space<vmem>>, vector<32x128xbf16>
    tpu.vector_store %arg5[%c0_8, %c0_9], %11 {strides = array<i32>} : memref<32x128xbf16, #tpu.memory_space<vmem>>, vector<32x128xbf16>,
    return
  }
  func.func @transform_0(%arg0: i32) -> (i32, i32) {
    %c0_i32 = arith.constant 0 : i32
    %c0_i32_0 = arith.constant 0 : i32
    %c0_i32_1 = arith.constant 0 : i32
    return %c0_i32, %c0_i32_0 : i32, i32
  }
  func.func @transform_1(%arg0: i32) -> (i32, i32) {
    %c0_i32 = arith.constant 0 : i32
    %c0_i32_0 = arith.constant 0 : i32
    return %c0_i32, %arg0 : i32, i32
  }
  func.func @transform_2(%arg0: i32) -> (i32, i32) {
    %c0_i32 = arith.constant 0 : i32
    %c0_i32_0 = arith.constant 0 : i32
    %c0_i32_1 = arith.constant 0 : i32
    return %c0_i32, %c0_i32_0 : i32, i32
  }
  func.func @transform_3(%arg0: i32) -> (i32, i32) {
    %c0_i32 = arith.constant 0 : i32
    %c0_i32_0 = arith.constant 0 : i32
    return %c0_i32, %arg0 : i32, i32
  }
  func.func @transform_4(%arg0: i32) -> (i32, i32) {
    %c0_i32 = arith.constant 0 : i32
    %c0_i32_0 = arith.constant 0 : i32
    return %c0_i32, %arg0 : i32, i32
  }
}

module attributes {stable_mosaic.version = 11 : i64} {
  func.func @_gemm_epilogue_kernel(%arg0: i32, %arg1: memref<32x128xbf16, #tpu.memory_space<vmem>>, %arg2: memref<128x128xbf16, #tpu.memory_space<vmem>>, %arg3: memref<32x1xf32, #tpu.memory_space<vmem>>, %arg4: memref<32x128xbf16, #tpu.memory_space<vmem>>, %arg5: memref<32x128xbf16, #tpu.memory_space<vmem>>) attributes {dimension_semantics = [#tpu.dimension_semantics<parallel>], iteration_bounds = array<i64: 1>, scalar_prefetch = 0 : i64, scratch_operands = 0 : i64, tpu.core_type = #tpu.core_type<tc>, window_params = [{pipeline_mode = #tpu.pipeline_mode<synchronous>, transform_indices = @transform_0, window_bounds = array<i64: 32, 128>}, {transform_indices = @transform_1, window_bounds = array<i64: 128, 128>}, {pipeline_mode = #tpu.pipeline_mode<synchronous>, transform_indices = @transform_2, window_bounds = array<i64: 32, 1>}, {transform_indices = @transform_3, window_bounds = array<i64: 32, 128>}, {transform_indices = @transform_4, window_bounds = array<i64: 32, 128>}]} {
    %c0 = arith.constant 0 : index
    %c0_0 = arith.constant 0 : index
    %0 = vector.load %arg1[%c0, %c0_0] : memref<32x128xbf16, #tpu.memory_space<vmem>>, vector<32x128xbf16>
    %c0_1 = arith.constant 0 : index
    %c0_2 = arith.constant 0 : index
    %1 = vector.load %arg2[%c0_1, %c0_2] : memref<128x128xbf16, #tpu.memory_space<vmem>>, vector<128x128xbf16>
    %cst = arith.constant dense<0.000000e+00> : vector<32x128xf32>
    %2 = tpu.matmul %0, %1, %cst {dimension_numbers = #tpu.dot_dimension_numbers<[1], [0], [0], [1], [0, 0, 1, 1], [], []>} : vector<32x128xbf16>, vector<128x128xbf16>, vector<32x128xf32> -> vector<32x128xf32>
    %c0_3 = arith.constant 0 : index
    %c0_4 = arith.constant 0 : index
    %3 = vector.load %arg3[%c0_3, %c0_4] : memref<32x1xf32, #tpu.memory_space<vmem>>, vector<32x1xf32>
    %4 = vector.broadcast %3 : vector<32x1xf32> to vector<32x128xf32>
    %5 = arith.addf %2, %4 : vector<32x128xf32>
    %cst_5 = arith.constant 0.000000e+00 : f32
    %6 = vector.broadcast %cst_5 : f32 to vector<32x128xf32>
    %7 = arith.maximumf %5, %6 : vector<32x128xf32>
    %c0_6 = arith.constant 0 : index
    %c0_7 = arith.constant 0 : index
    %8 = vector.load %arg4[%c0_6, %c0_7] : memref<32x128xbf16, #tpu.memory_space<vmem>>, vector<32x128xbf16>
    %9 = arith.extf %8 : vector<32x128xbf16> to vector<32x128xf32>
    %10 = arith.addf %7, %9 : vector<32x128xf32>
    %11 = arith.truncf %10 : vector<32x128xf32> to vector<32x128xbf16>
    %c0_8 = arith.constant 0 : index
    %c0_9 = arith.constant 0 : index
    %12 = vector.load %arg5[%c0_8, %c0_9] : memref<32x128xbf16, #tpu.memory_space<vmem>>, vector<32x128xbf16>
    tpu.vector_store %arg5[%c0_8, %c0_9], %11 {strides = array<i32>} : memref<32x128xbf16, #tpu.memory_space<vmem>>, vector<32x128xbf16>,
    return
  }
  func.func @transform_0(%arg0: i32) -> (i32, i32) {
    %c0_i32 = arith.constant 0 : i32
    %c0_i32_0 = arith.constant 0 : i32
    %c0_i32_1 = arith.constant 0 : i32
    return %c0_i32, %c0_i32_0 : i32, i32
  }
  func.func @transform_1(%arg0: i32) -> (i32, i32) {
    %c0_i32 = arith.constant 0 : i32
    %c0_i32_0 = arith.constant 0 : i32
    return %c0_i32, %arg0 : i32, i32
  }
  func.func @transform_2(%arg0: i32) -> (i32, i32) {
    %c0_i32 = arith.constant 0 : i32
    %c0_i32_0 = arith.constant 0 : i32
    %c0_i32_1 = arith.constant 0 : i32
    return %c0_i32, %c0_i32_0 : i32, i32
  }
  func.func @transform_3(%arg0: i32) -> (i32, i32) {
    %c0_i32 = arith.constant 0 : i32
    %c0_i32_0 = arith.constant 0 : i32
    return %c0_i32, %arg0 : i32, i32
  }
  func.func @transform_4(%arg0: i32) -> (i32, i32) {
    %c0_i32 = arith.constant 0 : i32
    %c0_i32_0 = arith.constant 0 : i32
    return %c0_i32, %arg0 : i32, i32
  }
}

module attributes {stable_mosaic.version = 11 : i64} {
  func.func @_gemm_epilogue_kernel(%arg0: i32, %arg1: memref<32x256xbf16, #tpu.memory_space<vmem>>, %arg2: memref<256x128xbf16, #tpu.memory_space<vmem>>, %arg3: memref<32x1xf32, #tpu.memory_space<vmem>>, %arg4: memref<32x128xbf16, #tpu.memory_space<vmem>>, %arg5: memref<32x128xbf16, #tpu.memory_space<vmem>>) attributes {dimension_semantics = [#tpu.dimension_semantics<parallel>], iteration_bounds = array<i64: 1>, scalar_prefetch = 0 : i64, scratch_operands = 0 : i64, tpu.core_type = #tpu.core_type<tc>, window_params = [{pipeline_mode = #tpu.pipeline_mode<synchronous>, transform_indices = @transform_0, window_bounds = array<i64: 32, 256>}, {transform_indices = @transform_1, window_bounds = array<i64: 256, 128>}, {pipeline_mode = #tpu.pipeline_mode<synchronous>, transform_indices = @transform_2, window_bounds = array<i64: 32, 1>}, {transform_indices = @transform_3, window_bounds = array<i64: 32, 128>}, {transform_indices = @transform_4, window_bounds = array<i64: 32, 128>}]} {
    %c0 = arith.constant 0 : index
    %c0_0 = arith.constant 0 : index
    %0 = vector.load %arg1[%c0, %c0_0] : memref<32x256xbf16, #tpu.memory_space<vmem>>, vector<32x256xbf16>
    %c0_1 = arith.constant 0 : index
    %c0_2 = arith.constant 0 : index
    %1 = vector.load %arg2[%c0_1, %c0_2] : memref<256x128xbf16, #tpu.memory_space<vmem>>, vector<256x128xbf16>
    %cst = arith.constant dense<0.000000e+00> : vector<32x128xf32>
    %2 = tpu.matmul %0, %1, %cst {dimension_numbers = #tpu.dot_dimension_numbers<[1], [0], [0], [1], [0, 0, 1, 1], [], []>} : vector<32x256xbf16>, vector<256x128xbf16>, vector<32x128xf32> -> vector<32x128xf32>
    %c0_3 = arith.constant 0 : index
    %c0_4 = arith.constant 0 : index
    %3 = vector.load %arg3[%c0_3, %c0_4] : memref<32x1xf32, #tpu.memory_space<vmem>>, vector<32x1xf32>
    %4 = vector.broadcast %3 : vector<32x1xf32> to vector<32x128xf32>
    %5 = arith.addf %2, %4 : vector<32x128xf32>
    %cst_5 = arith.constant 0.000000e+00 : f32
    %6 = vector.broadcast %cst_5 : f32 to vector<32x128xf32>
    %7 = arith.maximumf %5, %6 : vector<32x128xf32>
    %c0_6 = arith.constant 0 : index
    %c0_7 = arith.constant 0 : index
    %8 = vector.load %arg4[%c0_6, %c0_7] : memref<32x128xbf16, #tpu.memory_space<vmem>>, vector<32x128xbf16>
    %9 = arith.extf %8 : vector<32x128xbf16> to vector<32x128xf32>
    %10 = arith.addf %7, %9 : vector<32x128xf32>
    %11 = arith.truncf %10 : vector<32x128xf32> to vector<32x128xbf16>
    %c0_8 = arith.constant 0 : index
    %c0_9 = arith.constant 0 : index
    %12 = vector.load %arg5[%c0_8, %c0_9] : memref<32x128xbf16, #tpu.memory_space<vmem>>, vector<32x128xbf16>
    tpu.vector_store %arg5[%c0_8, %c0_9], %11 {strides = array<i32>} : memref<32x128xbf16, #tpu.memory_space<vmem>>, vector<32x128xbf16>,
    return
  }
  func.func @transform_0(%arg0: i32) -> (i32, i32) {
    %c0_i32 = arith.constant 0 : i32
    %c0_i32_0 = arith.constant 0 : i32
    %c0_i32_1 = arith.constant 0 : i32
    return %c0_i32, %c0_i32_0 : i32, i32
  }
  func.func @transform_1(%arg0: i32) -> (i32, i32) {
    %c0_i32 = arith.constant 0 : i32
    %c0_i32_0 = arith.constant 0 : i32
    return %c0_i32, %arg0 : i32, i32
  }
  func.func @transform_2(%arg0: i32) -> (i32, i32) {
    %c0_i32 = arith.constant 0 : i32
    %c0_i32_0 = arith.constant 0 : i32
    %c0_i32_1 = arith.constant 0 : i32
    return %c0_i32, %c0_i32_0 : i32, i32
  }
  func.func @transform_3(%arg0: i32) -> (i32, i32) {
    %c0_i32 = arith.constant 0 : i32
    %c0_i32_0 = arith.constant 0 : i32
    return %c0_i32, %arg0 : i32, i32
  }
  func.func @transform_4(%arg0: i32) -> (i32, i32) {
    %c0_i32 = arith.constant 0 : i32
    %c0_i32_0 = arith.constant 0 : i32
    return %c0_i32, %arg0 : i32, i32
  }
}

module attributes {stable_mosaic.version = 11 : i64} {
  func.func @_gemm_epilogue_kernel(%arg0: i32, %arg1: memref<16x32xbf16, #tpu.memory_space<vmem>>, %arg2: memref<32x128xbf16, #tpu.memory_space<vmem>>, %arg3: memref<16x1xf32, #tpu.memory_space<vmem>>, %arg4: memref<16x128xbf16, #tpu.memory_space<vmem>>, %arg5: memref<16x128xbf16, #tpu.memory_space<vmem>>) attributes {dimension_semantics = [#tpu.dimension_semantics<parallel>], iteration_bounds = array<i64: 1>, scalar_prefetch = 0 : i64, scratch_operands = 0 : i64, tpu.core_type = #tpu.core_type<tc>, window_params = [{pipeline_mode = #tpu.pipeline_mode<synchronous>, transform_indices = @transform_0, window_bounds = array<i64: 16, 32>}, {transform_indices = @transform_1, window_bounds = array<i64: 32, 128>}, {pipeline_mode = #tpu.pipeline_mode<synchronous>, transform_indices = @transform_2, window_bounds = array<i64: 16, 1>}, {transform_indices = @transform_3, window_bounds = array<i64: 16, 128>}, {transform_indices = @transform_4, window_bounds = array<i64: 16, 128>}]} {
    %c0 = arith.constant 0 : index
    %c0_0 = arith.constant 0 : index
    %0 = vector.load %arg1[%c0, %c0_0] : memref<16x32xbf16, #tpu.memory_space<vmem>>, vector<16x32xbf16>
    %c0_1 = arith.constant 0 : index
    %c0_2 = arith.constant 0 : index
    %1 = vector.load %arg2[%c0_1, %c0_2] : memref<32x128xbf16, #tpu.memory_space<vmem>>, vector<32x128xbf16>
    %cst = arith.constant dense<0.000000e+00> : vector<16x128xf32>
    %2 = tpu.matmul %0, %1, %cst {dimension_numbers = #tpu.dot_dimension_numbers<[1], [0], [0], [1], [0, 0, 1, 1], [], []>} : vector<16x32xbf16>, vector<32x128xbf16>, vector<16x128xf32> -> vector<16x128xf32>
    %c0_3 = arith.constant 0 : index
    %c0_4 = arith.constant 0 : index
    %3 = vector.load %arg3[%c0_3, %c0_4] : memref<16x1xf32, #tpu.memory_space<vmem>>, vector<16x1xf32>
    %4 = vector.broadcast %3 : vector<16x1xf32> to vector<16x128xf32>
    %5 = arith.addf %2, %4 : vector<16x128xf32>
    %cst_5 = arith.constant 0.000000e+00 : f32
    %6 = vector.broadcast %cst_5 : f32 to vector<16x128xf32>
    %7 = arith.maximumf %5, %6 : vector<16x128xf32>
    %c0_6 = arith.constant 0 : index
    %c0_7 = arith.constant 0 : index
    %8 = vector.load %arg4[%c0_6, %c0_7] : memref<16x128xbf16, #tpu.memory_space<vmem>>, vector<16x128xbf16>
    %9 = arith.extf %8 : vector<16x128xbf16> to vector<16x128xf32>
    %10 = arith.addf %7, %9 : vector<16x128xf32>
    %11 = arith.truncf %10 : vector<16x128xf32> to vector<16x128xbf16>
    %c0_8 = arith.constant 0 : index
    %c0_9 = arith.constant 0 : index
    %12 = vector.load %arg5[%c0_8, %c0_9] : memref<16x128xbf16, #tpu.memory_space<vmem>>, vector<16x128xbf16>
    tpu.vector_store %arg5[%c0_8, %c0_9], %11 {strides = array<i32>} : memref<16x128xbf16, #tpu.memory_space<vmem>>, vector<16x128xbf16>,
    return
  }
  func.func @transform_0(%arg0: i32) -> (i32, i32) {
    %c0_i32 = arith.constant 0 : i32
    %c0_i32_0 = arith.constant 0 : i32
    %c0_i32_1 = arith.constant 0 : i32
    return %c0_i32, %c0_i32_0 : i32, i32
  }
  func.func @transform_1(%arg0: i32) -> (i32, i32) {
    %c0_i32 = arith.constant 0 : i32
    %c0_i32_0 = arith.constant 0 : i32
    return %c0_i32, %arg0 : i32, i32
  }
  func.func @transform_2(%arg0: i32) -> (i32, i32) {
    %c0_i32 = arith.constant 0 : i32
    %c0_i32_0 = arith.constant 0 : i32
    %c0_i32_1 = arith.constant 0 : i32
    return %c0_i32, %c0_i32_0 : i32, i32
  }
  func.func @transform_3(%arg0: i32) -> (i32, i32) {
    %c0_i32 = arith.constant 0 : i32
    %c0_i32_0 = arith.constant 0 : i32
    return %c0_i32, %arg0 : i32, i32
  }
  func.func @transform_4(%arg0: i32) -> (i32, i32) {
    %c0_i32 = arith.constant 0 : i32
    %c0_i32_0 = arith.constant 0 : i32
    return %c0_i32, %arg0 : i32, i32
  }
}

module attributes {stable_mosaic.version = 11 : i64} {
  func.func @_gemm_epilogue_kernel(%arg0: i32, %arg1: memref<16x64xbf16, #tpu.memory_space<vmem>>, %arg2: memref<64x128xbf16, #tpu.memory_space<vmem>>, %arg3: memref<16x1xf32, #tpu.memory_space<vmem>>, %arg4: memref<16x128xbf16, #tpu.memory_space<vmem>>, %arg5: memref<16x128xbf16, #tpu.memory_space<vmem>>) attributes {dimension_semantics = [#tpu.dimension_semantics<parallel>], iteration_bounds = array<i64: 1>, scalar_prefetch = 0 : i64, scratch_operands = 0 : i64, tpu.core_type = #tpu.core_type<tc>, window_params = [{pipeline_mode = #tpu.pipeline_mode<synchronous>, transform_indices = @transform_0, window_bounds = array<i64: 16, 64>}, {transform_indices = @transform_1, window_bounds = array<i64: 64, 128>}, {pipeline_mode = #tpu.pipeline_mode<synchronous>, transform_indices = @transform_2, window_bounds = array<i64: 16, 1>}, {transform_indices = @transform_3, window_bounds = array<i64: 16, 128>}, {transform_indices = @transform_4, window_bounds = array<i64: 16, 128>}]} {
    %c0 = arith.constant 0 : index
    %c0_0 = arith.constant 0 : index
    %0 = vector.load %arg1[%c0, %c0_0] : memref<16x64xbf16, #tpu.memory_space<vmem>>, vector<16x64xbf16>
    %c0_1 = arith.constant 0 : index
    %c0_2 = arith.constant 0 : index
    %1 = vector.load %arg2[%c0_1, %c0_2] : memref<64x128xbf16, #tpu.memory_space<vmem>>, vector<64x128xbf16>
    %cst = arith.constant dense<0.000000e+00> : vector<16x128xf32>
    %2 = tpu.matmul %0, %1, %cst {dimension_numbers = #tpu.dot_dimension_numbers<[1], [0], [0], [1], [0, 0, 1, 1], [], []>} : vector<16x64xbf16>, vector<64x128xbf16>, vector<16x128xf32> -> vector<16x128xf32>
    %c0_3 = arith.constant 0 : index
    %c0_4 = arith.constant 0 : index
    %3 = vector.load %arg3[%c0_3, %c0_4] : memref<16x1xf32, #tpu.memory_space<vmem>>, vector<16x1xf32>
    %4 = vector.broadcast %3 : vector<16x1xf32> to vector<16x128xf32>
    %5 = arith.addf %2, %4 : vector<16x128xf32>
    %cst_5 = arith.constant 0.000000e+00 : f32
    %6 = vector.broadcast %cst_5 : f32 to vector<16x128xf32>
    %7 = arith.maximumf %5, %6 : vector<16x128xf32>
    %c0_6 = arith.constant 0 : index
    %c0_7 = arith.constant 0 : index
    %8 = vector.load %arg4[%c0_6, %c0_7] : memref<16x128xbf16, #tpu.memory_space<vmem>>, vector<16x128xbf16>
    %9 = arith.extf %8 : vector<16x128xbf16> to vector<16x128xf32>
    %10 = arith.addf %7, %9 : vector<16x128xf32>
    %11 = arith.truncf %10 : vector<16x128xf32> to vector<16x128xbf16>
    %c0_8 = arith.constant 0 : index
    %c0_9 = arith.constant 0 : index
    %12 = vector.load %arg5[%c0_8, %c0_9] : memref<16x128xbf16, #tpu.memory_space<vmem>>, vector<16x128xbf16>
    tpu.vector_store %arg5[%c0_8, %c0_9], %11 {strides = array<i32>} : memref<16x128xbf16, #tpu.memory_space<vmem>>, vector<16x128xbf16>,
    return
  }
  func.func @transform_0(%arg0: i32) -> (i32, i32) {
    %c0_i32 = arith.constant 0 : i32
    %c0_i32_0 = arith.constant 0 : i32
    %c0_i32_1 = arith.constant 0 : i32
    return %c0_i32, %c0_i32_0 : i32, i32
  }
  func.func @transform_1(%arg0: i32) -> (i32, i32) {
    %c0_i32 = arith.constant 0 : i32
    %c0_i32_0 = arith.constant 0 : i32
    return %c0_i32, %arg0 : i32, i32
  }
  func.func @transform_2(%arg0: i32) -> (i32, i32) {
    %c0_i32 = arith.constant 0 : i32
    %c0_i32_0 = arith.constant 0 : i32
    %c0_i32_1 = arith.constant 0 : i32
    return %c0_i32, %c0_i32_0 : i32, i32
  }
  func.func @transform_3(%arg0: i32) -> (i32, i32) {
    %c0_i32 = arith.constant 0 : i32
    %c0_i32_0 = arith.constant 0 : i32
    return %c0_i32, %arg0 : i32, i32
  }
  func.func @transform_4(%arg0: i32) -> (i32, i32) {
    %c0_i32 = arith.constant 0 : i32
    %c0_i32_0 = arith.constant 0 : i32
    return %c0_i32, %arg0 : i32, i32
  }
}

module attributes {stable_mosaic.version = 11 : i64} {
  func.func @_gemm_epilogue_kernel(%arg0: i32, %arg1: memref<16x128xbf16, #tpu.memory_space<vmem>>, %arg2: memref<128x128xbf16, #tpu.memory_space<vmem>>, %arg3: memref<16x1xf32, #tpu.memory_space<vmem>>, %arg4: memref<16x128xbf16, #tpu.memory_space<vmem>>, %arg5: memref<16x128xbf16, #tpu.memory_space<vmem>>) attributes {dimension_semantics = [#tpu.dimension_semantics<parallel>], iteration_bounds = array<i64: 1>, scalar_prefetch = 0 : i64, scratch_operands = 0 : i64, tpu.core_type = #tpu.core_type<tc>, window_params = [{pipeline_mode = #tpu.pipeline_mode<synchronous>, transform_indices = @transform_0, window_bounds = array<i64: 16, 128>}, {transform_indices = @transform_1, window_bounds = array<i64: 128, 128>}, {pipeline_mode = #tpu.pipeline_mode<synchronous>, transform_indices = @transform_2, window_bounds = array<i64: 16, 1>}, {transform_indices = @transform_3, window_bounds = array<i64: 16, 128>}, {transform_indices = @transform_4, window_bounds = array<i64: 16, 128>}]} {
    %c0 = arith.constant 0 : index
    %c0_0 = arith.constant 0 : index
    %0 = vector.load %arg1[%c0, %c0_0] : memref<16x128xbf16, #tpu.memory_space<vmem>>, vector<16x128xbf16>
    %c0_1 = arith.constant 0 : index
    %c0_2 = arith.constant 0 : index
    %1 = vector.load %arg2[%c0_1, %c0_2] : memref<128x128xbf16, #tpu.memory_space<vmem>>, vector<128x128xbf16>
    %cst = arith.constant dense<0.000000e+00> : vector<16x128xf32>
    %2 = tpu.matmul %0, %1, %cst {dimension_numbers = #tpu.dot_dimension_numbers<[1], [0], [0], [1], [0, 0, 1, 1], [], []>} : vector<16x128xbf16>, vector<128x128xbf16>, vector<16x128xf32> -> vector<16x128xf32>
    %c0_3 = arith.constant 0 : index
    %c0_4 = arith.constant 0 : index
    %3 = vector.load %arg3[%c0_3, %c0_4] : memref<16x1xf32, #tpu.memory_space<vmem>>, vector<16x1xf32>
    %4 = vector.broadcast %3 : vector<16x1xf32> to vector<16x128xf32>
    %5 = arith.addf %2, %4 : vector<16x128xf32>
    %cst_5 = arith.constant 0.000000e+00 : f32
    %6 = vector.broadcast %cst_5 : f32 to vector<16x128xf32>
    %7 = arith.maximumf %5, %6 : vector<16x128xf32>
    %c0_6 = arith.constant 0 : index
    %c0_7 = arith.constant 0 : index
    %8 = vector.load %arg4[%c0_6, %c0_7] : memref<16x128xbf16, #tpu.memory_space<vmem>>, vector<16x128xbf16>
    %9 = arith.extf %8 : vector<16x128xbf16> to vector<16x128xf32>
    %10 = arith.addf %7, %9 : vector<16x128xf32>
    %11 = arith.truncf %10 : vector<16x128xf32> to vector<16x128xbf16>
    %c0_8 = arith.constant 0 : index
    %c0_9 = arith.constant 0 : index
    %12 = vector.load %arg5[%c0_8, %c0_9] : memref<16x128xbf16, #tpu.memory_space<vmem>>, vector<16x128xbf16>
    tpu.vector_store %arg5[%c0_8, %c0_9], %11 {strides = array<i32>} : memref<16x128xbf16, #tpu.memory_space<vmem>>, vector<16x128xbf16>,
    return
  }
  func.func @transform_0(%arg0: i32) -> (i32, i32) {
    %c0_i32 = arith.constant 0 : i32
    %c0_i32_0 = arith.constant 0 : i32
    %c0_i32_1 = arith.constant 0 : i32
    return %c0_i32, %c0_i32_0 : i32, i32
  }
  func.func @transform_1(%arg0: i32) -> (i32, i32) {
    %c0_i32 = arith.constant 0 : i32
    %c0_i32_0 = arith.constant 0 : i32
    return %c0_i32, %arg0 : i32, i32
  }
  func.func @transform_2(%arg0: i32) -> (i32, i32) {
    %c0_i32 = arith.constant 0 : i32
    %c0_i32_0 = arith.constant 0 : i32
    %c0_i32_1 = arith.constant 0 : i32
    return %c0_i32, %c0_i32_0 : i32, i32
  }
  func.func @transform_3(%arg0: i32) -> (i32, i32) {
    %c0_i32 = arith.constant 0 : i32
    %c0_i32_0 = arith.constant 0 : i32
    return %c0_i32, %arg0 : i32, i32
  }
  func.func @transform_4(%arg0: i32) -> (i32, i32) {
    %c0_i32 = arith.constant 0 : i32
    %c0_i32_0 = arith.constant 0 : i32
    return %c0_i32, %arg0 : i32, i32
  }
}

module attributes {stable_mosaic.version = 11 : i64} {
  func.func @_gemm_epilogue_kernel(%arg0: i32, %arg1: memref<8x16xbf16, #tpu.memory_space<vmem>>, %arg2: memref<16x128xbf16, #tpu.memory_space<vmem>>, %arg3: memref<8x1xf32, #tpu.memory_space<vmem>>, %arg4: memref<8x128xbf16, #tpu.memory_space<vmem>>, %arg5: memref<8x128xbf16, #tpu.memory_space<vmem>>) attributes {dimension_semantics = [#tpu.dimension_semantics<parallel>], iteration_bounds = array<i64: 2>, scalar_prefetch = 0 : i64, scratch_operands = 0 : i64, tpu.core_type = #tpu.core_type<tc>, window_params = [{pipeline_mode = #tpu.pipeline_mode<synchronous>, transform_indices = @transform_0, window_bounds = array<i64: 8, 16>}, {transform_indices = @transform_1, window_bounds = array<i64: 16, 128>}, {pipeline_mode = #tpu.pipeline_mode<synchronous>, transform_indices = @transform_2, window_bounds = array<i64: 8, 1>}, {transform_indices = @transform_3, window_bounds = array<i64: 8, 128>}, {transform_indices = @transform_4, window_bounds = array<i64: 8, 128>}]} {
    %c0 = arith.constant 0 : index
    %c0_0 = arith.constant 0 : index
    %0 = vector.load %arg1[%c0, %c0_0] : memref<8x16xbf16, #tpu.memory_space<vmem>>, vector<8x16xbf16>
    %c0_1 = arith.constant 0 : index
    %c0_2 = arith.constant 0 : index
    %1 = vector.load %arg2[%c0_1, %c0_2] : memref<16x128xbf16, #tpu.memory_space<vmem>>, vector<16x128xbf16>
    %cst = arith.constant dense<0.000000e+00> : vector<8x128xf32>
    %2 = tpu.matmul %0, %1, %cst {dimension_numbers = #tpu.dot_dimension_numbers<[1], [0], [0], [1], [0, 0, 1, 1], [], []>} : vector<8x16xbf16>, vector<16x128xbf16>, vector<8x128xf32> -> vector<8x128xf32>
    %c0_3 = arith.constant 0 : index
    %c0_4 = arith.constant 0 : index
    %3 = vector.load %arg3[%c0_3, %c0_4] : memref<8x1xf32, #tpu.memory_space<vmem>>, vector<8x1xf32>
    %4 = vector.broadcast %3 : vector<8x1xf32> to vector<8x128xf32>
    %5 = arith.addf %2, %4 : vector<8x128xf32>
    %cst_5 = arith.constant 0.000000e+00 : f32
    %6 = vector.broadcast %cst_5 : f32 to vector<8x128xf32>
    %7 = arith.maximumf %5, %6 : vector<8x128xf32>
    %c0_6 = arith.constant 0 : index
    %c0_7 = arith.constant 0 : index
    %8 = vector.load %arg4[%c0_6, %c0_7] : memref<8x128xbf16, #tpu.memory_space<vmem>>, vector<8x128xbf16>
    %9 = arith.extf %8 : vector<8x128xbf16> to vector<8x128xf32>
    %10 = arith.addf %7, %9 : vector<8x128xf32>
    %11 = arith.truncf %10 : vector<8x128xf32> to vector<8x128xbf16>
    %c0_8 = arith.constant 0 : index
    %c0_9 = arith.constant 0 : index
    %12 = vector.load %arg5[%c0_8, %c0_9] : memref<8x128xbf16, #tpu.memory_space<vmem>>, vector<8x128xbf16>
    tpu.vector_store %arg5[%c0_8, %c0_9], %11 {strides = array<i32>} : memref<8x128xbf16, #tpu.memory_space<vmem>>, vector<8x128xbf16>,
    return
  }
  func.func @transform_0(%arg0: i32) -> (i32, i32) {
    %c0_i32 = arith.constant 0 : i32
    %c0_i32_0 = arith.constant 0 : i32
    %c0_i32_1 = arith.constant 0 : i32
    return %c0_i32, %c0_i32_0 : i32, i32
  }
  func.func @transform_1(%arg0: i32) -> (i32, i32) {
    %c0_i32 = arith.constant 0 : i32
    %c0_i32_0 = arith.constant 0 : i32
    return %c0_i32, %arg0 : i32, i32
  }
  func.func @transform_2(%arg0: i32) -> (i32, i32) {
    %c0_i32 = arith.constant 0 : i32
    %c0_i32_0 = arith.constant 0 : i32
    %c0_i32_1 = arith.constant 0 : i32
    return %c0_i32, %c0_i32_0 : i32, i32
  }
  func.func @transform_3(%arg0: i32) -> (i32, i32) {
    %c0_i32 = arith.constant 0 : i32
    %c0_i32_0 = arith.constant 0 : i32
    return %c0_i32, %arg0 : i32, i32
  }
  func.func @transform_4(%arg0: i32) -> (i32, i32) {
    %c0_i32 = arith.constant 0 : i32
    %c0_i32_0 = arith.constant 0 : i32
    return %c0_i32, %arg0 : i32, i32
  }
}

module attributes {stable_mosaic.version = 11 : i64} {
  func.func @_gemm_epilogue_kernel(%arg0: i32, %arg1: memref<8x32xbf16, #tpu.memory_space<vmem>>, %arg2: memref<32x128xbf16, #tpu.memory_space<vmem>>, %arg3: memref<8x1xf32, #tpu.memory_space<vmem>>, %arg4: memref<8x128xbf16, #tpu.memory_space<vmem>>, %arg5: memref<8x128xbf16, #tpu.memory_space<vmem>>) attributes {dimension_semantics = [#tpu.dimension_semantics<parallel>], iteration_bounds = array<i64: 2>, scalar_prefetch = 0 : i64, scratch_operands = 0 : i64, tpu.core_type = #tpu.core_type<tc>, window_params = [{pipeline_mode = #tpu.pipeline_mode<synchronous>, transform_indices = @transform_0, window_bounds = array<i64: 8, 32>}, {transform_indices = @transform_1, window_bounds = array<i64: 32, 128>}, {pipeline_mode = #tpu.pipeline_mode<synchronous>, transform_indices = @transform_2, window_bounds = array<i64: 8, 1>}, {transform_indices = @transform_3, window_bounds = array<i64: 8, 128>}, {transform_indices = @transform_4, window_bounds = array<i64: 8, 128>}]} {
    %c0 = arith.constant 0 : index
    %c0_0 = arith.constant 0 : index
    %0 = vector.load %arg1[%c0, %c0_0] : memref<8x32xbf16, #tpu.memory_space<vmem>>, vector<8x32xbf16>
    %c0_1 = arith.constant 0 : index
    %c0_2 = arith.constant 0 : index
    %1 = vector.load %arg2[%c0_1, %c0_2] : memref<32x128xbf16, #tpu.memory_space<vmem>>, vector<32x128xbf16>
    %cst = arith.constant dense<0.000000e+00> : vector<8x128xf32>
    %2 = tpu.matmul %0, %1, %cst {dimension_numbers = #tpu.dot_dimension_numbers<[1], [0], [0], [1], [0, 0, 1, 1], [], []>} : vector<8x32xbf16>, vector<32x128xbf16>, vector<8x128xf32> -> vector<8x128xf32>
    %c0_3 = arith.constant 0 : index
    %c0_4 = arith.constant 0 : index
    %3 = vector.load %arg3[%c0_3, %c0_4] : memref<8x1xf32, #tpu.memory_space<vmem>>, vector<8x1xf32>
    %4 = vector.broadcast %3 : vector<8x1xf32> to vector<8x128xf32>
    %5 = arith.addf %2, %4 : vector<8x128xf32>
    %cst_5 = arith.constant 0.000000e+00 : f32
    %6 = vector.broadcast %cst_5 : f32 to vector<8x128xf32>
    %7 = arith.maximumf %5, %6 : vector<8x128xf32>
    %c0_6 = arith.constant 0 : index
    %c0_7 = arith.constant 0 : index
    %8 = vector.load %arg4[%c0_6, %c0_7] : memref<8x128xbf16, #tpu.memory_space<vmem>>, vector<8x128xbf16>
    %9 = arith.extf %8 : vector<8x128xbf16> to vector<8x128xf32>
    %10 = arith.addf %7, %9 : vector<8x128xf32>
    %11 = arith.truncf %10 : vector<8x128xf32> to vector<8x128xbf16>
    %c0_8 = arith.constant 0 : index
    %c0_9 = arith.constant 0 : index
    %12 = vector.load %arg5[%c0_8, %c0_9] : memref<8x128xbf16, #tpu.memory_space<vmem>>, vector<8x128xbf16>
    tpu.vector_store %arg5[%c0_8, %c0_9], %11 {strides = array<i32>} : memref<8x128xbf16, #tpu.memory_space<vmem>>, vector<8x128xbf16>,
    return
  }
  func.func @transform_0(%arg0: i32) -> (i32, i32) {
    %c0_i32 = arith.constant 0 : i32
    %c0_i32_0 = arith.constant 0 : i32
    %c0_i32_1 = arith.constant 0 : i32
    return %c0_i32, %c0_i32_0 : i32, i32
  }
  func.func @transform_1(%arg0: i32) -> (i32, i32) {
    %c0_i32 = arith.constant 0 : i32
    %c0_i32_0 = arith.constant 0 : i32
    return %c0_i32, %arg0 : i32, i32
  }
  func.func @transform_2(%arg0: i32) -> (i32, i32) {
    %c0_i32 = arith.constant 0 : i32
    %c0_i32_0 = arith.constant 0 : i32
    %c0_i32_1 = arith.constant 0 : i32
    return %c0_i32, %c0_i32_0 : i32, i32
  }
  func.func @transform_3(%arg0: i32) -> (i32, i32) {
    %c0_i32 = arith.constant 0 : i32
    %c0_i32_0 = arith.constant 0 : i32
    return %c0_i32, %arg0 : i32, i32
  }
  func.func @transform_4(%arg0: i32) -> (i32, i32) {
    %c0_i32 = arith.constant 0 : i32
    %c0_i32_0 = arith.constant 0 : i32
    return %c0_i32, %arg0 : i32, i32
  }
}

module attributes {stable_mosaic.version = 11 : i64} {
  func.func @_gemm_epilogue_kernel(%arg0: i32, %arg1: memref<8x64xbf16, #tpu.memory_space<vmem>>, %arg2: memref<64x128xbf16, #tpu.memory_space<vmem>>, %arg3: memref<8x1xf32, #tpu.memory_space<vmem>>, %arg4: memref<8x128xbf16, #tpu.memory_space<vmem>>, %arg5: memref<8x128xbf16, #tpu.memory_space<vmem>>) attributes {dimension_semantics = [#tpu.dimension_semantics<parallel>], iteration_bounds = array<i64: 2>, scalar_prefetch = 0 : i64, scratch_operands = 0 : i64, tpu.core_type = #tpu.core_type<tc>, window_params = [{pipeline_mode = #tpu.pipeline_mode<synchronous>, transform_indices = @transform_0, window_bounds = array<i64: 8, 64>}, {transform_indices = @transform_1, window_bounds = array<i64: 64, 128>}, {pipeline_mode = #tpu.pipeline_mode<synchronous>, transform_indices = @transform_2, window_bounds = array<i64: 8, 1>}, {transform_indices = @transform_3, window_bounds = array<i64: 8, 128>}, {transform_indices = @transform_4, window_bounds = array<i64: 8, 128>}]} {
    %c0 = arith.constant 0 : index
    %c0_0 = arith.constant 0 : index
    %0 = vector.load %arg1[%c0, %c0_0] : memref<8x64xbf16, #tpu.memory_space<vmem>>, vector<8x64xbf16>
    %c0_1 = arith.constant 0 : index
    %c0_2 = arith.constant 0 : index
    %1 = vector.load %arg2[%c0_1, %c0_2] : memref<64x128xbf16, #tpu.memory_space<vmem>>, vector<64x128xbf16>
    %cst = arith.constant dense<0.000000e+00> : vector<8x128xf32>
    %2 = tpu.matmul %0, %1, %cst {dimension_numbers = #tpu.dot_dimension_numbers<[1], [0], [0], [1], [0, 0, 1, 1], [], []>} : vector<8x64xbf16>, vector<64x128xbf16>, vector<8x128xf32> -> vector<8x128xf32>
    %c0_3 = arith.constant 0 : index
    %c0_4 = arith.constant 0 : index
    %3 = vector.load %arg3[%c0_3, %c0_4] : memref<8x1xf32, #tpu.memory_space<vmem>>, vector<8x1xf32>
    %4 = vector.broadcast %3 : vector<8x1xf32> to vector<8x128xf32>
    %5 = arith.addf %2, %4 : vector<8x128xf32>
    %cst_5 = arith.constant 0.000000e+00 : f32
    %6 = vector.broadcast %cst_5 : f32 to vector<8x128xf32>
    %7 = arith.maximumf %5, %6 : vector<8x128xf32>
    %c0_6 = arith.constant 0 : index
    %c0_7 = arith.constant 0 : index
    %8 = vector.load %arg4[%c0_6, %c0_7] : memref<8x128xbf16, #tpu.memory_space<vmem>>, vector<8x128xbf16>
    %9 = arith.extf %8 : vector<8x128xbf16> to vector<8x128xf32>
    %10 = arith.addf %7, %9 : vector<8x128xf32>
    %11 = arith.truncf %10 : vector<8x128xf32> to vector<8x128xbf16>
    %c0_8 = arith.constant 0 : index
    %c0_9 = arith.constant 0 : index
    %12 = vector.load %arg5[%c0_8, %c0_9] : memref<8x128xbf16, #tpu.memory_space<vmem>>, vector<8x128xbf16>
    tpu.vector_store %arg5[%c0_8, %c0_9], %11 {strides = array<i32>} : memref<8x128xbf16, #tpu.memory_space<vmem>>, vector<8x128xbf16>,
    return
  }
  func.func @transform_0(%arg0: i32) -> (i32, i32) {
    %c0_i32 = arith.constant 0 : i32
    %c0_i32_0 = arith.constant 0 : i32
    %c0_i32_1 = arith.constant 0 : i32
    return %c0_i32, %c0_i32_0 : i32, i32
  }
  func.func @transform_1(%arg0: i32) -> (i32, i32) {
    %c0_i32 = arith.constant 0 : i32
    %c0_i32_0 = arith.constant 0 : i32
    return %c0_i32, %arg0 : i32, i32
  }
  func.func @transform_2(%arg0: i32) -> (i32, i32) {
    %c0_i32 = arith.constant 0 : i32
    %c0_i32_0 = arith.constant 0 : i32
    %c0_i32_1 = arith.constant 0 : i32
    return %c0_i32, %c0_i32_0 : i32, i32
  }
  func.func @transform_3(%arg0: i32) -> (i32, i32) {
    %c0_i32 = arith.constant 0 : i32
    %c0_i32_0 = arith.constant 0 : i32
    return %c0_i32, %arg0 : i32, i32
  }
  func.func @transform_4(%arg0: i32) -> (i32, i32) {
    %c0_i32 = arith.constant 0 : i32
    %c0_i32_0 = arith.constant 0 : i32
    return %c0_i32, %arg0 : i32, i32
  }
}

module attributes {stable_mosaic.version = 11 : i64} {
  func.func @_gemm_epilogue_kernel(%arg0: i32, %arg1: memref<8x8xbf16, #tpu.memory_space<vmem>>, %arg2: memref<8x512xbf16, #tpu.memory_space<vmem>>, %arg3: memref<8x1xf32, #tpu.memory_space<vmem>>, %arg4: memref<8x512xf32, #tpu.memory_space<vmem>>) attributes {dimension_semantics = [#tpu.dimension_semantics<parallel>], iteration_bounds = array<i64: 2>, scalar_prefetch = 0 : i64, scratch_operands = 0 : i64, tpu.core_type = #tpu.core_type<tc>, window_params = [{pipeline_mode = #tpu.pipeline_mode<synchronous>, transform_indices = @transform_0, window_bounds = array<i64: 8, 8>}, {transform_indices = @transform_1, window_bounds = array<i64: 8, 512>}, {pipeline_mode = #tpu.pipeline_mode<synchronous>, transform_indices = @transform_2, window_bounds = array<i64: 8, 1>}, {transform_indices = @transform_3, window_bounds = array<i64: 8, 512>}]} {
    %c0 = arith.constant 0 : index
    %c0_0 = arith.constant 0 : index
    %0 = vector.load %arg1[%c0, %c0_0] : memref<8x8xbf16, #tpu.memory_space<vmem>>, vector<8x8xbf16>
    %c0_1 = arith.constant 0 : index
    %c0_2 = arith.constant 0 : index
    %1 = vector.load %arg2[%c0_1, %c0_2] : memref<8x512xbf16, #tpu.memory_space<vmem>>, vector<8x512xbf16>
    %cst = arith.constant dense<0.000000e+00> : vector<8x512xf32>
    %2 = tpu.matmul %0, %1, %cst {dimension_numbers = #tpu.dot_dimension_numbers<[1], [0], [0], [1], [0, 0, 1, 1], [], []>} : vector<8x8xbf16>, vector<8x512xbf16>, vector<8x512xf32> -> vector<8x512xf32>
    %c0_3 = arith.constant 0 : index
    %c0_4 = arith.constant 0 : index
    %3 = vector.load %arg3[%c0_3, %c0_4] : memref<8x1xf32, #tpu.memory_space<vmem>>, vector<8x1xf32>
    %4 = vector.broadcast %3 : vector<8x1xf32> to vector<8x512xf32>
    %5 = arith.addf %2, %4 : vector<8x512xf32>
    %c0_5 = arith.constant 0 : index
    %c0_6 = arith.constant 0 : index
    %6 = vector.load %arg4[%c0_5, %c0_6] : memref<8x512xf32, #tpu.memory_space<vmem>>, vector<8x512xf32>
    tpu.vector_store %arg4[%c0_5, %c0_6], %5 {strides = array<i32>} : memref<8x512xf32, #tpu.memory_space<vmem>>, vector<8x512xf32>,
    return
  }
  func.func @transform_0(%arg0: i32) -> (i32, i32) {
    %c0_i32 = arith.constant 0 : i32
    %c0_i32_0 = arith.constant 0 : i32
    %c0_i32_1 = arith.constant 0 : i32
    return %c0_i32, %c0_i32_0 : i32, i32
  }
  func.func @transform_1(%arg0: i32) -> (i32, i32) {
    %c0_i32 = arith.constant 0 : i32
    %c0_i32_0 = arith.constant 0 : i32
    return %c0_i32, %arg0 : i32, i32
  }
  func.func @transform_2(%arg0: i32) -> (i32, i32) {
    %c0_i32 = arith.constant 0 : i32
    %c0_i32_0 = arith.constant 0 : i32
    %c0_i32_1 = arith.constant 0 : i32
    return %c0_i32, %c0_i32_0 : i32, i32
  }
  func.func @transform_3(%arg0: i32) -> (i32, i32) {
    %c0_i32 = arith.constant 0 : i32
    %c0_i32_0 = arith.constant 0 : i32
    return %c0_i32, %arg0 : i32, i32
  }
}

</mosaic_0001>

<llo_original>
// kernel: reg2d_forward.20
$region0: #{reg2d_forward.20}
  #allocation0 [shape = 'u32[]', space=smem, size = 0x4, offset = 0x4, fixed_abs, tag = 'smem constant byte address 0x4 - core index']
  #allocation1 [shape = 'u32[72,128]{1,0:T(1,128)}', space=vmem, size = 0x9000, scoped, tag = 'internal scratch']
  %s0 = inlined_call_operand.vmem [shape: bf16[8,144], index: 0, kind: input, shape index: {}]
  %s1 = inlined_call_operand.vmem [shape: bf16[144,1024], index: 1, kind: input, shape index: {}]
  %s2 = inlined_call_operand.vmem [shape: f32[8,1], index: 2, kind: input, shape index: {}]
  %s3 = inlined_call_operand.vmem [shape: bf16[8,1024], index: 3, kind: output, shape index: {}]
  %s4 = sld [smem:[#allocation0]]
  $region68: #{reg2d_forward.20} parent=0
    _
  %s6 = ssub.s32 1, %s4
  %s7 = scalar_select 0, %s6, %s4
  $region1: #{reg2d_forward.20} parent=0
    #allocation2 [shape = 'u8[294912]{0}', space=vmem, size = 0x48000, scoped, tag = 'input window, operand 1']
    loop: start=0, step=1, limit=4
    $region2: #{reg2d_forward.20} parent=1 // loop_pre_header
      _
    $region3: #{reg2d_forward.20} parent=1 // loop_header
      %s9 = sphi 0, %s13
      %p10 = scmp.ge.s32.totalorder %s9, 4
      %s17 = sphi 0, %s17
      %s19 = sphi 0, %s17
      %s20 = sphi 0, %s19
      %s34 = sphi 0, %s20
      %s40 = sphi 0, %s42
      %s43 = sphi 0, %s40
      %s44 = sphi 0, %s43
      %s60 = sphi 0, %s44
      %s64 = sphi 0, %s64
      %s66 = sphi 0, %s64
      %s67 = sphi 0, %s66
      %s81 = sphi 0, %s67
      %s87 = sphi 0, %s89
      %s90 = sphi 0, %s87
      %s91 = sphi 0, %s90
      %s107 = sphi 0, %s91
    $region4: #{reg2d_forward.20} parent=1 // loop_header_branch
      %12 = sbr.rel (%p10) target = $region8
    $region5: #{reg2d_forward.20} parent=1 // loop_body
      %s14 = ssub.s32 %s9, 1
      %s15 = ssub.s32 %s9, 2
      %s16 = sadd.s32 %s9, 1
      %s18 = sadd.s32 %s17, 1
      %p21 = scmp.eq.s32.totalorder %s9, 1
      %p22 = scmp.ne.s32.totalorder %s17, %s19
      %p23 = scmp.eq.s32.totalorder %s9, 0
      %p24 = por %p22, %p23
      %p25 = scmp.ne.s32.totalorder %s17, %s19
      %p26 = scmp.eq.s32.totalorder %s14, 1
      %p27 = por %p25, %p26
      %p28 = scmp.ne.s32.totalorder %s19, %s20
      %p29 = scmp.eq.s32.totalorder %s14, 0
      %p30 = por %p28, %p29
      %p31 = scmp.ne.s32.totalorder %s19, %s20
      %p32 = scmp.eq.s32.totalorder %s15, 1
      %p33 = por %p31, %p32
      %p35 = scmp.ne.s32.totalorder %s20, %s34
      %p36 = scmp.eq.s32.totalorder %s15, 0
      %p37 = por %p35, %p36
      %s38 = ssub.s32 %s9, %s16
      %p39 = scmp.eq.s32.totalorder %s38, 0
      %s41 = sadd.s32 %s40, 1
      %s42 = scalar_select %p39, %s40, %s41
      %p45 = pneg %p39
      %p46 = scmp.eq.s32.totalorder %s9, 1
      %p47 = por %p45, %p46
      %p48 = scmp.ne.s32.totalorder %s40, %s43
      %p49 = scmp.eq.s32.totalorder %s9, 0
      %p50 = por %p48, %p49
      %p51 = scmp.ne.s32.totalorder %s40, %s43
      %p52 = scmp.eq.s32.totalorder %s14, 1
      %p53 = por %p51, %p52
      %p54 = scmp.ne.s32.totalorder %s43, %s44
      %p55 = scmp.eq.s32.totalorder %s14, 0
      %p56 = por %p54, %p55
      %p57 = scmp.ne.s32.totalorder %s43, %s44
      %p58 = scmp.eq.s32.totalorder %s15, 1
      %p59 = por %p57, %p58
      %p61 = scmp.ne.s32.totalorder %s44, %s60
      %p62 = scmp.eq.s32.totalorder %s15, 0
      %p63 = por %p61, %p62
      %s65 = sadd.s32 %s64, 1
      %p68 = scmp.eq.s32.totalorder %s9, 1
      %p69 = scmp.ne.s32.totalorder %s64, %s66
      %p70 = scmp.eq.s32.totalorder %s9, 0
      %p71 = por %p69, %p70
      %p72 = scmp.ne.s32.totalorder %s64, %s66
      %p73 = scmp.eq.s32.totalorder %s14, 1
      %p74 = por %p72, %p73
      %p75 = scmp.ne.s32.totalorder %s66, %s67
      %p76 = scmp.eq.s32.totalorder %s14, 0
      %p77 = por %p75, %p76
      %p78 = scmp.ne.s32.totalorder %s66, %s67
      %p79 = scmp.eq.s32.totalorder %s15, 1
      %p80 = por %p78, %p79
      %p82 = scmp.ne.s32.totalorder %s67, %s81
      %p83 = scmp.eq.s32.totalorder %s15, 0
      %p84 = por %p82, %p83
      %s85 = ssub.s32 %s9, %s16
      %p86 = scmp.eq.s32.totalorder %s85, 0
      %s88 = sadd.s32 %s87, 1
      %s89 = scalar_select %p86, %s87, %s88
      %p92 = pneg %p86
      %p93 = scmp.eq.s32.totalorder %s9, 1
      %p94 = por %p92, %p93
      %p95 = scmp.ne.s32.totalorder %s87, %s90
      %p96 = scmp.eq.s32.totalorder %s9, 0
      %p97 = por %p95, %p96
      %p98 = scmp.ne.s32.totalorder %s87, %s90
      %p99 = scmp.eq.s32.totalorder %s14, 1
      %p100 = por %p98, %p99
      %p101 = scmp.ne.s32.totalorder %s90, %s91
      %p102 = scmp.eq.s32.totalorder %s14, 0
      %p103 = por %p101, %p102
      %p104 = scmp.ne.s32.totalorder %s90, %s91
      %p105 = scmp.eq.s32.totalorder %s15, 1
      %p106 = por %p104, %p105
      %p108 = scmp.ne.s32.totalorder %s91, %s107
      %p109 = scmp.eq.s32.totalorder %s15, 0
      %p110 = por %p108, %p109
      %p111 = scmp.le.s32.totalorder 1, %s9
      %p112 = scmp.lt.s32.totalorder %s9, 3
      %p113 = pnand %p111, %p112
      %p114 = pneg %p113
      // Predicated region
      $region9: #{reg2d_forward.20} parent=5 // pred_check
        _
      $region10: #{reg2d_forward.20} parent=5 // pred_check_branch
        %116 = sbr.rel (%p113) target = $region12
      $region11: #{reg2d_forward.20} parent=5 // pred_region
        %s117 = ssub.s32 %s9, 1
        // Predicated region
        $region13: #{reg2d_forward.20} parent=11 // pred_check
          %p118 = pneg %p30
        $region14: #{reg2d_forward.20} parent=11 // pred_check_branch
          %120 = sbr.rel (%p118) target = $region16
        $region15: #{reg2d_forward.20} parent=11 // pred_region
          _
        $region16: #{reg2d_forward.20} parent=11 // pred_fallthru
          _
        // Predicated region
        $region17: #{reg2d_forward.20} parent=11 // pred_check
          %p121 = pneg %p77
        $region18: #{reg2d_forward.20} parent=11 // pred_check_branch
          %123 = sbr.rel (%p121) target = $region20
        $region19: #{reg2d_forward.20} parent=11 // pred_region
          _
        $region20: #{reg2d_forward.20} parent=11 // pred_fallthru
          _
      $region12: #{reg2d_forward.20} parent=5 // pred_fallthru
        _
      %p124 = scmp.lt.s32.totalorder %s9, 2
      // Predicated region
      $region21: #{reg2d_forward.20} parent=5 // pred_check
        %p125 = pneg %p124
      $region22: #{reg2d_forward.20} parent=5 // pred_check_branch
        %127 = sbr.rel (%p125) target = $region24
      $region23: #{reg2d_forward.20} parent=5 // pred_region
        // Predicated region
        $region25: #{reg2d_forward.20} parent=23 // pred_check
          %p128 = pneg %p50
        $region26: #{reg2d_forward.20} parent=23 // pred_check_branch
          %130 = sbr.rel (%p128) target = $region28
        $region27: #{reg2d_forward.20} parent=23 // pred_region
          %s131 = sand.u32 %s40, 1
          %s132 = sand.u32 %s40, 1
          %s133 = smul.addr %s132, 288
          %s134 = scalar_lea.vmem [#allocation2], %s133
          %s135 = smul.u32 4, %s9
          %s136 = smul.addr %s135, 4
          %s137 = scalar_lea.vmem %s1, %s136
          // Predicated region
          $region29: #{reg2d_forward.20} parent=27 // pred_check
            _
          $region30: #{reg2d_forward.20} parent=27 // pred_check_branch
            %139 = sbr.rel (0) target = $region32
          $region31: #{reg2d_forward.20} parent=27 // pred_region
            // Predicated region
            $region33: #{reg2d_forward.20} parent=31 // pred_check
              _
            $region34: #{reg2d_forward.20} parent=31 // pred_check_branch
              %141 = sbr.rel (0) target = $region36
            $region35: #{reg2d_forward.20} parent=31 // pred_region
              loop: start=0, step=1, limit=1
              $region37: #{reg2d_forward.20} parent=35 // loop_pre_header
                _
              $region38: #{reg2d_forward.20} parent=35 // loop_header
                %s143 = sphi 0, %s147
                %p144 = scmp.ge.s32.totalorder %s143, 1
                %s148 = sphi %s137, %s137
                %s149 = sphi %s134, %s134
              $region39: #{reg2d_forward.20} parent=35 // loop_header_branch
                %146 = sbr.rel (%p144) target = $region43
              $region40: #{reg2d_forward.20} parent=35 // loop_body
                %v150 = vld [vmem:[%s148] sm:$0xff]
                %151 = vst [vmem:[%s149] sm:$0xff] %v150
                %v152 = vld [vmem:[%s148 + $0x8] sm:$0xff]
                %153 = vst [vmem:[%s149 + $0x8] sm:$0xff] %v152
                %v154 = vld [vmem:[%s148 + $0x20] sm:$0xff]
                %155 = vst [vmem:[%s149 + $0x10] sm:$0xff] %v154
                %v156 = vld [vmem:[%s148 + $0x28] sm:$0xff]
                %157 = vst [vmem:[%s149 + $0x18] sm:$0xff] %v156
                %v158 = vld [vmem:[%s148 + $0x40] sm:$0xff]
                %159 = vst [vmem:[%s149 + $0x20] sm:$0xff] %v158
                %v160 = vld [vmem:[%s148 + $0x48] sm:$0xff]
                %161 = vst [vmem:[%s149 + $0x28] sm:$0xff] %v160
                %v162 = vld [vmem:[%s148 + $0x60] sm:$0xff]
                %163 = vst [vmem:[%s149 + $0x30] sm:$0xff] %v162
                %v164 = vld [vmem:[%s148 + $0x68] sm:$0xff]
                %165 = vst [vmem:[%s149 + $0x38] sm:$0xff] %v164
                %v166 = vld [vmem:[%s148 + $0x80] sm:$0xff]
                %167 = vst [vmem:[%s149 + $0x40] sm:$0xff] %v166
                %v168 = vld [vmem:[%s148 + $0x88] sm:$0xff]
                %169 = vst [vmem:[%s149 + $0x48] sm:$0xff] %v168
                %v170 = vld [vmem:[%s148 + $0xa0] sm:$0xff]
                %171 = vst [vmem:[%s149 + $0x50] sm:$0xff] %v170
                %v172 = vld [vmem:[%s148 + $0xa8] sm:$0xff]
                %173 = vst [vmem:[%s149 + $0x58] sm:$0xff] %v172
                %v174 = vld [vmem:[%s148 + $0xc0] sm:$0xff]
                %175 = vst [vmem:[%s149 + $0x60] sm:$0xff] %v174
                %v176 = vld [vmem:[%s148 + $0xc8] sm:$0xff]
                %177 = vst [vmem:[%s149 + $0x68] sm:$0xff] %v176
                %v178 = vld [vmem:[%s148 + $0xe0] sm:$0xff]
                %179 = vst [vmem:[%s149 + $0x70] sm:$0xff] %v178
                %v180 = vld [vmem:[%s148 + $0xe8] sm:$0xff]
                %181 = vst [vmem:[%s149 + $0x78] sm:$0xff] %v180
                %v182 = vld [vmem:[%s148 + $0x100] sm:$0xff]
                %183 = vst [vmem:[%s149 + $0x80] sm:$0xff] %v182
                %v184 = vld [vmem:[%s148 + $0x108] sm:$0xff]
                %185 = vst [vmem:[%s149 + $0x88] sm:$0xff] %v184
                %v186 = vld [vmem:[%s148 + $0x120] sm:$0xff]
                %187 = vst [vmem:[%s149 + $0x90] sm:$0xff] %v186
                %v188 = vld [vmem:[%s148 + $0x128] sm:$0xff]
                %189 = vst [vmem:[%s149 + $0x98] sm:$0xff] %v188
                %v190 = vld [vmem:[%s148 + $0x140] sm:$0xff]
                %191 = vst [vmem:[%s149 + $0xa0] sm:$0xff] %v190
                %v192 = vld [vmem:[%s148 + $0x148] sm:$0xff]
                %193 = vst [vmem:[%s149 + $0xa8] sm:$0xff] %v192
                %v194 = vld [vmem:[%s148 + $0x160] sm:$0xff]
                %195 = vst [vmem:[%s149 + $0xb0] sm:$0xff] %v194
                %v196 = vld [vmem:[%s148 + $0x168] sm:$0xff]
                %197 = vst [vmem:[%s149 + $0xb8] sm:$0xff] %v196
                %v198 = vld [vmem:[%s148 + $0x180] sm:$0xff]
                %199 = vst [vmem:[%s149 + $0xc0] sm:$0xff] %v198
                %v200 = vld [vmem:[%s148 + $0x188] sm:$0xff]
                %201 = vst [vmem:[%s149 + $0xc8] sm:$0xff] %v200
                %v202 = vld [vmem:[%s148 + $0x1a0] sm:$0xff]
                %203 = vst [vmem:[%s149 + $0xd0] sm:$0xff] %v202
                %v204 = vld [vmem:[%s148 + $0x1a8] sm:$0xff]
                %205 = vst [vmem:[%s149 + $0xd8] sm:$0xff] %v204
                %v206 = vld [vmem:[%s148 + $0x1c0] sm:$0xff]
                %207 = vst [vmem:[%s149 + $0xe0] sm:$0xff] %v206
                %v208 = vld [vmem:[%s148 + $0x1c8] sm:$0xff]
                %209 = vst [vmem:[%s149 + $0xe8] sm:$0xff] %v208
                %v210 = vld [vmem:[%s148 + $0x1e0] sm:$0xff]
                %211 = vst [vmem:[%s149 + $0xf0] sm:$0xff] %v210
                %v212 = vld [vmem:[%s148 + $0x1e8] sm:$0xff]
                %213 = vst [vmem:[%s149 + $0xf8] sm:$0xff] %v212
                %v214 = vld [vmem:[%s148 + $0x200] sm:$0xff]
                %215 = vst [vmem:[%s149 + $0x100] sm:$0xff] %v214
                %v216 = vld [vmem:[%s148 + $0x208] sm:$0xff]
                %217 = vst [vmem:[%s149 + $0x108] sm:$0xff] %v216
                %v218 = vld [vmem:[%s148 + $0x220] sm:$0xff]
                %219 = vst [vmem:[%s149 + $0x110] sm:$0xff] %v218
                %v220 = vld [vmem:[%s148 + $0x228] sm:$0xff]
                %221 = vst [vmem:[%s149 + $0x118] sm:$0xff] %v220
              $region41: #{reg2d_forward.20} parent=35 // loop_footer
                %s147 = sadd.s32 1, %s143
              $region42: #{reg2d_forward.20} parent=35 // loop_footer_branch
                %142 = sbr.rel target = $region38
              $region43: #{reg2d_forward.20} parent=35 // loop_exit
                _
            $region36: #{reg2d_forward.20} parent=31 // pred_fallthru
              _
            // Predicated region
            $region44: #{reg2d_forward.20} parent=31 // pred_check
              _
            $region45: #{reg2d_forward.20} parent=31 // pred_check_branch
              %223 = sbr.rel target = $region47
            $region46: #{reg2d_forward.20} parent=31 // pred_region
              _
            $region47: #{reg2d_forward.20} parent=31 // pred_fallthru
              _
          $region32: #{reg2d_forward.20} parent=27 // pred_fallthru
            _
          %224 = vnop
        $region28: #{reg2d_forward.20} parent=23 // pred_fallthru
          _
      $region24: #{reg2d_forward.20} parent=5 // pred_fallthru
        _
      %p225 = scmp.le.s32.totalorder 1, %s9
      %p226 = scmp.lt.s32.totalorder %s9, 3
      %p227 = pnand %p225, %p226
      %p228 = pneg %p227
      // Predicated region
      $region48: #{reg2d_forward.20} parent=5 // pred_check
        _
      $region49: #{reg2d_forward.20} parent=5 // pred_check_branch
        %230 = sbr.rel (%p227) target = $region51
      $region50: #{reg2d_forward.20} parent=5 // pred_region
        %s231 = ssub.s32 %s9, 1
        %s232 = sand.u32 %s43, 1
        %s233 = sand.u32 %s43, 1
        %s234 = smul.addr %s233, 288
        %s235 = scalar_lea.vmem [#allocation2], %s234
        // Predicated region
        $region52: #{reg2d_forward.20} parent=50 // pred_check
          %p236 = pneg %p56
        $region53: #{reg2d_forward.20} parent=50 // pred_check_branch
          %238 = sbr.rel (%p236) target = $region55
        $region54: #{reg2d_forward.20} parent=50 // pred_region
          _
        $region55: #{reg2d_forward.20} parent=50 // pred_fallthru
          _
        %p239 = pneg %p30
        %p240 = pneg %p27
        %s241 = sand.u32 %s43, 1
        %s242 = sand.u32 %s43, 1
        %s243 = smul.addr %s242, 288
        %s244 = scalar_lea.vmem [#allocation2], %s243
        %p245 = pneg %p56
        %p246 = pneg %p53
        %p247 = pneg %p77
        %p248 = pneg %p74
        %p249 = pneg %p103
        %p250 = pneg %p100
        %s251 = smul.u32 4, %s14
        %p252 = scmp.lt.s32.totalorder %s251, 7
        %s253 = scalar_select %p252, %s251, 7
        %s254 = smul.addr %s253, 4
        %s255 = scalar_lea.vmem %s3, %s254
        %s256 = smul.u32 4, %s14
        %s257 = smul.u32 4, %s14
        %p258 = scmp.lt.s32.totalorder %s257, 7
        %s259 = scalar_select %p258, %s257, 7
        %s260 = smul.addr %s259, 4
        %s261 = scalar_lea.vmem %s3, %s260
        %s262 = smul.u32 4, %s14
        %v264 = vld [vmem:[%s0] sm:$0xff]
        %v265 = vld [vmem:[%s235] sm:$0xff]
        %v266 = vld [vmem:[%s235 + $0x8] sm:$0xff]
        %v267 = vld [vmem:[%s235 + $0x10] sm:$0xff]
        %v268 = vld [vmem:[%s235 + $0x18] sm:$0xff]
        %v269 = vld [vmem:[%s235 + $0x20] sm:$0xff]
        %v270 = vld [vmem:[%s235 + $0x28] sm:$0xff]
        %v271 = vld [vmem:[%s235 + $0x30] sm:$0xff]
        %v272 = vld [vmem:[%s235 + $0x38] sm:$0xff]
        %v273 = vld [vmem:[%s235 + $0x40] sm:$0xff]
        %v274 = vld [vmem:[%s235 + $0x48] sm:$0xff]
        %v275 = vld [vmem:[%s235 + $0x50] sm:$0xff]
        %v276 = vld [vmem:[%s235 + $0x58] sm:$0xff]
        %v277 = vld [vmem:[%s235 + $0x60] sm:$0xff]
        %v278 = vld [vmem:[%s235 + $0x68] sm:$0xff]
        %v279 = vld [vmem:[%s235 + $0x70] sm:$0xff]
        %v280 = vld [vmem:[%s235 + $0x78] sm:$0xff]
        %v281 = vld [vmem:[%s235 + $0x80] sm:$0xff]
        %v282 = vld [vmem:[%s235 + $0x88] sm:$0xff]
        %v283 = vld [vmem:[%s235 + $0x90] sm:$0xff]
        %v284 = vld [vmem:[%s235 + $0x98] sm:$0xff]
        %v285 = vld [vmem:[%s235 + $0xa0] sm:$0xff]
        %v286 = vld [vmem:[%s235 + $0xa8] sm:$0xff]
        %v287 = vld [vmem:[%s235 + $0xb0] sm:$0xff]
        %v288 = vld [vmem:[%s235 + $0xb8] sm:$0xff]
        %v289 = vld [vmem:[%s235 + $0xc0] sm:$0xff]
        %v290 = vld [vmem:[%s235 + $0xc8] sm:$0xff]
        %v291 = vld [vmem:[%s235 + $0xd0] sm:$0xff]
        %v292 = vld [vmem:[%s235 + $0xd8] sm:$0xff]
        %v293 = vld [vmem:[%s235 + $0xe0] sm:$0xff]
        %v294 = vld [vmem:[%s235 + $0xe8] sm:$0xff]
        %v295 = vld [vmem:[%s235 + $0xf0] sm:$0xff]
        %v296 = vld [vmem:[%s235 + $0xf8] sm:$0xff]
        %v297 = vld [vmem:[%s235 + $0x100] sm:$0xff]
        %v298 = vld [vmem:[%s235 + $0x108] sm:$0xff]
        %v299 = vld [vmem:[%s235 + $0x110] sm:$0xff]
        %v300 = vld [vmem:[%s235 + $0x118] sm:$0xff]
        %v301 = vld [vmem:[%s2] sm:$0xff]
        %303 = vset.pattern.permute.xlu0 0
        %304 = vperm.xlu0 %303, %v301
        %v305 = vpop.permute.xlu0 %304
        %v308 = vunpack.c.l.b16 %v264
        %v309 = vunpack.c.h.b16 %v264
        %v310 = vpack.c.b16 %v308, %v308
        %v311 = vpack.c.b16 %v309, %v309
        %v349 = vunpack.c.l.b16 %v265
        %v350 = vunpack.c.h.b16 %v265
        %v351 = vunpack.c.l.b16 %v266
        %v352 = vunpack.c.h.b16 %v266
        %v353 = vunpack.c.l.b16 %v267
        %v354 = vunpack.c.h.b16 %v267
        %v355 = vunpack.c.l.b16 %v268
        %v356 = vunpack.c.h.b16 %v268
        %v357 = vunpack.c.l.b16 %v269
        %v358 = vunpack.c.h.b16 %v269
        %v359 = vunpack.c.l.b16 %v270
        %v360 = vunpack.c.h.b16 %v270
        %v361 = vunpack.c.l.b16 %v271
        %v362 = vunpack.c.h.b16 %v271
        %v363 = vunpack.c.l.b16 %v272
        %v364 = vunpack.c.h.b16 %v272
        %v365 = vunpack.c.l.b16 %v273
        %v366 = vunpack.c.h.b16 %v273
        %v367 = vunpack.c.l.b16 %v274
        %v368 = vunpack.c.h.b16 %v274
        %v369 = vunpack.c.l.b16 %v275
        %v370 = vunpack.c.h.b16 %v275
        %v371 = vunpack.c.l.b16 %v276
        %v372 = vunpack.c.h.b16 %v276
        %v373 = vunpack.c.l.b16 %v277
        %v374 = vunpack.c.h.b16 %v277
        %v375 = vunpack.c.l.b16 %v278
        %v376 = vunpack.c.h.b16 %v278
        %v377 = vunpack.c.l.b16 %v279
        %v378 = vunpack.c.h.b16 %v279
        %v379 = vunpack.c.l.b16 %v280
        %v380 = vunpack.c.h.b16 %v280
        %v381 = vunpack.c.l.b16 %v281
        %v382 = vunpack.c.h.b16 %v281
        %v383 = vunpack.c.l.b16 %v282
        %v384 = vunpack.c.h.b16 %v282
        %v385 = vunpack.c.l.b16 %v283
        %v386 = vunpack.c.h.b16 %v283
        %v387 = vunpack.c.l.b16 %v284
        %v388 = vunpack.c.h.b16 %v284
        %v389 = vunpack.c.l.b16 %v285
        %v390 = vunpack.c.h.b16 %v285
        %v391 = vunpack.c.l.b16 %v286
        %v392 = vunpack.c.h.b16 %v286
        %v393 = vunpack.c.l.b16 %v287
        %v394 = vunpack.c.h.b16 %v287
        %v395 = vunpack.c.l.b16 %v288
        %v396 = vunpack.c.h.b16 %v288
        %v397 = vunpack.c.l.b16 %v289
        %v398 = vunpack.c.h.b16 %v289
        %v399 = vunpack.c.l.b16 %v290
        %v400 = vunpack.c.h.b16 %v290
        %v401 = vunpack.c.l.b16 %v291
        %v402 = vunpack.c.h.b16 %v291
        %v403 = vunpack.c.l.b16 %v292
        %v404 = vunpack.c.h.b16 %v292
        %v405 = vunpack.c.l.b16 %v293
        %v406 = vunpack.c.h.b16 %v293
        %v407 = vunpack.c.l.b16 %v294
        %v408 = vunpack.c.h.b16 %v294
        %v409 = vunpack.c.l.b16 %v295
        %v410 = vunpack.c.h.b16 %v295
        %v411 = vunpack.c.l.b16 %v296
        %v412 = vunpack.c.h.b16 %v296
        %v413 = vunpack.c.l.b16 %v297
        %v414 = vunpack.c.h.b16 %v297
        %v415 = vunpack.c.l.b16 %v298
        %v416 = vunpack.c.h.b16 %v298
        %v417 = vunpack.c.l.b16 %v299
        %v418 = vunpack.c.h.b16 %v299
        %v419 = vunpack.c.l.b16 %v300
        %v420 = vunpack.c.h.b16 %v300
        %v421 = vpack.c.b16 %v353, %v349
        %v422 = vpack.c.b16 %v354, %v350
        %v423 = vpack.c.b16 %v355, %v351
        %v424 = vpack.c.b16 %v356, %v352
        %v425 = vpack.c.b16 %v361, %v357
        %v426 = vpack.c.b16 %v362, %v358
        %v427 = vpack.c.b16 %v363, %v359
        %v428 = vpack.c.b16 %v364, %v360
        %v429 = vpack.c.b16 %v369, %v365
        %v430 = vpack.c.b16 %v370, %v366
        %v431 = vpack.c.b16 %v371, %v367
        %v432 = vpack.c.b16 %v372, %v368
        %v433 = vpack.c.b16 %v377, %v373
        %v434 = vpack.c.b16 %v378, %v374
        %v435 = vpack.c.b16 %v379, %v375
        %v436 = vpack.c.b16 %v380, %v376
        %v437 = vpack.c.b16 %v385, %v381
        %v438 = vpack.c.b16 %v386, %v382
        %v439 = vpack.c.b16 %v387, %v383
        %v440 = vpack.c.b16 %v388, %v384
        %v441 = vpack.c.b16 %v393, %v389
        %v442 = vpack.c.b16 %v394, %v390
        %v443 = vpack.c.b16 %v395, %v391
        %v444 = vpack.c.b16 %v396, %v392
        %v445 = vpack.c.b16 %v401, %v397
        %v446 = vpack.c.b16 %v402, %v398
        %v447 = vpack.c.b16 %v403, %v399
        %v448 = vpack.c.b16 %v404, %v400
        %v449 = vpack.c.b16 %v409, %v405
        %v450 = vpack.c.b16 %v410, %v406
        %v451 = vpack.c.b16 %v411, %v407
        %v452 = vpack.c.b16 %v412, %v408
        %v453 = vpack.c.b16 %v417, %v413
        %v454 = vpack.c.b16 %v418, %v414
        %v455 = vpack.c.b16 %v419, %v415
        %v456 = vpack.c.b16 %v420, %v416
        %vm493 = vcmask 130048
        %v495 = vsel %vm493, %v311, 0
        %497 = vmatpush.bf16.msra.mxu0 %v449
        %498 = vmatpush.bf16.msra.mxu0 %v445
        %499 = vmatpush.bf16.msra.mxu0 %v441
        %500 = vmatpush.bf16.msra.mxu0 %v437
        %501 = vmatpush.bf16.msra.mxu0 %v433
        %502 = vmatpush.bf16.msra.mxu0 %v429
        %503 = vmatpush.bf16.msra.mxu0 %v425
        %504 = vmatpush.bf16.msra.mxu0 %v421
        %505 = vmatmul.bf16.gmra.mxu0 %v310
        %v506 = vpop.f32.mrf.mxu0
        %v507 = vadd.f32 %v305, %v506
        %v508 = vpop.f32.mrf.mxu0
        %509 = vdwg.mxu0
        %510 = vmatpush.bf16.msra.mxu0 0
        %511 = vmatpush.bf16.msra.mxu0 0
        %512 = vmatpush.bf16.msra.mxu0 0
        %513 = vmatpush.bf16.msra.mxu0 0
        %514 = vmatpush.bf16.msra.mxu0 0
        %515 = vmatpush.bf16.msra.mxu0 0
        %516 = vmatpush.bf16.msra.mxu0 0
        %517 = vmatpush.bf16.msra.mxu0 %v453
        %518 = vmatmul.bf16.gmra.mxu0 %v495
        %v519 = vpop.f32.mrf.mxu0
        %v520 = vadd.f32 %v507, %v519
        %v521 = vpop.f32.mrf.mxu0
        %522 = vdwg.mxu0
        %523 = vmatpush.bf16.msra.mxu0 %v450
        %524 = vmatpush.bf16.msra.mxu0 %v446
        %525 = vmatpush.bf16.msra.mxu0 %v442
        %526 = vmatpush.bf16.msra.mxu0 %v438
        %527 = vmatpush.bf16.msra.mxu0 %v434
        %528 = vmatpush.bf16.msra.mxu0 %v430
        %529 = vmatpush.bf16.msra.mxu0 %v426
        %530 = vmatpush.bf16.msra.mxu0 %v422
        %531 = vmatmul.bf16.gmra.mxu0 %v310
        %v532 = vpop.f32.mrf.mxu0
        %v533 = vadd.f32 %v305, %v532
        %v534 = vpop.f32.mrf.mxu0
        %535 = vdwg.mxu0
        %536 = vmatpush.bf16.msra.mxu0 0
        %537 = vmatpush.bf16.msra.mxu0 0
        %538 = vmatpush.bf16.msra.mxu0 0
        %539 = vmatpush.bf16.msra.mxu0 0
        %540 = vmatpush.bf16.msra.mxu0 0
        %541 = vmatpush.bf16.msra.mxu0 0
        %542 = vmatpush.bf16.msra.mxu0 0
        %543 = vmatpush.bf16.msra.mxu0 %v454
        %544 = vmatmul.bf16.gmra.mxu0 %v495
        %v545 = vpop.f32.mrf.mxu0
        %v546 = vadd.f32 %v533, %v545
        %v547 = vpop.f32.mrf.mxu0
        %548 = vdwg.mxu0
        %549 = vmatpush.bf16.msra.mxu0 %v451
        %550 = vmatpush.bf16.msra.mxu0 %v447
        %551 = vmatpush.bf16.msra.mxu0 %v443
        %552 = vmatpush.bf16.msra.mxu0 %v439
        %553 = vmatpush.bf16.msra.mxu0 %v435
        %554 = vmatpush.bf16.msra.mxu0 %v431
        %555 = vmatpush.bf16.msra.mxu0 %v427
        %556 = vmatpush.bf16.msra.mxu0 %v423
        %557 = vmatmul.bf16.gmra.mxu0 %v310
        %v558 = vpop.f32.mrf.mxu0
        %v559 = vadd.f32 %v305, %v558
        %v560 = vpop.f32.mrf.mxu0
        %561 = vdwg.mxu0
        %562 = vmatpush.bf16.msra.mxu0 0
        %563 = vmatpush.bf16.msra.mxu0 0
        %564 = vmatpush.bf16.msra.mxu0 0
        %565 = vmatpush.bf16.msra.mxu0 0
        %566 = vmatpush.bf16.msra.mxu0 0
        %567 = vmatpush.bf16.msra.mxu0 0
        %568 = vmatpush.bf16.msra.mxu0 0
        %569 = vmatpush.bf16.msra.mxu0 %v455
        %570 = vmatmul.bf16.gmra.mxu0 %v495
        %v571 = vpop.f32.mrf.mxu0
        %v572 = vadd.f32 %v559, %v571
        %v573 = vpop.f32.mrf.mxu0
        %574 = vdwg.mxu0
        %575 = vmatpush.bf16.msra.mxu0 %v452
        %576 = vmatpush.bf16.msra.mxu0 %v448
        %577 = vmatpush.bf16.msra.mxu0 %v444
        %578 = vmatpush.bf16.msra.mxu0 %v440
        %579 = vmatpush.bf16.msra.mxu0 %v436
        %580 = vmatpush.bf16.msra.mxu0 %v432
        %581 = vmatpush.bf16.msra.mxu0 %v428
        %582 = vmatpush.bf16.msra.mxu0 %v424
        %583 = vmatmul.bf16.gmra.mxu0 %v310
        %v584 = vpop.f32.mrf.mxu0
        %v585 = vadd.f32 %v305, %v584
        %v586 = vpop.f32.mrf.mxu0
        %587 = vdwg.mxu0
        %588 = vmatpush.bf16.msra.mxu0 0
        %589 = vmatpush.bf16.msra.mxu0 0
        %590 = vmatpush.bf16.msra.mxu0 0
        %591 = vmatpush.bf16.msra.mxu0 0
        %592 = vmatpush.bf16.msra.mxu0 0
        %593 = vmatpush.bf16.msra.mxu0 0
        %594 = vmatpush.bf16.msra.mxu0 0
        %595 = vmatpush.bf16.msra.mxu0 %v456
        %596 = vmatmul.bf16.gmra.mxu0 %v495
        %v597 = vpop.f32.mrf.mxu0
        %v598 = vadd.f32 %v585, %v597
        %v599 = vpop.f32.mrf.mxu0
        %600 = vdwg.mxu0
        %v601 = vmax.f32 %v520, 0.0
        %v602 = vmax.f32 %v546, 0.0
        %v603 = vmax.f32 %v572, 0.0
        %v604 = vmax.f32 %v598, 0.0
        %v605 = vpack.c.bf16 %v602, %v601
        %v606 = vpack.c.bf16 %v604, %v603
        %607 = vst [vmem:[%s261] sm:$0xff] %v605
        %608 = vst [vmem:[%s261 + $0x8] sm:$0xff] %v606
        %s609 = smul.u32 4, %s14
        %p610 = scmp.lt.s32.totalorder %s609, 7
        %s611 = scalar_select %p610, %s609, 7
        %s612 = smul.addr %s611, 4
        %s613 = scalar_lea.vmem %s3, %s612
        // Predicated region
        $region56: #{reg2d_forward.20} parent=50 // pred_check
          %p614 = pneg %p100
        $region57: #{reg2d_forward.20} parent=50 // pred_check_branch
          %616 = sbr.rel (%p614) target = $region59
        $region58: #{reg2d_forward.20} parent=50 // pred_region
          %s617 = smul.u32 4, %s14
        $region59: #{reg2d_forward.20} parent=50 // pred_fallthru
          _
      $region51: #{reg2d_forward.20} parent=5 // pred_fallthru
        _
      %p618 = scmp.le.s32.totalorder 2, %s9
      // Predicated region
      $region60: #{reg2d_forward.20} parent=5 // pred_check
        %p619 = pneg %p618
      $region61: #{reg2d_forward.20} parent=5 // pred_check_branch
        %621 = sbr.rel (%p619) target = $region63
      $region62: #{reg2d_forward.20} parent=5 // pred_region
        %s622 = ssub.s32 %s9, 2
        // Predicated region
        $region64: #{reg2d_forward.20} parent=62 // pred_check
          %p623 = pneg %p106
        $region65: #{reg2d_forward.20} parent=62 // pred_check_branch
          %625 = sbr.rel (%p623) target = $region67
        $region66: #{reg2d_forward.20} parent=62 // pred_region
          %s626 = smul.u32 4, %s15
          %p627 = scmp.lt.s32.totalorder %s626, 7
          %s628 = scalar_select %p627, %s626, 7
          %s629 = smul.addr %s628, 4
          %s630 = scalar_lea.vmem %s3, %s629
        $region67: #{reg2d_forward.20} parent=62 // pred_fallthru
          _
      $region63: #{reg2d_forward.20} parent=5 // pred_fallthru
        _
    $region6: #{reg2d_forward.20} parent=1 // loop_footer
      %s13 = sadd.s32 1, %s9
    $region7: #{reg2d_forward.20} parent=1 // loop_footer_branch
      %8 = sbr.rel target = $region3
    $region8: #{reg2d_forward.20} parent=1 // loop_exit
      _

// kernel: reg2d_forward.21
$region0: #{reg2d_forward.21}
  #allocation0 [shape = 'u32[]', space=smem, size = 0x4, offset = 0x4, fixed_abs, tag = 'smem constant byte address 0x4 - core index']
  #allocation1 [shape = 'u32[72,128]{1,0:T(1,128)}', space=vmem, size = 0x9000, scoped, tag = 'internal scratch']
  %s0 = inlined_call_operand.vmem [shape: bf16[16,72], index: 0, kind: input, shape index: {}]
  %s1 = inlined_call_operand.vmem [shape: bf16[72,256], index: 1, kind: input, shape index: {}]
  %s2 = inlined_call_operand.vmem [shape: f32[16,1], index: 2, kind: input, shape index: {}]
  %s3 = inlined_call_operand.vmem [shape: bf16[16,256], index: 3, kind: output, shape index: {}]
  %s4 = sld [smem:[#allocation0]]
  $region123: #{reg2d_forward.21} parent=0
    _
  %s6 = ssub.s32 1, %s4
  %s7 = scalar_select 0, %s6, %s4
  $region1: #{reg2d_forward.21} parent=0
    #allocation2 [shape = 'u8[36864]{0}', space=vmem, size = 0x9000, scoped, tag = 'input window, operand 1']
    #allocation3 [shape = 'u8[8192]{0}', space=vmem, size = 0x2000, scoped, tag = 'output window, operand 0']
    loop: start=0, step=1, limit=4
    $region2: #{reg2d_forward.21} parent=1 // loop_pre_header
      _
    $region3: #{reg2d_forward.21} parent=1 // loop_header
      %s9 = sphi 0, %s13
      %p10 = scmp.ge.s32.totalorder %s9, 4
      %s17 = sphi 0, %s17
      %s19 = sphi 0, %s17
      %s20 = sphi 0, %s19
      %s34 = sphi 0, %s20
      %s40 = sphi 0, %s42
      %s43 = sphi 0, %s40
      %s44 = sphi 0, %s43
      %s60 = sphi 0, %s44
      %s64 = sphi 0, %s64
      %s66 = sphi 0, %s64
      %s67 = sphi 0, %s66
      %s81 = sphi 0, %s67
      %s87 = sphi 0, %s89
      %s90 = sphi 0, %s87
      %s91 = sphi 0, %s90
      %s107 = sphi 0, %s91
    $region4: #{reg2d_forward.21} parent=1 // loop_header_branch
      %12 = sbr.rel (%p10) target = $region8
    $region5: #{reg2d_forward.21} parent=1 // loop_body
      %s14 = ssub.s32 %s9, 1
      %s15 = ssub.s32 %s9, 2
      %s16 = sadd.s32 %s9, 1
      %s18 = sadd.s32 %s17, 1
      %p21 = scmp.eq.s32.totalorder %s9, 1
      %p22 = scmp.ne.s32.totalorder %s17, %s19
      %p23 = scmp.eq.s32.totalorder %s9, 0
      %p24 = por %p22, %p23
      %p25 = scmp.ne.s32.totalorder %s17, %s19
      %p26 = scmp.eq.s32.totalorder %s14, 1
      %p27 = por %p25, %p26
      %p28 = scmp.ne.s32.totalorder %s19, %s20
      %p29 = scmp.eq.s32.totalorder %s14, 0
      %p30 = por %p28, %p29
      %p31 = scmp.ne.s32.totalorder %s19, %s20
      %p32 = scmp.eq.s32.totalorder %s15, 1
      %p33 = por %p31, %p32
      %p35 = scmp.ne.s32.totalorder %s20, %s34
      %p36 = scmp.eq.s32.totalorder %s15, 0
      %p37 = por %p35, %p36
      %s38 = ssub.s32 %s9, %s16
      %p39 = scmp.eq.s32.totalorder %s38, 0
      %s41 = sadd.s32 %s40, 1
      %s42 = scalar_select %p39, %s40, %s41
      %p45 = pneg %p39
      %p46 = scmp.eq.s32.totalorder %s9, 1
      %p47 = por %p45, %p46
      %p48 = scmp.ne.s32.totalorder %s40, %s43
      %p49 = scmp.eq.s32.totalorder %s9, 0
      %p50 = por %p48, %p49
      %p51 = scmp.ne.s32.totalorder %s40, %s43
      %p52 = scmp.eq.s32.totalorder %s14, 1
      %p53 = por %p51, %p52
      %p54 = scmp.ne.s32.totalorder %s43, %s44
      %p55 = scmp.eq.s32.totalorder %s14, 0
      %p56 = por %p54, %p55
      %p57 = scmp.ne.s32.totalorder %s43, %s44
      %p58 = scmp.eq.s32.totalorder %s15, 1
      %p59 = por %p57, %p58
      %p61 = scmp.ne.s32.totalorder %s44, %s60
      %p62 = scmp.eq.s32.totalorder %s15, 0
      %p63 = por %p61, %p62
      %s65 = sadd.s32 %s64, 1
      %p68 = scmp.eq.s32.totalorder %s9, 1
      %p69 = scmp.ne.s32.totalorder %s64, %s66
      %p70 = scmp.eq.s32.totalorder %s9, 0
      %p71 = por %p69, %p70
      %p72 = scmp.ne.s32.totalorder %s64, %s66
      %p73 = scmp.eq.s32.totalorder %s14, 1
      %p74 = por %p72, %p73
      %p75 = scmp.ne.s32.totalorder %s66, %s67
      %p76 = scmp.eq.s32.totalorder %s14, 0
      %p77 = por %p75, %p76
      %p78 = scmp.ne.s32.totalorder %s66, %s67
      %p79 = scmp.eq.s32.totalorder %s15, 1
      %p80 = por %p78, %p79
      %p82 = scmp.ne.s32.totalorder %s67, %s81
      %p83 = scmp.eq.s32.totalorder %s15, 0
      %p84 = por %p82, %p83
      %s85 = ssub.s32 %s9, %s16
      %p86 = scmp.eq.s32.totalorder %s85, 0
      %s88 = sadd.s32 %s87, 1
      %s89 = scalar_select %p86, %s87, %s88
      %p92 = pneg %p86
      %p93 = scmp.eq.s32.totalorder %s9, 1
      %p94 = por %p92, %p93
      %p95 = scmp.ne.s32.totalorder %s87, %s90
      %p96 = scmp.eq.s32.totalorder %s9, 0
      %p97 = por %p95, %p96
      %p98 = scmp.ne.s32.totalorder %s87, %s90
      %p99 = scmp.eq.s32.totalorder %s14, 1
      %p100 = por %p98, %p99
      %p101 = scmp.ne.s32.totalorder %s90, %s91
      %p102 = scmp.eq.s32.totalorder %s14, 0
      %p103 = por %p101, %p102
      %p104 = scmp.ne.s32.totalorder %s90, %s91
      %p105 = scmp.eq.s32.totalorder %s15, 1
      %p106 = por %p104, %p105
      %p108 = scmp.ne.s32.totalorder %s91, %s107
      %p109 = scmp.eq.s32.totalorder %s15, 0
      %p110 = por %p108, %p109
      %p111 = scmp.le.s32.totalorder 1, %s9
      %p112 = scmp.lt.s32.totalorder %s9, 3
      %p113 = pnand %p111, %p112
      %p114 = pneg %p113
      // Predicated region
      $region9: #{reg2d_forward.21} parent=5 // pred_check
        _
      $region10: #{reg2d_forward.21} parent=5 // pred_check_branch
        %116 = sbr.rel (%p113) target = $region12
      $region11: #{reg2d_forward.21} parent=5 // pred_region
        %s117 = ssub.s32 %s9, 1
        // Predicated region
        $region13: #{reg2d_forward.21} parent=11 // pred_check
          %p118 = pneg %p30
        $region14: #{reg2d_forward.21} parent=11 // pred_check_branch
          %120 = sbr.rel (%p118) target = $region16
        $region15: #{reg2d_forward.21} parent=11 // pred_region
          _
        $region16: #{reg2d_forward.21} parent=11 // pred_fallthru
          _
        // Predicated region
        $region17: #{reg2d_forward.21} parent=11 // pred_check
          %p121 = pneg %p77
        $region18: #{reg2d_forward.21} parent=11 // pred_check_branch
          %123 = sbr.rel (%p121) target = $region20
        $region19: #{reg2d_forward.21} parent=11 // pred_region
          _
        $region20: #{reg2d_forward.21} parent=11 // pred_fallthru
          _
      $region12: #{reg2d_forward.21} parent=5 // pred_fallthru
        _
      %p124 = scmp.lt.s32.totalorder %s9, 2
      // Predicated region
      $region21: #{reg2d_forward.21} parent=5 // pred_check
        %p125 = pneg %p124
      $region22: #{reg2d_forward.21} parent=5 // pred_check_branch
        %127 = sbr.rel (%p125) target = $region24
      $region23: #{reg2d_forward.21} parent=5 // pred_region
        // Predicated region
        $region25: #{reg2d_forward.21} parent=23 // pred_check
          %p128 = pneg %p50
        $region26: #{reg2d_forward.21} parent=23 // pred_check_branch
          %130 = sbr.rel (%p128) target = $region28
        $region27: #{reg2d_forward.21} parent=23 // pred_region
          %s131 = sand.u32 %s40, 1
          %s132 = sand.u32 %s40, 1
          %s133 = smul.addr %s132, 36
          %s134 = scalar_lea.vmem [#allocation2], %s133
          %s135 = smul.addr %s9, 4
          %s136 = scalar_lea.vmem %s1, %s135
          // Predicated region
          $region29: #{reg2d_forward.21} parent=27 // pred_check
            _
          $region30: #{reg2d_forward.21} parent=27 // pred_check_branch
            %138 = sbr.rel (0) target = $region32
          $region31: #{reg2d_forward.21} parent=27 // pred_region
            // Predicated region
            $region33: #{reg2d_forward.21} parent=31 // pred_check
              _
            $region34: #{reg2d_forward.21} parent=31 // pred_check_branch
              %140 = sbr.rel target = $region36
            $region35: #{reg2d_forward.21} parent=31 // pred_region
              // Predicated region
              $region48: #{reg2d_forward.21} parent=35 // pred_check
                _
              $region49: #{reg2d_forward.21} parent=35 // pred_check_branch
                %172 = sbr.rel (0) target = $region51
              $region50: #{reg2d_forward.21} parent=35 // pred_region
                loop: start=0, step=1, limit=1
                $region52: #{reg2d_forward.21} parent=50 // loop_pre_header
                  _
                $region53: #{reg2d_forward.21} parent=50 // loop_header
                  %s174 = sphi 0, %s178
                  %p175 = scmp.ge.s32.totalorder %s174, 1
                  %s179 = sphi %s136, %s136
                  %s180 = sphi %s134, %s134
                $region54: #{reg2d_forward.21} parent=50 // loop_header_branch
                  %177 = sbr.rel (%p175) target = $region58
                $region55: #{reg2d_forward.21} parent=50 // loop_body
                  _
                $region56: #{reg2d_forward.21} parent=50 // loop_footer
                  %s178 = sadd.s32 1, %s174
                $region57: #{reg2d_forward.21} parent=50 // loop_footer_branch
                  %173 = sbr.rel target = $region53
                $region58: #{reg2d_forward.21} parent=50 // loop_exit
                  _
                %s182 = ssub.s32 16, 1
                loop: start=0, step=1, limit=1
                $region59: #{reg2d_forward.21} parent=50 // loop_pre_header
                  _
                $region60: #{reg2d_forward.21} parent=50 // loop_header
                  %s184 = sphi 0, %s188
                  %p185 = scmp.ge.s32.totalorder %s184, 1
                  %s189 = sphi %s136, %s136
                  %s190 = sphi %s134, %s134
                $region61: #{reg2d_forward.21} parent=50 // loop_header_branch
                  %187 = sbr.rel (%p185) target = $region65
                $region62: #{reg2d_forward.21} parent=50 // loop_body
                  %v191 = vld [vmem:[%s189] sm:%s182]
                  %192 = vst [vmem:[%s190] sm:%s182] %v191
                  %v193 = vld [vmem:[%s189 + $0x8] sm:%s182]
                  %194 = vst [vmem:[%s190 + $0x4] sm:%s182] %v193
                  %v195 = vld [vmem:[%s189 + $0x10] sm:%s182]
                  %196 = vst [vmem:[%s190 + $0x8] sm:%s182] %v195
                  %v197 = vld [vmem:[%s189 + $0x18] sm:%s182]
                  %198 = vst [vmem:[%s190 + $0xc] sm:%s182] %v197
                  %v199 = vld [vmem:[%s189 + $0x20] sm:%s182]
                  %200 = vst [vmem:[%s190 + $0x10] sm:%s182] %v199
                  %v201 = vld [vmem:[%s189 + $0x28] sm:%s182]
                  %202 = vst [vmem:[%s190 + $0x14] sm:%s182] %v201
                  %v203 = vld [vmem:[%s189 + $0x30] sm:%s182]
                  %204 = vst [vmem:[%s190 + $0x18] sm:%s182] %v203
                  %v205 = vld [vmem:[%s189 + $0x38] sm:%s182]
                  %206 = vst [vmem:[%s190 + $0x1c] sm:%s182] %v205
                  %v207 = vld [vmem:[%s189 + $0x40] sm:%s182]
                  %208 = vst [vmem:[%s190 + $0x20] sm:%s182] %v207
                $region63: #{reg2d_forward.21} parent=50 // loop_footer
                  %s188 = sadd.s32 1, %s184
                $region64: #{reg2d_forward.21} parent=50 // loop_footer_branch
                  %183 = sbr.rel target = $region60
                $region65: #{reg2d_forward.21} parent=50 // loop_exit
                  _
              $region51: #{reg2d_forward.21} parent=35 // pred_fallthru
                _
            $region36: #{reg2d_forward.21} parent=31 // pred_fallthru
              _
            // Predicated region
            $region37: #{reg2d_forward.21} parent=31 // pred_check
              _
            $region38: #{reg2d_forward.21} parent=31 // pred_check_branch
              %142 = sbr.rel (0) target = $region40
            $region39: #{reg2d_forward.21} parent=31 // pred_region
              %s144 = ssub.s32 16, 1
              loop: start=0, step=1, limit=1
              $region41: #{reg2d_forward.21} parent=39 // loop_pre_header
                _
              $region42: #{reg2d_forward.21} parent=39 // loop_header
                %s146 = sphi 0, %s150
                %p147 = scmp.ge.s32.totalorder %s146, 1
                %s151 = sphi %s136, %s136
                %s152 = sphi %s134, %s134
              $region43: #{reg2d_forward.21} parent=39 // loop_header_branch
                %149 = sbr.rel (%p147) target = $region47
              $region44: #{reg2d_forward.21} parent=39 // loop_body
                %v153 = vld [vmem:[%s151] sm:%s144]
                %154 = vst [vmem:[%s152] sm:%s144] %v153
                %v155 = vld [vmem:[%s151 + $0x8] sm:%s144]
                %156 = vst [vmem:[%s152 + $0x4] sm:%s144] %v155
                %v157 = vld [vmem:[%s151 + $0x10] sm:%s144]
                %158 = vst [vmem:[%s152 + $0x8] sm:%s144] %v157
                %v159 = vld [vmem:[%s151 + $0x18] sm:%s144]
                %160 = vst [vmem:[%s152 + $0xc] sm:%s144] %v159
                %v161 = vld [vmem:[%s151 + $0x20] sm:%s144]
                %162 = vst [vmem:[%s152 + $0x10] sm:%s144] %v161
                %v163 = vld [vmem:[%s151 + $0x28] sm:%s144]
                %164 = vst [vmem:[%s152 + $0x14] sm:%s144] %v163
                %v165 = vld [vmem:[%s151 + $0x30] sm:%s144]
                %166 = vst [vmem:[%s152 + $0x18] sm:%s144] %v165
                %v167 = vld [vmem:[%s151 + $0x38] sm:%s144]
                %168 = vst [vmem:[%s152 + $0x1c] sm:%s144] %v167
                %v169 = vld [vmem:[%s151 + $0x40] sm:%s144]
                %170 = vst [vmem:[%s152 + $0x20] sm:%s144] %v169
              $region45: #{reg2d_forward.21} parent=39 // loop_footer
                %s150 = sadd.s32 1, %s146
              $region46: #{reg2d_forward.21} parent=39 // loop_footer_branch
                %145 = sbr.rel target = $region42
              $region47: #{reg2d_forward.21} parent=39 // loop_exit
                _
            $region40: #{reg2d_forward.21} parent=31 // pred_fallthru
              _
          $region32: #{reg2d_forward.21} parent=27 // pred_fallthru
            _
          %209 = vnop
        $region28: #{reg2d_forward.21} parent=23 // pred_fallthru
          _
      $region24: #{reg2d_forward.21} parent=5 // pred_fallthru
        _
      %p210 = scmp.le.s32.totalorder 1, %s9
      %p211 = scmp.lt.s32.totalorder %s9, 3
      %p212 = pnand %p210, %p211
      %p213 = pneg %p212
      // Predicated region
      $region66: #{reg2d_forward.21} parent=5 // pred_check
        _
      $region67: #{reg2d_forward.21} parent=5 // pred_check_branch
        %215 = sbr.rel (%p212) target = $region69
      $region68: #{reg2d_forward.21} parent=5 // pred_region
        %s216 = ssub.s32 %s9, 1
        %s217 = sand.u32 %s43, 1
        %s218 = sand.u32 %s43, 1
        %s219 = smul.addr %s218, 36
        %s220 = scalar_lea.vmem [#allocation2], %s219
        // Predicated region
        $region70: #{reg2d_forward.21} parent=68 // pred_check
          %p221 = pneg %p56
        $region71: #{reg2d_forward.21} parent=68 // pred_check_branch
          %223 = sbr.rel (%p221) target = $region73
        $region72: #{reg2d_forward.21} parent=68 // pred_region
          _
        $region73: #{reg2d_forward.21} parent=68 // pred_fallthru
          _
        %p224 = pneg %p30
        %p225 = pneg %p27
        %s226 = sand.u32 %s43, 1
        %s227 = sand.u32 %s43, 1
        %s228 = smul.addr %s227, 36
        %s229 = scalar_lea.vmem [#allocation2], %s228
        %p230 = pneg %p56
        %p231 = pneg %p53
        %p232 = pneg %p77
        %p233 = pneg %p74
        %p234 = pneg %p103
        %p235 = pneg %p100
        %s236 = sand.u32 %s90, 1
        %s237 = sand.u32 %s90, 1
        %s238 = smul.addr %s237, 8
        %s239 = scalar_lea.vmem [#allocation3], %s238
        %v241 = vld [vmem:[%s0] sm:$0xf]
        %v242 = vld [vmem:[%s0 + $0x4] sm:$0xf]
        %v243 = vld [vmem:[%s220] sm:$0xf]
        %v244 = vld [vmem:[%s220 + $0x4] sm:$0xf]
        %v245 = vld [vmem:[%s220 + $0x8] sm:$0xf]
        %v246 = vld [vmem:[%s220 + $0xc] sm:$0xf]
        %v247 = vld [vmem:[%s220 + $0x10] sm:$0xf]
        %v248 = vld [vmem:[%s220 + $0x14] sm:$0xf]
        %v249 = vld [vmem:[%s220 + $0x18] sm:$0xf]
        %v250 = vld [vmem:[%s220 + $0x1c] sm:$0xf]
        %v251 = vld [vmem:[%s220 + $0x20] sm:$0xf]
        %v252 = vld [vmem:[%s2] sm:$0xff]
        %v253 = vld [vmem:[%s2 + $0x8] sm:$0xff]
        %255 = vset.pattern.permute.xlu0 0
        %256 = vperm.xlu0 %255, %v252
        %v257 = vpop.permute.xlu0 %256
        %260 = vset.pattern.permute.xlu0 0
        %261 = vperm.xlu0 %260, %v253
        %v262 = vpop.permute.xlu0 %261
        %v266 = vunpack.c.l.b16 %v241
        %v267 = vunpack.c.l.b16 %v242
        %v268 = vpack.c.b16 %v267, %v266
        %v278 = vunpack.c.l.b16 %v243
        %v279 = vunpack.c.l.b16 %v244
        %v280 = vunpack.c.l.b16 %v245
        %v281 = vunpack.c.l.b16 %v246
        %v282 = vunpack.c.l.b16 %v247
        %v283 = vunpack.c.l.b16 %v248
        %v284 = vunpack.c.l.b16 %v249
        %v285 = vunpack.c.l.b16 %v250
        %v286 = vunpack.c.l.b16 %v251
        %v287 = vpack.c.b16 %v279, %v278
        %v288 = vpack.c.b16 %v281, %v280
        %v289 = vpack.c.b16 %v283, %v282
        %v290 = vpack.c.b16 %v285, %v284
        %v291 = vpack.c.b16 %v286, %v286
        %vm296 = vcmask 588800
        %v298 = vsel %vm296, %v268, 0
        %vm300 = vcmask 1043456
        %v302 = vsel %vm300, %v291, 0
        %304 = vmatpush.bf16.msra.mxu0 0
        %305 = vmatpush.bf16.msra.mxu0 0
        %306 = vmatpush.bf16.msra.mxu0 0
        %307 = vmatpush.bf16.msra.mxu0 %v302
        %308 = vmatpush.bf16.msra.mxu0 %v290
        %309 = vmatpush.bf16.msra.mxu0 %v289
        %310 = vmatpush.bf16.msra.mxu0 %v288
        %311 = vmatpush.bf16.msra.mxu0 %v287
        %312 = vmatmul.bf16.gmra.mxu0 %v298
        %v313 = vpop.f32.mrf.mxu0
        %v314 = vadd.f32 %v257, %v313
        %v315 = vpop.f32.mrf.mxu0
        %v316 = vadd.f32 %v262, %v315
        %317 = vdwg.mxu0
        %v318 = vmax.f32 %v314, 0.0
        %v319 = vmax.f32 %v316, 0.0
        %v320 = vpack.c.bf16 %v318, %v318
        %v321 = vpack.c.bf16 %v319, %v319
        %322 = vst [vmem:[%s239] sm:$0xf] %v320
        %323 = vst [vmem:[%s239 + $0x4] sm:$0xf] %v321
        %s324 = sand.u32 %s90, 1
        %s325 = sand.u32 %s90, 1
        %s326 = smul.addr %s325, 8
        %s327 = scalar_lea.vmem [#allocation3], %s326
        // Predicated region
        $region74: #{reg2d_forward.21} parent=68 // pred_check
          %p328 = pneg %p100
        $region75: #{reg2d_forward.21} parent=68 // pred_check_branch
          %330 = sbr.rel (%p328) target = $region77
        $region76: #{reg2d_forward.21} parent=68 // pred_region
          %s331 = smul.addr %s14, 4
          %s332 = scalar_lea.vmem %s3, %s331
          // Predicated region
          $region78: #{reg2d_forward.21} parent=76 // pred_check
            _
          $region79: #{reg2d_forward.21} parent=76 // pred_check_branch
            %334 = sbr.rel (0) target = $region81
          $region80: #{reg2d_forward.21} parent=76 // pred_region
            // Predicated region
            $region82: #{reg2d_forward.21} parent=80 // pred_check
              _
            $region83: #{reg2d_forward.21} parent=80 // pred_check_branch
              %336 = sbr.rel target = $region85
            $region84: #{reg2d_forward.21} parent=80 // pred_region
              // Predicated region
              $region97: #{reg2d_forward.21} parent=84 // pred_check
                _
              $region98: #{reg2d_forward.21} parent=84 // pred_check_branch
                %354 = sbr.rel (0) target = $region100
              $region99: #{reg2d_forward.21} parent=84 // pred_region
                loop: start=0, step=1, limit=1
                $region101: #{reg2d_forward.21} parent=99 // loop_pre_header
                  _
                $region102: #{reg2d_forward.21} parent=99 // loop_header
                  %s356 = sphi 0, %s360
                  %p357 = scmp.ge.s32.totalorder %s356, 1
                  %s361 = sphi %s327, %s327
                  %s362 = sphi %s332, %s332
                $region103: #{reg2d_forward.21} parent=99 // loop_header_branch
                  %359 = sbr.rel (%p357) target = $region107
                $region104: #{reg2d_forward.21} parent=99 // loop_body
                  _
                $region105: #{reg2d_forward.21} parent=99 // loop_footer
                  %s360 = sadd.s32 1, %s356
                $region106: #{reg2d_forward.21} parent=99 // loop_footer_branch
                  %355 = sbr.rel target = $region102
                $region107: #{reg2d_forward.21} parent=99 // loop_exit
                  _
                %s364 = ssub.s32 16, 1
                loop: start=0, step=1, limit=1
                $region108: #{reg2d_forward.21} parent=99 // loop_pre_header
                  _
                $region109: #{reg2d_forward.21} parent=99 // loop_header
                  %s366 = sphi 0, %s370
                  %p367 = scmp.ge.s32.totalorder %s366, 1
                  %s371 = sphi %s327, %s327
                  %s372 = sphi %s332, %s332
                $region110: #{reg2d_forward.21} parent=99 // loop_header_branch
                  %369 = sbr.rel (%p367) target = $region114
                $region111: #{reg2d_forward.21} parent=99 // loop_body
                  %v373 = vld [vmem:[%s371] sm:%s364]
                  %374 = vst [vmem:[%s372] sm:%s364] %v373
                  %v375 = vld [vmem:[%s371 + $0x4] sm:%s364]
                  %376 = vst [vmem:[%s372 + $0x8] sm:%s364] %v375
                $region112: #{reg2d_forward.21} parent=99 // loop_footer
                  %s370 = sadd.s32 1, %s366
                $region113: #{reg2d_forward.21} parent=99 // loop_footer_branch
                  %365 = sbr.rel target = $region109
                $region114: #{reg2d_forward.21} parent=99 // loop_exit
                  _
              $region100: #{reg2d_forward.21} parent=84 // pred_fallthru
                _
            $region85: #{reg2d_forward.21} parent=80 // pred_fallthru
              _
            // Predicated region
            $region86: #{reg2d_forward.21} parent=80 // pred_check
              _
            $region87: #{reg2d_forward.21} parent=80 // pred_check_branch
              %338 = sbr.rel (0) target = $region89
            $region88: #{reg2d_forward.21} parent=80 // pred_region
              %s340 = ssub.s32 16, 1
              loop: start=0, step=1, limit=1
              $region90: #{reg2d_forward.21} parent=88 // loop_pre_header
                _
              $region91: #{reg2d_forward.21} parent=88 // loop_header
                %s342 = sphi 0, %s346
                %p343 = scmp.ge.s32.totalorder %s342, 1
                %s347 = sphi %s327, %s327
                %s348 = sphi %s332, %s332
              $region92: #{reg2d_forward.21} parent=88 // loop_header_branch
                %345 = sbr.rel (%p343) target = $region96
              $region93: #{reg2d_forward.21} parent=88 // loop_body
                %v349 = vld [vmem:[%s347] sm:%s340]
                %350 = vst [vmem:[%s348] sm:%s340] %v349
                %v351 = vld [vmem:[%s347 + $0x4] sm:%s340]
                %352 = vst [vmem:[%s348 + $0x8] sm:%s340] %v351
              $region94: #{reg2d_forward.21} parent=88 // loop_footer
                %s346 = sadd.s32 1, %s342
              $region95: #{reg2d_forward.21} parent=88 // loop_footer_branch
                %341 = sbr.rel target = $region91
              $region96: #{reg2d_forward.21} parent=88 // loop_exit
                _
            $region89: #{reg2d_forward.21} parent=80 // pred_fallthru
              _
          $region81: #{reg2d_forward.21} parent=76 // pred_fallthru
            _
          %377 = vnop
        $region77: #{reg2d_forward.21} parent=68 // pred_fallthru
          _
      $region69: #{reg2d_forward.21} parent=5 // pred_fallthru
        _
      %p378 = scmp.le.s32.totalorder 2, %s9
      // Predicated region
      $region115: #{reg2d_forward.21} parent=5 // pred_check
        %p379 = pneg %p378
      $region116: #{reg2d_forward.21} parent=5 // pred_check_branch
        %381 = sbr.rel (%p379) target = $region118
      $region117: #{reg2d_forward.21} parent=5 // pred_region
        %s382 = ssub.s32 %s9, 2
        // Predicated region
        $region119: #{reg2d_forward.21} parent=117 // pred_check
          %p383 = pneg %p106
        $region120: #{reg2d_forward.21} parent=117 // pred_check_branch
          %385 = sbr.rel (%p383) target = $region122
        $region121: #{reg2d_forward.21} parent=117 // pred_region
          %s386 = sand.u32 %s91, 1
          %s387 = sand.u32 %s91, 1
          %s388 = smul.addr %s387, 8
          %s389 = scalar_lea.vmem [#allocation3], %s388
        $region122: #{reg2d_forward.21} parent=117 // pred_fallthru
          _
      $region118: #{reg2d_forward.21} parent=5 // pred_fallthru
        _
    $region6: #{reg2d_forward.21} parent=1 // loop_footer
      %s13 = sadd.s32 1, %s9
    $region7: #{reg2d_forward.21} parent=1 // loop_footer_branch
      %8 = sbr.rel target = $region3
    $region8: #{reg2d_forward.21} parent=1 // loop_exit
      _

// kernel: reg2d_forward.22
$region0: #{reg2d_forward.22}
  #allocation0 [shape = 'u32[]', space=smem, size = 0x4, offset = 0x4, fixed_abs, tag = 'smem constant byte address 0x4 - core index']
  #allocation1 [shape = 'u32[72,128]{1,0:T(1,128)}', space=vmem, size = 0x9000, scoped, tag = 'internal scratch']
  %s0 = inlined_call_operand.vmem [shape: bf16[16,432], index: 0, kind: input, shape index: {}]
  %s1 = inlined_call_operand.vmem [shape: bf16[432,256], index: 1, kind: input, shape index: {}]
  %s2 = inlined_call_operand.vmem [shape: f32[16,1], index: 2, kind: input, shape index: {}]
  %s3 = inlined_call_operand.vmem [shape: bf16[16,256], index: 3, kind: output, shape index: {}]
  %s4 = sld [smem:[#allocation0]]
  $region123: #{reg2d_forward.22} parent=0
    _
  %s6 = ssub.s32 1, %s4
  %s7 = scalar_select 0, %s6, %s4
  $region1: #{reg2d_forward.22} parent=0
    #allocation2 [shape = 'u8[221184]{0}', space=vmem, size = 0x36000, scoped, tag = 'input window, operand 1']
    #allocation3 [shape = 'u8[8192]{0}', space=vmem, size = 0x2000, scoped, tag = 'output window, operand 0']
    loop: start=0, step=1, limit=4
    $region2: #{reg2d_forward.22} parent=1 // loop_pre_header
      _
    $region3: #{reg2d_forward.22} parent=1 // loop_header
      %s9 = sphi 0, %s13
      %p10 = scmp.ge.s32.totalorder %s9, 4
      %s17 = sphi 0, %s17
      %s19 = sphi 0, %s17
      %s20 = sphi 0, %s19
      %s34 = sphi 0, %s20
      %s40 = sphi 0, %s42
      %s43 = sphi 0, %s40
      %s44 = sphi 0, %s43
      %s60 = sphi 0, %s44
      %s64 = sphi 0, %s64
      %s66 = sphi 0, %s64
      %s67 = sphi 0, %s66
      %s81 = sphi 0, %s67
      %s87 = sphi 0, %s89
      %s90 = sphi 0, %s87
      %s91 = sphi 0, %s90
      %s107 = sphi 0, %s91
    $region4: #{reg2d_forward.22} parent=1 // loop_header_branch
      %12 = sbr.rel (%p10) target = $region8
    $region5: #{reg2d_forward.22} parent=1 // loop_body
      %s14 = ssub.s32 %s9, 1
      %s15 = ssub.s32 %s9, 2
      %s16 = sadd.s32 %s9, 1
      %s18 = sadd.s32 %s17, 1
      %p21 = scmp.eq.s32.totalorder %s9, 1
      %p22 = scmp.ne.s32.totalorder %s17, %s19
      %p23 = scmp.eq.s32.totalorder %s9, 0
      %p24 = por %p22, %p23
      %p25 = scmp.ne.s32.totalorder %s17, %s19
      %p26 = scmp.eq.s32.totalorder %s14, 1
      %p27 = por %p25, %p26
      %p28 = scmp.ne.s32.totalorder %s19, %s20
      %p29 = scmp.eq.s32.totalorder %s14, 0
      %p30 = por %p28, %p29
      %p31 = scmp.ne.s32.totalorder %s19, %s20
      %p32 = scmp.eq.s32.totalorder %s15, 1
      %p33 = por %p31, %p32
      %p35 = scmp.ne.s32.totalorder %s20, %s34
      %p36 = scmp.eq.s32.totalorder %s15, 0
      %p37 = por %p35, %p36
      %s38 = ssub.s32 %s9, %s16
      %p39 = scmp.eq.s32.totalorder %s38, 0
      %s41 = sadd.s32 %s40, 1
      %s42 = scalar_select %p39, %s40, %s41
      %p45 = pneg %p39
      %p46 = scmp.eq.s32.totalorder %s9, 1
      %p47 = por %p45, %p46
      %p48 = scmp.ne.s32.totalorder %s40, %s43
      %p49 = scmp.eq.s32.totalorder %s9, 0
      %p50 = por %p48, %p49
      %p51 = scmp.ne.s32.totalorder %s40, %s43
      %p52 = scmp.eq.s32.totalorder %s14, 1
      %p53 = por %p51, %p52
      %p54 = scmp.ne.s32.totalorder %s43, %s44
      %p55 = scmp.eq.s32.totalorder %s14, 0
      %p56 = por %p54, %p55
      %p57 = scmp.ne.s32.totalorder %s43, %s44
      %p58 = scmp.eq.s32.totalorder %s15, 1
      %p59 = por %p57, %p58
      %p61 = scmp.ne.s32.totalorder %s44, %s60
      %p62 = scmp.eq.s32.totalorder %s15, 0
      %p63 = por %p61, %p62
      %s65 = sadd.s32 %s64, 1
      %p68 = scmp.eq.s32.totalorder %s9, 1
      %p69 = scmp.ne.s32.totalorder %s64, %s66
      %p70 = scmp.eq.s32.totalorder %s9, 0
      %p71 = por %p69, %p70
      %p72 = scmp.ne.s32.totalorder %s64, %s66
      %p73 = scmp.eq.s32.totalorder %s14, 1
      %p74 = por %p72, %p73
      %p75 = scmp.ne.s32.totalorder %s66, %s67
      %p76 = scmp.eq.s32.totalorder %s14, 0
      %p77 = por %p75, %p76
      %p78 = scmp.ne.s32.totalorder %s66, %s67
      %p79 = scmp.eq.s32.totalorder %s15, 1
      %p80 = por %p78, %p79
      %p82 = scmp.ne.s32.totalorder %s67, %s81
      %p83 = scmp.eq.s32.totalorder %s15, 0
      %p84 = por %p82, %p83
      %s85 = ssub.s32 %s9, %s16
      %p86 = scmp.eq.s32.totalorder %s85, 0
      %s88 = sadd.s32 %s87, 1
      %s89 = scalar_select %p86, %s87, %s88
      %p92 = pneg %p86
      %p93 = scmp.eq.s32.totalorder %s9, 1
      %p94 = por %p92, %p93
      %p95 = scmp.ne.s32.totalorder %s87, %s90
      %p96 = scmp.eq.s32.totalorder %s9, 0
      %p97 = por %p95, %p96
      %p98 = scmp.ne.s32.totalorder %s87, %s90
      %p99 = scmp.eq.s32.totalorder %s14, 1
      %p100 = por %p98, %p99
      %p101 = scmp.ne.s32.totalorder %s90, %s91
      %p102 = scmp.eq.s32.totalorder %s14, 0
      %p103 = por %p101, %p102
      %p104 = scmp.ne.s32.totalorder %s90, %s91
      %p105 = scmp.eq.s32.totalorder %s15, 1
      %p106 = por %p104, %p105
      %p108 = scmp.ne.s32.totalorder %s91, %s107
      %p109 = scmp.eq.s32.totalorder %s15, 0
      %p110 = por %p108, %p109
      %p111 = scmp.le.s32.totalorder 1, %s9
      %p112 = scmp.lt.s32.totalorder %s9, 3
      %p113 = pnand %p111, %p112
      %p114 = pneg %p113
      // Predicated region
      $region9: #{reg2d_forward.22} parent=5 // pred_check
        _
      $region10: #{reg2d_forward.22} parent=5 // pred_check_branch
        %116 = sbr.rel (%p113) target = $region12
      $region11: #{reg2d_forward.22} parent=5 // pred_region
        %s117 = ssub.s32 %s9, 1
        // Predicated region
        $region13: #{reg2d_forward.22} parent=11 // pred_check
          %p118 = pneg %p30
        $region14: #{reg2d_forward.22} parent=11 // pred_check_branch
          %120 = sbr.rel (%p118) target = $region16
        $region15: #{reg2d_forward.22} parent=11 // pred_region
          _
        $region16: #{reg2d_forward.22} parent=11 // pred_fallthru
          _
        // Predicated region
        $region17: #{reg2d_forward.22} parent=11 // pred_check
          %p121 = pneg %p77
        $region18: #{reg2d_forward.22} parent=11 // pred_check_branch
          %123 = sbr.rel (%p121) target = $region20
        $region19: #{reg2d_forward.22} parent=11 // pred_region
          _
        $region20: #{reg2d_forward.22} parent=11 // pred_fallthru
          _
      $region12: #{reg2d_forward.22} parent=5 // pred_fallthru
        _
      %p124 = scmp.lt.s32.totalorder %s9, 2
      // Predicated region
      $region21: #{reg2d_forward.22} parent=5 // pred_check
        %p125 = pneg %p124
      $region22: #{reg2d_forward.22} parent=5 // pred_check_branch
        %127 = sbr.rel (%p125) target = $region24
      $region23: #{reg2d_forward.22} parent=5 // pred_region
        // Predicated region
        $region25: #{reg2d_forward.22} parent=23 // pred_check
          %p128 = pneg %p50
        $region26: #{reg2d_forward.22} parent=23 // pred_check_branch
          %130 = sbr.rel (%p128) target = $region28
        $region27: #{reg2d_forward.22} parent=23 // pred_region
          %s131 = sand.u32 %s40, 1
          %s132 = sand.u32 %s40, 1
          %s133 = smul.addr %s132, 216
          %s134 = scalar_lea.vmem [#allocation2], %s133
          %s135 = smul.addr %s9, 4
          %s136 = scalar_lea.vmem %s1, %s135
          // Predicated region
          $region29: #{reg2d_forward.22} parent=27 // pred_check
            _
          $region30: #{reg2d_forward.22} parent=27 // pred_check_branch
            %138 = sbr.rel (0) target = $region32
          $region31: #{reg2d_forward.22} parent=27 // pred_region
            // Predicated region
            $region33: #{reg2d_forward.22} parent=31 // pred_check
              _
            $region34: #{reg2d_forward.22} parent=31 // pred_check_branch
              %140 = sbr.rel target = $region36
            $region35: #{reg2d_forward.22} parent=31 // pred_region
              // Predicated region
              $region48: #{reg2d_forward.22} parent=35 // pred_check
                _
              $region49: #{reg2d_forward.22} parent=35 // pred_check_branch
                %262 = sbr.rel (0) target = $region51
              $region50: #{reg2d_forward.22} parent=35 // pred_region
                loop: start=0, step=1, limit=1
                $region52: #{reg2d_forward.22} parent=50 // loop_pre_header
                  _
                $region53: #{reg2d_forward.22} parent=50 // loop_header
                  %s264 = sphi 0, %s268
                  %p265 = scmp.ge.s32.totalorder %s264, 1
                  %s269 = sphi %s136, %s136
                  %s270 = sphi %s134, %s134
                $region54: #{reg2d_forward.22} parent=50 // loop_header_branch
                  %267 = sbr.rel (%p265) target = $region58
                $region55: #{reg2d_forward.22} parent=50 // loop_body
                  _
                $region56: #{reg2d_forward.22} parent=50 // loop_footer
                  %s268 = sadd.s32 1, %s264
                $region57: #{reg2d_forward.22} parent=50 // loop_footer_branch
                  %263 = sbr.rel target = $region53
                $region58: #{reg2d_forward.22} parent=50 // loop_exit
                  _
                %s272 = ssub.s32 16, 1
                loop: start=0, step=1, limit=1
                $region59: #{reg2d_forward.22} parent=50 // loop_pre_header
                  _
                $region60: #{reg2d_forward.22} parent=50 // loop_header
                  %s274 = sphi 0, %s278
                  %p275 = scmp.ge.s32.totalorder %s274, 1
                  %s279 = sphi %s136, %s136
                  %s280 = sphi %s134, %s134
                $region61: #{reg2d_forward.22} parent=50 // loop_header_branch
                  %277 = sbr.rel (%p275) target = $region65
                $region62: #{reg2d_forward.22} parent=50 // loop_body
                  %v281 = vld [vmem:[%s279] sm:%s272]
                  %282 = vst [vmem:[%s280] sm:%s272] %v281
                  %v283 = vld [vmem:[%s279 + $0x8] sm:%s272]
                  %284 = vst [vmem:[%s280 + $0x4] sm:%s272] %v283
                  %v285 = vld [vmem:[%s279 + $0x10] sm:%s272]
                  %286 = vst [vmem:[%s280 + $0x8] sm:%s272] %v285
                  %v287 = vld [vmem:[%s279 + $0x18] sm:%s272]
                  %288 = vst [vmem:[%s280 + $0xc] sm:%s272] %v287
                  %v289 = vld [vmem:[%s279 + $0x20] sm:%s272]
                  %290 = vst [vmem:[%s280 + $0x10] sm:%s272] %v289
                  %v291 = vld [vmem:[%s279 + $0x28] sm:%s272]
                  %292 = vst [vmem:[%s280 + $0x14] sm:%s272] %v291
                  %v293 = vld [vmem:[%s279 + $0x30] sm:%s272]
                  %294 = vst [vmem:[%s280 + $0x18] sm:%s272] %v293
                  %v295 = vld [vmem:[%s279 + $0x38] sm:%s272]
                  %296 = vst [vmem:[%s280 + $0x1c] sm:%s272] %v295
                  %v297 = vld [vmem:[%s279 + $0x40] sm:%s272]
                  %298 = vst [vmem:[%s280 + $0x20] sm:%s272] %v297
                  %v299 = vld [vmem:[%s279 + $0x48] sm:%s272]
                  %300 = vst [vmem:[%s280 + $0x24] sm:%s272] %v299
                  %v301 = vld [vmem:[%s279 + $0x50] sm:%s272]
                  %302 = vst [vmem:[%s280 + $0x28] sm:%s272] %v301
                  %v303 = vld [vmem:[%s279 + $0x58] sm:%s272]
                  %304 = vst [vmem:[%s280 + $0x2c] sm:%s272] %v303
                  %v305 = vld [vmem:[%s279 + $0x60] sm:%s272]
                  %306 = vst [vmem:[%s280 + $0x30] sm:%s272] %v305
                  %v307 = vld [vmem:[%s279 + $0x68] sm:%s272]
                  %308 = vst [vmem:[%s280 + $0x34] sm:%s272] %v307
                  %v309 = vld [vmem:[%s279 + $0x70] sm:%s272]
                  %310 = vst [vmem:[%s280 + $0x38] sm:%s272] %v309
                  %v311 = vld [vmem:[%s279 + $0x78] sm:%s272]
                  %312 = vst [vmem:[%s280 + $0x3c] sm:%s272] %v311
                  %v313 = vld [vmem:[%s279 + $0x80] sm:%s272]
                  %314 = vst [vmem:[%s280 + $0x40] sm:%s272] %v313
                  %v315 = vld [vmem:[%s279 + $0x88] sm:%s272]
                  %316 = vst [vmem:[%s280 + $0x44] sm:%s272] %v315
                  %v317 = vld [vmem:[%s279 + $0x90] sm:%s272]
                  %318 = vst [vmem:[%s280 + $0x48] sm:%s272] %v317
                  %v319 = vld [vmem:[%s279 + $0x98] sm:%s272]
                  %320 = vst [vmem:[%s280 + $0x4c] sm:%s272] %v319
                  %v321 = vld [vmem:[%s279 + $0xa0] sm:%s272]
                  %322 = vst [vmem:[%s280 + $0x50] sm:%s272] %v321
                  %v323 = vld [vmem:[%s279 + $0xa8] sm:%s272]
                  %324 = vst [vmem:[%s280 + $0x54] sm:%s272] %v323
                  %v325 = vld [vmem:[%s279 + $0xb0] sm:%s272]
                  %326 = vst [vmem:[%s280 + $0x58] sm:%s272] %v325
                  %v327 = vld [vmem:[%s279 + $0xb8] sm:%s272]
                  %328 = vst [vmem:[%s280 + $0x5c] sm:%s272] %v327
                  %v329 = vld [vmem:[%s279 + $0xc0] sm:%s272]
                  %330 = vst [vmem:[%s280 + $0x60] sm:%s272] %v329
                  %v331 = vld [vmem:[%s279 + $0xc8] sm:%s272]
                  %332 = vst [vmem:[%s280 + $0x64] sm:%s272] %v331
                  %v333 = vld [vmem:[%s279 + $0xd0] sm:%s272]
                  %334 = vst [vmem:[%s280 + $0x68] sm:%s272] %v333
                  %v335 = vld [vmem:[%s279 + $0xd8] sm:%s272]
                  %336 = vst [vmem:[%s280 + $0x6c] sm:%s272] %v335
                  %v337 = vld [vmem:[%s279 + $0xe0] sm:%s272]
                  %338 = vst [vmem:[%s280 + $0x70] sm:%s272] %v337
                  %v339 = vld [vmem:[%s279 + $0xe8] sm:%s272]
                  %340 = vst [vmem:[%s280 + $0x74] sm:%s272] %v339
                  %v341 = vld [vmem:[%s279 + $0xf0] sm:%s272]
                  %342 = vst [vmem:[%s280 + $0x78] sm:%s272] %v341
                  %v343 = vld [vmem:[%s279 + $0xf8] sm:%s272]
                  %344 = vst [vmem:[%s280 + $0x7c] sm:%s272] %v343
                  %v345 = vld [vmem:[%s279 + $0x100] sm:%s272]
                  %346 = vst [vmem:[%s280 + $0x80] sm:%s272] %v345
                  %v347 = vld [vmem:[%s279 + $0x108] sm:%s272]
                  %348 = vst [vmem:[%s280 + $0x84] sm:%s272] %v347
                  %v349 = vld [vmem:[%s279 + $0x110] sm:%s272]
                  %350 = vst [vmem:[%s280 + $0x88] sm:%s272] %v349
                  %v351 = vld [vmem:[%s279 + $0x118] sm:%s272]
                  %352 = vst [vmem:[%s280 + $0x8c] sm:%s272] %v351
                  %v353 = vld [vmem:[%s279 + $0x120] sm:%s272]
                  %354 = vst [vmem:[%s280 + $0x90] sm:%s272] %v353
                  %v355 = vld [vmem:[%s279 + $0x128] sm:%s272]
                  %356 = vst [vmem:[%s280 + $0x94] sm:%s272] %v355
                  %v357 = vld [vmem:[%s279 + $0x130] sm:%s272]
                  %358 = vst [vmem:[%s280 + $0x98] sm:%s272] %v357
                  %v359 = vld [vmem:[%s279 + $0x138] sm:%s272]
                  %360 = vst [vmem:[%s280 + $0x9c] sm:%s272] %v359
                  %v361 = vld [vmem:[%s279 + $0x140] sm:%s272]
                  %362 = vst [vmem:[%s280 + $0xa0] sm:%s272] %v361
                  %v363 = vld [vmem:[%s279 + $0x148] sm:%s272]
                  %364 = vst [vmem:[%s280 + $0xa4] sm:%s272] %v363
                  %v365 = vld [vmem:[%s279 + $0x150] sm:%s272]
                  %366 = vst [vmem:[%s280 + $0xa8] sm:%s272] %v365
                  %v367 = vld [vmem:[%s279 + $0x158] sm:%s272]
                  %368 = vst [vmem:[%s280 + $0xac] sm:%s272] %v367
                  %v369 = vld [vmem:[%s279 + $0x160] sm:%s272]
                  %370 = vst [vmem:[%s280 + $0xb0] sm:%s272] %v369
                  %v371 = vld [vmem:[%s279 + $0x168] sm:%s272]
                  %372 = vst [vmem:[%s280 + $0xb4] sm:%s272] %v371
                  %v373 = vld [vmem:[%s279 + $0x170] sm:%s272]
                  %374 = vst [vmem:[%s280 + $0xb8] sm:%s272] %v373
                  %v375 = vld [vmem:[%s279 + $0x178] sm:%s272]
                  %376 = vst [vmem:[%s280 + $0xbc] sm:%s272] %v375
                  %v377 = vld [vmem:[%s279 + $0x180] sm:%s272]
                  %378 = vst [vmem:[%s280 + $0xc0] sm:%s272] %v377
                  %v379 = vld [vmem:[%s279 + $0x188] sm:%s272]
                  %380 = vst [vmem:[%s280 + $0xc4] sm:%s272] %v379
                  %v381 = vld [vmem:[%s279 + $0x190] sm:%s272]
                  %382 = vst [vmem:[%s280 + $0xc8] sm:%s272] %v381
                  %v383 = vld [vmem:[%s279 + $0x198] sm:%s272]
                  %384 = vst [vmem:[%s280 + $0xcc] sm:%s272] %v383
                  %v385 = vld [vmem:[%s279 + $0x1a0] sm:%s272]
                  %386 = vst [vmem:[%s280 + $0xd0] sm:%s272] %v385
                  %v387 = vld [vmem:[%s279 + $0x1a8] sm:%s272]
                  %388 = vst [vmem:[%s280 + $0xd4] sm:%s272] %v387
                $region63: #{reg2d_forward.22} parent=50 // loop_footer
                  %s278 = sadd.s32 1, %s274
                $region64: #{reg2d_forward.22} parent=50 // loop_footer_branch
                  %273 = sbr.rel target = $region60
                $region65: #{reg2d_forward.22} parent=50 // loop_exit
                  _
              $region51: #{reg2d_forward.22} parent=35 // pred_fallthru
                _
            $region36: #{reg2d_forward.22} parent=31 // pred_fallthru
              _
            // Predicated region
            $region37: #{reg2d_forward.22} parent=31 // pred_check
              _
            $region38: #{reg2d_forward.22} parent=31 // pred_check_branch
              %142 = sbr.rel (0) target = $region40
            $region39: #{reg2d_forward.22} parent=31 // pred_region
              %s144 = ssub.s32 16, 1
              loop: start=0, step=1, limit=1
              $region41: #{reg2d_forward.22} parent=39 // loop_pre_header
                _
              $region42: #{reg2d_forward.22} parent=39 // loop_header
                %s146 = sphi 0, %s150
                %p147 = scmp.ge.s32.totalorder %s146, 1
                %s151 = sphi %s136, %s136
                %s152 = sphi %s134, %s134
              $region43: #{reg2d_forward.22} parent=39 // loop_header_branch
                %149 = sbr.rel (%p147) target = $region47
              $region44: #{reg2d_forward.22} parent=39 // loop_body
                %v153 = vld [vmem:[%s151] sm:%s144]
                %154 = vst [vmem:[%s152] sm:%s144] %v153
                %v155 = vld [vmem:[%s151 + $0x8] sm:%s144]
                %156 = vst [vmem:[%s152 + $0x4] sm:%s144] %v155
                %v157 = vld [vmem:[%s151 + $0x10] sm:%s144]
                %158 = vst [vmem:[%s152 + $0x8] sm:%s144] %v157
                %v159 = vld [vmem:[%s151 + $0x18] sm:%s144]
                %160 = vst [vmem:[%s152 + $0xc] sm:%s144] %v159
                %v161 = vld [vmem:[%s151 + $0x20] sm:%s144]
                %162 = vst [vmem:[%s152 + $0x10] sm:%s144] %v161
                %v163 = vld [vmem:[%s151 + $0x28] sm:%s144]
                %164 = vst [vmem:[%s152 + $0x14] sm:%s144] %v163
                %v165 = vld [vmem:[%s151 + $0x30] sm:%s144]
                %166 = vst [vmem:[%s152 + $0x18] sm:%s144] %v165
                %v167 = vld [vmem:[%s151 + $0x38] sm:%s144]
                %168 = vst [vmem:[%s152 + $0x1c] sm:%s144] %v167
                %v169 = vld [vmem:[%s151 + $0x40] sm:%s144]
                %170 = vst [vmem:[%s152 + $0x20] sm:%s144] %v169
                %v171 = vld [vmem:[%s151 + $0x48] sm:%s144]
                %172 = vst [vmem:[%s152 + $0x24] sm:%s144] %v171
                %v173 = vld [vmem:[%s151 + $0x50] sm:%s144]
                %174 = vst [vmem:[%s152 + $0x28] sm:%s144] %v173
                %v175 = vld [vmem:[%s151 + $0x58] sm:%s144]
                %176 = vst [vmem:[%s152 + $0x2c] sm:%s144] %v175
                %v177 = vld [vmem:[%s151 + $0x60] sm:%s144]
                %178 = vst [vmem:[%s152 + $0x30] sm:%s144] %v177
                %v179 = vld [vmem:[%s151 + $0x68] sm:%s144]
                %180 = vst [vmem:[%s152 + $0x34] sm:%s144] %v179
                %v181 = vld [vmem:[%s151 + $0x70] sm:%s144]
                %182 = vst [vmem:[%s152 + $0x38] sm:%s144] %v181
                %v183 = vld [vmem:[%s151 + $0x78] sm:%s144]
                %184 = vst [vmem:[%s152 + $0x3c] sm:%s144] %v183
                %v185 = vld [vmem:[%s151 + $0x80] sm:%s144]
                %186 = vst [vmem:[%s152 + $0x40] sm:%s144] %v185
                %v187 = vld [vmem:[%s151 + $0x88] sm:%s144]
                %188 = vst [vmem:[%s152 + $0x44] sm:%s144] %v187
                %v189 = vld [vmem:[%s151 + $0x90] sm:%s144]
                %190 = vst [vmem:[%s152 + $0x48] sm:%s144] %v189
                %v191 = vld [vmem:[%s151 + $0x98] sm:%s144]
                %192 = vst [vmem:[%s152 + $0x4c] sm:%s144] %v191
                %v193 = vld [vmem:[%s151 + $0xa0] sm:%s144]
                %194 = vst [vmem:[%s152 + $0x50] sm:%s144] %v193
                %v195 = vld [vmem:[%s151 + $0xa8] sm:%s144]
                %196 = vst [vmem:[%s152 + $0x54] sm:%s144] %v195
                %v197 = vld [vmem:[%s151 + $0xb0] sm:%s144]
                %198 = vst [vmem:[%s152 + $0x58] sm:%s144] %v197
                %v199 = vld [vmem:[%s151 + $0xb8] sm:%s144]
                %200 = vst [vmem:[%s152 + $0x5c] sm:%s144] %v199
                %v201 = vld [vmem:[%s151 + $0xc0] sm:%s144]
                %202 = vst [vmem:[%s152 + $0x60] sm:%s144] %v201
                %v203 = vld [vmem:[%s151 + $0xc8] sm:%s144]
                %204 = vst [vmem:[%s152 + $0x64] sm:%s144] %v203
                %v205 = vld [vmem:[%s151 + $0xd0] sm:%s144]
                %206 = vst [vmem:[%s152 + $0x68] sm:%s144] %v205
                %v207 = vld [vmem:[%s151 + $0xd8] sm:%s144]
                %208 = vst [vmem:[%s152 + $0x6c] sm:%s144] %v207
                %v209 = vld [vmem:[%s151 + $0xe0] sm:%s144]
                %210 = vst [vmem:[%s152 + $0x70] sm:%s144] %v209
                %v211 = vld [vmem:[%s151 + $0xe8] sm:%s144]
                %212 = vst [vmem:[%s152 + $0x74] sm:%s144] %v211
                %v213 = vld [vmem:[%s151 + $0xf0] sm:%s144]
                %214 = vst [vmem:[%s152 + $0x78] sm:%s144] %v213
                %v215 = vld [vmem:[%s151 + $0xf8] sm:%s144]
                %216 = vst [vmem:[%s152 + $0x7c] sm:%s144] %v215
                %v217 = vld [vmem:[%s151 + $0x100] sm:%s144]
                %218 = vst [vmem:[%s152 + $0x80] sm:%s144] %v217
                %v219 = vld [vmem:[%s151 + $0x108] sm:%s144]
                %220 = vst [vmem:[%s152 + $0x84] sm:%s144] %v219
                %v221 = vld [vmem:[%s151 + $0x110] sm:%s144]
                %222 = vst [vmem:[%s152 + $0x88] sm:%s144] %v221
                %v223 = vld [vmem:[%s151 + $0x118] sm:%s144]
                %224 = vst [vmem:[%s152 + $0x8c] sm:%s144] %v223
                %v225 = vld [vmem:[%s151 + $0x120] sm:%s144]
                %226 = vst [vmem:[%s152 + $0x90] sm:%s144] %v225
                %v227 = vld [vmem:[%s151 + $0x128] sm:%s144]
                %228 = vst [vmem:[%s152 + $0x94] sm:%s144] %v227
                %v229 = vld [vmem:[%s151 + $0x130] sm:%s144]
                %230 = vst [vmem:[%s152 + $0x98] sm:%s144] %v229
                %v231 = vld [vmem:[%s151 + $0x138] sm:%s144]
                %232 = vst [vmem:[%s152 + $0x9c] sm:%s144] %v231
                %v233 = vld [vmem:[%s151 + $0x140] sm:%s144]
                %234 = vst [vmem:[%s152 + $0xa0] sm:%s144] %v233
                %v235 = vld [vmem:[%s151 + $0x148] sm:%s144]
                %236 = vst [vmem:[%s152 + $0xa4] sm:%s144] %v235
                %v237 = vld [vmem:[%s151 + $0x150] sm:%s144]
                %238 = vst [vmem:[%s152 + $0xa8] sm:%s144] %v237
                %v239 = vld [vmem:[%s151 + $0x158] sm:%s144]
                %240 = vst [vmem:[%s152 + $0xac] sm:%s144] %v239
                %v241 = vld [vmem:[%s151 + $0x160] sm:%s144]
                %242 = vst [vmem:[%s152 + $0xb0] sm:%s144] %v241
                %v243 = vld [vmem:[%s151 + $0x168] sm:%s144]
                %244 = vst [vmem:[%s152 + $0xb4] sm:%s144] %v243
                %v245 = vld [vmem:[%s151 + $0x170] sm:%s144]
                %246 = vst [vmem:[%s152 + $0xb8] sm:%s144] %v245
                %v247 = vld [vmem:[%s151 + $0x178] sm:%s144]
                %248 = vst [vmem:[%s152 + $0xbc] sm:%s144] %v247
                %v249 = vld [vmem:[%s151 + $0x180] sm:%s144]
                %250 = vst [vmem:[%s152 + $0xc0] sm:%s144] %v249
                %v251 = vld [vmem:[%s151 + $0x188] sm:%s144]
                %252 = vst [vmem:[%s152 + $0xc4] sm:%s144] %v251
                %v253 = vld [vmem:[%s151 + $0x190] sm:%s144]
                %254 = vst [vmem:[%s152 + $0xc8] sm:%s144] %v253
                %v255 = vld [vmem:[%s151 + $0x198] sm:%s144]
                %256 = vst [vmem:[%s152 + $0xcc] sm:%s144] %v255
                %v257 = vld [vmem:[%s151 + $0x1a0] sm:%s144]
                %258 = vst [vmem:[%s152 + $0xd0] sm:%s144] %v257
                %v259 = vld [vmem:[%s151 + $0x1a8] sm:%s144]
                %260 = vst [vmem:[%s152 + $0xd4] sm:%s144] %v259
              $region45: #{reg2d_forward.22} parent=39 // loop_footer
                %s150 = sadd.s32 1, %s146
              $region46: #{reg2d_forward.22} parent=39 // loop_footer_branch
                %145 = sbr.rel target = $region42
              $region47: #{reg2d_forward.22} parent=39 // loop_exit
                _
            $region40: #{reg2d_forward.22} parent=31 // pred_fallthru
              _
          $region32: #{reg2d_forward.22} parent=27 // pred_fallthru
            _
          %389 = vnop
        $region28: #{reg2d_forward.22} parent=23 // pred_fallthru
          _
      $region24: #{reg2d_forward.22} parent=5 // pred_fallthru
        _
      %p390 = scmp.le.s32.totalorder 1, %s9
      %p391 = scmp.lt.s32.totalorder %s9, 3
      %p392 = pnand %p390, %p391
      %p393 = pneg %p392
      // Predicated region
      $region66: #{reg2d_forward.22} parent=5 // pred_check
        _
      $region67: #{reg2d_forward.22} parent=5 // pred_check_branch
        %395 = sbr.rel (%p392) target = $region69
      $region68: #{reg2d_forward.22} parent=5 // pred_region
        %s396 = ssub.s32 %s9, 1
        %s397 = sand.u32 %s43, 1
        %s398 = sand.u32 %s43, 1
        %s399 = smul.addr %s398, 216
        %s400 = scalar_lea.vmem [#allocation2], %s399
        // Predicated region
        $region70: #{reg2d_forward.22} parent=68 // pred_check
          %p401 = pneg %p56
        $region71: #{reg2d_forward.22} parent=68 // pred_check_branch
          %403 = sbr.rel (%p401) target = $region73
        $region72: #{reg2d_forward.22} parent=68 // pred_region
          _
        $region73: #{reg2d_forward.22} parent=68 // pred_fallthru
          _
        %p404 = pneg %p30
        %p405 = pneg %p27
        %s406 = sand.u32 %s43, 1
        %s407 = sand.u32 %s43, 1
        %s408 = smul.addr %s407, 216
        %s409 = scalar_lea.vmem [#allocation2], %s408
        %p410 = pneg %p56
        %p411 = pneg %p53
        %p412 = pneg %p77
        %p413 = pneg %p74
        %p414 = pneg %p103
        %p415 = pneg %p100
        %s416 = sand.u32 %s90, 1
        %s417 = sand.u32 %s90, 1
        %s418 = smul.addr %s417, 8
        %s419 = scalar_lea.vmem [#allocation3], %s418
        %v421 = vld [vmem:[%s0] sm:$0xff]
        %v422 = vld [vmem:[%s0 + $0x8] sm:$0xff]
        %v423 = vld [vmem:[%s0 + $0x10] sm:$0xff]
        %v424 = vld [vmem:[%s0 + $0x18] sm:$0xff]
        %v425 = vld [vmem:[%s400] sm:$0xf]
        %v426 = vld [vmem:[%s400 + $0x4] sm:$0xf]
        %v427 = vld [vmem:[%s400 + $0x8] sm:$0xf]
        %v428 = vld [vmem:[%s400 + $0xc] sm:$0xf]
        %v429 = vld [vmem:[%s400 + $0x10] sm:$0xf]
        %v430 = vld [vmem:[%s400 + $0x14] sm:$0xf]
        %v431 = vld [vmem:[%s400 + $0x18] sm:$0xf]
        %v432 = vld [vmem:[%s400 + $0x1c] sm:$0xf]
        %v433 = vld [vmem:[%s400 + $0x20] sm:$0xf]
        %v434 = vld [vmem:[%s400 + $0x24] sm:$0xf]
        %v435 = vld [vmem:[%s400 + $0x28] sm:$0xf]
        %v436 = vld [vmem:[%s400 + $0x2c] sm:$0xf]
        %v437 = vld [vmem:[%s400 + $0x30] sm:$0xf]
        %v438 = vld [vmem:[%s400 + $0x34] sm:$0xf]
        %v439 = vld [vmem:[%s400 + $0x38] sm:$0xf]
        %v440 = vld [vmem:[%s400 + $0x3c] sm:$0xf]
        %v441 = vld [vmem:[%s400 + $0x40] sm:$0xf]
        %v442 = vld [vmem:[%s400 + $0x44] sm:$0xf]
        %v443 = vld [vmem:[%s400 + $0x48] sm:$0xf]
        %v444 = vld [vmem:[%s400 + $0x4c] sm:$0xf]
        %v445 = vld [vmem:[%s400 + $0x50] sm:$0xf]
        %v446 = vld [vmem:[%s400 + $0x54] sm:$0xf]
        %v447 = vld [vmem:[%s400 + $0x58] sm:$0xf]
        %v448 = vld [vmem:[%s400 + $0x5c] sm:$0xf]
        %v449 = vld [vmem:[%s400 + $0x60] sm:$0xf]
        %v450 = vld [vmem:[%s400 + $0x64] sm:$0xf]
        %v451 = vld [vmem:[%s400 + $0x68] sm:$0xf]
        %v452 = vld [vmem:[%s400 + $0x6c] sm:$0xf]
        %v453 = vld [vmem:[%s400 + $0x70] sm:$0xf]
        %v454 = vld [vmem:[%s400 + $0x74] sm:$0xf]
        %v455 = vld [vmem:[%s400 + $0x78] sm:$0xf]
        %v456 = vld [vmem:[%s400 + $0x7c] sm:$0xf]
        %v457 = vld [vmem:[%s400 + $0x80] sm:$0xf]
        %v458 = vld [vmem:[%s400 + $0x84] sm:$0xf]
        %v459 = vld [vmem:[%s400 + $0x88] sm:$0xf]
        %v460 = vld [vmem:[%s400 + $0x8c] sm:$0xf]
        %v461 = vld [vmem:[%s400 + $0x90] sm:$0xf]
        %v462 = vld [vmem:[%s400 + $0x94] sm:$0xf]
        %v463 = vld [vmem:[%s400 + $0x98] sm:$0xf]
        %v464 = vld [vmem:[%s400 + $0x9c] sm:$0xf]
        %v465 = vld [vmem:[%s400 + $0xa0] sm:$0xf]
        %v466 = vld [vmem:[%s400 + $0xa4] sm:$0xf]
        %v467 = vld [vmem:[%s400 + $0xa8] sm:$0xf]
        %v468 = vld [vmem:[%s400 + $0xac] sm:$0xf]
        %v469 = vld [vmem:[%s400 + $0xb0] sm:$0xf]
        %v470 = vld [vmem:[%s400 + $0xb4] sm:$0xf]
        %v471 = vld [vmem:[%s400 + $0xb8] sm:$0xf]
        %v472 = vld [vmem:[%s400 + $0xbc] sm:$0xf]
        %v473 = vld [vmem:[%s400 + $0xc0] sm:$0xf]
        %v474 = vld [vmem:[%s400 + $0xc4] sm:$0xf]
        %v475 = vld [vmem:[%s400 + $0xc8] sm:$0xf]
        %v476 = vld [vmem:[%s400 + $0xcc] sm:$0xf]
        %v477 = vld [vmem:[%s400 + $0xd0] sm:$0xf]
        %v478 = vld [vmem:[%s400 + $0xd4] sm:$0xf]
        %v479 = vld [vmem:[%s2] sm:$0xff]
        %v480 = vld [vmem:[%s2 + $0x8] sm:$0xff]
        %482 = vset.pattern.permute.xlu0 0
        %483 = vperm.xlu0 %482, %v479
        %v484 = vpop.permute.xlu0 %483
        %487 = vset.pattern.permute.xlu0 0
        %488 = vperm.xlu0 %487, %v480
        %v489 = vpop.permute.xlu0 %488
        %v495 = vunpack.c.l.b16 %v421
        %v496 = vunpack.c.h.b16 %v421
        %v497 = vunpack.c.l.b16 %v422
        %v498 = vunpack.c.h.b16 %v422
        %v499 = vunpack.c.l.b16 %v423
        %v500 = vunpack.c.h.b16 %v423
        %v501 = vunpack.c.l.b16 %v424
        %v502 = vunpack.c.h.b16 %v424
        %v503 = vpack.c.b16 %v499, %v495
        %v504 = vpack.c.b16 %v500, %v496
        %v505 = vpack.c.b16 %v501, %v497
        %v506 = vpack.c.b16 %v502, %v498
        %v564 = vunpack.c.l.b16 %v425
        %v565 = vunpack.c.l.b16 %v426
        %v566 = vunpack.c.l.b16 %v427
        %v567 = vunpack.c.l.b16 %v428
        %v568 = vunpack.c.l.b16 %v429
        %v569 = vunpack.c.l.b16 %v430
        %v570 = vunpack.c.l.b16 %v431
        %v571 = vunpack.c.l.b16 %v432
        %v572 = vunpack.c.l.b16 %v433
        %v573 = vunpack.c.l.b16 %v434
        %v574 = vunpack.c.l.b16 %v435
        %v575 = vunpack.c.l.b16 %v436
        %v576 = vunpack.c.l.b16 %v437
        %v577 = vunpack.c.l.b16 %v438
        %v578 = vunpack.c.l.b16 %v439
        %v579 = vunpack.c.l.b16 %v440
        %v580 = vunpack.c.l.b16 %v441
        %v581 = vunpack.c.l.b16 %v442
        %v582 = vunpack.c.l.b16 %v443
        %v583 = vunpack.c.l.b16 %v444
        %v584 = vunpack.c.l.b16 %v445
        %v585 = vunpack.c.l.b16 %v446
        %v586 = vunpack.c.l.b16 %v447
        %v587 = vunpack.c.l.b16 %v448
        %v588 = vunpack.c.l.b16 %v449
        %v589 = vunpack.c.l.b16 %v450
        %v590 = vunpack.c.l.b16 %v451
        %v591 = vunpack.c.l.b16 %v452
        %v592 = vunpack.c.l.b16 %v453
        %v593 = vunpack.c.l.b16 %v454
        %v594 = vunpack.c.l.b16 %v455
        %v595 = vunpack.c.l.b16 %v456
        %v596 = vunpack.c.l.b16 %v457
        %v597 = vunpack.c.l.b16 %v458
        %v598 = vunpack.c.l.b16 %v459
        %v599 = vunpack.c.l.b16 %v460
        %v600 = vunpack.c.l.b16 %v461
        %v601 = vunpack.c.l.b16 %v462
        %v602 = vunpack.c.l.b16 %v463
        %v603 = vunpack.c.l.b16 %v464
        %v604 = vunpack.c.l.b16 %v465
        %v605 = vunpack.c.l.b16 %v466
        %v606 = vunpack.c.l.b16 %v467
        %v607 = vunpack.c.l.b16 %v468
        %v608 = vunpack.c.l.b16 %v469
        %v609 = vunpack.c.l.b16 %v470
        %v610 = vunpack.c.l.b16 %v471
        %v611 = vunpack.c.l.b16 %v472
        %v612 = vunpack.c.l.b16 %v473
        %v613 = vunpack.c.l.b16 %v474
        %v614 = vunpack.c.l.b16 %v475
        %v615 = vunpack.c.l.b16 %v476
        %v616 = vunpack.c.l.b16 %v477
        %v617 = vunpack.c.l.b16 %v478
        %v618 = vpack.c.b16 %v565, %v564
        %v619 = vpack.c.b16 %v567, %v566
        %v620 = vpack.c.b16 %v569, %v568
        %v621 = vpack.c.b16 %v571, %v570
        %v622 = vpack.c.b16 %v573, %v572
        %v623 = vpack.c.b16 %v575, %v574
        %v624 = vpack.c.b16 %v577, %v576
        %v625 = vpack.c.b16 %v579, %v578
        %v626 = vpack.c.b16 %v581, %v580
        %v627 = vpack.c.b16 %v583, %v582
        %v628 = vpack.c.b16 %v585, %v584
        %v629 = vpack.c.b16 %v587, %v586
        %v630 = vpack.c.b16 %v589, %v588
        %v631 = vpack.c.b16 %v591, %v590
        %v632 = vpack.c.b16 %v593, %v592
        %v633 = vpack.c.b16 %v595, %v594
        %v634 = vpack.c.b16 %v597, %v596
        %v635 = vpack.c.b16 %v599, %v598
        %v636 = vpack.c.b16 %v601, %v600
        %v637 = vpack.c.b16 %v603, %v602
        %v638 = vpack.c.b16 %v605, %v604
        %v639 = vpack.c.b16 %v607, %v606
        %v640 = vpack.c.b16 %v609, %v608
        %v641 = vpack.c.b16 %v611, %v610
        %v642 = vpack.c.b16 %v613, %v612
        %v643 = vpack.c.b16 %v615, %v614
        %v644 = vpack.c.b16 %v617, %v616
        %vm672 = vcmask 392192
        %v674 = vsel %vm672, %v506, 0
        %676 = vmatpush.bf16.msra.mxu0 %v625
        %677 = vmatpush.bf16.msra.mxu0 %v624
        %678 = vmatpush.bf16.msra.mxu0 %v623
        %679 = vmatpush.bf16.msra.mxu0 %v622
        %680 = vmatpush.bf16.msra.mxu0 %v621
        %681 = vmatpush.bf16.msra.mxu0 %v620
        %682 = vmatpush.bf16.msra.mxu0 %v619
        %683 = vmatpush.bf16.msra.mxu0 %v618
        %684 = vmatmul.bf16.gmra.mxu0 %v503
        %v685 = vpop.f32.mrf.mxu0
        %v686 = vadd.f32 %v484, %v685
        %v687 = vpop.f32.mrf.mxu0
        %v688 = vadd.f32 %v489, %v687
        %689 = vdwg.mxu0
        %690 = vmatpush.bf16.msra.mxu0 %v633
        %691 = vmatpush.bf16.msra.mxu0 %v632
        %692 = vmatpush.bf16.msra.mxu0 %v631
        %693 = vmatpush.bf16.msra.mxu0 %v630
        %694 = vmatpush.bf16.msra.mxu0 %v629
        %695 = vmatpush.bf16.msra.mxu0 %v628
        %696 = vmatpush.bf16.msra.mxu0 %v627
        %697 = vmatpush.bf16.msra.mxu0 %v626
        %698 = vmatmul.bf16.gmra.mxu0 %v504
        %v699 = vpop.f32.mrf.mxu0
        %v700 = vadd.f32 %v686, %v699
        %v701 = vpop.f32.mrf.mxu0
        %v702 = vadd.f32 %v688, %v701
        %703 = vdwg.mxu0
        %704 = vmatpush.bf16.msra.mxu0 %v641
        %705 = vmatpush.bf16.msra.mxu0 %v640
        %706 = vmatpush.bf16.msra.mxu0 %v639
        %707 = vmatpush.bf16.msra.mxu0 %v638
        %708 = vmatpush.bf16.msra.mxu0 %v637
        %709 = vmatpush.bf16.msra.mxu0 %v636
        %710 = vmatpush.bf16.msra.mxu0 %v635
        %711 = vmatpush.bf16.msra.mxu0 %v634
        %712 = vmatmul.bf16.gmra.mxu0 %v505
        %v713 = vpop.f32.mrf.mxu0
        %v714 = vadd.f32 %v700, %v713
        %v715 = vpop.f32.mrf.mxu0
        %v716 = vadd.f32 %v702, %v715
        %717 = vdwg.mxu0
        %718 = vmatpush.bf16.msra.mxu0 0
        %719 = vmatpush.bf16.msra.mxu0 0
        %720 = vmatpush.bf16.msra.mxu0 0
        %721 = vmatpush.bf16.msra.mxu0 0
        %722 = vmatpush.bf16.msra.mxu0 0
        %723 = vmatpush.bf16.msra.mxu0 %v644
        %724 = vmatpush.bf16.msra.mxu0 %v643
        %725 = vmatpush.bf16.msra.mxu0 %v642
        %726 = vmatmul.bf16.gmra.mxu0 %v674
        %v727 = vpop.f32.mrf.mxu0
        %v728 = vadd.f32 %v714, %v727
        %v729 = vpop.f32.mrf.mxu0
        %v730 = vadd.f32 %v716, %v729
        %731 = vdwg.mxu0
        %v732 = vmax.f32 %v728, 0.0
        %v733 = vmax.f32 %v730, 0.0
        %v734 = vpack.c.bf16 %v732, %v732
        %v735 = vpack.c.bf16 %v733, %v733
        %736 = vst [vmem:[%s419] sm:$0xf] %v734
        %737 = vst [vmem:[%s419 + $0x4] sm:$0xf] %v735
        %s738 = sand.u32 %s90, 1
        %s739 = sand.u32 %s90, 1
        %s740 = smul.addr %s739, 8
        %s741 = scalar_lea.vmem [#allocation3], %s740
        // Predicated region
        $region74: #{reg2d_forward.22} parent=68 // pred_check
          %p742 = pneg %p100
        $region75: #{reg2d_forward.22} parent=68 // pred_check_branch
          %744 = sbr.rel (%p742) target = $region77
        $region76: #{reg2d_forward.22} parent=68 // pred_region
          %s745 = smul.addr %s14, 4
          %s746 = scalar_lea.vmem %s3, %s745
          // Predicated region
          $region78: #{reg2d_forward.22} parent=76 // pred_check
            _
          $region79: #{reg2d_forward.22} parent=76 // pred_check_branch
            %748 = sbr.rel (0) target = $region81
          $region80: #{reg2d_forward.22} parent=76 // pred_region
            // Predicated region
            $region82: #{reg2d_forward.22} parent=80 // pred_check
              _
            $region83: #{reg2d_forward.22} parent=80 // pred_check_branch
              %750 = sbr.rel target = $region85
            $region84: #{reg2d_forward.22} parent=80 // pred_region
              // Predicated region
              $region97: #{reg2d_forward.22} parent=84 // pred_check
                _
              $region98: #{reg2d_forward.22} parent=84 // pred_check_branch
                %768 = sbr.rel (0) target = $region100
              $region99: #{reg2d_forward.22} parent=84 // pred_region
                loop: start=0, step=1, limit=1
                $region101: #{reg2d_forward.22} parent=99 // loop_pre_header
                  _
                $region102: #{reg2d_forward.22} parent=99 // loop_header
                  %s770 = sphi 0, %s774
                  %p771 = scmp.ge.s32.totalorder %s770, 1
                  %s775 = sphi %s741, %s741
                  %s776 = sphi %s746, %s746
                $region103: #{reg2d_forward.22} parent=99 // loop_header_branch
                  %773 = sbr.rel (%p771) target = $region107
                $region104: #{reg2d_forward.22} parent=99 // loop_body
                  _
                $region105: #{reg2d_forward.22} parent=99 // loop_footer
                  %s774 = sadd.s32 1, %s770
                $region106: #{reg2d_forward.22} parent=99 // loop_footer_branch
                  %769 = sbr.rel target = $region102
                $region107: #{reg2d_forward.22} parent=99 // loop_exit
                  _
                %s778 = ssub.s32 16, 1
                loop: start=0, step=1, limit=1
                $region108: #{reg2d_forward.22} parent=99 // loop_pre_header
                  _
                $region109: #{reg2d_forward.22} parent=99 // loop_header
                  %s780 = sphi 0, %s784
                  %p781 = scmp.ge.s32.totalorder %s780, 1
                  %s785 = sphi %s741, %s741
                  %s786 = sphi %s746, %s746
                $region110: #{reg2d_forward.22} parent=99 // loop_header_branch
                  %783 = sbr.rel (%p781) target = $region114
                $region111: #{reg2d_forward.22} parent=99 // loop_body
                  %v787 = vld [vmem:[%s785] sm:%s778]
                  %788 = vst [vmem:[%s786] sm:%s778] %v787
                  %v789 = vld [vmem:[%s785 + $0x4] sm:%s778]
                  %790 = vst [vmem:[%s786 + $0x8] sm:%s778] %v789
                $region112: #{reg2d_forward.22} parent=99 // loop_footer
                  %s784 = sadd.s32 1, %s780
                $region113: #{reg2d_forward.22} parent=99 // loop_footer_branch
                  %779 = sbr.rel target = $region109
                $region114: #{reg2d_forward.22} parent=99 // loop_exit
                  _
              $region100: #{reg2d_forward.22} parent=84 // pred_fallthru
                _
            $region85: #{reg2d_forward.22} parent=80 // pred_fallthru
              _
            // Predicated region
            $region86: #{reg2d_forward.22} parent=80 // pred_check
              _
            $region87: #{reg2d_forward.22} parent=80 // pred_check_branch
              %752 = sbr.rel (0) target = $region89
            $region88: #{reg2d_forward.22} parent=80 // pred_region
              %s754 = ssub.s32 16, 1
              loop: start=0, step=1, limit=1
              $region90: #{reg2d_forward.22} parent=88 // loop_pre_header
                _
              $region91: #{reg2d_forward.22} parent=88 // loop_header
                %s756 = sphi 0, %s760
                %p757 = scmp.ge.s32.totalorder %s756, 1
                %s761 = sphi %s741, %s741
                %s762 = sphi %s746, %s746
              $region92: #{reg2d_forward.22} parent=88 // loop_header_branch
                %759 = sbr.rel (%p757) target = $region96
              $region93: #{reg2d_forward.22} parent=88 // loop_body
                %v763 = vld [vmem:[%s761] sm:%s754]
                %764 = vst [vmem:[%s762] sm:%s754] %v763
                %v765 = vld [vmem:[%s761 + $0x4] sm:%s754]
                %766 = vst [vmem:[%s762 + $0x8] sm:%s754] %v765
              $region94: #{reg2d_forward.22} parent=88 // loop_footer
                %s760 = sadd.s32 1, %s756
              $region95: #{reg2d_forward.22} parent=88 // loop_footer_branch
                %755 = sbr.rel target = $region91
              $region96: #{reg2d_forward.22} parent=88 // loop_exit
                _
            $region89: #{reg2d_forward.22} parent=80 // pred_fallthru
              _
          $region81: #{reg2d_forward.22} parent=76 // pred_fallthru
            _
          %791 = vnop
        $region77: #{reg2d_forward.22} parent=68 // pred_fallthru
          _
      $region69: #{reg2d_forward.22} parent=5 // pred_fallthru
        _
      %p792 = scmp.le.s32.totalorder 2, %s9
      // Predicated region
      $region115: #{reg2d_forward.22} parent=5 // pred_check
        %p793 = pneg %p792
      $region116: #{reg2d_forward.22} parent=5 // pred_check_branch
        %795 = sbr.rel (%p793) target = $region118
      $region117: #{reg2d_forward.22} parent=5 // pred_region
        %s796 = ssub.s32 %s9, 2
        // Predicated region
        $region119: #{reg2d_forward.22} parent=117 // pred_check
          %p797 = pneg %p106
        $region120: #{reg2d_forward.22} parent=117 // pred_check_branch
          %799 = sbr.rel (%p797) target = $region122
        $region121: #{reg2d_forward.22} parent=117 // pred_region
          %s800 = sand.u32 %s91, 1
          %s801 = sand.u32 %s91, 1
          %s802 = smul.addr %s801, 8
          %s803 = scalar_lea.vmem [#allocation3], %s802
        $region122: #{reg2d_forward.22} parent=117 // pred_fallthru
          _
      $region118: #{reg2d_forward.22} parent=5 // pred_fallthru
        _
    $region6: #{reg2d_forward.22} parent=1 // loop_footer
      %s13 = sadd.s32 1, %s9
    $region7: #{reg2d_forward.22} parent=1 // loop_footer_branch
      %8 = sbr.rel target = $region3
    $region8: #{reg2d_forward.22} parent=1 // loop_exit
      _

// kernel: reg2d_forward.23
$region0: #{reg2d_forward.23}
  #allocation0 [shape = 'u32[]', space=smem, size = 0x4, offset = 0x4, fixed_abs, tag = 'smem constant byte address 0x4 - core index']
  #allocation1 [shape = 'u32[72,128]{1,0:T(1,128)}', space=vmem, size = 0x9000, scoped, tag = 'internal scratch']
  %s0 = inlined_call_operand.vmem [shape: bf16[32,144], index: 0, kind: input, shape index: {}]
  %s1 = inlined_call_operand.vmem [shape: bf16[144,128], index: 1, kind: input, shape index: {}]
  %s2 = inlined_call_operand.vmem [shape: f32[32,1], index: 2, kind: input, shape index: {}]
  %s3 = inlined_call_operand.vmem [shape: bf16[32,128], index: 3, kind: output, shape index: {}]
  %s4 = sld [smem:[#allocation0]]
  $region22: #{reg2d_forward.23} parent=0
    _
  %s6 = ssub.s32 1, %s4
  %s7 = scalar_select 0, %s6, %s4
  // Predicated region
  $region2: #{reg2d_forward.23} parent=0 // pred_check
    _
  $region3: #{reg2d_forward.23} parent=0 // pred_check_branch
    %9 = sbr.rel (0) target = $region5
  $region4: #{reg2d_forward.23} parent=0 // pred_region
    _
  $region5: #{reg2d_forward.23} parent=0 // pred_fallthru
    _
  // Predicated region
  $region6: #{reg2d_forward.23} parent=0 // pred_check
    _
  $region7: #{reg2d_forward.23} parent=0 // pred_check_branch
    %11 = sbr.rel (0) target = $region9
  $region8: #{reg2d_forward.23} parent=0 // pred_region
    _
  $region9: #{reg2d_forward.23} parent=0 // pred_fallthru
    _
  // Predicated region
  $region10: #{reg2d_forward.23} parent=0 // pred_check
    _
  $region11: #{reg2d_forward.23} parent=0 // pred_check_branch
    %13 = sbr.rel (0) target = $region13
  $region12: #{reg2d_forward.23} parent=0 // pred_region
    _
  $region13: #{reg2d_forward.23} parent=0 // pred_fallthru
    _
  %v15 = vld [vmem:[%s0] sm:$0xff]
  %v16 = vld [vmem:[%s0 + $0x8] sm:$0xff]
  %v17 = vld [vmem:[%s0 + $0x10] sm:$0xff]
  %v18 = vld [vmem:[%s0 + $0x18] sm:$0xff]
  %v19 = vld [vmem:[%s1] sm:$0xf]
  %v20 = vld [vmem:[%s1 + $0x4] sm:$0xf]
  %v21 = vld [vmem:[%s1 + $0x8] sm:$0xf]
  %v22 = vld [vmem:[%s1 + $0xc] sm:$0xf]
  %v23 = vld [vmem:[%s1 + $0x10] sm:$0xf]
  %v24 = vld [vmem:[%s1 + $0x14] sm:$0xf]
  %v25 = vld [vmem:[%s1 + $0x18] sm:$0xf]
  %v26 = vld [vmem:[%s1 + $0x1c] sm:$0xf]
  %v27 = vld [vmem:[%s1 + $0x20] sm:$0xf]
  %v28 = vld [vmem:[%s1 + $0x24] sm:$0xf]
  %v29 = vld [vmem:[%s1 + $0x28] sm:$0xf]
  %v30 = vld [vmem:[%s1 + $0x2c] sm:$0xf]
  %v31 = vld [vmem:[%s1 + $0x30] sm:$0xf]
  %v32 = vld [vmem:[%s1 + $0x34] sm:$0xf]
  %v33 = vld [vmem:[%s1 + $0x38] sm:$0xf]
  %v34 = vld [vmem:[%s1 + $0x3c] sm:$0xf]
  %v35 = vld [vmem:[%s1 + $0x40] sm:$0xf]
  %v36 = vld [vmem:[%s1 + $0x44] sm:$0xf]
  %v37 = vld [vmem:[%s2] sm:$0xff]
  %v38 = vld [vmem:[%s2 + $0x8] sm:$0xff]
  %v39 = vld [vmem:[%s2 + $0x10] sm:$0xff]
  %v40 = vld [vmem:[%s2 + $0x18] sm:$0xff]
  %42 = vset.pattern.permute.xlu0 0
  %43 = vperm.xlu0 %42, %v37
  %v44 = vpop.permute.xlu0 %43
  %47 = vset.pattern.permute.xlu0 0
  %48 = vperm.xlu0 %47, %v38
  %v49 = vpop.permute.xlu0 %48
  %52 = vset.pattern.permute.xlu0 0
  %53 = vperm.xlu0 %52, %v39
  %v54 = vpop.permute.xlu0 %53
  %57 = vset.pattern.permute.xlu0 0
  %58 = vperm.xlu0 %57, %v40
  %v59 = vpop.permute.xlu0 %58
  %v65 = vunpack.c.l.b16 %v15
  %v66 = vunpack.c.h.b16 %v15
  %v67 = vunpack.c.l.b16 %v16
  %v68 = vunpack.c.h.b16 %v16
  %v69 = vunpack.c.l.b16 %v17
  %v70 = vunpack.c.h.b16 %v17
  %v71 = vunpack.c.l.b16 %v18
  %v72 = vunpack.c.h.b16 %v18
  %v73 = vpack.c.b16 %v67, %v65
  %v74 = vpack.c.b16 %v68, %v66
  %v75 = vpack.c.b16 %v71, %v69
  %v76 = vpack.c.b16 %v72, %v70
  %v97 = vunpack.c.l.b16 %v19
  %v98 = vunpack.c.l.b16 %v20
  %v99 = vunpack.c.l.b16 %v21
  %v100 = vunpack.c.l.b16 %v22
  %v101 = vunpack.c.l.b16 %v23
  %v102 = vunpack.c.l.b16 %v24
  %v103 = vunpack.c.l.b16 %v25
  %v104 = vunpack.c.l.b16 %v26
  %v105 = vunpack.c.l.b16 %v27
  %v106 = vunpack.c.l.b16 %v28
  %v107 = vunpack.c.l.b16 %v29
  %v108 = vunpack.c.l.b16 %v30
  %v109 = vunpack.c.l.b16 %v31
  %v110 = vunpack.c.l.b16 %v32
  %v111 = vunpack.c.l.b16 %v33
  %v112 = vunpack.c.l.b16 %v34
  %v113 = vunpack.c.l.b16 %v35
  %v114 = vunpack.c.l.b16 %v36
  %v115 = vpack.c.b16 %v98, %v97
  %v116 = vpack.c.b16 %v100, %v99
  %v117 = vpack.c.b16 %v102, %v101
  %v118 = vpack.c.b16 %v104, %v103
  %v119 = vpack.c.b16 %v106, %v105
  %v120 = vpack.c.b16 %v108, %v107
  %v121 = vpack.c.b16 %v110, %v109
  %v122 = vpack.c.b16 %v112, %v111
  %v123 = vpack.c.b16 %v114, %v113
  %vm133 = vcmask 130048
  %v135 = vsel %vm133, %v74, 0
  %v138 = vsel %vm133, %v76, 0
  %140 = vmatpush.bf16.msra.mxu0 %v122
  %141 = vmatpush.bf16.msra.mxu0 %v121
  %142 = vmatpush.bf16.msra.mxu0 %v120
  %143 = vmatpush.bf16.msra.mxu0 %v119
  %144 = vmatpush.bf16.msra.mxu0 %v118
  %145 = vmatpush.bf16.msra.mxu0 %v117
  %146 = vmatpush.bf16.msra.mxu0 %v116
  %147 = vmatpush.bf16.msra.mxu0 %v115
  %148 = vmatmul.bf16.gmra.mxu0 %v73
  %v149 = vpop.f32.mrf.mxu0
  %v150 = vadd.f32 %v44, %v149
  %v151 = vpop.f32.mrf.mxu0
  %v152 = vadd.f32 %v49, %v151
  %153 = vmatmul.bf16.gmra.mxu0 %v75
  %v154 = vpop.f32.mrf.mxu0
  %v155 = vadd.f32 %v54, %v154
  %v156 = vpop.f32.mrf.mxu0
  %v157 = vadd.f32 %v59, %v156
  %158 = vdwg.mxu0
  %159 = vmatpush.bf16.msra.mxu0 0
  %160 = vmatpush.bf16.msra.mxu0 0
  %161 = vmatpush.bf16.msra.mxu0 0
  %162 = vmatpush.bf16.msra.mxu0 0
  %163 = vmatpush.bf16.msra.mxu0 0
  %164 = vmatpush.bf16.msra.mxu0 0
  %165 = vmatpush.bf16.msra.mxu0 0
  %166 = vmatpush.bf16.msra.mxu0 %v123
  %167 = vmatmul.bf16.gmra.mxu0 %v135
  %v168 = vpop.f32.mrf.mxu0
  %v169 = vadd.f32 %v150, %v168
  %v170 = vpop.f32.mrf.mxu0
  %v171 = vadd.f32 %v152, %v170
  %172 = vmatmul.bf16.gmra.mxu0 %v138
  %v173 = vpop.f32.mrf.mxu0
  %v174 = vadd.f32 %v155, %v173
  %v175 = vpop.f32.mrf.mxu0
  %v176 = vadd.f32 %v157, %v175
  %177 = vdwg.mxu0
  %v178 = vmax.f32 %v169, 0.0
  %v179 = vmax.f32 %v171, 0.0
  %v180 = vmax.f32 %v174, 0.0
  %v181 = vmax.f32 %v176, 0.0
  %v182 = vpack.c.bf16 %v178, %v178
  %v183 = vpack.c.bf16 %v179, %v179
  %v184 = vpack.c.bf16 %v180, %v180
  %v185 = vpack.c.bf16 %v181, %v181
  %186 = vst [vmem:[%s3] sm:$0xf] %v182
  %187 = vst [vmem:[%s3 + $0x4] sm:$0xf] %v183
  %188 = vst [vmem:[%s3 + $0x8] sm:$0xf] %v184
  %189 = vst [vmem:[%s3 + $0xc] sm:$0xf] %v185
  // Predicated region
  $region14: #{reg2d_forward.23} parent=0 // pred_check
    _
  $region15: #{reg2d_forward.23} parent=0 // pred_check_branch
    %191 = sbr.rel (0) target = $region17
  $region16: #{reg2d_forward.23} parent=0 // pred_region
    _
  $region17: #{reg2d_forward.23} parent=0 // pred_fallthru
    _
  // Predicated region
  $region18: #{reg2d_forward.23} parent=0 // pred_check
    _
  $region19: #{reg2d_forward.23} parent=0 // pred_check_branch
    %193 = sbr.rel (0) target = $region21
  $region20: #{reg2d_forward.23} parent=0 // pred_region
    _
  $region21: #{reg2d_forward.23} parent=0 // pred_fallthru
    _

// kernel: reg2d_forward.24
$region0: #{reg2d_forward.24}
  #allocation0 [shape = 'u32[]', space=smem, size = 0x4, offset = 0x4, fixed_abs, tag = 'smem constant byte address 0x4 - core index']
  #allocation1 [shape = 'u32[72,128]{1,0:T(1,128)}', space=vmem, size = 0x9000, scoped, tag = 'internal scratch']
  %s0 = inlined_call_operand.vmem [shape: bf16[32,864], index: 0, kind: input, shape index: {}]
  %s1 = inlined_call_operand.vmem [shape: bf16[864,128], index: 1, kind: input, shape index: {}]
  %s2 = inlined_call_operand.vmem [shape: f32[32,1], index: 2, kind: input, shape index: {}]
  %s3 = inlined_call_operand.vmem [shape: bf16[32,128], index: 3, kind: output, shape index: {}]
  %s4 = sld [smem:[#allocation0]]
  $region22: #{reg2d_forward.24} parent=0
    _
  %s6 = ssub.s32 1, %s4
  %s7 = scalar_select 0, %s6, %s4
  // Predicated region
  $region2: #{reg2d_forward.24} parent=0 // pred_check
    _
  $region3: #{reg2d_forward.24} parent=0 // pred_check_branch
    %9 = sbr.rel (0) target = $region5
  $region4: #{reg2d_forward.24} parent=0 // pred_region
    _
  $region5: #{reg2d_forward.24} parent=0 // pred_fallthru
    _
  // Predicated region
  $region6: #{reg2d_forward.24} parent=0 // pred_check
    _
  $region7: #{reg2d_forward.24} parent=0 // pred_check_branch
    %11 = sbr.rel (0) target = $region9
  $region8: #{reg2d_forward.24} parent=0 // pred_region
    _
  $region9: #{reg2d_forward.24} parent=0 // pred_fallthru
    _
  // Predicated region
  $region10: #{reg2d_forward.24} parent=0 // pred_check
    _
  $region11: #{reg2d_forward.24} parent=0 // pred_check_branch
    %13 = sbr.rel (0) target = $region13
  $region12: #{reg2d_forward.24} parent=0 // pred_region
    _
  $region13: #{reg2d_forward.24} parent=0 // pred_fallthru
    _
  %v15 = vld [vmem:[%s0] sm:$0xff]
  %v16 = vld [vmem:[%s0 + $0x8] sm:$0xff]
  %v17 = vld [vmem:[%s0 + $0x10] sm:$0xff]
  %v18 = vld [vmem:[%s0 + $0x18] sm:$0xf]
  %v19 = vld [vmem:[%s0 + $0x1c] sm:$0xff]
  %v20 = vld [vmem:[%s0 + $0x24] sm:$0xff]
  %v21 = vld [vmem:[%s0 + $0x2c] sm:$0xff]
  %v22 = vld [vmem:[%s0 + $0x34] sm:$0xf]
  %v23 = vld [vmem:[%s0 + $0x38] sm:$0xff]
  %v24 = vld [vmem:[%s0 + $0x40] sm:$0xff]
  %v25 = vld [vmem:[%s0 + $0x48] sm:$0xff]
  %v26 = vld [vmem:[%s0 + $0x50] sm:$0xf]
  %v27 = vld [vmem:[%s0 + $0x54] sm:$0xff]
  %v28 = vld [vmem:[%s0 + $0x5c] sm:$0xff]
  %v29 = vld [vmem:[%s0 + $0x64] sm:$0xff]
  %v30 = vld [vmem:[%s0 + $0x6c] sm:$0xf]
  %v31 = vld [vmem:[%s1] sm:$0xf]
  %v32 = vld [vmem:[%s1 + $0x4] sm:$0xf]
  %v33 = vld [vmem:[%s1 + $0x8] sm:$0xf]
  %v34 = vld [vmem:[%s1 + $0xc] sm:$0xf]
  %v35 = vld [vmem:[%s1 + $0x10] sm:$0xf]
  %v36 = vld [vmem:[%s1 + $0x14] sm:$0xf]
  %v37 = vld [vmem:[%s1 + $0x18] sm:$0xf]
  %v38 = vld [vmem:[%s1 + $0x1c] sm:$0xf]
  %v39 = vld [vmem:[%s1 + $0x20] sm:$0xf]
  %v40 = vld [vmem:[%s1 + $0x24] sm:$0xf]
  %v41 = vld [vmem:[%s1 + $0x28] sm:$0xf]
  %v42 = vld [vmem:[%s1 + $0x2c] sm:$0xf]
  %v43 = vld [vmem:[%s1 + $0x30] sm:$0xf]
  %v44 = vld [vmem:[%s1 + $0x34] sm:$0xf]
  %v45 = vld [vmem:[%s1 + $0x38] sm:$0xf]
  %v46 = vld [vmem:[%s1 + $0x3c] sm:$0xf]
  %v47 = vld [vmem:[%s1 + $0x40] sm:$0xf]
  %v48 = vld [vmem:[%s1 + $0x44] sm:$0xf]
  %v49 = vld [vmem:[%s1 + $0x48] sm:$0xf]
  %v50 = vld [vmem:[%s1 + $0x4c] sm:$0xf]
  %v51 = vld [vmem:[%s1 + $0x50] sm:$0xf]
  %v52 = vld [vmem:[%s1 + $0x54] sm:$0xf]
  %v53 = vld [vmem:[%s1 + $0x58] sm:$0xf]
  %v54 = vld [vmem:[%s1 + $0x5c] sm:$0xf]
  %v55 = vld [vmem:[%s1 + $0x60] sm:$0xf]
  %v56 = vld [vmem:[%s1 + $0x64] sm:$0xf]
  %v57 = vld [vmem:[%s1 + $0x68] sm:$0xf]
  %v58 = vld [vmem:[%s1 + $0x6c] sm:$0xf]
  %v59 = vld [vmem:[%s1 + $0x70] sm:$0xf]
  %v60 = vld [vmem:[%s1 + $0x74] sm:$0xf]
  %v61 = vld [vmem:[%s1 + $0x78] sm:$0xf]
  %v62 = vld [vmem:[%s1 + $0x7c] sm:$0xf]
  %v63 = vld [vmem:[%s1 + $0x80] sm:$0xf]
  %v64 = vld [vmem:[%s1 + $0x84] sm:$0xf]
  %v65 = vld [vmem:[%s1 + $0x88] sm:$0xf]
  %v66 = vld [vmem:[%s1 + $0x8c] sm:$0xf]
  %v67 = vld [vmem:[%s1 + $0x90] sm:$0xf]
  %v68 = vld [vmem:[%s1 + $0x94] sm:$0xf]
  %v69 = vld [vmem:[%s1 + $0x98] sm:$0xf]
  %v70 = vld [vmem:[%s1 + $0x9c] sm:$0xf]
  %v71 = vld [vmem:[%s1 + $0xa0] sm:$0xf]
  %v72 = vld [vmem:[%s1 + $0xa4] sm:$0xf]
  %v73 = vld [vmem:[%s1 + $0xa8] sm:$0xf]
  %v74 = vld [vmem:[%s1 + $0xac] sm:$0xf]
  %v75 = vld [vmem:[%s1 + $0xb0] sm:$0xf]
  %v76 = vld [vmem:[%s1 + $0xb4] sm:$0xf]
  %v77 = vld [vmem:[%s1 + $0xb8] sm:$0xf]
  %v78 = vld [vmem:[%s1 + $0xbc] sm:$0xf]
  %v79 = vld [vmem:[%s1 + $0xc0] sm:$0xf]
  %v80 = vld [vmem:[%s1 + $0xc4] sm:$0xf]
  %v81 = vld [vmem:[%s1 + $0xc8] sm:$0xf]
  %v82 = vld [vmem:[%s1 + $0xcc] sm:$0xf]
  %v83 = vld [vmem:[%s1 + $0xd0] sm:$0xf]
  %v84 = vld [vmem:[%s1 + $0xd4] sm:$0xf]
  %v85 = vld [vmem:[%s1 + $0xd8] sm:$0xf]
  %v86 = vld [vmem:[%s1 + $0xdc] sm:$0xf]
  %v87 = vld [vmem:[%s1 + $0xe0] sm:$0xf]
  %v88 = vld [vmem:[%s1 + $0xe4] sm:$0xf]
  %v89 = vld [vmem:[%s1 + $0xe8] sm:$0xf]
  %v90 = vld [vmem:[%s1 + $0xec] sm:$0xf]
  %v91 = vld [vmem:[%s1 + $0xf0] sm:$0xf]
  %v92 = vld [vmem:[%s1 + $0xf4] sm:$0xf]
  %v93 = vld [vmem:[%s1 + $0xf8] sm:$0xf]
  %v94 = vld [vmem:[%s1 + $0xfc] sm:$0xf]
  %v95 = vld [vmem:[%s1 + $0x100] sm:$0xf]
  %v96 = vld [vmem:[%s1 + $0x104] sm:$0xf]
  %v97 = vld [vmem:[%s1 + $0x108] sm:$0xf]
  %v98 = vld [vmem:[%s1 + $0x10c] sm:$0xf]
  %v99 = vld [vmem:[%s1 + $0x110] sm:$0xf]
  %v100 = vld [vmem:[%s1 + $0x114] sm:$0xf]
  %v101 = vld [vmem:[%s1 + $0x118] sm:$0xf]
  %v102 = vld [vmem:[%s1 + $0x11c] sm:$0xf]
  %v103 = vld [vmem:[%s1 + $0x120] sm:$0xf]
  %v104 = vld [vmem:[%s1 + $0x124] sm:$0xf]
  %v105 = vld [vmem:[%s1 + $0x128] sm:$0xf]
  %v106 = vld [vmem:[%s1 + $0x12c] sm:$0xf]
  %v107 = vld [vmem:[%s1 + $0x130] sm:$0xf]
  %v108 = vld [vmem:[%s1 + $0x134] sm:$0xf]
  %v109 = vld [vmem:[%s1 + $0x138] sm:$0xf]
  %v110 = vld [vmem:[%s1 + $0x13c] sm:$0xf]
  %v111 = vld [vmem:[%s1 + $0x140] sm:$0xf]
  %v112 = vld [vmem:[%s1 + $0x144] sm:$0xf]
  %v113 = vld [vmem:[%s1 + $0x148] sm:$0xf]
  %v114 = vld [vmem:[%s1 + $0x14c] sm:$0xf]
  %v115 = vld [vmem:[%s1 + $0x150] sm:$0xf]
  %v116 = vld [vmem:[%s1 + $0x154] sm:$0xf]
  %v117 = vld [vmem:[%s1 + $0x158] sm:$0xf]
  %v118 = vld [vmem:[%s1 + $0x15c] sm:$0xf]
  %v119 = vld [vmem:[%s1 + $0x160] sm:$0xf]
  %v120 = vld [vmem:[%s1 + $0x164] sm:$0xf]
  %v121 = vld [vmem:[%s1 + $0x168] sm:$0xf]
  %v122 = vld [vmem:[%s1 + $0x16c] sm:$0xf]
  %v123 = vld [vmem:[%s1 + $0x170] sm:$0xf]
  %v124 = vld [vmem:[%s1 + $0x174] sm:$0xf]
  %v125 = vld [vmem:[%s1 + $0x178] sm:$0xf]
  %v126 = vld [vmem:[%s1 + $0x17c] sm:$0xf]
  %v127 = vld [vmem:[%s1 + $0x180] sm:$0xf]
  %v128 = vld [vmem:[%s1 + $0x184] sm:$0xf]
  %v129 = vld [vmem:[%s1 + $0x188] sm:$0xf]
  %v130 = vld [vmem:[%s1 + $0x18c] sm:$0xf]
  %v131 = vld [vmem:[%s1 + $0x190] sm:$0xf]
  %v132 = vld [vmem:[%s1 + $0x194] sm:$0xf]
  %v133 = vld [vmem:[%s1 + $0x198] sm:$0xf]
  %v134 = vld [vmem:[%s1 + $0x19c] sm:$0xf]
  %v135 = vld [vmem:[%s1 + $0x1a0] sm:$0xf]
  %v136 = vld [vmem:[%s1 + $0x1a4] sm:$0xf]
  %v137 = vld [vmem:[%s1 + $0x1a8] sm:$0xf]
  %v138 = vld [vmem:[%s1 + $0x1ac] sm:$0xf]
  %v139 = vld [vmem:[%s2] sm:$0xff]
  %v140 = vld [vmem:[%s2 + $0x8] sm:$0xff]
  %v141 = vld [vmem:[%s2 + $0x10] sm:$0xff]
  %v142 = vld [vmem:[%s2 + $0x18] sm:$0xff]
  %144 = vset.pattern.permute.xlu0 0
  %145 = vperm.xlu0 %144, %v139
  %v146 = vpop.permute.xlu0 %145
  %149 = vset.pattern.permute.xlu0 0
  %150 = vperm.xlu0 %149, %v140
  %v151 = vpop.permute.xlu0 %150
  %154 = vset.pattern.permute.xlu0 0
  %155 = vperm.xlu0 %154, %v141
  %v156 = vpop.permute.xlu0 %155
  %159 = vset.pattern.permute.xlu0 0
  %160 = vperm.xlu0 %159, %v142
  %v161 = vpop.permute.xlu0 %160
  %v179 = vunpack.c.l.b16 %v15
  %v180 = vunpack.c.h.b16 %v15
  %v181 = vunpack.c.l.b16 %v16
  %v182 = vunpack.c.h.b16 %v16
  %v183 = vunpack.c.l.b16 %v17
  %v184 = vunpack.c.h.b16 %v17
  %v185 = vunpack.c.l.b16 %v18
  %v186 = vunpack.c.l.b16 %v19
  %v187 = vunpack.c.h.b16 %v19
  %v188 = vunpack.c.l.b16 %v20
  %v189 = vunpack.c.h.b16 %v20
  %v190 = vunpack.c.l.b16 %v21
  %v191 = vunpack.c.h.b16 %v21
  %v192 = vunpack.c.l.b16 %v22
  %v193 = vunpack.c.l.b16 %v23
  %v194 = vunpack.c.h.b16 %v23
  %v195 = vunpack.c.l.b16 %v24
  %v196 = vunpack.c.h.b16 %v24
  %v197 = vunpack.c.l.b16 %v25
  %v198 = vunpack.c.h.b16 %v25
  %v199 = vunpack.c.l.b16 %v26
  %v200 = vunpack.c.l.b16 %v27
  %v201 = vunpack.c.h.b16 %v27
  %v202 = vunpack.c.l.b16 %v28
  %v203 = vunpack.c.h.b16 %v28
  %v204 = vunpack.c.l.b16 %v29
  %v205 = vunpack.c.h.b16 %v29
  %v206 = vunpack.c.l.b16 %v30
  %v207 = vpack.c.b16 %v186, %v179
  %v208 = vpack.c.b16 %v187, %v180
  %v209 = vpack.c.b16 %v188, %v181
  %v210 = vpack.c.b16 %v189, %v182
  %v211 = vpack.c.b16 %v190, %v183
  %v212 = vpack.c.b16 %v191, %v184
  %v213 = vpack.c.b16 %v192, %v185
  %v214 = vpack.c.b16 %v200, %v193
  %v215 = vpack.c.b16 %v201, %v194
  %v216 = vpack.c.b16 %v202, %v195
  %v217 = vpack.c.b16 %v203, %v196
  %v218 = vpack.c.b16 %v204, %v197
  %v219 = vpack.c.b16 %v205, %v198
  %v220 = vpack.c.b16 %v206, %v199
  %v341 = vunpack.c.l.b16 %v31
  %v342 = vunpack.c.l.b16 %v32
  %v343 = vunpack.c.l.b16 %v33
  %v344 = vunpack.c.l.b16 %v34
  %v345 = vunpack.c.l.b16 %v35
  %v346 = vunpack.c.l.b16 %v36
  %v347 = vunpack.c.l.b16 %v37
  %v348 = vunpack.c.l.b16 %v38
  %v349 = vunpack.c.l.b16 %v39
  %v350 = vunpack.c.l.b16 %v40
  %v351 = vunpack.c.l.b16 %v41
  %v352 = vunpack.c.l.b16 %v42
  %v353 = vunpack.c.l.b16 %v43
  %v354 = vunpack.c.l.b16 %v44
  %v355 = vunpack.c.l.b16 %v45
  %v356 = vunpack.c.l.b16 %v46
  %v357 = vunpack.c.l.b16 %v47
  %v358 = vunpack.c.l.b16 %v48
  %v359 = vunpack.c.l.b16 %v49
  %v360 = vunpack.c.l.b16 %v50
  %v361 = vunpack.c.l.b16 %v51
  %v362 = vunpack.c.l.b16 %v52
  %v363 = vunpack.c.l.b16 %v53
  %v364 = vunpack.c.l.b16 %v54
  %v365 = vunpack.c.l.b16 %v55
  %v366 = vunpack.c.l.b16 %v56
  %v367 = vunpack.c.l.b16 %v57
  %v368 = vunpack.c.l.b16 %v58
  %v369 = vunpack.c.l.b16 %v59
  %v370 = vunpack.c.l.b16 %v60
  %v371 = vunpack.c.l.b16 %v61
  %v372 = vunpack.c.l.b16 %v62
  %v373 = vunpack.c.l.b16 %v63
  %v374 = vunpack.c.l.b16 %v64
  %v375 = vunpack.c.l.b16 %v65
  %v376 = vunpack.c.l.b16 %v66
  %v377 = vunpack.c.l.b16 %v67
  %v378 = vunpack.c.l.b16 %v68
  %v379 = vunpack.c.l.b16 %v69
  %v380 = vunpack.c.l.b16 %v70
  %v381 = vunpack.c.l.b16 %v71
  %v382 = vunpack.c.l.b16 %v72
  %v383 = vunpack.c.l.b16 %v73
  %v384 = vunpack.c.l.b16 %v74
  %v385 = vunpack.c.l.b16 %v75
  %v386 = vunpack.c.l.b16 %v76
  %v387 = vunpack.c.l.b16 %v77
  %v388 = vunpack.c.l.b16 %v78
  %v389 = vunpack.c.l.b16 %v79
  %v390 = vunpack.c.l.b16 %v80
  %v391 = vunpack.c.l.b16 %v81
  %v392 = vunpack.c.l.b16 %v82
  %v393 = vunpack.c.l.b16 %v83
  %v394 = vunpack.c.l.b16 %v84
  %v395 = vunpack.c.l.b16 %v85
  %v396 = vunpack.c.l.b16 %v86
  %v397 = vunpack.c.l.b16 %v87
  %v398 = vunpack.c.l.b16 %v88
  %v399 = vunpack.c.l.b16 %v89
  %v400 = vunpack.c.l.b16 %v90
  %v401 = vunpack.c.l.b16 %v91
  %v402 = vunpack.c.l.b16 %v92
  %v403 = vunpack.c.l.b16 %v93
  %v404 = vunpack.c.l.b16 %v94
  %v405 = vunpack.c.l.b16 %v95
  %v406 = vunpack.c.l.b16 %v96
  %v407 = vunpack.c.l.b16 %v97
  %v408 = vunpack.c.l.b16 %v98
  %v409 = vunpack.c.l.b16 %v99
  %v410 = vunpack.c.l.b16 %v100
  %v411 = vunpack.c.l.b16 %v101
  %v412 = vunpack.c.l.b16 %v102
  %v413 = vunpack.c.l.b16 %v103
  %v414 = vunpack.c.l.b16 %v104
  %v415 = vunpack.c.l.b16 %v105
  %v416 = vunpack.c.l.b16 %v106
  %v417 = vunpack.c.l.b16 %v107
  %v418 = vunpack.c.l.b16 %v108
  %v419 = vunpack.c.l.b16 %v109
  %v420 = vunpack.c.l.b16 %v110
  %v421 = vunpack.c.l.b16 %v111
  %v422 = vunpack.c.l.b16 %v112
  %v423 = vunpack.c.l.b16 %v113
  %v424 = vunpack.c.l.b16 %v114
  %v425 = vunpack.c.l.b16 %v115
  %v426 = vunpack.c.l.b16 %v116
  %v427 = vunpack.c.l.b16 %v117
  %v428 = vunpack.c.l.b16 %v118
  %v429 = vunpack.c.l.b16 %v119
  %v430 = vunpack.c.l.b16 %v120
  %v431 = vunpack.c.l.b16 %v121
  %v432 = vunpack.c.l.b16 %v122
  %v433 = vunpack.c.l.b16 %v123
  %v434 = vunpack.c.l.b16 %v124
  %v435 = vunpack.c.l.b16 %v125
  %v436 = vunpack.c.l.b16 %v126
  %v437 = vunpack.c.l.b16 %v127
  %v438 = vunpack.c.l.b16 %v128
  %v439 = vunpack.c.l.b16 %v129
  %v440 = vunpack.c.l.b16 %v130
  %v441 = vunpack.c.l.b16 %v131
  %v442 = vunpack.c.l.b16 %v132
  %v443 = vunpack.c.l.b16 %v133
  %v444 = vunpack.c.l.b16 %v134
  %v445 = vunpack.c.l.b16 %v135
  %v446 = vunpack.c.l.b16 %v136
  %v447 = vunpack.c.l.b16 %v137
  %v448 = vunpack.c.l.b16 %v138
  %v449 = vpack.c.b16 %v342, %v341
  %v450 = vpack.c.b16 %v344, %v343
  %v451 = vpack.c.b16 %v346, %v345
  %v452 = vpack.c.b16 %v348, %v347
  %v453 = vpack.c.b16 %v350, %v349
  %v454 = vpack.c.b16 %v352, %v351
  %v455 = vpack.c.b16 %v354, %v353
  %v456 = vpack.c.b16 %v356, %v355
  %v457 = vpack.c.b16 %v358, %v357
  %v458 = vpack.c.b16 %v360, %v359
  %v459 = vpack.c.b16 %v362, %v361
  %v460 = vpack.c.b16 %v364, %v363
  %v461 = vpack.c.b16 %v366, %v365
  %v462 = vpack.c.b16 %v368, %v367
  %v463 = vpack.c.b16 %v370, %v369
  %v464 = vpack.c.b16 %v372, %v371
  %v465 = vpack.c.b16 %v374, %v373
  %v466 = vpack.c.b16 %v376, %v375
  %v467 = vpack.c.b16 %v378, %v377
  %v468 = vpack.c.b16 %v380, %v379
  %v469 = vpack.c.b16 %v382, %v381
  %v470 = vpack.c.b16 %v384, %v383
  %v471 = vpack.c.b16 %v386, %v385
  %v472 = vpack.c.b16 %v388, %v387
  %v473 = vpack.c.b16 %v390, %v389
  %v474 = vpack.c.b16 %v392, %v391
  %v475 = vpack.c.b16 %v394, %v393
  %v476 = vpack.c.b16 %v396, %v395
  %v477 = vpack.c.b16 %v398, %v397
  %v478 = vpack.c.b16 %v400, %v399
  %v479 = vpack.c.b16 %v402, %v401
  %v480 = vpack.c.b16 %v404, %v403
  %v481 = vpack.c.b16 %v406, %v405
  %v482 = vpack.c.b16 %v408, %v407
  %v483 = vpack.c.b16 %v410, %v409
  %v484 = vpack.c.b16 %v412, %v411
  %v485 = vpack.c.b16 %v414, %v413
  %v486 = vpack.c.b16 %v416, %v415
  %v487 = vpack.c.b16 %v418, %v417
  %v488 = vpack.c.b16 %v420, %v419
  %v489 = vpack.c.b16 %v422, %v421
  %v490 = vpack.c.b16 %v424, %v423
  %v491 = vpack.c.b16 %v426, %v425
  %v492 = vpack.c.b16 %v428, %v427
  %v493 = vpack.c.b16 %v430, %v429
  %v494 = vpack.c.b16 %v432, %v431
  %v495 = vpack.c.b16 %v434, %v433
  %v496 = vpack.c.b16 %v436, %v435
  %v497 = vpack.c.b16 %v438, %v437
  %v498 = vpack.c.b16 %v440, %v439
  %v499 = vpack.c.b16 %v442, %v441
  %v500 = vpack.c.b16 %v444, %v443
  %v501 = vpack.c.b16 %v446, %v445
  %v502 = vpack.c.b16 %v448, %v447
  %vm557 = vcmask 785408
  %v559 = vsel %vm557, %v213, 0
  %v562 = vsel %vm557, %v220, 0
  %564 = vmatpush.bf16.msra.mxu0 %v456
  %565 = vmatpush.bf16.msra.mxu0 %v455
  %566 = vmatpush.bf16.msra.mxu0 %v454
  %567 = vmatpush.bf16.msra.mxu0 %v453
  %568 = vmatpush.bf16.msra.mxu0 %v452
  %569 = vmatpush.bf16.msra.mxu0 %v451
  %570 = vmatpush.bf16.msra.mxu0 %v450
  %571 = vmatpush.bf16.msra.mxu0 %v449
  %572 = vmatmul.bf16.gmra.mxu0 %v207
  %v573 = vpop.f32.mrf.mxu0
  %v574 = vadd.f32 %v146, %v573
  %v575 = vpop.f32.mrf.mxu0
  %v576 = vadd.f32 %v151, %v575
  %577 = vmatmul.bf16.gmra.mxu0 %v214
  %v578 = vpop.f32.mrf.mxu0
  %v579 = vadd.f32 %v156, %v578
  %v580 = vpop.f32.mrf.mxu0
  %v581 = vadd.f32 %v161, %v580
  %582 = vdwg.mxu0
  %583 = vmatpush.bf16.msra.mxu0 %v464
  %584 = vmatpush.bf16.msra.mxu0 %v463
  %585 = vmatpush.bf16.msra.mxu0 %v462
  %586 = vmatpush.bf16.msra.mxu0 %v461
  %587 = vmatpush.bf16.msra.mxu0 %v460
  %588 = vmatpush.bf16.msra.mxu0 %v459
  %589 = vmatpush.bf16.msra.mxu0 %v458
  %590 = vmatpush.bf16.msra.mxu0 %v457
  %591 = vmatmul.bf16.gmra.mxu0 %v208
  %v592 = vpop.f32.mrf.mxu0
  %v593 = vadd.f32 %v574, %v592
  %v594 = vpop.f32.mrf.mxu0
  %v595 = vadd.f32 %v576, %v594
  %596 = vmatmul.bf16.gmra.mxu0 %v215
  %v597 = vpop.f32.mrf.mxu0
  %v598 = vadd.f32 %v579, %v597
  %v599 = vpop.f32.mrf.mxu0
  %v600 = vadd.f32 %v581, %v599
  %601 = vdwg.mxu0
  %602 = vmatpush.bf16.msra.mxu0 %v472
  %603 = vmatpush.bf16.msra.mxu0 %v471
  %604 = vmatpush.bf16.msra.mxu0 %v470
  %605 = vmatpush.bf16.msra.mxu0 %v469
  %606 = vmatpush.bf16.msra.mxu0 %v468
  %607 = vmatpush.bf16.msra.mxu0 %v467
  %608 = vmatpush.bf16.msra.mxu0 %v466
  %609 = vmatpush.bf16.msra.mxu0 %v465
  %610 = vmatmul.bf16.gmra.mxu0 %v209
  %v611 = vpop.f32.mrf.mxu0
  %v612 = vadd.f32 %v593, %v611
  %v613 = vpop.f32.mrf.mxu0
  %v614 = vadd.f32 %v595, %v613
  %615 = vmatmul.bf16.gmra.mxu0 %v216
  %v616 = vpop.f32.mrf.mxu0
  %v617 = vadd.f32 %v598, %v616
  %v618 = vpop.f32.mrf.mxu0
  %v619 = vadd.f32 %v600, %v618
  %620 = vdwg.mxu0
  %621 = vmatpush.bf16.msra.mxu0 %v480
  %622 = vmatpush.bf16.msra.mxu0 %v479
  %623 = vmatpush.bf16.msra.mxu0 %v478
  %624 = vmatpush.bf16.msra.mxu0 %v477
  %625 = vmatpush.bf16.msra.mxu0 %v476
  %626 = vmatpush.bf16.msra.mxu0 %v475
  %627 = vmatpush.bf16.msra.mxu0 %v474
  %628 = vmatpush.bf16.msra.mxu0 %v473
  %629 = vmatmul.bf16.gmra.mxu0 %v210
  %v630 = vpop.f32.mrf.mxu0
  %v631 = vadd.f32 %v612, %v630
  %v632 = vpop.f32.mrf.mxu0
  %v633 = vadd.f32 %v614, %v632
  %634 = vmatmul.bf16.gmra.mxu0 %v217
  %v635 = vpop.f32.mrf.mxu0
  %v636 = vadd.f32 %v617, %v635
  %v637 = vpop.f32.mrf.mxu0
  %v638 = vadd.f32 %v619, %v637
  %639 = vdwg.mxu0
  %640 = vmatpush.bf16.msra.mxu0 %v488
  %641 = vmatpush.bf16.msra.mxu0 %v487
  %642 = vmatpush.bf16.msra.mxu0 %v486
  %643 = vmatpush.bf16.msra.mxu0 %v485
  %644 = vmatpush.bf16.msra.mxu0 %v484
  %645 = vmatpush.bf16.msra.mxu0 %v483
  %646 = vmatpush.bf16.msra.mxu0 %v482
  %647 = vmatpush.bf16.msra.mxu0 %v481
  %648 = vmatmul.bf16.gmra.mxu0 %v211
  %v649 = vpop.f32.mrf.mxu0
  %v650 = vadd.f32 %v631, %v649
  %v651 = vpop.f32.mrf.mxu0
  %v652 = vadd.f32 %v633, %v651
  %653 = vmatmul.bf16.gmra.mxu0 %v218
  %v654 = vpop.f32.mrf.mxu0
  %v655 = vadd.f32 %v636, %v654
  %v656 = vpop.f32.mrf.mxu0
  %v657 = vadd.f32 %v638, %v656
  %658 = vdwg.mxu0
  %659 = vmatpush.bf16.msra.mxu0 %v496
  %660 = vmatpush.bf16.msra.mxu0 %v495
  %661 = vmatpush.bf16.msra.mxu0 %v494
  %662 = vmatpush.bf16.msra.mxu0 %v493
  %663 = vmatpush.bf16.msra.mxu0 %v492
  %664 = vmatpush.bf16.msra.mxu0 %v491
  %665 = vmatpush.bf16.msra.mxu0 %v490
  %666 = vmatpush.bf16.msra.mxu0 %v489
  %667 = vmatmul.bf16.gmra.mxu0 %v212
  %v668 = vpop.f32.mrf.mxu0
  %v669 = vadd.f32 %v650, %v668
  %v670 = vpop.f32.mrf.mxu0
  %v671 = vadd.f32 %v652, %v670
  %672 = vmatmul.bf16.gmra.mxu0 %v219
  %v673 = vpop.f32.mrf.mxu0
  %v674 = vadd.f32 %v655, %v673
  %v675 = vpop.f32.mrf.mxu0
  %v676 = vadd.f32 %v657, %v675
  %677 = vdwg.mxu0
  %678 = vmatpush.bf16.msra.mxu0 0
  %679 = vmatpush.bf16.msra.mxu0 0
  %680 = vmatpush.bf16.msra.mxu0 %v502
  %681 = vmatpush.bf16.msra.mxu0 %v501
  %682 = vmatpush.bf16.msra.mxu0 %v500
  %683 = vmatpush.bf16.msra.mxu0 %v499
  %684 = vmatpush.bf16.msra.mxu0 %v498
  %685 = vmatpush.bf16.msra.mxu0 %v497
  %686 = vmatmul.bf16.gmra.mxu0 %v559
  %v687 = vpop.f32.mrf.mxu0
  %v688 = vadd.f32 %v669, %v687
  %v689 = vpop.f32.mrf.mxu0
  %v690 = vadd.f32 %v671, %v689
  %691 = vmatmul.bf16.gmra.mxu0 %v562
  %v692 = vpop.f32.mrf.mxu0
  %v693 = vadd.f32 %v674, %v692
  %v694 = vpop.f32.mrf.mxu0
  %v695 = vadd.f32 %v676, %v694
  %696 = vdwg.mxu0
  %v697 = vmax.f32 %v688, 0.0
  %v698 = vmax.f32 %v690, 0.0
  %v699 = vmax.f32 %v693, 0.0
  %v700 = vmax.f32 %v695, 0.0
  %v701 = vpack.c.bf16 %v697, %v697
  %v702 = vpack.c.bf16 %v698, %v698
  %v703 = vpack.c.bf16 %v699, %v699
  %v704 = vpack.c.bf16 %v700, %v700
  %705 = vst [vmem:[%s3] sm:$0xf] %v701
  %706 = vst [vmem:[%s3 + $0x4] sm:$0xf] %v702
  %707 = vst [vmem:[%s3 + $0x8] sm:$0xf] %v703
  %708 = vst [vmem:[%s3 + $0xc] sm:$0xf] %v704
  // Predicated region
  $region14: #{reg2d_forward.24} parent=0 // pred_check
    _
  $region15: #{reg2d_forward.24} parent=0 // pred_check_branch
    %710 = sbr.rel (0) target = $region17
  $region16: #{reg2d_forward.24} parent=0 // pred_region
    _
  $region17: #{reg2d_forward.24} parent=0 // pred_fallthru
    _
  // Predicated region
  $region18: #{reg2d_forward.24} parent=0 // pred_check
    _
  $region19: #{reg2d_forward.24} parent=0 // pred_check_branch
    %712 = sbr.rel (0) target = $region21
  $region20: #{reg2d_forward.24} parent=0 // pred_region
    _
  $region21: #{reg2d_forward.24} parent=0 // pred_fallthru
    _

// kernel: reg2d_forward.25
$region0: #{reg2d_forward.25}
  #allocation0 [shape = 'u32[]', space=smem, size = 0x4, offset = 0x4, fixed_abs, tag = 'smem constant byte address 0x4 - core index']
  #allocation1 [shape = 'u32[72,128]{1,0:T(1,128)}', space=vmem, size = 0x9000, scoped, tag = 'internal scratch']
  %s0 = inlined_call_operand.vmem [shape: bf16[64,288], index: 0, kind: input, shape index: {}]
  %s1 = inlined_call_operand.vmem [shape: bf16[288,128], index: 1, kind: input, shape index: {}]
  %s2 = inlined_call_operand.vmem [shape: f32[64,1], index: 2, kind: input, shape index: {}]
  %s3 = inlined_call_operand.vmem [shape: bf16[64,128], index: 3, kind: output, shape index: {}]
  %s4 = sld [smem:[#allocation0]]
  $region22: #{reg2d_forward.25} parent=0
    _
  %s6 = ssub.s32 1, %s4
  %s7 = scalar_select 0, %s6, %s4
  // Predicated region
  $region2: #{reg2d_forward.25} parent=0 // pred_check
    _
  $region3: #{reg2d_forward.25} parent=0 // pred_check_branch
    %9 = sbr.rel (0) target = $region5
  $region4: #{reg2d_forward.25} parent=0 // pred_region
    _
  $region5: #{reg2d_forward.25} parent=0 // pred_fallthru
    _
  // Predicated region
  $region6: #{reg2d_forward.25} parent=0 // pred_check
    _
  $region7: #{reg2d_forward.25} parent=0 // pred_check_branch
    %11 = sbr.rel (0) target = $region9
  $region8: #{reg2d_forward.25} parent=0 // pred_region
    _
  $region9: #{reg2d_forward.25} parent=0 // pred_fallthru
    _
  // Predicated region
  $region10: #{reg2d_forward.25} parent=0 // pred_check
    _
  $region11: #{reg2d_forward.25} parent=0 // pred_check_branch
    %13 = sbr.rel (0) target = $region13
  $region12: #{reg2d_forward.25} parent=0 // pred_region
    _
  $region13: #{reg2d_forward.25} parent=0 // pred_fallthru
    _
  %v15 = vld [vmem:[%s0] sm:$0xff]
  %v16 = vld [vmem:[%s0 + $0x8] sm:$0xf]
  %v17 = vld [vmem:[%s0 + $0xc] sm:$0xff]
  %v18 = vld [vmem:[%s0 + $0x14] sm:$0xf]
  %v19 = vld [vmem:[%s0 + $0x18] sm:$0xff]
  %v20 = vld [vmem:[%s0 + $0x20] sm:$0xf]
  %v21 = vld [vmem:[%s0 + $0x24] sm:$0xff]
  %v22 = vld [vmem:[%s0 + $0x2c] sm:$0xf]
  %v23 = vld [vmem:[%s0 + $0x30] sm:$0xff]
  %v24 = vld [vmem:[%s0 + $0x38] sm:$0xf]
  %v25 = vld [vmem:[%s0 + $0x3c] sm:$0xff]
  %v26 = vld [vmem:[%s0 + $0x44] sm:$0xf]
  %v27 = vld [vmem:[%s0 + $0x48] sm:$0xff]
  %v28 = vld [vmem:[%s0 + $0x50] sm:$0xf]
  %v29 = vld [vmem:[%s0 + $0x54] sm:$0xff]
  %v30 = vld [vmem:[%s0 + $0x5c] sm:$0xf]
  %v31 = vld [vmem:[%s1] sm:$0xf]
  %v32 = vld [vmem:[%s1 + $0x4] sm:$0xf]
  %v33 = vld [vmem:[%s1 + $0x8] sm:$0xf]
  %v34 = vld [vmem:[%s1 + $0xc] sm:$0xf]
  %v35 = vld [vmem:[%s1 + $0x10] sm:$0xf]
  %v36 = vld [vmem:[%s1 + $0x14] sm:$0xf]
  %v37 = vld [vmem:[%s1 + $0x18] sm:$0xf]
  %v38 = vld [vmem:[%s1 + $0x1c] sm:$0xf]
  %v39 = vld [vmem:[%s1 + $0x20] sm:$0xf]
  %v40 = vld [vmem:[%s1 + $0x24] sm:$0xf]
  %v41 = vld [vmem:[%s1 + $0x28] sm:$0xf]
  %v42 = vld [vmem:[%s1 + $0x2c] sm:$0xf]
  %v43 = vld [vmem:[%s1 + $0x30] sm:$0xf]
  %v44 = vld [vmem:[%s1 + $0x34] sm:$0xf]
  %v45 = vld [vmem:[%s1 + $0x38] sm:$0xf]
  %v46 = vld [vmem:[%s1 + $0x3c] sm:$0xf]
  %v47 = vld [vmem:[%s1 + $0x40] sm:$0xf]
  %v48 = vld [vmem:[%s1 + $0x44] sm:$0xf]
  %v49 = vld [vmem:[%s1 + $0x48] sm:$0xf]
  %v50 = vld [vmem:[%s1 + $0x4c] sm:$0xf]
  %v51 = vld [vmem:[%s1 + $0x50] sm:$0xf]
  %v52 = vld [vmem:[%s1 + $0x54] sm:$0xf]
  %v53 = vld [vmem:[%s1 + $0x58] sm:$0xf]
  %v54 = vld [vmem:[%s1 + $0x5c] sm:$0xf]
  %v55 = vld [vmem:[%s1 + $0x60] sm:$0xf]
  %v56 = vld [vmem:[%s1 + $0x64] sm:$0xf]
  %v57 = vld [vmem:[%s1 + $0x68] sm:$0xf]
  %v58 = vld [vmem:[%s1 + $0x6c] sm:$0xf]
  %v59 = vld [vmem:[%s1 + $0x70] sm:$0xf]
  %v60 = vld [vmem:[%s1 + $0x74] sm:$0xf]
  %v61 = vld [vmem:[%s1 + $0x78] sm:$0xf]
  %v62 = vld [vmem:[%s1 + $0x7c] sm:$0xf]
  %v63 = vld [vmem:[%s1 + $0x80] sm:$0xf]
  %v64 = vld [vmem:[%s1 + $0x84] sm:$0xf]
  %v65 = vld [vmem:[%s1 + $0x88] sm:$0xf]
  %v66 = vld [vmem:[%s1 + $0x8c] sm:$0xf]
  %v67 = vld [vmem:[%s2] sm:$0xff]
  %v68 = vld [vmem:[%s2 + $0x8] sm:$0xff]
  %v69 = vld [vmem:[%s2 + $0x10] sm:$0xff]
  %v70 = vld [vmem:[%s2 + $0x18] sm:$0xff]
  %v71 = vld [vmem:[%s2 + $0x20] sm:$0xff]
  %v72 = vld [vmem:[%s2 + $0x28] sm:$0xff]
  %v73 = vld [vmem:[%s2 + $0x30] sm:$0xff]
  %v74 = vld [vmem:[%s2 + $0x38] sm:$0xff]
  %76 = vset.pattern.permute.xlu0 0
  %77 = vperm.xlu0 %76, %v67
  %v78 = vpop.permute.xlu0 %77
  %81 = vset.pattern.permute.xlu0 0
  %82 = vperm.xlu0 %81, %v68
  %v83 = vpop.permute.xlu0 %82
  %86 = vset.pattern.permute.xlu0 0
  %87 = vperm.xlu0 %86, %v69
  %v88 = vpop.permute.xlu0 %87
  %91 = vset.pattern.permute.xlu0 0
  %92 = vperm.xlu0 %91, %v70
  %v93 = vpop.permute.xlu0 %92
  %96 = vset.pattern.permute.xlu0 0
  %97 = vperm.xlu0 %96, %v71
  %v98 = vpop.permute.xlu0 %97
  %101 = vset.pattern.permute.xlu0 0
  %102 = vperm.xlu0 %101, %v72
  %v103 = vpop.permute.xlu0 %102
  %106 = vset.pattern.permute.xlu0 0
  %107 = vperm.xlu0 %106, %v73
  %v108 = vpop.permute.xlu0 %107
  %111 = vset.pattern.permute.xlu0 0
  %112 = vperm.xlu0 %111, %v74
  %v113 = vpop.permute.xlu0 %112
  %v131 = vunpack.c.l.b16 %v15
  %v132 = vunpack.c.h.b16 %v15
  %v133 = vunpack.c.l.b16 %v16
  %v134 = vunpack.c.l.b16 %v17
  %v135 = vunpack.c.h.b16 %v17
  %v136 = vunpack.c.l.b16 %v18
  %v137 = vunpack.c.l.b16 %v19
  %v138 = vunpack.c.h.b16 %v19
  %v139 = vunpack.c.l.b16 %v20
  %v140 = vunpack.c.l.b16 %v21
  %v141 = vunpack.c.h.b16 %v21
  %v142 = vunpack.c.l.b16 %v22
  %v143 = vunpack.c.l.b16 %v23
  %v144 = vunpack.c.h.b16 %v23
  %v145 = vunpack.c.l.b16 %v24
  %v146 = vunpack.c.l.b16 %v25
  %v147 = vunpack.c.h.b16 %v25
  %v148 = vunpack.c.l.b16 %v26
  %v149 = vunpack.c.l.b16 %v27
  %v150 = vunpack.c.h.b16 %v27
  %v151 = vunpack.c.l.b16 %v28
  %v152 = vunpack.c.l.b16 %v29
  %v153 = vunpack.c.h.b16 %v29
  %v154 = vunpack.c.l.b16 %v30
  %v155 = vpack.c.b16 %v134, %v131
  %v156 = vpack.c.b16 %v135, %v132
  %v157 = vpack.c.b16 %v136, %v133
  %v158 = vpack.c.b16 %v140, %v137
  %v159 = vpack.c.b16 %v141, %v138
  %v160 = vpack.c.b16 %v142, %v139
  %v161 = vpack.c.b16 %v146, %v143
  %v162 = vpack.c.b16 %v147, %v144
  %v163 = vpack.c.b16 %v148, %v145
  %v164 = vpack.c.b16 %v152, %v149
  %v165 = vpack.c.b16 %v153, %v150
  %v166 = vpack.c.b16 %v154, %v151
  %v211 = vunpack.c.l.b16 %v31
  %v212 = vunpack.c.l.b16 %v32
  %v213 = vunpack.c.l.b16 %v33
  %v214 = vunpack.c.l.b16 %v34
  %v215 = vunpack.c.l.b16 %v35
  %v216 = vunpack.c.l.b16 %v36
  %v217 = vunpack.c.l.b16 %v37
  %v218 = vunpack.c.l.b16 %v38
  %v219 = vunpack.c.l.b16 %v39
  %v220 = vunpack.c.l.b16 %v40
  %v221 = vunpack.c.l.b16 %v41
  %v222 = vunpack.c.l.b16 %v42
  %v223 = vunpack.c.l.b16 %v43
  %v224 = vunpack.c.l.b16 %v44
  %v225 = vunpack.c.l.b16 %v45
  %v226 = vunpack.c.l.b16 %v46
  %v227 = vunpack.c.l.b16 %v47
  %v228 = vunpack.c.l.b16 %v48
  %v229 = vunpack.c.l.b16 %v49
  %v230 = vunpack.c.l.b16 %v50
  %v231 = vunpack.c.l.b16 %v51
  %v232 = vunpack.c.l.b16 %v52
  %v233 = vunpack.c.l.b16 %v53
  %v234 = vunpack.c.l.b16 %v54
  %v235 = vunpack.c.l.b16 %v55
  %v236 = vunpack.c.l.b16 %v56
  %v237 = vunpack.c.l.b16 %v57
  %v238 = vunpack.c.l.b16 %v58
  %v239 = vunpack.c.l.b16 %v59
  %v240 = vunpack.c.l.b16 %v60
  %v241 = vunpack.c.l.b16 %v61
  %v242 = vunpack.c.l.b16 %v62
  %v243 = vunpack.c.l.b16 %v63
  %v244 = vunpack.c.l.b16 %v64
  %v245 = vunpack.c.l.b16 %v65
  %v246 = vunpack.c.l.b16 %v66
  %v247 = vpack.c.b16 %v212, %v211
  %v248 = vpack.c.b16 %v214, %v213
  %v249 = vpack.c.b16 %v216, %v215
  %v250 = vpack.c.b16 %v218, %v217
  %v251 = vpack.c.b16 %v220, %v219
  %v252 = vpack.c.b16 %v222, %v221
  %v253 = vpack.c.b16 %v224, %v223
  %v254 = vpack.c.b16 %v226, %v225
  %v255 = vpack.c.b16 %v228, %v227
  %v256 = vpack.c.b16 %v230, %v229
  %v257 = vpack.c.b16 %v232, %v231
  %v258 = vpack.c.b16 %v234, %v233
  %v259 = vpack.c.b16 %v236, %v235
  %v260 = vpack.c.b16 %v238, %v237
  %v261 = vpack.c.b16 %v240, %v239
  %v262 = vpack.c.b16 %v242, %v241
  %v263 = vpack.c.b16 %v244, %v243
  %v264 = vpack.c.b16 %v246, %v245
  %vm283 = vcmask 261120
  %v285 = vsel %vm283, %v157, 0
  %v288 = vsel %vm283, %v160, 0
  %v291 = vsel %vm283, %v163, 0
  %v294 = vsel %vm283, %v166, 0
  %296 = vmatpush.bf16.msra.mxu0 %v254
  %297 = vmatpush.bf16.msra.mxu0 %v253
  %298 = vmatpush.bf16.msra.mxu0 %v252
  %299 = vmatpush.bf16.msra.mxu0 %v251
  %300 = vmatpush.bf16.msra.mxu0 %v250
  %301 = vmatpush.bf16.msra.mxu0 %v249
  %302 = vmatpush.bf16.msra.mxu0 %v248
  %303 = vmatpush.bf16.msra.mxu0 %v247
  %304 = vmatmul.bf16.gmra.mxu0 %v155
  %v305 = vpop.f32.mrf.mxu0
  %v306 = vadd.f32 %v78, %v305
  %v307 = vpop.f32.mrf.mxu0
  %v308 = vadd.f32 %v83, %v307
  %309 = vmatmul.bf16.gmra.mxu0 %v158
  %v310 = vpop.f32.mrf.mxu0
  %v311 = vadd.f32 %v88, %v310
  %v312 = vpop.f32.mrf.mxu0
  %v313 = vadd.f32 %v93, %v312
  %314 = vmatmul.bf16.gmra.mxu0 %v161
  %v315 = vpop.f32.mrf.mxu0
  %v316 = vadd.f32 %v98, %v315
  %v317 = vpop.f32.mrf.mxu0
  %v318 = vadd.f32 %v103, %v317
  %319 = vmatmul.bf16.gmra.mxu0 %v164
  %v320 = vpop.f32.mrf.mxu0
  %v321 = vadd.f32 %v108, %v320
  %v322 = vpop.f32.mrf.mxu0
  %v323 = vadd.f32 %v113, %v322
  %324 = vdwg.mxu0
  %325 = vmatpush.bf16.msra.mxu0 %v262
  %326 = vmatpush.bf16.msra.mxu0 %v261
  %327 = vmatpush.bf16.msra.mxu0 %v260
  %328 = vmatpush.bf16.msra.mxu0 %v259
  %329 = vmatpush.bf16.msra.mxu0 %v258
  %330 = vmatpush.bf16.msra.mxu0 %v257
  %331 = vmatpush.bf16.msra.mxu0 %v256
  %332 = vmatpush.bf16.msra.mxu0 %v255
  %333 = vmatmul.bf16.gmra.mxu0 %v156
  %v334 = vpop.f32.mrf.mxu0
  %v335 = vadd.f32 %v306, %v334
  %v336 = vpop.f32.mrf.mxu0
  %v337 = vadd.f32 %v308, %v336
  %338 = vmatmul.bf16.gmra.mxu0 %v159
  %v339 = vpop.f32.mrf.mxu0
  %v340 = vadd.f32 %v311, %v339
  %v341 = vpop.f32.mrf.mxu0
  %v342 = vadd.f32 %v313, %v341
  %343 = vmatmul.bf16.gmra.mxu0 %v162
  %v344 = vpop.f32.mrf.mxu0
  %v345 = vadd.f32 %v316, %v344
  %v346 = vpop.f32.mrf.mxu0
  %v347 = vadd.f32 %v318, %v346
  %348 = vmatmul.bf16.gmra.mxu0 %v165
  %v349 = vpop.f32.mrf.mxu0
  %v350 = vadd.f32 %v321, %v349
  %v351 = vpop.f32.mrf.mxu0
  %v352 = vadd.f32 %v323, %v351
  %353 = vdwg.mxu0
  %354 = vmatpush.bf16.msra.mxu0 0
  %355 = vmatpush.bf16.msra.mxu0 0
  %356 = vmatpush.bf16.msra.mxu0 0
  %357 = vmatpush.bf16.msra.mxu0 0
  %358 = vmatpush.bf16.msra.mxu0 0
  %359 = vmatpush.bf16.msra.mxu0 0
  %360 = vmatpush.bf16.msra.mxu0 %v264
  %361 = vmatpush.bf16.msra.mxu0 %v263
  %362 = vmatmul.bf16.gmra.mxu0 %v285
  %v363 = vpop.f32.mrf.mxu0
  %v364 = vadd.f32 %v335, %v363
  %v365 = vpop.f32.mrf.mxu0
  %v366 = vadd.f32 %v337, %v365
  %367 = vmatmul.bf16.gmra.mxu0 %v288
  %v368 = vpop.f32.mrf.mxu0
  %v369 = vadd.f32 %v340, %v368
  %v370 = vpop.f32.mrf.mxu0
  %v371 = vadd.f32 %v342, %v370
  %372 = vmatmul.bf16.gmra.mxu0 %v291
  %v373 = vpop.f32.mrf.mxu0
  %v374 = vadd.f32 %v345, %v373
  %v375 = vpop.f32.mrf.mxu0
  %v376 = vadd.f32 %v347, %v375
  %377 = vmatmul.bf16.gmra.mxu0 %v294
  %v378 = vpop.f32.mrf.mxu0
  %v379 = vadd.f32 %v350, %v378
  %v380 = vpop.f32.mrf.mxu0
  %v381 = vadd.f32 %v352, %v380
  %382 = vdwg.mxu0
  %v383 = vmax.f32 %v364, 0.0
  %v384 = vmax.f32 %v366, 0.0
  %v385 = vmax.f32 %v369, 0.0
  %v386 = vmax.f32 %v371, 0.0
  %v387 = vmax.f32 %v374, 0.0
  %v388 = vmax.f32 %v376, 0.0
  %v389 = vmax.f32 %v379, 0.0
  %v390 = vmax.f32 %v381, 0.0
  %v391 = vpack.c.bf16 %v383, %v383
  %v392 = vpack.c.bf16 %v384, %v384
  %v393 = vpack.c.bf16 %v385, %v385
  %v394 = vpack.c.bf16 %v386, %v386
  %v395 = vpack.c.bf16 %v387, %v387
  %v396 = vpack.c.bf16 %v388, %v388
  %v397 = vpack.c.bf16 %v389, %v389
  %v398 = vpack.c.bf16 %v390, %v390
  %399 = vst [vmem:[%s3] sm:$0xf] %v391
  %400 = vst [vmem:[%s3 + $0x4] sm:$0xf] %v392
  %401 = vst [vmem:[%s3 + $0x8] sm:$0xf] %v393
  %402 = vst [vmem:[%s3 + $0xc] sm:$0xf] %v394
  %403 = vst [vmem:[%s3 + $0x10] sm:$0xf] %v395
  %404 = vst [vmem:[%s3 + $0x14] sm:$0xf] %v396
  %405 = vst [vmem:[%s3 + $0x18] sm:$0xf] %v397
  %406 = vst [vmem:[%s3 + $0x1c] sm:$0xf] %v398
  // Predicated region
  $region14: #{reg2d_forward.25} parent=0 // pred_check
    _
  $region15: #{reg2d_forward.25} parent=0 // pred_check_branch
    %408 = sbr.rel (0) target = $region17
  $region16: #{reg2d_forward.25} parent=0 // pred_region
    _
  $region17: #{reg2d_forward.25} parent=0 // pred_fallthru
    _
  // Predicated region
  $region18: #{reg2d_forward.25} parent=0 // pred_check
    _
  $region19: #{reg2d_forward.25} parent=0 // pred_check_branch
    %410 = sbr.rel (0) target = $region21
  $region20: #{reg2d_forward.25} parent=0 // pred_region
    _
  $region21: #{reg2d_forward.25} parent=0 // pred_fallthru
    _

// kernel: reg2d_forward.27
$region0: #{reg2d_forward.27}
  #allocation0 [shape = 'u32[]', space=smem, size = 0x4, offset = 0x4, fixed_abs, tag = 'smem constant byte address 0x4 - core index']
  #allocation1 [shape = 'u32[72,128]{1,0:T(1,128)}', space=vmem, size = 0x9000, scoped, tag = 'internal scratch']
  %s0 = inlined_call_operand.vmem [shape: bf16[32,64], index: 0, kind: input, shape index: {}]
  %s1 = inlined_call_operand.vmem [shape: bf16[64,128], index: 1, kind: input, shape index: {}]
  %s2 = inlined_call_operand.vmem [shape: f32[32,1], index: 2, kind: input, shape index: {}]
  %s3 = inlined_call_operand.vmem [shape: bf16[32,128], index: 3, kind: input, shape index: {}]
  %s4 = inlined_call_operand.vmem [shape: bf16[32,128], index: 4, kind: output, shape index: {}]
  %s5 = sld [smem:[#allocation0]]
  $region26: #{reg2d_forward.27} parent=0
    _
  %s7 = ssub.s32 1, %s5
  %s8 = scalar_select 0, %s7, %s5
  // Predicated region
  $region2: #{reg2d_forward.27} parent=0 // pred_check
    _
  $region3: #{reg2d_forward.27} parent=0 // pred_check_branch
    %10 = sbr.rel (0) target = $region5
  $region4: #{reg2d_forward.27} parent=0 // pred_region
    _
  $region5: #{reg2d_forward.27} parent=0 // pred_fallthru
    _
  // Predicated region
  $region6: #{reg2d_forward.27} parent=0 // pred_check
    _
  $region7: #{reg2d_forward.27} parent=0 // pred_check_branch
    %12 = sbr.rel (0) target = $region9
  $region8: #{reg2d_forward.27} parent=0 // pred_region
    _
  $region9: #{reg2d_forward.27} parent=0 // pred_fallthru
    _
  // Predicated region
  $region10: #{reg2d_forward.27} parent=0 // pred_check
    _
  $region11: #{reg2d_forward.27} parent=0 // pred_check_branch
    %14 = sbr.rel (0) target = $region13
  $region12: #{reg2d_forward.27} parent=0 // pred_region
    _
  $region13: #{reg2d_forward.27} parent=0 // pred_fallthru
    _
  // Predicated region
  $region14: #{reg2d_forward.27} parent=0 // pred_check
    _
  $region15: #{reg2d_forward.27} parent=0 // pred_check_branch
    %16 = sbr.rel (0) target = $region17
  $region16: #{reg2d_forward.27} parent=0 // pred_region
    _
  $region17: #{reg2d_forward.27} parent=0 // pred_fallthru
    _
  %v18 = vld [vmem:[%s0] sm:$0xf]
  %v19 = vld [vmem:[%s0 + $0x4] sm:$0xf]
  %v20 = vld [vmem:[%s0 + $0x8] sm:$0xf]
  %v21 = vld [vmem:[%s0 + $0xc] sm:$0xf]
  %v22 = vld [vmem:[%s1] sm:$0xf]
  %v23 = vld [vmem:[%s1 + $0x4] sm:$0xf]
  %v24 = vld [vmem:[%s1 + $0x8] sm:$0xf]
  %v25 = vld [vmem:[%s1 + $0xc] sm:$0xf]
  %v26 = vld [vmem:[%s1 + $0x10] sm:$0xf]
  %v27 = vld [vmem:[%s1 + $0x14] sm:$0xf]
  %v28 = vld [vmem:[%s1 + $0x18] sm:$0xf]
  %v29 = vld [vmem:[%s1 + $0x1c] sm:$0xf]
  %v30 = vld [vmem:[%s2] sm:$0xff]
  %v31 = vld [vmem:[%s2 + $0x8] sm:$0xff]
  %v32 = vld [vmem:[%s2 + $0x10] sm:$0xff]
  %v33 = vld [vmem:[%s2 + $0x18] sm:$0xff]
  %35 = vset.pattern.permute.xlu0 0
  %36 = vperm.xlu0 %35, %v30
  %v37 = vpop.permute.xlu0 %36
  %40 = vset.pattern.permute.xlu0 0
  %41 = vperm.xlu0 %40, %v31
  %v42 = vpop.permute.xlu0 %41
  %45 = vset.pattern.permute.xlu0 0
  %46 = vperm.xlu0 %45, %v32
  %v47 = vpop.permute.xlu0 %46
  %50 = vset.pattern.permute.xlu0 0
  %51 = vperm.xlu0 %50, %v33
  %v52 = vpop.permute.xlu0 %51
  %v58 = vunpack.c.l.b16 %v18
  %v59 = vunpack.c.l.b16 %v19
  %v60 = vunpack.c.l.b16 %v20
  %v61 = vunpack.c.l.b16 %v21
  %v62 = vpack.c.b16 %v59, %v58
  %v63 = vpack.c.b16 %v61, %v60
  %v72 = vunpack.c.l.b16 %v22
  %v73 = vunpack.c.l.b16 %v23
  %v74 = vunpack.c.l.b16 %v24
  %v75 = vunpack.c.l.b16 %v25
  %v76 = vunpack.c.l.b16 %v26
  %v77 = vunpack.c.l.b16 %v27
  %v78 = vunpack.c.l.b16 %v28
  %v79 = vunpack.c.l.b16 %v29
  %v80 = vpack.c.b16 %v73, %v72
  %v81 = vpack.c.b16 %v75, %v74
  %v82 = vpack.c.b16 %v77, %v76
  %v83 = vpack.c.b16 %v79, %v78
  %vm88 = vcmask 523264
  %v90 = vsel %vm88, %v62, 0
  %v93 = vsel %vm88, %v63, 0
  %95 = vmatpush.bf16.msra.mxu0 0
  %96 = vmatpush.bf16.msra.mxu0 0
  %97 = vmatpush.bf16.msra.mxu0 0
  %98 = vmatpush.bf16.msra.mxu0 0
  %99 = vmatpush.bf16.msra.mxu0 %v83
  %100 = vmatpush.bf16.msra.mxu0 %v82
  %101 = vmatpush.bf16.msra.mxu0 %v81
  %102 = vmatpush.bf16.msra.mxu0 %v80
  %103 = vmatmul.bf16.gmra.mxu0 %v90
  %v104 = vpop.f32.mrf.mxu0
  %v105 = vadd.f32 %v37, %v104
  %v106 = vpop.f32.mrf.mxu0
  %v107 = vadd.f32 %v42, %v106
  %108 = vmatmul.bf16.gmra.mxu0 %v93
  %v109 = vpop.f32.mrf.mxu0
  %v110 = vadd.f32 %v47, %v109
  %v111 = vpop.f32.mrf.mxu0
  %v112 = vadd.f32 %v52, %v111
  %113 = vdwg.mxu0
  %v114 = vmax.f32 %v105, 0.0
  %v115 = vmax.f32 %v107, 0.0
  %v116 = vmax.f32 %v110, 0.0
  %v117 = vmax.f32 %v112, 0.0
  %v118 = vld [vmem:[%s3] sm:$0xf]
  %v119 = vld [vmem:[%s3 + $0x4] sm:$0xf]
  %v120 = vld [vmem:[%s3 + $0x8] sm:$0xf]
  %v121 = vld [vmem:[%s3 + $0xc] sm:$0xf]
  %v122 = vunpack.c.l.bf16 %v118
  %v123 = vunpack.c.l.bf16 %v119
  %v124 = vunpack.c.l.bf16 %v120
  %v125 = vunpack.c.l.bf16 %v121
  %v126 = vadd.f32 %v114, %v122
  %v127 = vadd.f32 %v115, %v123
  %v128 = vadd.f32 %v116, %v124
  %v129 = vadd.f32 %v117, %v125
  %v130 = vpack.c.bf16 %v126, %v126
  %v131 = vpack.c.bf16 %v127, %v127
  %v132 = vpack.c.bf16 %v128, %v128
  %v133 = vpack.c.bf16 %v129, %v129
  %134 = vst [vmem:[%s4] sm:$0xf] %v130
  %135 = vst [vmem:[%s4 + $0x4] sm:$0xf] %v131
  %136 = vst [vmem:[%s4 + $0x8] sm:$0xf] %v132
  %137 = vst [vmem:[%s4 + $0xc] sm:$0xf] %v133
  // Predicated region
  $region18: #{reg2d_forward.27} parent=0 // pred_check
    _
  $region19: #{reg2d_forward.27} parent=0 // pred_check_branch
    %139 = sbr.rel (0) target = $region21
  $region20: #{reg2d_forward.27} parent=0 // pred_region
    _
  $region21: #{reg2d_forward.27} parent=0 // pred_fallthru
    _
  // Predicated region
  $region22: #{reg2d_forward.27} parent=0 // pred_check
    _
  $region23: #{reg2d_forward.27} parent=0 // pred_check_branch
    %141 = sbr.rel (0) target = $region25
  $region24: #{reg2d_forward.27} parent=0 // pred_region
    _
  $region25: #{reg2d_forward.27} parent=0 // pred_fallthru
    _

// kernel: reg2d_forward.26
$region0: #{reg2d_forward.26}
  #allocation0 [shape = 'u32[]', space=smem, size = 0x4, offset = 0x4, fixed_abs, tag = 'smem constant byte address 0x4 - core index']
  #allocation1 [shape = 'u32[72,128]{1,0:T(1,128)}', space=vmem, size = 0x9000, scoped, tag = 'internal scratch']
  %s0 = inlined_call_operand.vmem [shape: bf16[64,1728], index: 0, kind: input, shape index: {}]
  %s1 = inlined_call_operand.vmem [shape: bf16[1728,128], index: 1, kind: input, shape index: {}]
  %s2 = inlined_call_operand.vmem [shape: f32[64,1], index: 2, kind: input, shape index: {}]
  %s3 = inlined_call_operand.vmem [shape: bf16[64,128], index: 3, kind: output, shape index: {}]
  %s4 = sld [smem:[#allocation0]]
  $region22: #{reg2d_forward.26} parent=0
    _
  %s6 = ssub.s32 1, %s4
  %s7 = scalar_select 0, %s6, %s4
  // Predicated region
  $region2: #{reg2d_forward.26} parent=0 // pred_check
    _
  $region3: #{reg2d_forward.26} parent=0 // pred_check_branch
    %9 = sbr.rel (0) target = $region5
  $region4: #{reg2d_forward.26} parent=0 // pred_region
    _
  $region5: #{reg2d_forward.26} parent=0 // pred_fallthru
    _
  // Predicated region
  $region6: #{reg2d_forward.26} parent=0 // pred_check
    _
  $region7: #{reg2d_forward.26} parent=0 // pred_check_branch
    %11 = sbr.rel (0) target = $region9
  $region8: #{reg2d_forward.26} parent=0 // pred_region
    _
  $region9: #{reg2d_forward.26} parent=0 // pred_fallthru
    _
  // Predicated region
  $region10: #{reg2d_forward.26} parent=0 // pred_check
    _
  $region11: #{reg2d_forward.26} parent=0 // pred_check_branch
    %13 = sbr.rel (0) target = $region13
  $region12: #{reg2d_forward.26} parent=0 // pred_region
    _
  $region13: #{reg2d_forward.26} parent=0 // pred_fallthru
    _
  %v15 = vld [vmem:[%s0] sm:$0xff]
  %v16 = vld [vmem:[%s0 + $0x8] sm:$0xff]
  %v17 = vld [vmem:[%s0 + $0x10] sm:$0xff]
  %v18 = vld [vmem:[%s0 + $0x18] sm:$0xff]
  %v19 = vld [vmem:[%s0 + $0x20] sm:$0xff]
  %v20 = vld [vmem:[%s0 + $0x28] sm:$0xff]
  %v21 = vld [vmem:[%s0 + $0x30] sm:$0xff]
  %v22 = vld [vmem:[%s0 + $0x38] sm:$0xff]
  %v23 = vld [vmem:[%s0 + $0x40] sm:$0xff]
  %v24 = vld [vmem:[%s0 + $0x48] sm:$0xff]
  %v25 = vld [vmem:[%s0 + $0x50] sm:$0xff]
  %v26 = vld [vmem:[%s0 + $0x58] sm:$0xff]
  %v27 = vld [vmem:[%s0 + $0x60] sm:$0xff]
  %v28 = vld [vmem:[%s0 + $0x68] sm:$0xff]
  %v29 = vld [vmem:[%s0 + $0x70] sm:$0xff]
  %v30 = vld [vmem:[%s0 + $0x78] sm:$0xff]
  %v31 = vld [vmem:[%s0 + $0x80] sm:$0xff]
  %v32 = vld [vmem:[%s0 + $0x88] sm:$0xff]
  %v33 = vld [vmem:[%s0 + $0x90] sm:$0xff]
  %v34 = vld [vmem:[%s0 + $0x98] sm:$0xff]
  %v35 = vld [vmem:[%s0 + $0xa0] sm:$0xff]
  %v36 = vld [vmem:[%s0 + $0xa8] sm:$0xff]
  %v37 = vld [vmem:[%s0 + $0xb0] sm:$0xff]
  %v38 = vld [vmem:[%s0 + $0xb8] sm:$0xff]
  %v39 = vld [vmem:[%s0 + $0xc0] sm:$0xff]
  %v40 = vld [vmem:[%s0 + $0xc8] sm:$0xff]
  %v41 = vld [vmem:[%s0 + $0xd0] sm:$0xff]
  %v42 = vld [vmem:[%s0 + $0xd8] sm:$0xff]
  %v43 = vld [vmem:[%s0 + $0xe0] sm:$0xff]
  %v44 = vld [vmem:[%s0 + $0xe8] sm:$0xff]
  %v45 = vld [vmem:[%s0 + $0xf0] sm:$0xff]
  %v46 = vld [vmem:[%s0 + $0xf8] sm:$0xff]
  %v47 = vld [vmem:[%s0 + $0x100] sm:$0xff]
  %v48 = vld [vmem:[%s0 + $0x108] sm:$0xff]
  %v49 = vld [vmem:[%s0 + $0x110] sm:$0xff]
  %v50 = vld [vmem:[%s0 + $0x118] sm:$0xff]
  %v51 = vld [vmem:[%s0 + $0x120] sm:$0xff]
  %v52 = vld [vmem:[%s0 + $0x128] sm:$0xff]
  %v53 = vld [vmem:[%s0 + $0x130] sm:$0xff]
  %v54 = vld [vmem:[%s0 + $0x138] sm:$0xff]
  %v55 = vld [vmem:[%s0 + $0x140] sm:$0xff]
  %v56 = vld [vmem:[%s0 + $0x148] sm:$0xff]
  %v57 = vld [vmem:[%s0 + $0x150] sm:$0xff]
  %v58 = vld [vmem:[%s0 + $0x158] sm:$0xff]
  %v59 = vld [vmem:[%s0 + $0x160] sm:$0xff]
  %v60 = vld [vmem:[%s0 + $0x168] sm:$0xff]
  %v61 = vld [vmem:[%s0 + $0x170] sm:$0xff]
  %v62 = vld [vmem:[%s0 + $0x178] sm:$0xff]
  %v63 = vld [vmem:[%s0 + $0x180] sm:$0xff]
  %v64 = vld [vmem:[%s0 + $0x188] sm:$0xff]
  %v65 = vld [vmem:[%s0 + $0x190] sm:$0xff]
  %v66 = vld [vmem:[%s0 + $0x198] sm:$0xff]
  %v67 = vld [vmem:[%s0 + $0x1a0] sm:$0xff]
  %v68 = vld [vmem:[%s0 + $0x1a8] sm:$0xff]
  %v69 = vld [vmem:[%s0 + $0x1b0] sm:$0xff]
  %v70 = vld [vmem:[%s0 + $0x1b8] sm:$0xff]
  %v71 = vld [vmem:[%s1] sm:$0xf]
  %v72 = vld [vmem:[%s1 + $0x4] sm:$0xf]
  %v73 = vld [vmem:[%s1 + $0x8] sm:$0xf]
  %v74 = vld [vmem:[%s1 + $0xc] sm:$0xf]
  %v75 = vld [vmem:[%s1 + $0x10] sm:$0xf]
  %v76 = vld [vmem:[%s1 + $0x14] sm:$0xf]
  %v77 = vld [vmem:[%s1 + $0x18] sm:$0xf]
  %v78 = vld [vmem:[%s1 + $0x1c] sm:$0xf]
  %v79 = vld [vmem:[%s1 + $0x20] sm:$0xf]
  %v80 = vld [vmem:[%s1 + $0x24] sm:$0xf]
  %v81 = vld [vmem:[%s1 + $0x28] sm:$0xf]
  %v82 = vld [vmem:[%s1 + $0x2c] sm:$0xf]
  %v83 = vld [vmem:[%s1 + $0x30] sm:$0xf]
  %v84 = vld [vmem:[%s1 + $0x34] sm:$0xf]
  %v85 = vld [vmem:[%s1 + $0x38] sm:$0xf]
  %v86 = vld [vmem:[%s1 + $0x3c] sm:$0xf]
  %v87 = vld [vmem:[%s1 + $0x40] sm:$0xf]
  %v88 = vld [vmem:[%s1 + $0x44] sm:$0xf]
  %v89 = vld [vmem:[%s1 + $0x48] sm:$0xf]
  %v90 = vld [vmem:[%s1 + $0x4c] sm:$0xf]
  %v91 = vld [vmem:[%s1 + $0x50] sm:$0xf]
  %v92 = vld [vmem:[%s1 + $0x54] sm:$0xf]
  %v93 = vld [vmem:[%s1 + $0x58] sm:$0xf]
  %v94 = vld [vmem:[%s1 + $0x5c] sm:$0xf]
  %v95 = vld [vmem:[%s1 + $0x60] sm:$0xf]
  %v96 = vld [vmem:[%s1 + $0x64] sm:$0xf]
  %v97 = vld [vmem:[%s1 + $0x68] sm:$0xf]
  %v98 = vld [vmem:[%s1 + $0x6c] sm:$0xf]
  %v99 = vld [vmem:[%s1 + $0x70] sm:$0xf]
  %v100 = vld [vmem:[%s1 + $0x74] sm:$0xf]
  %v101 = vld [vmem:[%s1 + $0x78] sm:$0xf]
  %v102 = vld [vmem:[%s1 + $0x7c] sm:$0xf]
  %v103 = vld [vmem:[%s1 + $0x80] sm:$0xf]
  %v104 = vld [vmem:[%s1 + $0x84] sm:$0xf]
  %v105 = vld [vmem:[%s1 + $0x88] sm:$0xf]
  %v106 = vld [vmem:[%s1 + $0x8c] sm:$0xf]
  %v107 = vld [vmem:[%s1 + $0x90] sm:$0xf]
  %v108 = vld [vmem:[%s1 + $0x94] sm:$0xf]
  %v109 = vld [vmem:[%s1 + $0x98] sm:$0xf]
  %v110 = vld [vmem:[%s1 + $0x9c] sm:$0xf]
  %v111 = vld [vmem:[%s1 + $0xa0] sm:$0xf]
  %v112 = vld [vmem:[%s1 + $0xa4] sm:$0xf]
  %v113 = vld [vmem:[%s1 + $0xa8] sm:$0xf]
  %v114 = vld [vmem:[%s1 + $0xac] sm:$0xf]
  %v115 = vld [vmem:[%s1 + $0xb0] sm:$0xf]
  %v116 = vld [vmem:[%s1 + $0xb4] sm:$0xf]
  %v117 = vld [vmem:[%s1 + $0xb8] sm:$0xf]
  %v118 = vld [vmem:[%s1 + $0xbc] sm:$0xf]
  %v119 = vld [vmem:[%s1 + $0xc0] sm:$0xf]
  %v120 = vld [vmem:[%s1 + $0xc4] sm:$0xf]
  %v121 = vld [vmem:[%s1 + $0xc8] sm:$0xf]
  %v122 = vld [vmem:[%s1 + $0xcc] sm:$0xf]
  %v123 = vld [vmem:[%s1 + $0xd0] sm:$0xf]
  %v124 = vld [vmem:[%s1 + $0xd4] sm:$0xf]
  %v125 = vld [vmem:[%s1 + $0xd8] sm:$0xf]
  %v126 = vld [vmem:[%s1 + $0xdc] sm:$0xf]
  %v127 = vld [vmem:[%s1 + $0xe0] sm:$0xf]
  %v128 = vld [vmem:[%s1 + $0xe4] sm:$0xf]
  %v129 = vld [vmem:[%s1 + $0xe8] sm:$0xf]
  %v130 = vld [vmem:[%s1 + $0xec] sm:$0xf]
  %v131 = vld [vmem:[%s1 + $0xf0] sm:$0xf]
  %v132 = vld [vmem:[%s1 + $0xf4] sm:$0xf]
  %v133 = vld [vmem:[%s1 + $0xf8] sm:$0xf]
  %v134 = vld [vmem:[%s1 + $0xfc] sm:$0xf]
  %v135 = vld [vmem:[%s1 + $0x100] sm:$0xf]
  %v136 = vld [vmem:[%s1 + $0x104] sm:$0xf]
  %v137 = vld [vmem:[%s1 + $0x108] sm:$0xf]
  %v138 = vld [vmem:[%s1 + $0x10c] sm:$0xf]
  %v139 = vld [vmem:[%s1 + $0x110] sm:$0xf]
  %v140 = vld [vmem:[%s1 + $0x114] sm:$0xf]
  %v141 = vld [vmem:[%s1 + $0x118] sm:$0xf]
  %v142 = vld [vmem:[%s1 + $0x11c] sm:$0xf]
  %v143 = vld [vmem:[%s1 + $0x120] sm:$0xf]
  %v144 = vld [vmem:[%s1 + $0x124] sm:$0xf]
  %v145 = vld [vmem:[%s1 + $0x128] sm:$0xf]
  %v146 = vld [vmem:[%s1 + $0x12c] sm:$0xf]
  %v147 = vld [vmem:[%s1 + $0x130] sm:$0xf]
  %v148 = vld [vmem:[%s1 + $0x134] sm:$0xf]
  %v149 = vld [vmem:[%s1 + $0x138] sm:$0xf]
  %v150 = vld [vmem:[%s1 + $0x13c] sm:$0xf]
  %v151 = vld [vmem:[%s1 + $0x140] sm:$0xf]
  %v152 = vld [vmem:[%s1 + $0x144] sm:$0xf]
  %v153 = vld [vmem:[%s1 + $0x148] sm:$0xf]
  %v154 = vld [vmem:[%s1 + $0x14c] sm:$0xf]
  %v155 = vld [vmem:[%s1 + $0x150] sm:$0xf]
  %v156 = vld [vmem:[%s1 + $0x154] sm:$0xf]
  %v157 = vld [vmem:[%s1 + $0x158] sm:$0xf]
  %v158 = vld [vmem:[%s1 + $0x15c] sm:$0xf]
  %v159 = vld [vmem:[%s1 + $0x160] sm:$0xf]
  %v160 = vld [vmem:[%s1 + $0x164] sm:$0xf]
  %v161 = vld [vmem:[%s1 + $0x168] sm:$0xf]
  %v162 = vld [vmem:[%s1 + $0x16c] sm:$0xf]
  %v163 = vld [vmem:[%s1 + $0x170] sm:$0xf]
  %v164 = vld [vmem:[%s1 + $0x174] sm:$0xf]
  %v165 = vld [vmem:[%s1 + $0x178] sm:$0xf]
  %v166 = vld [vmem:[%s1 + $0x17c] sm:$0xf]
  %v167 = vld [vmem:[%s1 + $0x180] sm:$0xf]
  %v168 = vld [vmem:[%s1 + $0x184] sm:$0xf]
  %v169 = vld [vmem:[%s1 + $0x188] sm:$0xf]
  %v170 = vld [vmem:[%s1 + $0x18c] sm:$0xf]
  %v171 = vld [vmem:[%s1 + $0x190] sm:$0xf]
  %v172 = vld [vmem:[%s1 + $0x194] sm:$0xf]
  %v173 = vld [vmem:[%s1 + $0x198] sm:$0xf]
  %v174 = vld [vmem:[%s1 + $0x19c] sm:$0xf]
  %v175 = vld [vmem:[%s1 + $0x1a0] sm:$0xf]
  %v176 = vld [vmem:[%s1 + $0x1a4] sm:$0xf]
  %v177 = vld [vmem:[%s1 + $0x1a8] sm:$0xf]
  %v178 = vld [vmem:[%s1 + $0x1ac] sm:$0xf]
  %v179 = vld [vmem:[%s1 + $0x1b0] sm:$0xf]
  %v180 = vld [vmem:[%s1 + $0x1b4] sm:$0xf]
  %v181 = vld [vmem:[%s1 + $0x1b8] sm:$0xf]
  %v182 = vld [vmem:[%s1 + $0x1bc] sm:$0xf]
  %v183 = vld [vmem:[%s1 + $0x1c0] sm:$0xf]
  %v184 = vld [vmem:[%s1 + $0x1c4] sm:$0xf]
  %v185 = vld [vmem:[%s1 + $0x1c8] sm:$0xf]
  %v186 = vld [vmem:[%s1 + $0x1cc] sm:$0xf]
  %v187 = vld [vmem:[%s1 + $0x1d0] sm:$0xf]
  %v188 = vld [vmem:[%s1 + $0x1d4] sm:$0xf]
  %v189 = vld [vmem:[%s1 + $0x1d8] sm:$0xf]
  %v190 = vld [vmem:[%s1 + $0x1dc] sm:$0xf]
  %v191 = vld [vmem:[%s1 + $0x1e0] sm:$0xf]
  %v192 = vld [vmem:[%s1 + $0x1e4] sm:$0xf]
  %v193 = vld [vmem:[%s1 + $0x1e8] sm:$0xf]
  %v194 = vld [vmem:[%s1 + $0x1ec] sm:$0xf]
  %v195 = vld [vmem:[%s1 + $0x1f0] sm:$0xf]
  %v196 = vld [vmem:[%s1 + $0x1f4] sm:$0xf]
  %v197 = vld [vmem:[%s1 + $0x1f8] sm:$0xf]
  %v198 = vld [vmem:[%s1 + $0x1fc] sm:$0xf]
  %v199 = vld [vmem:[%s1 + $0x200] sm:$0xf]
  %v200 = vld [vmem:[%s1 + $0x204] sm:$0xf]
  %v201 = vld [vmem:[%s1 + $0x208] sm:$0xf]
  %v202 = vld [vmem:[%s1 + $0x20c] sm:$0xf]
  %v203 = vld [vmem:[%s1 + $0x210] sm:$0xf]
  %v204 = vld [vmem:[%s1 + $0x214] sm:$0xf]
  %v205 = vld [vmem:[%s1 + $0x218] sm:$0xf]
  %v206 = vld [vmem:[%s1 + $0x21c] sm:$0xf]
  %v207 = vld [vmem:[%s1 + $0x220] sm:$0xf]
  %v208 = vld [vmem:[%s1 + $0x224] sm:$0xf]
  %v209 = vld [vmem:[%s1 + $0x228] sm:$0xf]
  %v210 = vld [vmem:[%s1 + $0x22c] sm:$0xf]
  %v211 = vld [vmem:[%s1 + $0x230] sm:$0xf]
  %v212 = vld [vmem:[%s1 + $0x234] sm:$0xf]
  %v213 = vld [vmem:[%s1 + $0x238] sm:$0xf]
  %v214 = vld [vmem:[%s1 + $0x23c] sm:$0xf]
  %v215 = vld [vmem:[%s1 + $0x240] sm:$0xf]
  %v216 = vld [vmem:[%s1 + $0x244] sm:$0xf]
  %v217 = vld [vmem:[%s1 + $0x248] sm:$0xf]
  %v218 = vld [vmem:[%s1 + $0x24c] sm:$0xf]
  %v219 = vld [vmem:[%s1 + $0x250] sm:$0xf]
  %v220 = vld [vmem:[%s1 + $0x254] sm:$0xf]
  %v221 = vld [vmem:[%s1 + $0x258] sm:$0xf]
  %v222 = vld [vmem:[%s1 + $0x25c] sm:$0xf]
  %v223 = vld [vmem:[%s1 + $0x260] sm:$0xf]
  %v224 = vld [vmem:[%s1 + $0x264] sm:$0xf]
  %v225 = vld [vmem:[%s1 + $0x268] sm:$0xf]
  %v226 = vld [vmem:[%s1 + $0x26c] sm:$0xf]
  %v227 = vld [vmem:[%s1 + $0x270] sm:$0xf]
  %v228 = vld [vmem:[%s1 + $0x274] sm:$0xf]
  %v229 = vld [vmem:[%s1 + $0x278] sm:$0xf]
  %v230 = vld [vmem:[%s1 + $0x27c] sm:$0xf]
  %v231 = vld [vmem:[%s1 + $0x280] sm:$0xf]
  %v232 = vld [vmem:[%s1 + $0x284] sm:$0xf]
  %v233 = vld [vmem:[%s1 + $0x288] sm:$0xf]
  %v234 = vld [vmem:[%s1 + $0x28c] sm:$0xf]
  %v235 = vld [vmem:[%s1 + $0x290] sm:$0xf]
  %v236 = vld [vmem:[%s1 + $0x294] sm:$0xf]
  %v237 = vld [vmem:[%s1 + $0x298] sm:$0xf]
  %v238 = vld [vmem:[%s1 + $0x29c] sm:$0xf]
  %v239 = vld [vmem:[%s1 + $0x2a0] sm:$0xf]
  %v240 = vld [vmem:[%s1 + $0x2a4] sm:$0xf]
  %v241 = vld [vmem:[%s1 + $0x2a8] sm:$0xf]
  %v242 = vld [vmem:[%s1 + $0x2ac] sm:$0xf]
  %v243 = vld [vmem:[%s1 + $0x2b0] sm:$0xf]
  %v244 = vld [vmem:[%s1 + $0x2b4] sm:$0xf]
  %v245 = vld [vmem:[%s1 + $0x2b8] sm:$0xf]
  %v246 = vld [vmem:[%s1 + $0x2bc] sm:$0xf]
  %v247 = vld [vmem:[%s1 + $0x2c0] sm:$0xf]
  %v248 = vld [vmem:[%s1 + $0x2c4] sm:$0xf]
  %v249 = vld [vmem:[%s1 + $0x2c8] sm:$0xf]
  %v250 = vld [vmem:[%s1 + $0x2cc] sm:$0xf]
  %v251 = vld [vmem:[%s1 + $0x2d0] sm:$0xf]
  %v252 = vld [vmem:[%s1 + $0x2d4] sm:$0xf]
  %v253 = vld [vmem:[%s1 + $0x2d8] sm:$0xf]
  %v254 = vld [vmem:[%s1 + $0x2dc] sm:$0xf]
  %v255 = vld [vmem:[%s1 + $0x2e0] sm:$0xf]
  %v256 = vld [vmem:[%s1 + $0x2e4] sm:$0xf]
  %v257 = vld [vmem:[%s1 + $0x2e8] sm:$0xf]
  %v258 = vld [vmem:[%s1 + $0x2ec] sm:$0xf]
  %v259 = vld [vmem:[%s1 + $0x2f0] sm:$0xf]
  %v260 = vld [vmem:[%s1 + $0x2f4] sm:$0xf]
  %v261 = vld [vmem:[%s1 + $0x2f8] sm:$0xf]
  %v262 = vld [vmem:[%s1 + $0x2fc] sm:$0xf]
  %v263 = vld [vmem:[%s1 + $0x300] sm:$0xf]
  %v264 = vld [vmem:[%s1 + $0x304] sm:$0xf]
  %v265 = vld [vmem:[%s1 + $0x308] sm:$0xf]
  %v266 = vld [vmem:[%s1 + $0x30c] sm:$0xf]
  %v267 = vld [vmem:[%s1 + $0x310] sm:$0xf]
  %v268 = vld [vmem:[%s1 + $0x314] sm:$0xf]
  %v269 = vld [vmem:[%s1 + $0x318] sm:$0xf]
  %v270 = vld [vmem:[%s1 + $0x31c] sm:$0xf]
  %v271 = vld [vmem:[%s1 + $0x320] sm:$0xf]
  %v272 = vld [vmem:[%s1 + $0x324] sm:$0xf]
  %v273 = vld [vmem:[%s1 + $0x328] sm:$0xf]
  %v274 = vld [vmem:[%s1 + $0x32c] sm:$0xf]
  %v275 = vld [vmem:[%s1 + $0x330] sm:$0xf]
  %v276 = vld [vmem:[%s1 + $0x334] sm:$0xf]
  %v277 = vld [vmem:[%s1 + $0x338] sm:$0xf]
  %v278 = vld [vmem:[%s1 + $0x33c] sm:$0xf]
  %v279 = vld [vmem:[%s1 + $0x340] sm:$0xf]
  %v280 = vld [vmem:[%s1 + $0x344] sm:$0xf]
  %v281 = vld [vmem:[%s1 + $0x348] sm:$0xf]
  %v282 = vld [vmem:[%s1 + $0x34c] sm:$0xf]
  %v283 = vld [vmem:[%s1 + $0x350] sm:$0xf]
  %v284 = vld [vmem:[%s1 + $0x354] sm:$0xf]
  %v285 = vld [vmem:[%s1 + $0x358] sm:$0xf]
  %v286 = vld [vmem:[%s1 + $0x35c] sm:$0xf]
  %v287 = vld [vmem:[%s2] sm:$0xff]
  %v288 = vld [vmem:[%s2 + $0x8] sm:$0xff]
  %v289 = vld [vmem:[%s2 + $0x10] sm:$0xff]
  %v290 = vld [vmem:[%s2 + $0x18] sm:$0xff]
  %v291 = vld [vmem:[%s2 + $0x20] sm:$0xff]
  %v292 = vld [vmem:[%s2 + $0x28] sm:$0xff]
  %v293 = vld [vmem:[%s2 + $0x30] sm:$0xff]
  %v294 = vld [vmem:[%s2 + $0x38] sm:$0xff]
  %296 = vset.pattern.permute.xlu0 0
  %297 = vperm.xlu0 %296, %v287
  %v298 = vpop.permute.xlu0 %297
  %301 = vset.pattern.permute.xlu0 0
  %302 = vperm.xlu0 %301, %v288
  %v303 = vpop.permute.xlu0 %302
  %306 = vset.pattern.permute.xlu0 0
  %307 = vperm.xlu0 %306, %v289
  %v308 = vpop.permute.xlu0 %307
  %311 = vset.pattern.permute.xlu0 0
  %312 = vperm.xlu0 %311, %v290
  %v313 = vpop.permute.xlu0 %312
  %316 = vset.pattern.permute.xlu0 0
  %317 = vperm.xlu0 %316, %v291
  %v318 = vpop.permute.xlu0 %317
  %321 = vset.pattern.permute.xlu0 0
  %322 = vperm.xlu0 %321, %v292
  %v323 = vpop.permute.xlu0 %322
  %326 = vset.pattern.permute.xlu0 0
  %327 = vperm.xlu0 %326, %v293
  %v328 = vpop.permute.xlu0 %327
  %331 = vset.pattern.permute.xlu0 0
  %332 = vperm.xlu0 %331, %v294
  %v333 = vpop.permute.xlu0 %332
  %v391 = vunpack.c.l.b16 %v15
  %v392 = vunpack.c.h.b16 %v15
  %v393 = vunpack.c.l.b16 %v16
  %v394 = vunpack.c.h.b16 %v16
  %v395 = vunpack.c.l.b16 %v17
  %v396 = vunpack.c.h.b16 %v17
  %v397 = vunpack.c.l.b16 %v18
  %v398 = vunpack.c.h.b16 %v18
  %v399 = vunpack.c.l.b16 %v19
  %v400 = vunpack.c.h.b16 %v19
  %v401 = vunpack.c.l.b16 %v20
  %v402 = vunpack.c.h.b16 %v20
  %v403 = vunpack.c.l.b16 %v21
  %v404 = vunpack.c.h.b16 %v21
  %v405 = vunpack.c.l.b16 %v22
  %v406 = vunpack.c.h.b16 %v22
  %v407 = vunpack.c.l.b16 %v23
  %v408 = vunpack.c.h.b16 %v23
  %v409 = vunpack.c.l.b16 %v24
  %v410 = vunpack.c.h.b16 %v24
  %v411 = vunpack.c.l.b16 %v25
  %v412 = vunpack.c.h.b16 %v25
  %v413 = vunpack.c.l.b16 %v26
  %v414 = vunpack.c.h.b16 %v26
  %v415 = vunpack.c.l.b16 %v27
  %v416 = vunpack.c.h.b16 %v27
  %v417 = vunpack.c.l.b16 %v28
  %v418 = vunpack.c.h.b16 %v28
  %v419 = vunpack.c.l.b16 %v29
  %v420 = vunpack.c.h.b16 %v29
  %v421 = vunpack.c.l.b16 %v30
  %v422 = vunpack.c.h.b16 %v30
  %v423 = vunpack.c.l.b16 %v31
  %v424 = vunpack.c.h.b16 %v31
  %v425 = vunpack.c.l.b16 %v32
  %v426 = vunpack.c.h.b16 %v32
  %v427 = vunpack.c.l.b16 %v33
  %v428 = vunpack.c.h.b16 %v33
  %v429 = vunpack.c.l.b16 %v34
  %v430 = vunpack.c.h.b16 %v34
  %v431 = vunpack.c.l.b16 %v35
  %v432 = vunpack.c.h.b16 %v35
  %v433 = vunpack.c.l.b16 %v36
  %v434 = vunpack.c.h.b16 %v36
  %v435 = vunpack.c.l.b16 %v37
  %v436 = vunpack.c.h.b16 %v37
  %v437 = vunpack.c.l.b16 %v38
  %v438 = vunpack.c.h.b16 %v38
  %v439 = vunpack.c.l.b16 %v39
  %v440 = vunpack.c.h.b16 %v39
  %v441 = vunpack.c.l.b16 %v40
  %v442 = vunpack.c.h.b16 %v40
  %v443 = vunpack.c.l.b16 %v41
  %v444 = vunpack.c.h.b16 %v41
  %v445 = vunpack.c.l.b16 %v42
  %v446 = vunpack.c.h.b16 %v42
  %v447 = vunpack.c.l.b16 %v43
  %v448 = vunpack.c.h.b16 %v43
  %v449 = vunpack.c.l.b16 %v44
  %v450 = vunpack.c.h.b16 %v44
  %v451 = vunpack.c.l.b16 %v45
  %v452 = vunpack.c.h.b16 %v45
  %v453 = vunpack.c.l.b16 %v46
  %v454 = vunpack.c.h.b16 %v46
  %v455 = vunpack.c.l.b16 %v47
  %v456 = vunpack.c.h.b16 %v47
  %v457 = vunpack.c.l.b16 %v48
  %v458 = vunpack.c.h.b16 %v48
  %v459 = vunpack.c.l.b16 %v49
  %v460 = vunpack.c.h.b16 %v49
  %v461 = vunpack.c.l.b16 %v50
  %v462 = vunpack.c.h.b16 %v50
  %v463 = vunpack.c.l.b16 %v51
  %v464 = vunpack.c.h.b16 %v51
  %v465 = vunpack.c.l.b16 %v52
  %v466 = vunpack.c.h.b16 %v52
  %v467 = vunpack.c.l.b16 %v53
  %v468 = vunpack.c.h.b16 %v53
  %v469 = vunpack.c.l.b16 %v54
  %v470 = vunpack.c.h.b16 %v54
  %v471 = vunpack.c.l.b16 %v55
  %v472 = vunpack.c.h.b16 %v55
  %v473 = vunpack.c.l.b16 %v56
  %v474 = vunpack.c.h.b16 %v56
  %v475 = vunpack.c.l.b16 %v57
  %v476 = vunpack.c.h.b16 %v57
  %v477 = vunpack.c.l.b16 %v58
  %v478 = vunpack.c.h.b16 %v58
  %v479 = vunpack.c.l.b16 %v59
  %v480 = vunpack.c.h.b16 %v59
  %v481 = vunpack.c.l.b16 %v60
  %v482 = vunpack.c.h.b16 %v60
  %v483 = vunpack.c.l.b16 %v61
  %v484 = vunpack.c.h.b16 %v61
  %v485 = vunpack.c.l.b16 %v62
  %v486 = vunpack.c.h.b16 %v62
  %v487 = vunpack.c.l.b16 %v63
  %v488 = vunpack.c.h.b16 %v63
  %v489 = vunpack.c.l.b16 %v64
  %v490 = vunpack.c.h.b16 %v64
  %v491 = vunpack.c.l.b16 %v65
  %v492 = vunpack.c.h.b16 %v65
  %v493 = vunpack.c.l.b16 %v66
  %v494 = vunpack.c.h.b16 %v66
  %v495 = vunpack.c.l.b16 %v67
  %v496 = vunpack.c.h.b16 %v67
  %v497 = vunpack.c.l.b16 %v68
  %v498 = vunpack.c.h.b16 %v68
  %v499 = vunpack.c.l.b16 %v69
  %v500 = vunpack.c.h.b16 %v69
  %v501 = vunpack.c.l.b16 %v70
  %v502 = vunpack.c.h.b16 %v70
  %v503 = vpack.c.b16 %v405, %v391
  %v504 = vpack.c.b16 %v406, %v392
  %v505 = vpack.c.b16 %v407, %v393
  %v506 = vpack.c.b16 %v408, %v394
  %v507 = vpack.c.b16 %v409, %v395
  %v508 = vpack.c.b16 %v410, %v396
  %v509 = vpack.c.b16 %v411, %v397
  %v510 = vpack.c.b16 %v412, %v398
  %v511 = vpack.c.b16 %v413, %v399
  %v512 = vpack.c.b16 %v414, %v400
  %v513 = vpack.c.b16 %v415, %v401
  %v514 = vpack.c.b16 %v416, %v402
  %v515 = vpack.c.b16 %v417, %v403
  %v516 = vpack.c.b16 %v418, %v404
  %v517 = vpack.c.b16 %v433, %v419
  %v518 = vpack.c.b16 %v434, %v420
  %v519 = vpack.c.b16 %v435, %v421
  %v520 = vpack.c.b16 %v436, %v422
  %v521 = vpack.c.b16 %v437, %v423
  %v522 = vpack.c.b16 %v438, %v424
  %v523 = vpack.c.b16 %v439, %v425
  %v524 = vpack.c.b16 %v440, %v426
  %v525 = vpack.c.b16 %v441, %v427
  %v526 = vpack.c.b16 %v442, %v428
  %v527 = vpack.c.b16 %v443, %v429
  %v528 = vpack.c.b16 %v444, %v430
  %v529 = vpack.c.b16 %v445, %v431
  %v530 = vpack.c.b16 %v446, %v432
  %v531 = vpack.c.b16 %v461, %v447
  %v532 = vpack.c.b16 %v462, %v448
  %v533 = vpack.c.b16 %v463, %v449
  %v534 = vpack.c.b16 %v464, %v450
  %v535 = vpack.c.b16 %v465, %v451
  %v536 = vpack.c.b16 %v466, %v452
  %v537 = vpack.c.b16 %v467, %v453
  %v538 = vpack.c.b16 %v468, %v454
  %v539 = vpack.c.b16 %v469, %v455
  %v540 = vpack.c.b16 %v470, %v456
  %v541 = vpack.c.b16 %v471, %v457
  %v542 = vpack.c.b16 %v472, %v458
  %v543 = vpack.c.b16 %v473, %v459
  %v544 = vpack.c.b16 %v474, %v460
  %v545 = vpack.c.b16 %v489, %v475
  %v546 = vpack.c.b16 %v490, %v476
  %v547 = vpack.c.b16 %v491, %v477
  %v548 = vpack.c.b16 %v492, %v478
  %v549 = vpack.c.b16 %v493, %v479
  %v550 = vpack.c.b16 %v494, %v480
  %v551 = vpack.c.b16 %v495, %v481
  %v552 = vpack.c.b16 %v496, %v482
  %v553 = vpack.c.b16 %v497, %v483
  %v554 = vpack.c.b16 %v498, %v484
  %v555 = vpack.c.b16 %v499, %v485
  %v556 = vpack.c.b16 %v500, %v486
  %v557 = vpack.c.b16 %v501, %v487
  %v558 = vpack.c.b16 %v502, %v488
  %v827 = vunpack.c.l.b16 %v71
  %v828 = vunpack.c.l.b16 %v72
  %v829 = vunpack.c.l.b16 %v73
  %v830 = vunpack.c.l.b16 %v74
  %v831 = vunpack.c.l.b16 %v75
  %v832 = vunpack.c.l.b16 %v76
  %v833 = vunpack.c.l.b16 %v77
  %v834 = vunpack.c.l.b16 %v78
  %v835 = vunpack.c.l.b16 %v79
  %v836 = vunpack.c.l.b16 %v80
  %v837 = vunpack.c.l.b16 %v81
  %v838 = vunpack.c.l.b16 %v82
  %v839 = vunpack.c.l.b16 %v83
  %v840 = vunpack.c.l.b16 %v84
  %v841 = vunpack.c.l.b16 %v85
  %v842 = vunpack.c.l.b16 %v86
  %v843 = vunpack.c.l.b16 %v87
  %v844 = vunpack.c.l.b16 %v88
  %v845 = vunpack.c.l.b16 %v89
  %v846 = vunpack.c.l.b16 %v90
  %v847 = vunpack.c.l.b16 %v91
  %v848 = vunpack.c.l.b16 %v92
  %v849 = vunpack.c.l.b16 %v93
  %v850 = vunpack.c.l.b16 %v94
  %v851 = vunpack.c.l.b16 %v95
  %v852 = vunpack.c.l.b16 %v96
  %v853 = vunpack.c.l.b16 %v97
  %v854 = vunpack.c.l.b16 %v98
  %v855 = vunpack.c.l.b16 %v99
  %v856 = vunpack.c.l.b16 %v100
  %v857 = vunpack.c.l.b16 %v101
  %v858 = vunpack.c.l.b16 %v102
  %v859 = vunpack.c.l.b16 %v103
  %v860 = vunpack.c.l.b16 %v104
  %v861 = vunpack.c.l.b16 %v105
  %v862 = vunpack.c.l.b16 %v106
  %v863 = vunpack.c.l.b16 %v107
  %v864 = vunpack.c.l.b16 %v108
  %v865 = vunpack.c.l.b16 %v109
  %v866 = vunpack.c.l.b16 %v110
  %v867 = vunpack.c.l.b16 %v111
  %v868 = vunpack.c.l.b16 %v112
  %v869 = vunpack.c.l.b16 %v113
  %v870 = vunpack.c.l.b16 %v114
  %v871 = vunpack.c.l.b16 %v115
  %v872 = vunpack.c.l.b16 %v116
  %v873 = vunpack.c.l.b16 %v117
  %v874 = vunpack.c.l.b16 %v118
  %v875 = vunpack.c.l.b16 %v119
  %v876 = vunpack.c.l.b16 %v120
  %v877 = vunpack.c.l.b16 %v121
  %v878 = vunpack.c.l.b16 %v122
  %v879 = vunpack.c.l.b16 %v123
  %v880 = vunpack.c.l.b16 %v124
  %v881 = vunpack.c.l.b16 %v125
  %v882 = vunpack.c.l.b16 %v126
  %v883 = vunpack.c.l.b16 %v127
  %v884 = vunpack.c.l.b16 %v128
  %v885 = vunpack.c.l.b16 %v129
  %v886 = vunpack.c.l.b16 %v130
  %v887 = vunpack.c.l.b16 %v131
  %v888 = vunpack.c.l.b16 %v132
  %v889 = vunpack.c.l.b16 %v133
  %v890 = vunpack.c.l.b16 %v134
  %v891 = vunpack.c.l.b16 %v135
  %v892 = vunpack.c.l.b16 %v136
  %v893 = vunpack.c.l.b16 %v137
  %v894 = vunpack.c.l.b16 %v138
  %v895 = vunpack.c.l.b16 %v139
  %v896 = vunpack.c.l.b16 %v140
  %v897 = vunpack.c.l.b16 %v141
  %v898 = vunpack.c.l.b16 %v142
  %v899 = vunpack.c.l.b16 %v143
  %v900 = vunpack.c.l.b16 %v144
  %v901 = vunpack.c.l.b16 %v145
  %v902 = vunpack.c.l.b16 %v146
  %v903 = vunpack.c.l.b16 %v147
  %v904 = vunpack.c.l.b16 %v148
  %v905 = vunpack.c.l.b16 %v149
  %v906 = vunpack.c.l.b16 %v150
  %v907 = vunpack.c.l.b16 %v151
  %v908 = vunpack.c.l.b16 %v152
  %v909 = vunpack.c.l.b16 %v153
  %v910 = vunpack.c.l.b16 %v154
  %v911 = vunpack.c.l.b16 %v155
  %v912 = vunpack.c.l.b16 %v156
  %v913 = vunpack.c.l.b16 %v157
  %v914 = vunpack.c.l.b16 %v158
  %v915 = vunpack.c.l.b16 %v159
  %v916 = vunpack.c.l.b16 %v160
  %v917 = vunpack.c.l.b16 %v161
  %v918 = vunpack.c.l.b16 %v162
  %v919 = vunpack.c.l.b16 %v163
  %v920 = vunpack.c.l.b16 %v164
  %v921 = vunpack.c.l.b16 %v165
  %v922 = vunpack.c.l.b16 %v166
  %v923 = vunpack.c.l.b16 %v167
  %v924 = vunpack.c.l.b16 %v168
  %v925 = vunpack.c.l.b16 %v169
  %v926 = vunpack.c.l.b16 %v170
  %v927 = vunpack.c.l.b16 %v171
  %v928 = vunpack.c.l.b16 %v172
  %v929 = vunpack.c.l.b16 %v173
  %v930 = vunpack.c.l.b16 %v174
  %v931 = vunpack.c.l.b16 %v175
  %v932 = vunpack.c.l.b16 %v176
  %v933 = vunpack.c.l.b16 %v177
  %v934 = vunpack.c.l.b16 %v178
  %v935 = vunpack.c.l.b16 %v179
  %v936 = vunpack.c.l.b16 %v180
  %v937 = vunpack.c.l.b16 %v181
  %v938 = vunpack.c.l.b16 %v182
  %v939 = vunpack.c.l.b16 %v183
  %v940 = vunpack.c.l.b16 %v184
  %v941 = vunpack.c.l.b16 %v185
  %v942 = vunpack.c.l.b16 %v186
  %v943 = vunpack.c.l.b16 %v187
  %v944 = vunpack.c.l.b16 %v188
  %v945 = vunpack.c.l.b16 %v189
  %v946 = vunpack.c.l.b16 %v190
  %v947 = vunpack.c.l.b16 %v191
  %v948 = vunpack.c.l.b16 %v192
  %v949 = vunpack.c.l.b16 %v193
  %v950 = vunpack.c.l.b16 %v194
  %v951 = vunpack.c.l.b16 %v195
  %v952 = vunpack.c.l.b16 %v196
  %v953 = vunpack.c.l.b16 %v197
  %v954 = vunpack.c.l.b16 %v198
  %v955 = vunpack.c.l.b16 %v199
  %v956 = vunpack.c.l.b16 %v200
  %v957 = vunpack.c.l.b16 %v201
  %v958 = vunpack.c.l.b16 %v202
  %v959 = vunpack.c.l.b16 %v203
  %v960 = vunpack.c.l.b16 %v204
  %v961 = vunpack.c.l.b16 %v205
  %v962 = vunpack.c.l.b16 %v206
  %v963 = vunpack.c.l.b16 %v207
  %v964 = vunpack.c.l.b16 %v208
  %v965 = vunpack.c.l.b16 %v209
  %v966 = vunpack.c.l.b16 %v210
  %v967 = vunpack.c.l.b16 %v211
  %v968 = vunpack.c.l.b16 %v212
  %v969 = vunpack.c.l.b16 %v213
  %v970 = vunpack.c.l.b16 %v214
  %v971 = vunpack.c.l.b16 %v215
  %v972 = vunpack.c.l.b16 %v216
  %v973 = vunpack.c.l.b16 %v217
  %v974 = vunpack.c.l.b16 %v218
  %v975 = vunpack.c.l.b16 %v219
  %v976 = vunpack.c.l.b16 %v220
  %v977 = vunpack.c.l.b16 %v221
  %v978 = vunpack.c.l.b16 %v222
  %v979 = vunpack.c.l.b16 %v223
  %v980 = vunpack.c.l.b16 %v224
  %v981 = vunpack.c.l.b16 %v225
  %v982 = vunpack.c.l.b16 %v226
  %v983 = vunpack.c.l.b16 %v227
  %v984 = vunpack.c.l.b16 %v228
  %v985 = vunpack.c.l.b16 %v229
  %v986 = vunpack.c.l.b16 %v230
  %v987 = vunpack.c.l.b16 %v231
  %v988 = vunpack.c.l.b16 %v232
  %v989 = vunpack.c.l.b16 %v233
  %v990 = vunpack.c.l.b16 %v234
  %v991 = vunpack.c.l.b16 %v235
  %v992 = vunpack.c.l.b16 %v236
  %v993 = vunpack.c.l.b16 %v237
  %v994 = vunpack.c.l.b16 %v238
  %v995 = vunpack.c.l.b16 %v239
  %v996 = vunpack.c.l.b16 %v240
  %v997 = vunpack.c.l.b16 %v241
  %v998 = vunpack.c.l.b16 %v242
  %v999 = vunpack.c.l.b16 %v243
  %v1000 = vunpack.c.l.b16 %v244
  %v1001 = vunpack.c.l.b16 %v245
  %v1002 = vunpack.c.l.b16 %v246
  %v1003 = vunpack.c.l.b16 %v247
  %v1004 = vunpack.c.l.b16 %v248
  %v1005 = vunpack.c.l.b16 %v249
  %v1006 = vunpack.c.l.b16 %v250
  %v1007 = vunpack.c.l.b16 %v251
  %v1008 = vunpack.c.l.b16 %v252
  %v1009 = vunpack.c.l.b16 %v253
  %v1010 = vunpack.c.l.b16 %v254
  %v1011 = vunpack.c.l.b16 %v255
  %v1012 = vunpack.c.l.b16 %v256
  %v1013 = vunpack.c.l.b16 %v257
  %v1014 = vunpack.c.l.b16 %v258
  %v1015 = vunpack.c.l.b16 %v259
  %v1016 = vunpack.c.l.b16 %v260
  %v1017 = vunpack.c.l.b16 %v261
  %v1018 = vunpack.c.l.b16 %v262
  %v1019 = vunpack.c.l.b16 %v263
  %v1020 = vunpack.c.l.b16 %v264
  %v1021 = vunpack.c.l.b16 %v265
  %v1022 = vunpack.c.l.b16 %v266
  %v1023 = vunpack.c.l.b16 %v267
  %v1024 = vunpack.c.l.b16 %v268
  %v1025 = vunpack.c.l.b16 %v269
  %v1026 = vunpack.c.l.b16 %v270
  %v1027 = vunpack.c.l.b16 %v271
  %v1028 = vunpack.c.l.b16 %v272
  %v1029 = vunpack.c.l.b16 %v273
  %v1030 = vunpack.c.l.b16 %v274
  %v1031 = vunpack.c.l.b16 %v275
  %v1032 = vunpack.c.l.b16 %v276
  %v1033 = vunpack.c.l.b16 %v277
  %v1034 = vunpack.c.l.b16 %v278
  %v1035 = vunpack.c.l.b16 %v279
  %v1036 = vunpack.c.l.b16 %v280
  %v1037 = vunpack.c.l.b16 %v281
  %v1038 = vunpack.c.l.b16 %v282
  %v1039 = vunpack.c.l.b16 %v283
  %v1040 = vunpack.c.l.b16 %v284
  %v1041 = vunpack.c.l.b16 %v285
  %v1042 = vunpack.c.l.b16 %v286
  %v1043 = vpack.c.b16 %v828, %v827
  %v1044 = vpack.c.b16 %v830, %v829
  %v1045 = vpack.c.b16 %v832, %v831
  %v1046 = vpack.c.b16 %v834, %v833
  %v1047 = vpack.c.b16 %v836, %v835
  %v1048 = vpack.c.b16 %v838, %v837
  %v1049 = vpack.c.b16 %v840, %v839
  %v1050 = vpack.c.b16 %v842, %v841
  %v1051 = vpack.c.b16 %v844, %v843
  %v1052 = vpack.c.b16 %v846, %v845
  %v1053 = vpack.c.b16 %v848, %v847
  %v1054 = vpack.c.b16 %v850, %v849
  %v1055 = vpack.c.b16 %v852, %v851
  %v1056 = vpack.c.b16 %v854, %v853
  %v1057 = vpack.c.b16 %v856, %v855
  %v1058 = vpack.c.b16 %v858, %v857
  %v1059 = vpack.c.b16 %v860, %v859
  %v1060 = vpack.c.b16 %v862, %v861
  %v1061 = vpack.c.b16 %v864, %v863
  %v1062 = vpack.c.b16 %v866, %v865
  %v1063 = vpack.c.b16 %v868, %v867
  %v1064 = vpack.c.b16 %v870, %v869
  %v1065 = vpack.c.b16 %v872, %v871
  %v1066 = vpack.c.b16 %v874, %v873
  %v1067 = vpack.c.b16 %v876, %v875
  %v1068 = vpack.c.b16 %v878, %v877
  %v1069 = vpack.c.b16 %v880, %v879
  %v1070 = vpack.c.b16 %v882, %v881
  %v1071 = vpack.c.b16 %v884, %v883
  %v1072 = vpack.c.b16 %v886, %v885
  %v1073 = vpack.c.b16 %v888, %v887
  %v1074 = vpack.c.b16 %v890, %v889
  %v1075 = vpack.c.b16 %v892, %v891
  %v1076 = vpack.c.b16 %v894, %v893
  %v1077 = vpack.c.b16 %v896, %v895
  %v1078 = vpack.c.b16 %v898, %v897
  %v1079 = vpack.c.b16 %v900, %v899
  %v1080 = vpack.c.b16 %v902, %v901
  %v1081 = vpack.c.b16 %v904, %v903
  %v1082 = vpack.c.b16 %v906, %v905
  %v1083 = vpack.c.b16 %v908, %v907
  %v1084 = vpack.c.b16 %v910, %v909
  %v1085 = vpack.c.b16 %v912, %v911
  %v1086 = vpack.c.b16 %v914, %v913
  %v1087 = vpack.c.b16 %v916, %v915
  %v1088 = vpack.c.b16 %v918, %v917
  %v1089 = vpack.c.b16 %v920, %v919
  %v1090 = vpack.c.b16 %v922, %v921
  %v1091 = vpack.c.b16 %v924, %v923
  %v1092 = vpack.c.b16 %v926, %v925
  %v1093 = vpack.c.b16 %v928, %v927
  %v1094 = vpack.c.b16 %v930, %v929
  %v1095 = vpack.c.b16 %v932, %v931
  %v1096 = vpack.c.b16 %v934, %v933
  %v1097 = vpack.c.b16 %v936, %v935
  %v1098 = vpack.c.b16 %v938, %v937
  %v1099 = vpack.c.b16 %v940, %v939
  %v1100 = vpack.c.b16 %v942, %v941
  %v1101 = vpack.c.b16 %v944, %v943
  %v1102 = vpack.c.b16 %v946, %v945
  %v1103 = vpack.c.b16 %v948, %v947
  %v1104 = vpack.c.b16 %v950, %v949
  %v1105 = vpack.c.b16 %v952, %v951
  %v1106 = vpack.c.b16 %v954, %v953
  %v1107 = vpack.c.b16 %v956, %v955
  %v1108 = vpack.c.b16 %v958, %v957
  %v1109 = vpack.c.b16 %v960, %v959
  %v1110 = vpack.c.b16 %v962, %v961
  %v1111 = vpack.c.b16 %v964, %v963
  %v1112 = vpack.c.b16 %v966, %v965
  %v1113 = vpack.c.b16 %v968, %v967
  %v1114 = vpack.c.b16 %v970, %v969
  %v1115 = vpack.c.b16 %v972, %v971
  %v1116 = vpack.c.b16 %v974, %v973
  %v1117 = vpack.c.b16 %v976, %v975
  %v1118 = vpack.c.b16 %v978, %v977
  %v1119 = vpack.c.b16 %v980, %v979
  %v1120 = vpack.c.b16 %v982, %v981
  %v1121 = vpack.c.b16 %v984, %v983
  %v1122 = vpack.c.b16 %v986, %v985
  %v1123 = vpack.c.b16 %v988, %v987
  %v1124 = vpack.c.b16 %v990, %v989
  %v1125 = vpack.c.b16 %v992, %v991
  %v1126 = vpack.c.b16 %v994, %v993
  %v1127 = vpack.c.b16 %v996, %v995
  %v1128 = vpack.c.b16 %v998, %v997
  %v1129 = vpack.c.b16 %v1000, %v999
  %v1130 = vpack.c.b16 %v1002, %v1001
  %v1131 = vpack.c.b16 %v1004, %v1003
  %v1132 = vpack.c.b16 %v1006, %v1005
  %v1133 = vpack.c.b16 %v1008, %v1007
  %v1134 = vpack.c.b16 %v1010, %v1009
  %v1135 = vpack.c.b16 %v1012, %v1011
  %v1136 = vpack.c.b16 %v1014, %v1013
  %v1137 = vpack.c.b16 %v1016, %v1015
  %v1138 = vpack.c.b16 %v1018, %v1017
  %v1139 = vpack.c.b16 %v1020, %v1019
  %v1140 = vpack.c.b16 %v1022, %v1021
  %v1141 = vpack.c.b16 %v1024, %v1023
  %v1142 = vpack.c.b16 %v1026, %v1025
  %v1143 = vpack.c.b16 %v1028, %v1027
  %v1144 = vpack.c.b16 %v1030, %v1029
  %v1145 = vpack.c.b16 %v1032, %v1031
  %v1146 = vpack.c.b16 %v1034, %v1033
  %v1147 = vpack.c.b16 %v1036, %v1035
  %v1148 = vpack.c.b16 %v1038, %v1037
  %v1149 = vpack.c.b16 %v1040, %v1039
  %v1150 = vpack.c.b16 %v1042, %v1041
  %vm1259 = vcmask 523264
  %v1261 = vsel %vm1259, %v516, 0
  %v1264 = vsel %vm1259, %v530, 0
  %v1267 = vsel %vm1259, %v544, 0
  %v1270 = vsel %vm1259, %v558, 0
  %1272 = vmatpush.bf16.msra.mxu0 %v1050
  %1273 = vmatpush.bf16.msra.mxu0 %v1049
  %1274 = vmatpush.bf16.msra.mxu0 %v1048
  %1275 = vmatpush.bf16.msra.mxu0 %v1047
  %1276 = vmatpush.bf16.msra.mxu0 %v1046
  %1277 = vmatpush.bf16.msra.mxu0 %v1045
  %1278 = vmatpush.bf16.msra.mxu0 %v1044
  %1279 = vmatpush.bf16.msra.mxu0 %v1043
  %1280 = vmatmul.bf16.gmra.mxu0 %v503
  %v1281 = vpop.f32.mrf.mxu0
  %v1282 = vadd.f32 %v298, %v1281
  %v1283 = vpop.f32.mrf.mxu0
  %v1284 = vadd.f32 %v303, %v1283
  %1285 = vmatmul.bf16.gmra.mxu0 %v517
  %v1286 = vpop.f32.mrf.mxu0
  %v1287 = vadd.f32 %v308, %v1286
  %v1288 = vpop.f32.mrf.mxu0
  %v1289 = vadd.f32 %v313, %v1288
  %1290 = vmatmul.bf16.gmra.mxu0 %v531
  %v1291 = vpop.f32.mrf.mxu0
  %v1292 = vadd.f32 %v318, %v1291
  %v1293 = vpop.f32.mrf.mxu0
  %v1294 = vadd.f32 %v323, %v1293
  %1295 = vmatmul.bf16.gmra.mxu0 %v545
  %v1296 = vpop.f32.mrf.mxu0
  %v1297 = vadd.f32 %v328, %v1296
  %v1298 = vpop.f32.mrf.mxu0
  %v1299 = vadd.f32 %v333, %v1298
  %1300 = vdwg.mxu0
  %1301 = vmatpush.bf16.msra.mxu0 %v1058
  %1302 = vmatpush.bf16.msra.mxu0 %v1057
  %1303 = vmatpush.bf16.msra.mxu0 %v1056
  %1304 = vmatpush.bf16.msra.mxu0 %v1055
  %1305 = vmatpush.bf16.msra.mxu0 %v1054
  %1306 = vmatpush.bf16.msra.mxu0 %v1053
  %1307 = vmatpush.bf16.msra.mxu0 %v1052
  %1308 = vmatpush.bf16.msra.mxu0 %v1051
  %1309 = vmatmul.bf16.gmra.mxu0 %v504
  %v1310 = vpop.f32.mrf.mxu0
  %v1311 = vadd.f32 %v1282, %v1310
  %v1312 = vpop.f32.mrf.mxu0
  %v1313 = vadd.f32 %v1284, %v1312
  %1314 = vmatmul.bf16.gmra.mxu0 %v518
  %v1315 = vpop.f32.mrf.mxu0
  %v1316 = vadd.f32 %v1287, %v1315
  %v1317 = vpop.f32.mrf.mxu0
  %v1318 = vadd.f32 %v1289, %v1317
  %1319 = vmatmul.bf16.gmra.mxu0 %v532
  %v1320 = vpop.f32.mrf.mxu0
  %v1321 = vadd.f32 %v1292, %v1320
  %v1322 = vpop.f32.mrf.mxu0
  %v1323 = vadd.f32 %v1294, %v1322
  %1324 = vmatmul.bf16.gmra.mxu0 %v546
  %v1325 = vpop.f32.mrf.mxu0
  %v1326 = vadd.f32 %v1297, %v1325
  %v1327 = vpop.f32.mrf.mxu0
  %v1328 = vadd.f32 %v1299, %v1327
  %1329 = vdwg.mxu0
  %1330 = vmatpush.bf16.msra.mxu0 %v1066
  %1331 = vmatpush.bf16.msra.mxu0 %v1065
  %1332 = vmatpush.bf16.msra.mxu0 %v1064
  %1333 = vmatpush.bf16.msra.mxu0 %v1063
  %1334 = vmatpush.bf16.msra.mxu0 %v1062
  %1335 = vmatpush.bf16.msra.mxu0 %v1061
  %1336 = vmatpush.bf16.msra.mxu0 %v1060
  %1337 = vmatpush.bf16.msra.mxu0 %v1059
  %1338 = vmatmul.bf16.gmra.mxu0 %v505
  %v1339 = vpop.f32.mrf.mxu0
  %v1340 = vadd.f32 %v1311, %v1339
  %v1341 = vpop.f32.mrf.mxu0
  %v1342 = vadd.f32 %v1313, %v1341
  %1343 = vmatmul.bf16.gmra.mxu0 %v519
  %v1344 = vpop.f32.mrf.mxu0
  %v1345 = vadd.f32 %v1316, %v1344
  %v1346 = vpop.f32.mrf.mxu0
  %v1347 = vadd.f32 %v1318, %v1346
  %1348 = vmatmul.bf16.gmra.mxu0 %v533
  %v1349 = vpop.f32.mrf.mxu0
  %v1350 = vadd.f32 %v1321, %v1349
  %v1351 = vpop.f32.mrf.mxu0
  %v1352 = vadd.f32 %v1323, %v1351
  %1353 = vmatmul.bf16.gmra.mxu0 %v547
  %v1354 = vpop.f32.mrf.mxu0
  %v1355 = vadd.f32 %v1326, %v1354
  %v1356 = vpop.f32.mrf.mxu0
  %v1357 = vadd.f32 %v1328, %v1356
  %1358 = vdwg.mxu0
  %1359 = vmatpush.bf16.msra.mxu0 %v1074
  %1360 = vmatpush.bf16.msra.mxu0 %v1073
  %1361 = vmatpush.bf16.msra.mxu0 %v1072
  %1362 = vmatpush.bf16.msra.mxu0 %v1071
  %1363 = vmatpush.bf16.msra.mxu0 %v1070
  %1364 = vmatpush.bf16.msra.mxu0 %v1069
  %1365 = vmatpush.bf16.msra.mxu0 %v1068
  %1366 = vmatpush.bf16.msra.mxu0 %v1067
  %1367 = vmatmul.bf16.gmra.mxu0 %v506
  %v1368 = vpop.f32.mrf.mxu0
  %v1369 = vadd.f32 %v1340, %v1368
  %v1370 = vpop.f32.mrf.mxu0
  %v1371 = vadd.f32 %v1342, %v1370
  %1372 = vmatmul.bf16.gmra.mxu0 %v520
  %v1373 = vpop.f32.mrf.mxu0
  %v1374 = vadd.f32 %v1345, %v1373
  %v1375 = vpop.f32.mrf.mxu0
  %v1376 = vadd.f32 %v1347, %v1375
  %1377 = vmatmul.bf16.gmra.mxu0 %v534
  %v1378 = vpop.f32.mrf.mxu0
  %v1379 = vadd.f32 %v1350, %v1378
  %v1380 = vpop.f32.mrf.mxu0
  %v1381 = vadd.f32 %v1352, %v1380
  %1382 = vmatmul.bf16.gmra.mxu0 %v548
  %v1383 = vpop.f32.mrf.mxu0
  %v1384 = vadd.f32 %v1355, %v1383
  %v1385 = vpop.f32.mrf.mxu0
  %v1386 = vadd.f32 %v1357, %v1385
  %1387 = vdwg.mxu0
  %1388 = vmatpush.bf16.msra.mxu0 %v1082
  %1389 = vmatpush.bf16.msra.mxu0 %v1081
  %1390 = vmatpush.bf16.msra.mxu0 %v1080
  %1391 = vmatpush.bf16.msra.mxu0 %v1079
  %1392 = vmatpush.bf16.msra.mxu0 %v1078
  %1393 = vmatpush.bf16.msra.mxu0 %v1077
  %1394 = vmatpush.bf16.msra.mxu0 %v1076
  %1395 = vmatpush.bf16.msra.mxu0 %v1075
  %1396 = vmatmul.bf16.gmra.mxu0 %v507
  %v1397 = vpop.f32.mrf.mxu0
  %v1398 = vadd.f32 %v1369, %v1397
  %v1399 = vpop.f32.mrf.mxu0
  %v1400 = vadd.f32 %v1371, %v1399
  %1401 = vmatmul.bf16.gmra.mxu0 %v521
  %v1402 = vpop.f32.mrf.mxu0
  %v1403 = vadd.f32 %v1374, %v1402
  %v1404 = vpop.f32.mrf.mxu0
  %v1405 = vadd.f32 %v1376, %v1404
  %1406 = vmatmul.bf16.gmra.mxu0 %v535
  %v1407 = vpop.f32.mrf.mxu0
  %v1408 = vadd.f32 %v1379, %v1407
  %v1409 = vpop.f32.mrf.mxu0
  %v1410 = vadd.f32 %v1381, %v1409
  %1411 = vmatmul.bf16.gmra.mxu0 %v549
  %v1412 = vpop.f32.mrf.mxu0
  %v1413 = vadd.f32 %v1384, %v1412
  %v1414 = vpop.f32.mrf.mxu0
  %v1415 = vadd.f32 %v1386, %v1414
  %1416 = vdwg.mxu0
  %1417 = vmatpush.bf16.msra.mxu0 %v1090
  %1418 = vmatpush.bf16.msra.mxu0 %v1089
  %1419 = vmatpush.bf16.msra.mxu0 %v1088
  %1420 = vmatpush.bf16.msra.mxu0 %v1087
  %1421 = vmatpush.bf16.msra.mxu0 %v1086
  %1422 = vmatpush.bf16.msra.mxu0 %v1085
  %1423 = vmatpush.bf16.msra.mxu0 %v1084
  %1424 = vmatpush.bf16.msra.mxu0 %v1083
  %1425 = vmatmul.bf16.gmra.mxu0 %v508
  %v1426 = vpop.f32.mrf.mxu0
  %v1427 = vadd.f32 %v1398, %v1426
  %v1428 = vpop.f32.mrf.mxu0
  %v1429 = vadd.f32 %v1400, %v1428
  %1430 = vmatmul.bf16.gmra.mxu0 %v522
  %v1431 = vpop.f32.mrf.mxu0
  %v1432 = vadd.f32 %v1403, %v1431
  %v1433 = vpop.f32.mrf.mxu0
  %v1434 = vadd.f32 %v1405, %v1433
  %1435 = vmatmul.bf16.gmra.mxu0 %v536
  %v1436 = vpop.f32.mrf.mxu0
  %v1437 = vadd.f32 %v1408, %v1436
  %v1438 = vpop.f32.mrf.mxu0
  %v1439 = vadd.f32 %v1410, %v1438
  %1440 = vmatmul.bf16.gmra.mxu0 %v550
  %v1441 = vpop.f32.mrf.mxu0
  %v1442 = vadd.f32 %v1413, %v1441
  %v1443 = vpop.f32.mrf.mxu0
  %v1444 = vadd.f32 %v1415, %v1443
  %1445 = vdwg.mxu0
  %1446 = vmatpush.bf16.msra.mxu0 %v1098
  %1447 = vmatpush.bf16.msra.mxu0 %v1097
  %1448 = vmatpush.bf16.msra.mxu0 %v1096
  %1449 = vmatpush.bf16.msra.mxu0 %v1095
  %1450 = vmatpush.bf16.msra.mxu0 %v1094
  %1451 = vmatpush.bf16.msra.mxu0 %v1093
  %1452 = vmatpush.bf16.msra.mxu0 %v1092
  %1453 = vmatpush.bf16.msra.mxu0 %v1091
  %1454 = vmatmul.bf16.gmra.mxu0 %v509
  %v1455 = vpop.f32.mrf.mxu0
  %v1456 = vadd.f32 %v1427, %v1455
  %v1457 = vpop.f32.mrf.mxu0
  %v1458 = vadd.f32 %v1429, %v1457
  %1459 = vmatmul.bf16.gmra.mxu0 %v523
  %v1460 = vpop.f32.mrf.mxu0
  %v1461 = vadd.f32 %v1432, %v1460
  %v1462 = vpop.f32.mrf.mxu0
  %v1463 = vadd.f32 %v1434, %v1462
  %1464 = vmatmul.bf16.gmra.mxu0 %v537
  %v1465 = vpop.f32.mrf.mxu0
  %v1466 = vadd.f32 %v1437, %v1465
  %v1467 = vpop.f32.mrf.mxu0
  %v1468 = vadd.f32 %v1439, %v1467
  %1469 = vmatmul.bf16.gmra.mxu0 %v551
  %v1470 = vpop.f32.mrf.mxu0
  %v1471 = vadd.f32 %v1442, %v1470
  %v1472 = vpop.f32.mrf.mxu0
  %v1473 = vadd.f32 %v1444, %v1472
  %1474 = vdwg.mxu0
  %1475 = vmatpush.bf16.msra.mxu0 %v1106
  %1476 = vmatpush.bf16.msra.mxu0 %v1105
  %1477 = vmatpush.bf16.msra.mxu0 %v1104
  %1478 = vmatpush.bf16.msra.mxu0 %v1103
  %1479 = vmatpush.bf16.msra.mxu0 %v1102
  %1480 = vmatpush.bf16.msra.mxu0 %v1101
  %1481 = vmatpush.bf16.msra.mxu0 %v1100
  %1482 = vmatpush.bf16.msra.mxu0 %v1099
  %1483 = vmatmul.bf16.gmra.mxu0 %v510
  %v1484 = vpop.f32.mrf.mxu0
  %v1485 = vadd.f32 %v1456, %v1484
  %v1486 = vpop.f32.mrf.mxu0
  %v1487 = vadd.f32 %v1458, %v1486
  %1488 = vmatmul.bf16.gmra.mxu0 %v524
  %v1489 = vpop.f32.mrf.mxu0
  %v1490 = vadd.f32 %v1461, %v1489
  %v1491 = vpop.f32.mrf.mxu0
  %v1492 = vadd.f32 %v1463, %v1491
  %1493 = vmatmul.bf16.gmra.mxu0 %v538
  %v1494 = vpop.f32.mrf.mxu0
  %v1495 = vadd.f32 %v1466, %v1494
  %v1496 = vpop.f32.mrf.mxu0
  %v1497 = vadd.f32 %v1468, %v1496
  %1498 = vmatmul.bf16.gmra.mxu0 %v552
  %v1499 = vpop.f32.mrf.mxu0
  %v1500 = vadd.f32 %v1471, %v1499
  %v1501 = vpop.f32.mrf.mxu0
  %v1502 = vadd.f32 %v1473, %v1501
  %1503 = vdwg.mxu0
  %1504 = vmatpush.bf16.msra.mxu0 %v1114
  %1505 = vmatpush.bf16.msra.mxu0 %v1113
  %1506 = vmatpush.bf16.msra.mxu0 %v1112
  %1507 = vmatpush.bf16.msra.mxu0 %v1111
  %1508 = vmatpush.bf16.msra.mxu0 %v1110
  %1509 = vmatpush.bf16.msra.mxu0 %v1109
  %1510 = vmatpush.bf16.msra.mxu0 %v1108
  %1511 = vmatpush.bf16.msra.mxu0 %v1107
  %1512 = vmatmul.bf16.gmra.mxu0 %v511
  %v1513 = vpop.f32.mrf.mxu0
  %v1514 = vadd.f32 %v1485, %v1513
  %v1515 = vpop.f32.mrf.mxu0
  %v1516 = vadd.f32 %v1487, %v1515
  %1517 = vmatmul.bf16.gmra.mxu0 %v525
  %v1518 = vpop.f32.mrf.mxu0
  %v1519 = vadd.f32 %v1490, %v1518
  %v1520 = vpop.f32.mrf.mxu0
  %v1521 = vadd.f32 %v1492, %v1520
  %1522 = vmatmul.bf16.gmra.mxu0 %v539
  %v1523 = vpop.f32.mrf.mxu0
  %v1524 = vadd.f32 %v1495, %v1523
  %v1525 = vpop.f32.mrf.mxu0
  %v1526 = vadd.f32 %v1497, %v1525
  %1527 = vmatmul.bf16.gmra.mxu0 %v553
  %v1528 = vpop.f32.mrf.mxu0
  %v1529 = vadd.f32 %v1500, %v1528
  %v1530 = vpop.f32.mrf.mxu0
  %v1531 = vadd.f32 %v1502, %v1530
  %1532 = vdwg.mxu0
  %1533 = vmatpush.bf16.msra.mxu0 %v1122
  %1534 = vmatpush.bf16.msra.mxu0 %v1121
  %1535 = vmatpush.bf16.msra.mxu0 %v1120
  %1536 = vmatpush.bf16.msra.mxu0 %v1119
  %1537 = vmatpush.bf16.msra.mxu0 %v1118
  %1538 = vmatpush.bf16.msra.mxu0 %v1117
  %1539 = vmatpush.bf16.msra.mxu0 %v1116
  %1540 = vmatpush.bf16.msra.mxu0 %v1115
  %1541 = vmatmul.bf16.gmra.mxu0 %v512
  %v1542 = vpop.f32.mrf.mxu0
  %v1543 = vadd.f32 %v1514, %v1542
  %v1544 = vpop.f32.mrf.mxu0
  %v1545 = vadd.f32 %v1516, %v1544
  %1546 = vmatmul.bf16.gmra.mxu0 %v526
  %v1547 = vpop.f32.mrf.mxu0
  %v1548 = vadd.f32 %v1519, %v1547
  %v1549 = vpop.f32.mrf.mxu0
  %v1550 = vadd.f32 %v1521, %v1549
  %1551 = vmatmul.bf16.gmra.mxu0 %v540
  %v1552 = vpop.f32.mrf.mxu0
  %v1553 = vadd.f32 %v1524, %v1552
  %v1554 = vpop.f32.mrf.mxu0
  %v1555 = vadd.f32 %v1526, %v1554
  %1556 = vmatmul.bf16.gmra.mxu0 %v554
  %v1557 = vpop.f32.mrf.mxu0
  %v1558 = vadd.f32 %v1529, %v1557
  %v1559 = vpop.f32.mrf.mxu0
  %v1560 = vadd.f32 %v1531, %v1559
  %1561 = vdwg.mxu0
  %1562 = vmatpush.bf16.msra.mxu0 %v1130
  %1563 = vmatpush.bf16.msra.mxu0 %v1129
  %1564 = vmatpush.bf16.msra.mxu0 %v1128
  %1565 = vmatpush.bf16.msra.mxu0 %v1127
  %1566 = vmatpush.bf16.msra.mxu0 %v1126
  %1567 = vmatpush.bf16.msra.mxu0 %v1125
  %1568 = vmatpush.bf16.msra.mxu0 %v1124
  %1569 = vmatpush.bf16.msra.mxu0 %v1123
  %1570 = vmatmul.bf16.gmra.mxu0 %v513
  %v1571 = vpop.f32.mrf.mxu0
  %v1572 = vadd.f32 %v1543, %v1571
  %v1573 = vpop.f32.mrf.mxu0
  %v1574 = vadd.f32 %v1545, %v1573
  %1575 = vmatmul.bf16.gmra.mxu0 %v527
  %v1576 = vpop.f32.mrf.mxu0
  %v1577 = vadd.f32 %v1548, %v1576
  %v1578 = vpop.f32.mrf.mxu0
  %v1579 = vadd.f32 %v1550, %v1578
  %1580 = vmatmul.bf16.gmra.mxu0 %v541
  %v1581 = vpop.f32.mrf.mxu0
  %v1582 = vadd.f32 %v1553, %v1581
  %v1583 = vpop.f32.mrf.mxu0
  %v1584 = vadd.f32 %v1555, %v1583
  %1585 = vmatmul.bf16.gmra.mxu0 %v555
  %v1586 = vpop.f32.mrf.mxu0
  %v1587 = vadd.f32 %v1558, %v1586
  %v1588 = vpop.f32.mrf.mxu0
  %v1589 = vadd.f32 %v1560, %v1588
  %1590 = vdwg.mxu0
  %1591 = vmatpush.bf16.msra.mxu0 %v1138
  %1592 = vmatpush.bf16.msra.mxu0 %v1137
  %1593 = vmatpush.bf16.msra.mxu0 %v1136
  %1594 = vmatpush.bf16.msra.mxu0 %v1135
  %1595 = vmatpush.bf16.msra.mxu0 %v1134
  %1596 = vmatpush.bf16.msra.mxu0 %v1133
  %1597 = vmatpush.bf16.msra.mxu0 %v1132
  %1598 = vmatpush.bf16.msra.mxu0 %v1131
  %1599 = vmatmul.bf16.gmra.mxu0 %v514
  %v1600 = vpop.f32.mrf.mxu0
  %v1601 = vadd.f32 %v1572, %v1600
  %v1602 = vpop.f32.mrf.mxu0
  %v1603 = vadd.f32 %v1574, %v1602
  %1604 = vmatmul.bf16.gmra.mxu0 %v528
  %v1605 = vpop.f32.mrf.mxu0
  %v1606 = vadd.f32 %v1577, %v1605
  %v1607 = vpop.f32.mrf.mxu0
  %v1608 = vadd.f32 %v1579, %v1607
  %1609 = vmatmul.bf16.gmra.mxu0 %v542
  %v1610 = vpop.f32.mrf.mxu0
  %v1611 = vadd.f32 %v1582, %v1610
  %v1612 = vpop.f32.mrf.mxu0
  %v1613 = vadd.f32 %v1584, %v1612
  %1614 = vmatmul.bf16.gmra.mxu0 %v556
  %v1615 = vpop.f32.mrf.mxu0
  %v1616 = vadd.f32 %v1587, %v1615
  %v1617 = vpop.f32.mrf.mxu0
  %v1618 = vadd.f32 %v1589, %v1617
  %1619 = vdwg.mxu0
  %1620 = vmatpush.bf16.msra.mxu0 %v1146
  %1621 = vmatpush.bf16.msra.mxu0 %v1145
  %1622 = vmatpush.bf16.msra.mxu0 %v1144
  %1623 = vmatpush.bf16.msra.mxu0 %v1143
  %1624 = vmatpush.bf16.msra.mxu0 %v1142
  %1625 = vmatpush.bf16.msra.mxu0 %v1141
  %1626 = vmatpush.bf16.msra.mxu0 %v1140
  %1627 = vmatpush.bf16.msra.mxu0 %v1139
  %1628 = vmatmul.bf16.gmra.mxu0 %v515
  %v1629 = vpop.f32.mrf.mxu0
  %v1630 = vadd.f32 %v1601, %v1629
  %v1631 = vpop.f32.mrf.mxu0
  %v1632 = vadd.f32 %v1603, %v1631
  %1633 = vmatmul.bf16.gmra.mxu0 %v529
  %v1634 = vpop.f32.mrf.mxu0
  %v1635 = vadd.f32 %v1606, %v1634
  %v1636 = vpop.f32.mrf.mxu0
  %v1637 = vadd.f32 %v1608, %v1636
  %1638 = vmatmul.bf16.gmra.mxu0 %v543
  %v1639 = vpop.f32.mrf.mxu0
  %v1640 = vadd.f32 %v1611, %v1639
  %v1641 = vpop.f32.mrf.mxu0
  %v1642 = vadd.f32 %v1613, %v1641
  %1643 = vmatmul.bf16.gmra.mxu0 %v557
  %v1644 = vpop.f32.mrf.mxu0
  %v1645 = vadd.f32 %v1616, %v1644
  %v1646 = vpop.f32.mrf.mxu0
  %v1647 = vadd.f32 %v1618, %v1646
  %1648 = vdwg.mxu0
  %1649 = vmatpush.bf16.msra.mxu0 0
  %1650 = vmatpush.bf16.msra.mxu0 0
  %1651 = vmatpush.bf16.msra.mxu0 0
  %1652 = vmatpush.bf16.msra.mxu0 0
  %1653 = vmatpush.bf16.msra.mxu0 %v1150
  %1654 = vmatpush.bf16.msra.mxu0 %v1149
  %1655 = vmatpush.bf16.msra.mxu0 %v1148
  %1656 = vmatpush.bf16.msra.mxu0 %v1147
  %1657 = vmatmul.bf16.gmra.mxu0 %v1261
  %v1658 = vpop.f32.mrf.mxu0
  %v1659 = vadd.f32 %v1630, %v1658
  %v1660 = vpop.f32.mrf.mxu0
  %v1661 = vadd.f32 %v1632, %v1660
  %1662 = vmatmul.bf16.gmra.mxu0 %v1264
  %v1663 = vpop.f32.mrf.mxu0
  %v1664 = vadd.f32 %v1635, %v1663
  %v1665 = vpop.f32.mrf.mxu0
  %v1666 = vadd.f32 %v1637, %v1665
  %1667 = vmatmul.bf16.gmra.mxu0 %v1267
  %v1668 = vpop.f32.mrf.mxu0
  %v1669 = vadd.f32 %v1640, %v1668
  %v1670 = vpop.f32.mrf.mxu0
  %v1671 = vadd.f32 %v1642, %v1670
  %1672 = vmatmul.bf16.gmra.mxu0 %v1270
  %v1673 = vpop.f32.mrf.mxu0
  %v1674 = vadd.f32 %v1645, %v1673
  %v1675 = vpop.f32.mrf.mxu0
  %v1676 = vadd.f32 %v1647, %v1675
  %1677 = vdwg.mxu0
  %v1678 = vmax.f32 %v1659, 0.0
  %v1679 = vmax.f32 %v1661, 0.0
  %v1680 = vmax.f32 %v1664, 0.0
  %v1681 = vmax.f32 %v1666, 0.0
  %v1682 = vmax.f32 %v1669, 0.0
  %v1683 = vmax.f32 %v1671, 0.0
  %v1684 = vmax.f32 %v1674, 0.0
  %v1685 = vmax.f32 %v1676, 0.0
  %v1686 = vpack.c.bf16 %v1678, %v1678
  %v1687 = vpack.c.bf16 %v1679, %v1679
  %v1688 = vpack.c.bf16 %v1680, %v1680
  %v1689 = vpack.c.bf16 %v1681, %v1681
  %v1690 = vpack.c.bf16 %v1682, %v1682
  %v1691 = vpack.c.bf16 %v1683, %v1683
  %v1692 = vpack.c.bf16 %v1684, %v1684
  %v1693 = vpack.c.bf16 %v1685, %v1685
  %1694 = vst [vmem:[%s3] sm:$0xf] %v1686
  %1695 = vst [vmem:[%s3 + $0x4] sm:$0xf] %v1687
  %1696 = vst [vmem:[%s3 + $0x8] sm:$0xf] %v1688
  %1697 = vst [vmem:[%s3 + $0xc] sm:$0xf] %v1689
  %1698 = vst [vmem:[%s3 + $0x10] sm:$0xf] %v1690
  %1699 = vst [vmem:[%s3 + $0x14] sm:$0xf] %v1691
  %1700 = vst [vmem:[%s3 + $0x18] sm:$0xf] %v1692
  %1701 = vst [vmem:[%s3 + $0x1c] sm:$0xf] %v1693
  // Predicated region
  $region14: #{reg2d_forward.26} parent=0 // pred_check
    _
  $region15: #{reg2d_forward.26} parent=0 // pred_check_branch
    %1703 = sbr.rel (0) target = $region17
  $region16: #{reg2d_forward.26} parent=0 // pred_region
    _
  $region17: #{reg2d_forward.26} parent=0 // pred_fallthru
    _
  // Predicated region
  $region18: #{reg2d_forward.26} parent=0 // pred_check
    _
  $region19: #{reg2d_forward.26} parent=0 // pred_check_branch
    %1705 = sbr.rel (0) target = $region21
  $region20: #{reg2d_forward.26} parent=0 // pred_region
    _
  $region21: #{reg2d_forward.26} parent=0 // pred_fallthru
    _

// kernel: reg2d_forward.28
$region0: #{reg2d_forward.28}
  #allocation0 [shape = 'u32[]', space=smem, size = 0x4, offset = 0x4, fixed_abs, tag = 'smem constant byte address 0x4 - core index']
  #allocation1 [shape = 'u32[72,128]{1,0:T(1,128)}', space=vmem, size = 0x9000, scoped, tag = 'internal scratch']
  %s0 = inlined_call_operand.vmem [shape: bf16[32,128], index: 0, kind: input, shape index: {}]
  %s1 = inlined_call_operand.vmem [shape: bf16[128,128], index: 1, kind: input, shape index: {}]
  %s2 = inlined_call_operand.vmem [shape: f32[32,1], index: 2, kind: input, shape index: {}]
  %s3 = inlined_call_operand.vmem [shape: bf16[32,128], index: 3, kind: input, shape index: {}]
  %s4 = inlined_call_operand.vmem [shape: bf16[32,128], index: 4, kind: output, shape index: {}]
  %s5 = sld [smem:[#allocation0]]
  $region26: #{reg2d_forward.28} parent=0
    _
  %s7 = ssub.s32 1, %s5
  %s8 = scalar_select 0, %s7, %s5
  // Predicated region
  $region2: #{reg2d_forward.28} parent=0 // pred_check
    _
  $region3: #{reg2d_forward.28} parent=0 // pred_check_branch
    %10 = sbr.rel (0) target = $region5
  $region4: #{reg2d_forward.28} parent=0 // pred_region
    _
  $region5: #{reg2d_forward.28} parent=0 // pred_fallthru
    _
  // Predicated region
  $region6: #{reg2d_forward.28} parent=0 // pred_check
    _
  $region7: #{reg2d_forward.28} parent=0 // pred_check_branch
    %12 = sbr.rel (0) target = $region9
  $region8: #{reg2d_forward.28} parent=0 // pred_region
    _
  $region9: #{reg2d_forward.28} parent=0 // pred_fallthru
    _
  // Predicated region
  $region10: #{reg2d_forward.28} parent=0 // pred_check
    _
  $region11: #{reg2d_forward.28} parent=0 // pred_check_branch
    %14 = sbr.rel (0) target = $region13
  $region12: #{reg2d_forward.28} parent=0 // pred_region
    _
  $region13: #{reg2d_forward.28} parent=0 // pred_fallthru
    _
  // Predicated region
  $region14: #{reg2d_forward.28} parent=0 // pred_check
    _
  $region15: #{reg2d_forward.28} parent=0 // pred_check_branch
    %16 = sbr.rel (0) target = $region17
  $region16: #{reg2d_forward.28} parent=0 // pred_region
    _
  $region17: #{reg2d_forward.28} parent=0 // pred_fallthru
    _
  %v17 = vld [vmem:[%s0] sm:$0xf]
  %v18 = vld [vmem:[%s0 + $0x4] sm:$0xf]
  %v19 = vld [vmem:[%s0 + $0x8] sm:$0xf]
  %v20 = vld [vmem:[%s0 + $0xc] sm:$0xf]
  %v21 = vld [vmem:[%s1] sm:$0xf]
  %v22 = vld [vmem:[%s1 + $0x4] sm:$0xf]
  %v23 = vld [vmem:[%s1 + $0x8] sm:$0xf]
  %v24 = vld [vmem:[%s1 + $0xc] sm:$0xf]
  %v25 = vld [vmem:[%s1 + $0x10] sm:$0xf]
  %v26 = vld [vmem:[%s1 + $0x14] sm:$0xf]
  %v27 = vld [vmem:[%s1 + $0x18] sm:$0xf]
  %v28 = vld [vmem:[%s1 + $0x1c] sm:$0xf]
  %v29 = vld [vmem:[%s1 + $0x20] sm:$0xf]
  %v30 = vld [vmem:[%s1 + $0x24] sm:$0xf]
  %v31 = vld [vmem:[%s1 + $0x28] sm:$0xf]
  %v32 = vld [vmem:[%s1 + $0x2c] sm:$0xf]
  %v33 = vld [vmem:[%s1 + $0x30] sm:$0xf]
  %v34 = vld [vmem:[%s1 + $0x34] sm:$0xf]
  %v35 = vld [vmem:[%s1 + $0x38] sm:$0xf]
  %v36 = vld [vmem:[%s1 + $0x3c] sm:$0xf]
  %v37 = vld [vmem:[%s2] sm:$0xff]
  %v38 = vld [vmem:[%s2 + $0x8] sm:$0xff]
  %v39 = vld [vmem:[%s2 + $0x10] sm:$0xff]
  %v40 = vld [vmem:[%s2 + $0x18] sm:$0xff]
  %42 = vset.pattern.permute.xlu0 0
  %43 = vperm.xlu0 %42, %v37
  %v44 = vpop.permute.xlu0 %43
  %47 = vset.pattern.permute.xlu0 0
  %48 = vperm.xlu0 %47, %v38
  %v49 = vpop.permute.xlu0 %48
  %52 = vset.pattern.permute.xlu0 0
  %53 = vperm.xlu0 %52, %v39
  %v54 = vpop.permute.xlu0 %53
  %57 = vset.pattern.permute.xlu0 0
  %58 = vperm.xlu0 %57, %v40
  %v59 = vpop.permute.xlu0 %58
  %v65 = vunpack.c.l.b16 %v17
  %v66 = vunpack.c.l.b16 %v18
  %v67 = vunpack.c.l.b16 %v19
  %v68 = vunpack.c.l.b16 %v20
  %v69 = vpack.c.b16 %v66, %v65
  %v70 = vpack.c.b16 %v68, %v67
  %v89 = vunpack.c.l.b16 %v21
  %v90 = vunpack.c.l.b16 %v22
  %v91 = vunpack.c.l.b16 %v23
  %v92 = vunpack.c.l.b16 %v24
  %v93 = vunpack.c.l.b16 %v25
  %v94 = vunpack.c.l.b16 %v26
  %v95 = vunpack.c.l.b16 %v27
  %v96 = vunpack.c.l.b16 %v28
  %v97 = vunpack.c.l.b16 %v29
  %v98 = vunpack.c.l.b16 %v30
  %v99 = vunpack.c.l.b16 %v31
  %v100 = vunpack.c.l.b16 %v32
  %v101 = vunpack.c.l.b16 %v33
  %v102 = vunpack.c.l.b16 %v34
  %v103 = vunpack.c.l.b16 %v35
  %v104 = vunpack.c.l.b16 %v36
  %v105 = vpack.c.b16 %v90, %v89
  %v106 = vpack.c.b16 %v92, %v91
  %v107 = vpack.c.b16 %v94, %v93
  %v108 = vpack.c.b16 %v96, %v95
  %v109 = vpack.c.b16 %v98, %v97
  %v110 = vpack.c.b16 %v100, %v99
  %v111 = vpack.c.b16 %v102, %v101
  %v112 = vpack.c.b16 %v104, %v103
  %121 = vmatpush.bf16.msra.mxu0 %v112
  %122 = vmatpush.bf16.msra.mxu0 %v111
  %123 = vmatpush.bf16.msra.mxu0 %v110
  %124 = vmatpush.bf16.msra.mxu0 %v109
  %125 = vmatpush.bf16.msra.mxu0 %v108
  %126 = vmatpush.bf16.msra.mxu0 %v107
  %127 = vmatpush.bf16.msra.mxu0 %v106
  %128 = vmatpush.bf16.msra.mxu0 %v105
  %129 = vmatmul.bf16.gmra.mxu0 %v69
  %v130 = vpop.f32.mrf.mxu0
  %v131 = vadd.f32 %v44, %v130
  %v132 = vpop.f32.mrf.mxu0
  %v133 = vadd.f32 %v49, %v132
  %134 = vmatmul.bf16.gmra.mxu0 %v70
  %v135 = vpop.f32.mrf.mxu0
  %v136 = vadd.f32 %v54, %v135
  %v137 = vpop.f32.mrf.mxu0
  %v138 = vadd.f32 %v59, %v137
  %139 = vdwg.mxu0
  %v140 = vmax.f32 %v131, 0.0
  %v141 = vmax.f32 %v133, 0.0
  %v142 = vmax.f32 %v136, 0.0
  %v143 = vmax.f32 %v138, 0.0
  %v144 = vld [vmem:[%s3] sm:$0xf]
  %v145 = vld [vmem:[%s3 + $0x4] sm:$0xf]
  %v146 = vld [vmem:[%s3 + $0x8] sm:$0xf]
  %v147 = vld [vmem:[%s3 + $0xc] sm:$0xf]
  %v148 = vunpack.c.l.bf16 %v144
  %v149 = vunpack.c.l.bf16 %v145
  %v150 = vunpack.c.l.bf16 %v146
  %v151 = vunpack.c.l.bf16 %v147
  %v152 = vadd.f32 %v140, %v148
  %v153 = vadd.f32 %v141, %v149
  %v154 = vadd.f32 %v142, %v150
  %v155 = vadd.f32 %v143, %v151
  %v156 = vpack.c.bf16 %v152, %v152
  %v157 = vpack.c.bf16 %v153, %v153
  %v158 = vpack.c.bf16 %v154, %v154
  %v159 = vpack.c.bf16 %v155, %v155
  %160 = vst [vmem:[%s4] sm:$0xf] %v156
  %161 = vst [vmem:[%s4 + $0x4] sm:$0xf] %v157
  %162 = vst [vmem:[%s4 + $0x8] sm:$0xf] %v158
  %163 = vst [vmem:[%s4 + $0xc] sm:$0xf] %v159
  // Predicated region
  $region18: #{reg2d_forward.28} parent=0 // pred_check
    _
  $region19: #{reg2d_forward.28} parent=0 // pred_check_branch
    %165 = sbr.rel (0) target = $region21
  $region20: #{reg2d_forward.28} parent=0 // pred_region
    _
  $region21: #{reg2d_forward.28} parent=0 // pred_fallthru
    _
  // Predicated region
  $region22: #{reg2d_forward.28} parent=0 // pred_check
    _
  $region23: #{reg2d_forward.28} parent=0 // pred_check_branch
    %167 = sbr.rel (0) target = $region25
  $region24: #{reg2d_forward.28} parent=0 // pred_region
    _
  $region25: #{reg2d_forward.28} parent=0 // pred_fallthru
    _

// kernel: reg2d_forward.30
$region0: #{reg2d_forward.30}
  #allocation0 [shape = 'u32[]', space=smem, size = 0x4, offset = 0x4, fixed_abs, tag = 'smem constant byte address 0x4 - core index']
  #allocation1 [shape = 'u32[72,128]{1,0:T(1,128)}', space=vmem, size = 0x9000, scoped, tag = 'internal scratch']
  %s0 = inlined_call_operand.vmem [shape: bf16[32,256], index: 0, kind: input, shape index: {}]
  %s1 = inlined_call_operand.vmem [shape: bf16[256,128], index: 1, kind: input, shape index: {}]
  %s2 = inlined_call_operand.vmem [shape: f32[32,1], index: 2, kind: input, shape index: {}]
  %s3 = inlined_call_operand.vmem [shape: bf16[32,128], index: 3, kind: input, shape index: {}]
  %s4 = inlined_call_operand.vmem [shape: bf16[32,128], index: 4, kind: output, shape index: {}]
  %s5 = sld [smem:[#allocation0]]
  $region26: #{reg2d_forward.30} parent=0
    _
  %s7 = ssub.s32 1, %s5
  %s8 = scalar_select 0, %s7, %s5
  // Predicated region
  $region2: #{reg2d_forward.30} parent=0 // pred_check
    _
  $region3: #{reg2d_forward.30} parent=0 // pred_check_branch
    %10 = sbr.rel (0) target = $region5
  $region4: #{reg2d_forward.30} parent=0 // pred_region
    _
  $region5: #{reg2d_forward.30} parent=0 // pred_fallthru
    _
  // Predicated region
  $region6: #{reg2d_forward.30} parent=0 // pred_check
    _
  $region7: #{reg2d_forward.30} parent=0 // pred_check_branch
    %12 = sbr.rel (0) target = $region9
  $region8: #{reg2d_forward.30} parent=0 // pred_region
    _
  $region9: #{reg2d_forward.30} parent=0 // pred_fallthru
    _
  // Predicated region
  $region10: #{reg2d_forward.30} parent=0 // pred_check
    _
  $region11: #{reg2d_forward.30} parent=0 // pred_check_branch
    %14 = sbr.rel (0) target = $region13
  $region12: #{reg2d_forward.30} parent=0 // pred_region
    _
  $region13: #{reg2d_forward.30} parent=0 // pred_fallthru
    _
  // Predicated region
  $region14: #{reg2d_forward.30} parent=0 // pred_check
    _
  $region15: #{reg2d_forward.30} parent=0 // pred_check_branch
    %16 = sbr.rel (0) target = $region17
  $region16: #{reg2d_forward.30} parent=0 // pred_region
    _
  $region17: #{reg2d_forward.30} parent=0 // pred_fallthru
    _
  %v17 = vld [vmem:[%s0] sm:$0xff]
  %v18 = vld [vmem:[%s0 + $0x8] sm:$0xff]
  %v19 = vld [vmem:[%s0 + $0x10] sm:$0xff]
  %v20 = vld [vmem:[%s0 + $0x18] sm:$0xff]
  %v21 = vld [vmem:[%s1] sm:$0xf]
  %v22 = vld [vmem:[%s1 + $0x4] sm:$0xf]
  %v23 = vld [vmem:[%s1 + $0x8] sm:$0xf]
  %v24 = vld [vmem:[%s1 + $0xc] sm:$0xf]
  %v25 = vld [vmem:[%s1 + $0x10] sm:$0xf]
  %v26 = vld [vmem:[%s1 + $0x14] sm:$0xf]
  %v27 = vld [vmem:[%s1 + $0x18] sm:$0xf]
  %v28 = vld [vmem:[%s1 + $0x1c] sm:$0xf]
  %v29 = vld [vmem:[%s1 + $0x20] sm:$0xf]
  %v30 = vld [vmem:[%s1 + $0x24] sm:$0xf]
  %v31 = vld [vmem:[%s1 + $0x28] sm:$0xf]
  %v32 = vld [vmem:[%s1 + $0x2c] sm:$0xf]
  %v33 = vld [vmem:[%s1 + $0x30] sm:$0xf]
  %v34 = vld [vmem:[%s1 + $0x34] sm:$0xf]
  %v35 = vld [vmem:[%s1 + $0x38] sm:$0xf]
  %v36 = vld [vmem:[%s1 + $0x3c] sm:$0xf]
  %v37 = vld [vmem:[%s1 + $0x40] sm:$0xf]
  %v38 = vld [vmem:[%s1 + $0x44] sm:$0xf]
  %v39 = vld [vmem:[%s1 + $0x48] sm:$0xf]
  %v40 = vld [vmem:[%s1 + $0x4c] sm:$0xf]
  %v41 = vld [vmem:[%s1 + $0x50] sm:$0xf]
  %v42 = vld [vmem:[%s1 + $0x54] sm:$0xf]
  %v43 = vld [vmem:[%s1 + $0x58] sm:$0xf]
  %v44 = vld [vmem:[%s1 + $0x5c] sm:$0xf]
  %v45 = vld [vmem:[%s1 + $0x60] sm:$0xf]
  %v46 = vld [vmem:[%s1 + $0x64] sm:$0xf]
  %v47 = vld [vmem:[%s1 + $0x68] sm:$0xf]
  %v48 = vld [vmem:[%s1 + $0x6c] sm:$0xf]
  %v49 = vld [vmem:[%s1 + $0x70] sm:$0xf]
  %v50 = vld [vmem:[%s1 + $0x74] sm:$0xf]
  %v51 = vld [vmem:[%s1 + $0x78] sm:$0xf]
  %v52 = vld [vmem:[%s1 + $0x7c] sm:$0xf]
  %v53 = vld [vmem:[%s2] sm:$0xff]
  %v54 = vld [vmem:[%s2 + $0x8] sm:$0xff]
  %v55 = vld [vmem:[%s2 + $0x10] sm:$0xff]
  %v56 = vld [vmem:[%s2 + $0x18] sm:$0xff]
  %58 = vset.pattern.permute.xlu0 0
  %59 = vperm.xlu0 %58, %v53
  %v60 = vpop.permute.xlu0 %59
  %63 = vset.pattern.permute.xlu0 0
  %64 = vperm.xlu0 %63, %v54
  %v65 = vpop.permute.xlu0 %64
  %68 = vset.pattern.permute.xlu0 0
  %69 = vperm.xlu0 %68, %v55
  %v70 = vpop.permute.xlu0 %69
  %73 = vset.pattern.permute.xlu0 0
  %74 = vperm.xlu0 %73, %v56
  %v75 = vpop.permute.xlu0 %74
  %v81 = vunpack.c.l.b16 %v17
  %v82 = vunpack.c.h.b16 %v17
  %v83 = vunpack.c.l.b16 %v18
  %v84 = vunpack.c.h.b16 %v18
  %v85 = vunpack.c.l.b16 %v19
  %v86 = vunpack.c.h.b16 %v19
  %v87 = vunpack.c.l.b16 %v20
  %v88 = vunpack.c.h.b16 %v20
  %v89 = vpack.c.b16 %v83, %v81
  %v90 = vpack.c.b16 %v84, %v82
  %v91 = vpack.c.b16 %v87, %v85
  %v92 = vpack.c.b16 %v88, %v86
  %v129 = vunpack.c.l.b16 %v21
  %v130 = vunpack.c.l.b16 %v22
  %v131 = vunpack.c.l.b16 %v23
  %v132 = vunpack.c.l.b16 %v24
  %v133 = vunpack.c.l.b16 %v25
  %v134 = vunpack.c.l.b16 %v26
  %v135 = vunpack.c.l.b16 %v27
  %v136 = vunpack.c.l.b16 %v28
  %v137 = vunpack.c.l.b16 %v29
  %v138 = vunpack.c.l.b16 %v30
  %v139 = vunpack.c.l.b16 %v31
  %v140 = vunpack.c.l.b16 %v32
  %v141 = vunpack.c.l.b16 %v33
  %v142 = vunpack.c.l.b16 %v34
  %v143 = vunpack.c.l.b16 %v35
  %v144 = vunpack.c.l.b16 %v36
  %v145 = vunpack.c.l.b16 %v37
  %v146 = vunpack.c.l.b16 %v38
  %v147 = vunpack.c.l.b16 %v39
  %v148 = vunpack.c.l.b16 %v40
  %v149 = vunpack.c.l.b16 %v41
  %v150 = vunpack.c.l.b16 %v42
  %v151 = vunpack.c.l.b16 %v43
  %v152 = vunpack.c.l.b16 %v44
  %v153 = vunpack.c.l.b16 %v45
  %v154 = vunpack.c.l.b16 %v46
  %v155 = vunpack.c.l.b16 %v47
  %v156 = vunpack.c.l.b16 %v48
  %v157 = vunpack.c.l.b16 %v49
  %v158 = vunpack.c.l.b16 %v50
  %v159 = vunpack.c.l.b16 %v51
  %v160 = vunpack.c.l.b16 %v52
  %v161 = vpack.c.b16 %v130, %v129
  %v162 = vpack.c.b16 %v132, %v131
  %v163 = vpack.c.b16 %v134, %v133
  %v164 = vpack.c.b16 %v136, %v135
  %v165 = vpack.c.b16 %v138, %v137
  %v166 = vpack.c.b16 %v140, %v139
  %v167 = vpack.c.b16 %v142, %v141
  %v168 = vpack.c.b16 %v144, %v143
  %v169 = vpack.c.b16 %v146, %v145
  %v170 = vpack.c.b16 %v148, %v147
  %v171 = vpack.c.b16 %v150, %v149
  %v172 = vpack.c.b16 %v152, %v151
  %v173 = vpack.c.b16 %v154, %v153
  %v174 = vpack.c.b16 %v156, %v155
  %v175 = vpack.c.b16 %v158, %v157
  %v176 = vpack.c.b16 %v160, %v159
  %193 = vmatpush.bf16.msra.mxu0 %v168
  %194 = vmatpush.bf16.msra.mxu0 %v167
  %195 = vmatpush.bf16.msra.mxu0 %v166
  %196 = vmatpush.bf16.msra.mxu0 %v165
  %197 = vmatpush.bf16.msra.mxu0 %v164
  %198 = vmatpush.bf16.msra.mxu0 %v163
  %199 = vmatpush.bf16.msra.mxu0 %v162
  %200 = vmatpush.bf16.msra.mxu0 %v161
  %201 = vmatmul.bf16.gmra.mxu0 %v89
  %v202 = vpop.f32.mrf.mxu0
  %v203 = vadd.f32 %v60, %v202
  %v204 = vpop.f32.mrf.mxu0
  %v205 = vadd.f32 %v65, %v204
  %206 = vmatmul.bf16.gmra.mxu0 %v91
  %v207 = vpop.f32.mrf.mxu0
  %v208 = vadd.f32 %v70, %v207
  %v209 = vpop.f32.mrf.mxu0
  %v210 = vadd.f32 %v75, %v209
  %211 = vdwg.mxu0
  %212 = vmatpush.bf16.msra.mxu0 %v176
  %213 = vmatpush.bf16.msra.mxu0 %v175
  %214 = vmatpush.bf16.msra.mxu0 %v174
  %215 = vmatpush.bf16.msra.mxu0 %v173
  %216 = vmatpush.bf16.msra.mxu0 %v172
  %217 = vmatpush.bf16.msra.mxu0 %v171
  %218 = vmatpush.bf16.msra.mxu0 %v170
  %219 = vmatpush.bf16.msra.mxu0 %v169
  %220 = vmatmul.bf16.gmra.mxu0 %v90
  %v221 = vpop.f32.mrf.mxu0
  %v222 = vadd.f32 %v203, %v221
  %v223 = vpop.f32.mrf.mxu0
  %v224 = vadd.f32 %v205, %v223
  %225 = vmatmul.bf16.gmra.mxu0 %v92
  %v226 = vpop.f32.mrf.mxu0
  %v227 = vadd.f32 %v208, %v226
  %v228 = vpop.f32.mrf.mxu0
  %v229 = vadd.f32 %v210, %v228
  %230 = vdwg.mxu0
  %v231 = vmax.f32 %v222, 0.0
  %v232 = vmax.f32 %v224, 0.0
  %v233 = vmax.f32 %v227, 0.0
  %v234 = vmax.f32 %v229, 0.0
  %v235 = vld [vmem:[%s3] sm:$0xf]
  %v236 = vld [vmem:[%s3 + $0x4] sm:$0xf]
  %v237 = vld [vmem:[%s3 + $0x8] sm:$0xf]
  %v238 = vld [vmem:[%s3 + $0xc] sm:$0xf]
  %v239 = vunpack.c.l.bf16 %v235
  %v240 = vunpack.c.l.bf16 %v236
  %v241 = vunpack.c.l.bf16 %v237
  %v242 = vunpack.c.l.bf16 %v238
  %v243 = vadd.f32 %v231, %v239
  %v244 = vadd.f32 %v232, %v240
  %v245 = vadd.f32 %v233, %v241
  %v246 = vadd.f32 %v234, %v242
  %v247 = vpack.c.bf16 %v243, %v243
  %v248 = vpack.c.bf16 %v244, %v244
  %v249 = vpack.c.bf16 %v245, %v245
  %v250 = vpack.c.bf16 %v246, %v246
  %251 = vst [vmem:[%s4] sm:$0xf] %v247
  %252 = vst [vmem:[%s4 + $0x4] sm:$0xf] %v248
  %253 = vst [vmem:[%s4 + $0x8] sm:$0xf] %v249
  %254 = vst [vmem:[%s4 + $0xc] sm:$0xf] %v250
  // Predicated region
  $region18: #{reg2d_forward.30} parent=0 // pred_check
    _
  $region19: #{reg2d_forward.30} parent=0 // pred_check_branch
    %256 = sbr.rel (0) target = $region21
  $region20: #{reg2d_forward.30} parent=0 // pred_region
    _
  $region21: #{reg2d_forward.30} parent=0 // pred_fallthru
    _
  // Predicated region
  $region22: #{reg2d_forward.30} parent=0 // pred_check
    _
  $region23: #{reg2d_forward.30} parent=0 // pred_check_branch
    %258 = sbr.rel (0) target = $region25
  $region24: #{reg2d_forward.30} parent=0 // pred_region
    _
  $region25: #{reg2d_forward.30} parent=0 // pred_fallthru
    _

// kernel: reg2d_forward.31
$region0: #{reg2d_forward.31}
  #allocation0 [shape = 'u32[]', space=smem, size = 0x4, offset = 0x4, fixed_abs, tag = 'smem constant byte address 0x4 - core index']
  #allocation1 [shape = 'u32[72,128]{1,0:T(1,128)}', space=vmem, size = 0x9000, scoped, tag = 'internal scratch']
  %s0 = inlined_call_operand.vmem [shape: bf16[16,32], index: 0, kind: input, shape index: {}]
  %s1 = inlined_call_operand.vmem [shape: bf16[32,128], index: 1, kind: input, shape index: {}]
  %s2 = inlined_call_operand.vmem [shape: f32[16,1], index: 2, kind: input, shape index: {}]
  %s3 = inlined_call_operand.vmem [shape: bf16[16,128], index: 3, kind: input, shape index: {}]
  %s4 = inlined_call_operand.vmem [shape: bf16[16,128], index: 4, kind: output, shape index: {}]
  %s5 = sld [smem:[#allocation0]]
  $region26: #{reg2d_forward.31} parent=0
    _
  %s7 = ssub.s32 1, %s5
  %s8 = scalar_select 0, %s7, %s5
  // Predicated region
  $region2: #{reg2d_forward.31} parent=0 // pred_check
    _
  $region3: #{reg2d_forward.31} parent=0 // pred_check_branch
    %10 = sbr.rel (0) target = $region5
  $region4: #{reg2d_forward.31} parent=0 // pred_region
    _
  $region5: #{reg2d_forward.31} parent=0 // pred_fallthru
    _
  // Predicated region
  $region6: #{reg2d_forward.31} parent=0 // pred_check
    _
  $region7: #{reg2d_forward.31} parent=0 // pred_check_branch
    %12 = sbr.rel (0) target = $region9
  $region8: #{reg2d_forward.31} parent=0 // pred_region
    _
  $region9: #{reg2d_forward.31} parent=0 // pred_fallthru
    _
  // Predicated region
  $region10: #{reg2d_forward.31} parent=0 // pred_check
    _
  $region11: #{reg2d_forward.31} parent=0 // pred_check_branch
    %14 = sbr.rel (0) target = $region13
  $region12: #{reg2d_forward.31} parent=0 // pred_region
    _
  $region13: #{reg2d_forward.31} parent=0 // pred_fallthru
    _
  // Predicated region
  $region14: #{reg2d_forward.31} parent=0 // pred_check
    _
  $region15: #{reg2d_forward.31} parent=0 // pred_check_branch
    %16 = sbr.rel (0) target = $region17
  $region16: #{reg2d_forward.31} parent=0 // pred_region
    _
  $region17: #{reg2d_forward.31} parent=0 // pred_fallthru
    _
  %v18 = vld [vmem:[%s0] sm:$0xf]
  %v19 = vld [vmem:[%s0 + $0x4] sm:$0xf]
  %v20 = vld [vmem:[%s1] sm:$0xf]
  %v21 = vld [vmem:[%s1 + $0x4] sm:$0xf]
  %v22 = vld [vmem:[%s1 + $0x8] sm:$0xf]
  %v23 = vld [vmem:[%s1 + $0xc] sm:$0xf]
  %v24 = vld [vmem:[%s2] sm:$0xff]
  %v25 = vld [vmem:[%s2 + $0x8] sm:$0xff]
  %27 = vset.pattern.permute.xlu0 0
  %28 = vperm.xlu0 %27, %v24
  %v29 = vpop.permute.xlu0 %28
  %32 = vset.pattern.permute.xlu0 0
  %33 = vperm.xlu0 %32, %v25
  %v34 = vpop.permute.xlu0 %33
  %v38 = vunpack.c.l.b16 %v18
  %v39 = vunpack.c.l.b16 %v19
  %v40 = vpack.c.b16 %v39, %v38
  %v45 = vunpack.c.l.b16 %v20
  %v46 = vunpack.c.l.b16 %v21
  %v47 = vunpack.c.l.b16 %v22
  %v48 = vunpack.c.l.b16 %v23
  %v49 = vpack.c.b16 %v46, %v45
  %v50 = vpack.c.b16 %v48, %v47
  %vm53 = vcmask 261120
  %v55 = vsel %vm53, %v40, 0
  %57 = vmatpush.bf16.msra.mxu0 0
  %58 = vmatpush.bf16.msra.mxu0 0
  %59 = vmatpush.bf16.msra.mxu0 0
  %60 = vmatpush.bf16.msra.mxu0 0
  %61 = vmatpush.bf16.msra.mxu0 0
  %62 = vmatpush.bf16.msra.mxu0 0
  %63 = vmatpush.bf16.msra.mxu0 %v50
  %64 = vmatpush.bf16.msra.mxu0 %v49
  %65 = vmatmul.bf16.gmra.mxu0 %v55
  %v66 = vpop.f32.mrf.mxu0
  %v67 = vadd.f32 %v29, %v66
  %v68 = vpop.f32.mrf.mxu0
  %v69 = vadd.f32 %v34, %v68
  %70 = vdwg.mxu0
  %v71 = vmax.f32 %v67, 0.0
  %v72 = vmax.f32 %v69, 0.0
  %v73 = vld [vmem:[%s3] sm:$0xf]
  %v74 = vld [vmem:[%s3 + $0x4] sm:$0xf]
  %v75 = vunpack.c.l.bf16 %v73
  %v76 = vunpack.c.l.bf16 %v74
  %v77 = vadd.f32 %v71, %v75
  %v78 = vadd.f32 %v72, %v76
  %v79 = vpack.c.bf16 %v77, %v77
  %v80 = vpack.c.bf16 %v78, %v78
  %81 = vst [vmem:[%s4] sm:$0xf] %v79
  %82 = vst [vmem:[%s4 + $0x4] sm:$0xf] %v80
  // Predicated region
  $region18: #{reg2d_forward.31} parent=0 // pred_check
    _
  $region19: #{reg2d_forward.31} parent=0 // pred_check_branch
    %84 = sbr.rel (0) target = $region21
  $region20: #{reg2d_forward.31} parent=0 // pred_region
    _
  $region21: #{reg2d_forward.31} parent=0 // pred_fallthru
    _
  // Predicated region
  $region22: #{reg2d_forward.31} parent=0 // pred_check
    _
  $region23: #{reg2d_forward.31} parent=0 // pred_check_branch
    %86 = sbr.rel (0) target = $region25
  $region24: #{reg2d_forward.31} parent=0 // pred_region
    _
  $region25: #{reg2d_forward.31} parent=0 // pred_fallthru
    _

// kernel: reg2d_forward.32
$region0: #{reg2d_forward.32}
  #allocation0 [shape = 'u32[]', space=smem, size = 0x4, offset = 0x4, fixed_abs, tag = 'smem constant byte address 0x4 - core index']
  #allocation1 [shape = 'u32[72,128]{1,0:T(1,128)}', space=vmem, size = 0x9000, scoped, tag = 'internal scratch']
  %s0 = inlined_call_operand.vmem [shape: bf16[16,64], index: 0, kind: input, shape index: {}]
  %s1 = inlined_call_operand.vmem [shape: bf16[64,128], index: 1, kind: input, shape index: {}]
  %s2 = inlined_call_operand.vmem [shape: f32[16,1], index: 2, kind: input, shape index: {}]
  %s3 = inlined_call_operand.vmem [shape: bf16[16,128], index: 3, kind: input, shape index: {}]
  %s4 = inlined_call_operand.vmem [shape: bf16[16,128], index: 4, kind: output, shape index: {}]
  %s5 = sld [smem:[#allocation0]]
  $region26: #{reg2d_forward.32} parent=0
    _
  %s7 = ssub.s32 1, %s5
  %s8 = scalar_select 0, %s7, %s5
  // Predicated region
  $region2: #{reg2d_forward.32} parent=0 // pred_check
    _
  $region3: #{reg2d_forward.32} parent=0 // pred_check_branch
    %10 = sbr.rel (0) target = $region5
  $region4: #{reg2d_forward.32} parent=0 // pred_region
    _
  $region5: #{reg2d_forward.32} parent=0 // pred_fallthru
    _
  // Predicated region
  $region6: #{reg2d_forward.32} parent=0 // pred_check
    _
  $region7: #{reg2d_forward.32} parent=0 // pred_check_branch
    %12 = sbr.rel (0) target = $region9
  $region8: #{reg2d_forward.32} parent=0 // pred_region
    _
  $region9: #{reg2d_forward.32} parent=0 // pred_fallthru
    _
  // Predicated region
  $region10: #{reg2d_forward.32} parent=0 // pred_check
    _
  $region11: #{reg2d_forward.32} parent=0 // pred_check_branch
    %14 = sbr.rel (0) target = $region13
  $region12: #{reg2d_forward.32} parent=0 // pred_region
    _
  $region13: #{reg2d_forward.32} parent=0 // pred_fallthru
    _
  // Predicated region
  $region14: #{reg2d_forward.32} parent=0 // pred_check
    _
  $region15: #{reg2d_forward.32} parent=0 // pred_check_branch
    %16 = sbr.rel (0) target = $region17
  $region16: #{reg2d_forward.32} parent=0 // pred_region
    _
  $region17: #{reg2d_forward.32} parent=0 // pred_fallthru
    _
  %v18 = vld [vmem:[%s0] sm:$0xf]
  %v19 = vld [vmem:[%s0 + $0x4] sm:$0xf]
  %v20 = vld [vmem:[%s1] sm:$0xf]
  %v21 = vld [vmem:[%s1 + $0x4] sm:$0xf]
  %v22 = vld [vmem:[%s1 + $0x8] sm:$0xf]
  %v23 = vld [vmem:[%s1 + $0xc] sm:$0xf]
  %v24 = vld [vmem:[%s1 + $0x10] sm:$0xf]
  %v25 = vld [vmem:[%s1 + $0x14] sm:$0xf]
  %v26 = vld [vmem:[%s1 + $0x18] sm:$0xf]
  %v27 = vld [vmem:[%s1 + $0x1c] sm:$0xf]
  %v28 = vld [vmem:[%s2] sm:$0xff]
  %v29 = vld [vmem:[%s2 + $0x8] sm:$0xff]
  %31 = vset.pattern.permute.xlu0 0
  %32 = vperm.xlu0 %31, %v28
  %v33 = vpop.permute.xlu0 %32
  %36 = vset.pattern.permute.xlu0 0
  %37 = vperm.xlu0 %36, %v29
  %v38 = vpop.permute.xlu0 %37
  %v42 = vunpack.c.l.b16 %v18
  %v43 = vunpack.c.l.b16 %v19
  %v44 = vpack.c.b16 %v43, %v42
  %v53 = vunpack.c.l.b16 %v20
  %v54 = vunpack.c.l.b16 %v21
  %v55 = vunpack.c.l.b16 %v22
  %v56 = vunpack.c.l.b16 %v23
  %v57 = vunpack.c.l.b16 %v24
  %v58 = vunpack.c.l.b16 %v25
  %v59 = vunpack.c.l.b16 %v26
  %v60 = vunpack.c.l.b16 %v27
  %v61 = vpack.c.b16 %v54, %v53
  %v62 = vpack.c.b16 %v56, %v55
  %v63 = vpack.c.b16 %v58, %v57
  %v64 = vpack.c.b16 %v60, %v59
  %vm69 = vcmask 523264
  %v71 = vsel %vm69, %v44, 0
  %73 = vmatpush.bf16.msra.mxu0 0
  %74 = vmatpush.bf16.msra.mxu0 0
  %75 = vmatpush.bf16.msra.mxu0 0
  %76 = vmatpush.bf16.msra.mxu0 0
  %77 = vmatpush.bf16.msra.mxu0 %v64
  %78 = vmatpush.bf16.msra.mxu0 %v63
  %79 = vmatpush.bf16.msra.mxu0 %v62
  %80 = vmatpush.bf16.msra.mxu0 %v61
  %81 = vmatmul.bf16.gmra.mxu0 %v71
  %v82 = vpop.f32.mrf.mxu0
  %v83 = vadd.f32 %v33, %v82
  %v84 = vpop.f32.mrf.mxu0
  %v85 = vadd.f32 %v38, %v84
  %86 = vdwg.mxu0
  %v87 = vmax.f32 %v83, 0.0
  %v88 = vmax.f32 %v85, 0.0
  %v89 = vld [vmem:[%s3] sm:$0xf]
  %v90 = vld [vmem:[%s3 + $0x4] sm:$0xf]
  %v91 = vunpack.c.l.bf16 %v89
  %v92 = vunpack.c.l.bf16 %v90
  %v93 = vadd.f32 %v87, %v91
  %v94 = vadd.f32 %v88, %v92
  %v95 = vpack.c.bf16 %v93, %v93
  %v96 = vpack.c.bf16 %v94, %v94
  %97 = vst [vmem:[%s4] sm:$0xf] %v95
  %98 = vst [vmem:[%s4 + $0x4] sm:$0xf] %v96
  // Predicated region
  $region18: #{reg2d_forward.32} parent=0 // pred_check
    _
  $region19: #{reg2d_forward.32} parent=0 // pred_check_branch
    %100 = sbr.rel (0) target = $region21
  $region20: #{reg2d_forward.32} parent=0 // pred_region
    _
  $region21: #{reg2d_forward.32} parent=0 // pred_fallthru
    _
  // Predicated region
  $region22: #{reg2d_forward.32} parent=0 // pred_check
    _
  $region23: #{reg2d_forward.32} parent=0 // pred_check_branch
    %102 = sbr.rel (0) target = $region25
  $region24: #{reg2d_forward.32} parent=0 // pred_region
    _
  $region25: #{reg2d_forward.32} parent=0 // pred_fallthru
    _

// kernel: reg2d_forward.34
$region0: #{reg2d_forward.34}
  #allocation0 [shape = 'u32[]', space=smem, size = 0x4, offset = 0x4, fixed_abs, tag = 'smem constant byte address 0x4 - core index']
  #allocation1 [shape = 'u32[72,128]{1,0:T(1,128)}', space=vmem, size = 0x9000, scoped, tag = 'internal scratch']
  %s0 = inlined_call_operand.vmem [shape: bf16[16,128], index: 0, kind: input, shape index: {}]
  %s1 = inlined_call_operand.vmem [shape: bf16[128,128], index: 1, kind: input, shape index: {}]
  %s2 = inlined_call_operand.vmem [shape: f32[16,1], index: 2, kind: input, shape index: {}]
  %s3 = inlined_call_operand.vmem [shape: bf16[16,128], index: 3, kind: input, shape index: {}]
  %s4 = inlined_call_operand.vmem [shape: bf16[16,128], index: 4, kind: output, shape index: {}]
  %s5 = sld [smem:[#allocation0]]
  $region26: #{reg2d_forward.34} parent=0
    _
  %s7 = ssub.s32 1, %s5
  %s8 = scalar_select 0, %s7, %s5
  // Predicated region
  $region2: #{reg2d_forward.34} parent=0 // pred_check
    _
  $region3: #{reg2d_forward.34} parent=0 // pred_check_branch
    %10 = sbr.rel (0) target = $region5
  $region4: #{reg2d_forward.34} parent=0 // pred_region
    _
  $region5: #{reg2d_forward.34} parent=0 // pred_fallthru
    _
  // Predicated region
  $region6: #{reg2d_forward.34} parent=0 // pred_check
    _
  $region7: #{reg2d_forward.34} parent=0 // pred_check_branch
    %12 = sbr.rel (0) target = $region9
  $region8: #{reg2d_forward.34} parent=0 // pred_region
    _
  $region9: #{reg2d_forward.34} parent=0 // pred_fallthru
    _
  // Predicated region
  $region10: #{reg2d_forward.34} parent=0 // pred_check
    _
  $region11: #{reg2d_forward.34} parent=0 // pred_check_branch
    %14 = sbr.rel (0) target = $region13
  $region12: #{reg2d_forward.34} parent=0 // pred_region
    _
  $region13: #{reg2d_forward.34} parent=0 // pred_fallthru
    _
  // Predicated region
  $region14: #{reg2d_forward.34} parent=0 // pred_check
    _
  $region15: #{reg2d_forward.34} parent=0 // pred_check_branch
    %16 = sbr.rel (0) target = $region17
  $region16: #{reg2d_forward.34} parent=0 // pred_region
    _
  $region17: #{reg2d_forward.34} parent=0 // pred_fallthru
    _
  %v17 = vld [vmem:[%s0] sm:$0xf]
  %v18 = vld [vmem:[%s0 + $0x4] sm:$0xf]
  %v19 = vld [vmem:[%s1] sm:$0xf]
  %v20 = vld [vmem:[%s1 + $0x4] sm:$0xf]
  %v21 = vld [vmem:[%s1 + $0x8] sm:$0xf]
  %v22 = vld [vmem:[%s1 + $0xc] sm:$0xf]
  %v23 = vld [vmem:[%s1 + $0x10] sm:$0xf]
  %v24 = vld [vmem:[%s1 + $0x14] sm:$0xf]
  %v25 = vld [vmem:[%s1 + $0x18] sm:$0xf]
  %v26 = vld [vmem:[%s1 + $0x1c] sm:$0xf]
  %v27 = vld [vmem:[%s1 + $0x20] sm:$0xf]
  %v28 = vld [vmem:[%s1 + $0x24] sm:$0xf]
  %v29 = vld [vmem:[%s1 + $0x28] sm:$0xf]
  %v30 = vld [vmem:[%s1 + $0x2c] sm:$0xf]
  %v31 = vld [vmem:[%s1 + $0x30] sm:$0xf]
  %v32 = vld [vmem:[%s1 + $0x34] sm:$0xf]
  %v33 = vld [vmem:[%s1 + $0x38] sm:$0xf]
  %v34 = vld [vmem:[%s1 + $0x3c] sm:$0xf]
  %v35 = vld [vmem:[%s2] sm:$0xff]
  %v36 = vld [vmem:[%s2 + $0x8] sm:$0xff]
  %38 = vset.pattern.permute.xlu0 0
  %39 = vperm.xlu0 %38, %v35
  %v40 = vpop.permute.xlu0 %39
  %43 = vset.pattern.permute.xlu0 0
  %44 = vperm.xlu0 %43, %v36
  %v45 = vpop.permute.xlu0 %44
  %v49 = vunpack.c.l.b16 %v17
  %v50 = vunpack.c.l.b16 %v18
  %v51 = vpack.c.b16 %v50, %v49
  %v69 = vunpack.c.l.b16 %v19
  %v70 = vunpack.c.l.b16 %v20
  %v71 = vunpack.c.l.b16 %v21
  %v72 = vunpack.c.l.b16 %v22
  %v73 = vunpack.c.l.b16 %v23
  %v74 = vunpack.c.l.b16 %v24
  %v75 = vunpack.c.l.b16 %v25
  %v76 = vunpack.c.l.b16 %v26
  %v77 = vunpack.c.l.b16 %v27
  %v78 = vunpack.c.l.b16 %v28
  %v79 = vunpack.c.l.b16 %v29
  %v80 = vunpack.c.l.b16 %v30
  %v81 = vunpack.c.l.b16 %v31
  %v82 = vunpack.c.l.b16 %v32
  %v83 = vunpack.c.l.b16 %v33
  %v84 = vunpack.c.l.b16 %v34
  %v85 = vpack.c.b16 %v70, %v69
  %v86 = vpack.c.b16 %v72, %v71
  %v87 = vpack.c.b16 %v74, %v73
  %v88 = vpack.c.b16 %v76, %v75
  %v89 = vpack.c.b16 %v78, %v77
  %v90 = vpack.c.b16 %v80, %v79
  %v91 = vpack.c.b16 %v82, %v81
  %v92 = vpack.c.b16 %v84, %v83
  %101 = vmatpush.bf16.msra.mxu0 %v92
  %102 = vmatpush.bf16.msra.mxu0 %v91
  %103 = vmatpush.bf16.msra.mxu0 %v90
  %104 = vmatpush.bf16.msra.mxu0 %v89
  %105 = vmatpush.bf16.msra.mxu0 %v88
  %106 = vmatpush.bf16.msra.mxu0 %v87
  %107 = vmatpush.bf16.msra.mxu0 %v86
  %108 = vmatpush.bf16.msra.mxu0 %v85
  %109 = vmatmul.bf16.gmra.mxu0 %v51
  %v110 = vpop.f32.mrf.mxu0
  %v111 = vadd.f32 %v40, %v110
  %v112 = vpop.f32.mrf.mxu0
  %v113 = vadd.f32 %v45, %v112
  %114 = vdwg.mxu0
  %v115 = vmax.f32 %v111, 0.0
  %v116 = vmax.f32 %v113, 0.0
  %v117 = vld [vmem:[%s3] sm:$0xf]
  %v118 = vld [vmem:[%s3 + $0x4] sm:$0xf]
  %v119 = vunpack.c.l.bf16 %v117
  %v120 = vunpack.c.l.bf16 %v118
  %v121 = vadd.f32 %v115, %v119
  %v122 = vadd.f32 %v116, %v120
  %v123 = vpack.c.bf16 %v121, %v121
  %v124 = vpack.c.bf16 %v122, %v122
  %125 = vst [vmem:[%s4] sm:$0xf] %v123
  %126 = vst [vmem:[%s4 + $0x4] sm:$0xf] %v124
  // Predicated region
  $region18: #{reg2d_forward.34} parent=0 // pred_check
    _
  $region19: #{reg2d_forward.34} parent=0 // pred_check_branch
    %128 = sbr.rel (0) target = $region21
  $region20: #{reg2d_forward.34} parent=0 // pred_region
    _
  $region21: #{reg2d_forward.34} parent=0 // pred_fallthru
    _
  // Predicated region
  $region22: #{reg2d_forward.34} parent=0 // pred_check
    _
  $region23: #{reg2d_forward.34} parent=0 // pred_check_branch
    %130 = sbr.rel (0) target = $region25
  $region24: #{reg2d_forward.34} parent=0 // pred_region
    _
  $region25: #{reg2d_forward.34} parent=0 // pred_fallthru
    _

// kernel: reg2d_forward.35
$region0: #{reg2d_forward.35}
  #allocation0 [shape = 'u32[]', space=smem, size = 0x4, offset = 0x4, fixed_abs, tag = 'smem constant byte address 0x4 - core index']
  #allocation1 [shape = 'u32[72,128]{1,0:T(1,128)}', space=vmem, size = 0x9000, scoped, tag = 'internal scratch']
  %s0 = inlined_call_operand.vmem [shape: bf16[8,16], index: 0, kind: input, shape index: {}]
  %s1 = inlined_call_operand.vmem [shape: bf16[16,256], index: 1, kind: input, shape index: {}]
  %s2 = inlined_call_operand.vmem [shape: f32[8,1], index: 2, kind: input, shape index: {}]
  %s3 = inlined_call_operand.vmem [shape: bf16[8,256], index: 3, kind: input, shape index: {}]
  %s4 = inlined_call_operand.vmem [shape: bf16[8,256], index: 4, kind: output, shape index: {}]
  %s5 = sld [smem:[#allocation0]]
  $region90: #{reg2d_forward.35} parent=0
    _
  %s7 = ssub.s32 1, %s5
  %s8 = scalar_select 0, %s7, %s5
  $region1: #{reg2d_forward.35} parent=0
    #allocation2 [shape = 'u8[8192]{0}', space=vmem, size = 0x2000, scoped, tag = 'input window, operand 1']
    loop: start=0, step=1, limit=4
    $region2: #{reg2d_forward.35} parent=1 // loop_pre_header
      _
    $region3: #{reg2d_forward.35} parent=1 // loop_header
      %s10 = sphi 0, %s14
      %p11 = scmp.ge.s32.totalorder %s10, 4
      %s18 = sphi 0, %s18
      %s20 = sphi 0, %s18
      %s21 = sphi 0, %s20
      %s35 = sphi 0, %s21
      %s41 = sphi 0, %s43
      %s44 = sphi 0, %s41
      %s45 = sphi 0, %s44
      %s61 = sphi 0, %s45
      %s65 = sphi 0, %s65
      %s67 = sphi 0, %s65
      %s68 = sphi 0, %s67
      %s82 = sphi 0, %s68
      %s88 = sphi 0, %s90
      %s91 = sphi 0, %s88
      %s92 = sphi 0, %s91
      %s108 = sphi 0, %s92
      %s114 = sphi 0, %s116
      %s117 = sphi 0, %s114
      %s118 = sphi 0, %s117
      %s134 = sphi 0, %s118
    $region4: #{reg2d_forward.35} parent=1 // loop_header_branch
      %13 = sbr.rel (%p11) target = $region8
    $region5: #{reg2d_forward.35} parent=1 // loop_body
      %s15 = ssub.s32 %s10, 1
      %s16 = ssub.s32 %s10, 2
      %s17 = sadd.s32 %s10, 1
      %s19 = sadd.s32 %s18, 1
      %p22 = scmp.eq.s32.totalorder %s10, 1
      %p23 = scmp.ne.s32.totalorder %s18, %s20
      %p24 = scmp.eq.s32.totalorder %s10, 0
      %p25 = por %p23, %p24
      %p26 = scmp.ne.s32.totalorder %s18, %s20
      %p27 = scmp.eq.s32.totalorder %s15, 1
      %p28 = por %p26, %p27
      %p29 = scmp.ne.s32.totalorder %s20, %s21
      %p30 = scmp.eq.s32.totalorder %s15, 0
      %p31 = por %p29, %p30
      %p32 = scmp.ne.s32.totalorder %s20, %s21
      %p33 = scmp.eq.s32.totalorder %s16, 1
      %p34 = por %p32, %p33
      %p36 = scmp.ne.s32.totalorder %s21, %s35
      %p37 = scmp.eq.s32.totalorder %s16, 0
      %p38 = por %p36, %p37
      %s39 = ssub.s32 %s10, %s17
      %p40 = scmp.eq.s32.totalorder %s39, 0
      %s42 = sadd.s32 %s41, 1
      %s43 = scalar_select %p40, %s41, %s42
      %p46 = pneg %p40
      %p47 = scmp.eq.s32.totalorder %s10, 1
      %p48 = por %p46, %p47
      %p49 = scmp.ne.s32.totalorder %s41, %s44
      %p50 = scmp.eq.s32.totalorder %s10, 0
      %p51 = por %p49, %p50
      %p52 = scmp.ne.s32.totalorder %s41, %s44
      %p53 = scmp.eq.s32.totalorder %s15, 1
      %p54 = por %p52, %p53
      %p55 = scmp.ne.s32.totalorder %s44, %s45
      %p56 = scmp.eq.s32.totalorder %s15, 0
      %p57 = por %p55, %p56
      %p58 = scmp.ne.s32.totalorder %s44, %s45
      %p59 = scmp.eq.s32.totalorder %s16, 1
      %p60 = por %p58, %p59
      %p62 = scmp.ne.s32.totalorder %s45, %s61
      %p63 = scmp.eq.s32.totalorder %s16, 0
      %p64 = por %p62, %p63
      %s66 = sadd.s32 %s65, 1
      %p69 = scmp.eq.s32.totalorder %s10, 1
      %p70 = scmp.ne.s32.totalorder %s65, %s67
      %p71 = scmp.eq.s32.totalorder %s10, 0
      %p72 = por %p70, %p71
      %p73 = scmp.ne.s32.totalorder %s65, %s67
      %p74 = scmp.eq.s32.totalorder %s15, 1
      %p75 = por %p73, %p74
      %p76 = scmp.ne.s32.totalorder %s67, %s68
      %p77 = scmp.eq.s32.totalorder %s15, 0
      %p78 = por %p76, %p77
      %p79 = scmp.ne.s32.totalorder %s67, %s68
      %p80 = scmp.eq.s32.totalorder %s16, 1
      %p81 = por %p79, %p80
      %p83 = scmp.ne.s32.totalorder %s68, %s82
      %p84 = scmp.eq.s32.totalorder %s16, 0
      %p85 = por %p83, %p84
      %s86 = ssub.s32 %s10, %s17
      %p87 = scmp.eq.s32.totalorder %s86, 0
      %s89 = sadd.s32 %s88, 1
      %s90 = scalar_select %p87, %s88, %s89
      %p93 = pneg %p87
      %p94 = scmp.eq.s32.totalorder %s10, 1
      %p95 = por %p93, %p94
      %p96 = scmp.ne.s32.totalorder %s88, %s91
      %p97 = scmp.eq.s32.totalorder %s10, 0
      %p98 = por %p96, %p97
      %p99 = scmp.ne.s32.totalorder %s88, %s91
      %p100 = scmp.eq.s32.totalorder %s15, 1
      %p101 = por %p99, %p100
      %p102 = scmp.ne.s32.totalorder %s91, %s92
      %p103 = scmp.eq.s32.totalorder %s15, 0
      %p104 = por %p102, %p103
      %p105 = scmp.ne.s32.totalorder %s91, %s92
      %p106 = scmp.eq.s32.totalorder %s16, 1
      %p107 = por %p105, %p106
      %p109 = scmp.ne.s32.totalorder %s92, %s108
      %p110 = scmp.eq.s32.totalorder %s16, 0
      %p111 = por %p109, %p110
      %s112 = ssub.s32 %s10, %s17
      %p113 = scmp.eq.s32.totalorder %s112, 0
      %s115 = sadd.s32 %s114, 1
      %s116 = scalar_select %p113, %s114, %s115
      %p119 = pneg %p113
      %p120 = scmp.eq.s32.totalorder %s10, 1
      %p121 = por %p119, %p120
      %p122 = scmp.ne.s32.totalorder %s114, %s117
      %p123 = scmp.eq.s32.totalorder %s10, 0
      %p124 = por %p122, %p123
      %p125 = scmp.ne.s32.totalorder %s114, %s117
      %p126 = scmp.eq.s32.totalorder %s15, 1
      %p127 = por %p125, %p126
      %p128 = scmp.ne.s32.totalorder %s117, %s118
      %p129 = scmp.eq.s32.totalorder %s15, 0
      %p130 = por %p128, %p129
      %p131 = scmp.ne.s32.totalorder %s117, %s118
      %p132 = scmp.eq.s32.totalorder %s16, 1
      %p133 = por %p131, %p132
      %p135 = scmp.ne.s32.totalorder %s118, %s134
      %p136 = scmp.eq.s32.totalorder %s16, 0
      %p137 = por %p135, %p136
      %p138 = scmp.le.s32.totalorder 1, %s10
      %p139 = scmp.lt.s32.totalorder %s10, 3
      %p140 = pnand %p138, %p139
      %p141 = pneg %p140
      // Predicated region
      $region9: #{reg2d_forward.35} parent=5 // pred_check
        _
      $region10: #{reg2d_forward.35} parent=5 // pred_check_branch
        %143 = sbr.rel (%p140) target = $region12
      $region11: #{reg2d_forward.35} parent=5 // pred_region
        %s144 = ssub.s32 %s10, 1
        // Predicated region
        $region13: #{reg2d_forward.35} parent=11 // pred_check
          %p145 = pneg %p31
        $region14: #{reg2d_forward.35} parent=11 // pred_check_branch
          %147 = sbr.rel (%p145) target = $region16
        $region15: #{reg2d_forward.35} parent=11 // pred_region
          _
        $region16: #{reg2d_forward.35} parent=11 // pred_fallthru
          _
        // Predicated region
        $region17: #{reg2d_forward.35} parent=11 // pred_check
          %p148 = pneg %p78
        $region18: #{reg2d_forward.35} parent=11 // pred_check_branch
          %150 = sbr.rel (%p148) target = $region20
        $region19: #{reg2d_forward.35} parent=11 // pred_region
          _
        $region20: #{reg2d_forward.35} parent=11 // pred_fallthru
          _
      $region12: #{reg2d_forward.35} parent=5 // pred_fallthru
        _
      %p151 = scmp.lt.s32.totalorder %s10, 2
      // Predicated region
      $region21: #{reg2d_forward.35} parent=5 // pred_check
        %p152 = pneg %p151
      $region22: #{reg2d_forward.35} parent=5 // pred_check_branch
        %154 = sbr.rel (%p152) target = $region24
      $region23: #{reg2d_forward.35} parent=5 // pred_region
        // Predicated region
        $region25: #{reg2d_forward.35} parent=23 // pred_check
          %p155 = pneg %p51
        $region26: #{reg2d_forward.35} parent=23 // pred_check_branch
          %157 = sbr.rel (%p155) target = $region28
        $region27: #{reg2d_forward.35} parent=23 // pred_region
          %s158 = sand.u32 %s41, 1
          %s159 = sand.u32 %s41, 1
          %s160 = smul.addr %s159, 8
          %s161 = scalar_lea.vmem [#allocation2], %s160
          %s162 = smul.addr %s10, 4
          %s163 = scalar_lea.vmem %s1, %s162
          // Predicated region
          $region29: #{reg2d_forward.35} parent=27 // pred_check
            _
          $region30: #{reg2d_forward.35} parent=27 // pred_check_branch
            %165 = sbr.rel (0) target = $region32
          $region31: #{reg2d_forward.35} parent=27 // pred_region
            // Predicated region
            $region33: #{reg2d_forward.35} parent=31 // pred_check
              _
            $region34: #{reg2d_forward.35} parent=31 // pred_check_branch
              %167 = sbr.rel target = $region36
            $region35: #{reg2d_forward.35} parent=31 // pred_region
              // Predicated region
              $region48: #{reg2d_forward.35} parent=35 // pred_check
                _
              $region49: #{reg2d_forward.35} parent=35 // pred_check_branch
                %185 = sbr.rel (0) target = $region51
              $region50: #{reg2d_forward.35} parent=35 // pred_region
                loop: start=0, step=1, limit=1
                $region52: #{reg2d_forward.35} parent=50 // loop_pre_header
                  _
                $region53: #{reg2d_forward.35} parent=50 // loop_header
                  %s187 = sphi 0, %s191
                  %p188 = scmp.ge.s32.totalorder %s187, 1
                  %s192 = sphi %s163, %s163
                  %s193 = sphi %s161, %s161
                $region54: #{reg2d_forward.35} parent=50 // loop_header_branch
                  %190 = sbr.rel (%p188) target = $region58
                $region55: #{reg2d_forward.35} parent=50 // loop_body
                  _
                $region56: #{reg2d_forward.35} parent=50 // loop_footer
                  %s191 = sadd.s32 1, %s187
                $region57: #{reg2d_forward.35} parent=50 // loop_footer_branch
                  %186 = sbr.rel target = $region53
                $region58: #{reg2d_forward.35} parent=50 // loop_exit
                  _
                %s195 = ssub.s32 16, 1
                loop: start=0, step=1, limit=1
                $region59: #{reg2d_forward.35} parent=50 // loop_pre_header
                  _
                $region60: #{reg2d_forward.35} parent=50 // loop_header
                  %s197 = sphi 0, %s201
                  %p198 = scmp.ge.s32.totalorder %s197, 1
                  %s202 = sphi %s163, %s163
                  %s203 = sphi %s161, %s161
                $region61: #{reg2d_forward.35} parent=50 // loop_header_branch
                  %200 = sbr.rel (%p198) target = $region65
                $region62: #{reg2d_forward.35} parent=50 // loop_body
                  %v204 = vld [vmem:[%s202] sm:%s195]
                  %205 = vst [vmem:[%s203] sm:%s195] %v204
                  %v206 = vld [vmem:[%s202 + $0x8] sm:%s195]
                  %207 = vst [vmem:[%s203 + $0x4] sm:%s195] %v206
                $region63: #{reg2d_forward.35} parent=50 // loop_footer
                  %s201 = sadd.s32 1, %s197
                $region64: #{reg2d_forward.35} parent=50 // loop_footer_branch
                  %196 = sbr.rel target = $region60
                $region65: #{reg2d_forward.35} parent=50 // loop_exit
                  _
              $region51: #{reg2d_forward.35} parent=35 // pred_fallthru
                _
            $region36: #{reg2d_forward.35} parent=31 // pred_fallthru
              _
            // Predicated region
            $region37: #{reg2d_forward.35} parent=31 // pred_check
              _
            $region38: #{reg2d_forward.35} parent=31 // pred_check_branch
              %169 = sbr.rel (0) target = $region40
            $region39: #{reg2d_forward.35} parent=31 // pred_region
              %s171 = ssub.s32 16, 1
              loop: start=0, step=1, limit=1
              $region41: #{reg2d_forward.35} parent=39 // loop_pre_header
                _
              $region42: #{reg2d_forward.35} parent=39 // loop_header
                %s173 = sphi 0, %s177
                %p174 = scmp.ge.s32.totalorder %s173, 1
                %s178 = sphi %s163, %s163
                %s179 = sphi %s161, %s161
              $region43: #{reg2d_forward.35} parent=39 // loop_header_branch
                %176 = sbr.rel (%p174) target = $region47
              $region44: #{reg2d_forward.35} parent=39 // loop_body
                %v180 = vld [vmem:[%s178] sm:%s171]
                %181 = vst [vmem:[%s179] sm:%s171] %v180
                %v182 = vld [vmem:[%s178 + $0x8] sm:%s171]
                %183 = vst [vmem:[%s179 + $0x4] sm:%s171] %v182
              $region45: #{reg2d_forward.35} parent=39 // loop_footer
                %s177 = sadd.s32 1, %s173
              $region46: #{reg2d_forward.35} parent=39 // loop_footer_branch
                %172 = sbr.rel target = $region42
              $region47: #{reg2d_forward.35} parent=39 // loop_exit
                _
            $region40: #{reg2d_forward.35} parent=31 // pred_fallthru
              _
          $region32: #{reg2d_forward.35} parent=27 // pred_fallthru
            _
          %208 = vnop
        $region28: #{reg2d_forward.35} parent=23 // pred_fallthru
          _
        // Predicated region
        $region66: #{reg2d_forward.35} parent=23 // pred_check
          %p209 = pneg %p98
        $region67: #{reg2d_forward.35} parent=23 // pred_check_branch
          %211 = sbr.rel (%p209) target = $region69
        $region68: #{reg2d_forward.35} parent=23 // pred_region
          %p212 = scmp.lt.s32.totalorder %s10, 1
          %s213 = scalar_select %p212, %s10, 1
          %s214 = smul.addr %s213, 4
          %s215 = scalar_lea.vmem %s3, %s214
        $region69: #{reg2d_forward.35} parent=23 // pred_fallthru
          _
      $region24: #{reg2d_forward.35} parent=5 // pred_fallthru
        _
      %p216 = scmp.le.s32.totalorder 1, %s10
      %p217 = scmp.lt.s32.totalorder %s10, 3
      %p218 = pnand %p216, %p217
      %p219 = pneg %p218
      // Predicated region
      $region70: #{reg2d_forward.35} parent=5 // pred_check
        _
      $region71: #{reg2d_forward.35} parent=5 // pred_check_branch
        %221 = sbr.rel (%p218) target = $region73
      $region72: #{reg2d_forward.35} parent=5 // pred_region
        %s222 = ssub.s32 %s10, 1
        %s223 = sand.u32 %s44, 1
        %s224 = sand.u32 %s44, 1
        %s225 = smul.addr %s224, 8
        %s226 = scalar_lea.vmem [#allocation2], %s225
        // Predicated region
        $region74: #{reg2d_forward.35} parent=72 // pred_check
          %p227 = pneg %p57
        $region75: #{reg2d_forward.35} parent=72 // pred_check_branch
          %229 = sbr.rel (%p227) target = $region77
        $region76: #{reg2d_forward.35} parent=72 // pred_region
          _
        $region77: #{reg2d_forward.35} parent=72 // pred_fallthru
          _
        %p230 = pneg %p31
        %p231 = pneg %p28
        %s232 = sand.u32 %s44, 1
        %s233 = sand.u32 %s44, 1
        %s234 = smul.addr %s233, 8
        %s235 = scalar_lea.vmem [#allocation2], %s234
        %p236 = pneg %p57
        %p237 = pneg %p54
        %p238 = pneg %p78
        %p239 = pneg %p75
        %p240 = scmp.lt.s32.totalorder %s15, 1
        %s241 = scalar_select %p240, %s15, 1
        %s242 = smul.addr %s241, 4
        %s243 = scalar_lea.vmem %s3, %s242
        %p244 = pneg %p104
        %p245 = pneg %p101
        %p246 = pneg %p130
        %p247 = pneg %p127
        %p248 = scmp.lt.s32.totalorder %s15, 1
        %s249 = scalar_select %p248, %s15, 1
        %s250 = smul.addr %s249, 4
        %s251 = scalar_lea.vmem %s4, %s250
        %p252 = scmp.lt.s32.totalorder %s15, 1
        %s253 = scalar_select %p252, %s15, 1
        %s254 = smul.addr %s253, 4
        %s255 = scalar_lea.vmem %s3, %s254
        %p256 = scmp.lt.s32.totalorder %s15, 1
        %s257 = scalar_select %p256, %s15, 1
        %s258 = smul.addr %s257, 4
        %s259 = scalar_lea.vmem %s4, %s258
        %v261 = vld [vmem:[%s0] sm:$0xf]
        %v262 = vld [vmem:[%s226] sm:$0xf]
        %v263 = vld [vmem:[%s226 + $0x4] sm:$0xf]
        %v264 = vld [vmem:[%s2] sm:$0xff]
        %266 = vset.pattern.permute.xlu0 0
        %267 = vperm.xlu0 %266, %v264
        %v268 = vpop.permute.xlu0 %267
        %v272 = vunpack.c.l.b16 %v262
        %v273 = vunpack.c.l.b16 %v263
        %v274 = vpack.c.b16 %v273, %v272
        %vm276 = vcmask 130048
        %v278 = vsel %vm276, %v261, 0
        %280 = vmatpush.bf16.msra.mxu0 0
        %281 = vmatpush.bf16.msra.mxu0 0
        %282 = vmatpush.bf16.msra.mxu0 0
        %283 = vmatpush.bf16.msra.mxu0 0
        %284 = vmatpush.bf16.msra.mxu0 0
        %285 = vmatpush.bf16.msra.mxu0 0
        %286 = vmatpush.bf16.msra.mxu0 0
        %287 = vmatpush.bf16.msra.mxu0 %v274
        %288 = vmatmul.bf16.gmra.mxu0 %v278
        %v289 = vpop.f32.mrf.mxu0
        %v290 = vadd.f32 %v268, %v289
        %v291 = vpop.f32.mrf.mxu0
        %292 = vdwg.mxu0
        %v293 = vmax.f32 %v290, 0.0
        %v294 = vld [vmem:[%s255] sm:$0xf]
        %v295 = vunpack.c.l.bf16 %v294
        %v296 = vadd.f32 %v293, %v295
        %v297 = vpack.c.bf16 %v296, %v296
        %298 = vst [vmem:[%s259] sm:$0xf] %v297
        %p299 = scmp.lt.s32.totalorder %s15, 1
        %s300 = scalar_select %p299, %s15, 1
        %s301 = smul.addr %s300, 4
        %s302 = scalar_lea.vmem %s4, %s301
        // Predicated region
        $region78: #{reg2d_forward.35} parent=72 // pred_check
          %p303 = pneg %p127
        $region79: #{reg2d_forward.35} parent=72 // pred_check_branch
          %305 = sbr.rel (%p303) target = $region81
        $region80: #{reg2d_forward.35} parent=72 // pred_region
          _
        $region81: #{reg2d_forward.35} parent=72 // pred_fallthru
          _
      $region73: #{reg2d_forward.35} parent=5 // pred_fallthru
        _
      %p306 = scmp.le.s32.totalorder 2, %s10
      // Predicated region
      $region82: #{reg2d_forward.35} parent=5 // pred_check
        %p307 = pneg %p306
      $region83: #{reg2d_forward.35} parent=5 // pred_check_branch
        %309 = sbr.rel (%p307) target = $region85
      $region84: #{reg2d_forward.35} parent=5 // pred_region
        %s310 = ssub.s32 %s10, 2
        // Predicated region
        $region86: #{reg2d_forward.35} parent=84 // pred_check
          %p311 = pneg %p133
        $region87: #{reg2d_forward.35} parent=84 // pred_check_branch
          %313 = sbr.rel (%p311) target = $region89
        $region88: #{reg2d_forward.35} parent=84 // pred_region
          %p314 = scmp.lt.s32.totalorder %s16, 1
          %s315 = scalar_select %p314, %s16, 1
          %s316 = smul.addr %s315, 4
          %s317 = scalar_lea.vmem %s4, %s316
        $region89: #{reg2d_forward.35} parent=84 // pred_fallthru
          _
      $region85: #{reg2d_forward.35} parent=5 // pred_fallthru
        _
    $region6: #{reg2d_forward.35} parent=1 // loop_footer
      %s14 = sadd.s32 1, %s10
    $region7: #{reg2d_forward.35} parent=1 // loop_footer_branch
      %9 = sbr.rel target = $region3
    $region8: #{reg2d_forward.35} parent=1 // loop_exit
      _

// kernel: reg2d_forward.36
$region0: #{reg2d_forward.36}
  #allocation0 [shape = 'u32[]', space=smem, size = 0x4, offset = 0x4, fixed_abs, tag = 'smem constant byte address 0x4 - core index']
  #allocation1 [shape = 'u32[72,128]{1,0:T(1,128)}', space=vmem, size = 0x9000, scoped, tag = 'internal scratch']
  %s0 = inlined_call_operand.vmem [shape: bf16[8,32], index: 0, kind: input, shape index: {}]
  %s1 = inlined_call_operand.vmem [shape: bf16[32,256], index: 1, kind: input, shape index: {}]
  %s2 = inlined_call_operand.vmem [shape: f32[8,1], index: 2, kind: input, shape index: {}]
  %s3 = inlined_call_operand.vmem [shape: bf16[8,256], index: 3, kind: input, shape index: {}]
  %s4 = inlined_call_operand.vmem [shape: bf16[8,256], index: 4, kind: output, shape index: {}]
  %s5 = sld [smem:[#allocation0]]
  $region90: #{reg2d_forward.36} parent=0
    _
  %s7 = ssub.s32 1, %s5
  %s8 = scalar_select 0, %s7, %s5
  $region1: #{reg2d_forward.36} parent=0
    #allocation2 [shape = 'u8[16384]{0}', space=vmem, size = 0x4000, scoped, tag = 'input window, operand 1']
    loop: start=0, step=1, limit=4
    $region2: #{reg2d_forward.36} parent=1 // loop_pre_header
      _
    $region3: #{reg2d_forward.36} parent=1 // loop_header
      %s10 = sphi 0, %s14
      %p11 = scmp.ge.s32.totalorder %s10, 4
      %s18 = sphi 0, %s18
      %s20 = sphi 0, %s18
      %s21 = sphi 0, %s20
      %s35 = sphi 0, %s21
      %s41 = sphi 0, %s43
      %s44 = sphi 0, %s41
      %s45 = sphi 0, %s44
      %s61 = sphi 0, %s45
      %s65 = sphi 0, %s65
      %s67 = sphi 0, %s65
      %s68 = sphi 0, %s67
      %s82 = sphi 0, %s68
      %s88 = sphi 0, %s90
      %s91 = sphi 0, %s88
      %s92 = sphi 0, %s91
      %s108 = sphi 0, %s92
      %s114 = sphi 0, %s116
      %s117 = sphi 0, %s114
      %s118 = sphi 0, %s117
      %s134 = sphi 0, %s118
    $region4: #{reg2d_forward.36} parent=1 // loop_header_branch
      %13 = sbr.rel (%p11) target = $region8
    $region5: #{reg2d_forward.36} parent=1 // loop_body
      %s15 = ssub.s32 %s10, 1
      %s16 = ssub.s32 %s10, 2
      %s17 = sadd.s32 %s10, 1
      %s19 = sadd.s32 %s18, 1
      %p22 = scmp.eq.s32.totalorder %s10, 1
      %p23 = scmp.ne.s32.totalorder %s18, %s20
      %p24 = scmp.eq.s32.totalorder %s10, 0
      %p25 = por %p23, %p24
      %p26 = scmp.ne.s32.totalorder %s18, %s20
      %p27 = scmp.eq.s32.totalorder %s15, 1
      %p28 = por %p26, %p27
      %p29 = scmp.ne.s32.totalorder %s20, %s21
      %p30 = scmp.eq.s32.totalorder %s15, 0
      %p31 = por %p29, %p30
      %p32 = scmp.ne.s32.totalorder %s20, %s21
      %p33 = scmp.eq.s32.totalorder %s16, 1
      %p34 = por %p32, %p33
      %p36 = scmp.ne.s32.totalorder %s21, %s35
      %p37 = scmp.eq.s32.totalorder %s16, 0
      %p38 = por %p36, %p37
      %s39 = ssub.s32 %s10, %s17
      %p40 = scmp.eq.s32.totalorder %s39, 0
      %s42 = sadd.s32 %s41, 1
      %s43 = scalar_select %p40, %s41, %s42
      %p46 = pneg %p40
      %p47 = scmp.eq.s32.totalorder %s10, 1
      %p48 = por %p46, %p47
      %p49 = scmp.ne.s32.totalorder %s41, %s44
      %p50 = scmp.eq.s32.totalorder %s10, 0
      %p51 = por %p49, %p50
      %p52 = scmp.ne.s32.totalorder %s41, %s44
      %p53 = scmp.eq.s32.totalorder %s15, 1
      %p54 = por %p52, %p53
      %p55 = scmp.ne.s32.totalorder %s44, %s45
      %p56 = scmp.eq.s32.totalorder %s15, 0
      %p57 = por %p55, %p56
      %p58 = scmp.ne.s32.totalorder %s44, %s45
      %p59 = scmp.eq.s32.totalorder %s16, 1
      %p60 = por %p58, %p59
      %p62 = scmp.ne.s32.totalorder %s45, %s61
      %p63 = scmp.eq.s32.totalorder %s16, 0
      %p64 = por %p62, %p63
      %s66 = sadd.s32 %s65, 1
      %p69 = scmp.eq.s32.totalorder %s10, 1
      %p70 = scmp.ne.s32.totalorder %s65, %s67
      %p71 = scmp.eq.s32.totalorder %s10, 0
      %p72 = por %p70, %p71
      %p73 = scmp.ne.s32.totalorder %s65, %s67
      %p74 = scmp.eq.s32.totalorder %s15, 1
      %p75 = por %p73, %p74
      %p76 = scmp.ne.s32.totalorder %s67, %s68
      %p77 = scmp.eq.s32.totalorder %s15, 0
      %p78 = por %p76, %p77
      %p79 = scmp.ne.s32.totalorder %s67, %s68
      %p80 = scmp.eq.s32.totalorder %s16, 1
      %p81 = por %p79, %p80
      %p83 = scmp.ne.s32.totalorder %s68, %s82
      %p84 = scmp.eq.s32.totalorder %s16, 0
      %p85 = por %p83, %p84
      %s86 = ssub.s32 %s10, %s17
      %p87 = scmp.eq.s32.totalorder %s86, 0
      %s89 = sadd.s32 %s88, 1
      %s90 = scalar_select %p87, %s88, %s89
      %p93 = pneg %p87
      %p94 = scmp.eq.s32.totalorder %s10, 1
      %p95 = por %p93, %p94
      %p96 = scmp.ne.s32.totalorder %s88, %s91
      %p97 = scmp.eq.s32.totalorder %s10, 0
      %p98 = por %p96, %p97
      %p99 = scmp.ne.s32.totalorder %s88, %s91
      %p100 = scmp.eq.s32.totalorder %s15, 1
      %p101 = por %p99, %p100
      %p102 = scmp.ne.s32.totalorder %s91, %s92
      %p103 = scmp.eq.s32.totalorder %s15, 0
      %p104 = por %p102, %p103
      %p105 = scmp.ne.s32.totalorder %s91, %s92
      %p106 = scmp.eq.s32.totalorder %s16, 1
      %p107 = por %p105, %p106
      %p109 = scmp.ne.s32.totalorder %s92, %s108
      %p110 = scmp.eq.s32.totalorder %s16, 0
      %p111 = por %p109, %p110
      %s112 = ssub.s32 %s10, %s17
      %p113 = scmp.eq.s32.totalorder %s112, 0
      %s115 = sadd.s32 %s114, 1
      %s116 = scalar_select %p113, %s114, %s115
      %p119 = pneg %p113
      %p120 = scmp.eq.s32.totalorder %s10, 1
      %p121 = por %p119, %p120
      %p122 = scmp.ne.s32.totalorder %s114, %s117
      %p123 = scmp.eq.s32.totalorder %s10, 0
      %p124 = por %p122, %p123
      %p125 = scmp.ne.s32.totalorder %s114, %s117
      %p126 = scmp.eq.s32.totalorder %s15, 1
      %p127 = por %p125, %p126
      %p128 = scmp.ne.s32.totalorder %s117, %s118
      %p129 = scmp.eq.s32.totalorder %s15, 0
      %p130 = por %p128, %p129
      %p131 = scmp.ne.s32.totalorder %s117, %s118
      %p132 = scmp.eq.s32.totalorder %s16, 1
      %p133 = por %p131, %p132
      %p135 = scmp.ne.s32.totalorder %s118, %s134
      %p136 = scmp.eq.s32.totalorder %s16, 0
      %p137 = por %p135, %p136
      %p138 = scmp.le.s32.totalorder 1, %s10
      %p139 = scmp.lt.s32.totalorder %s10, 3
      %p140 = pnand %p138, %p139
      %p141 = pneg %p140
      // Predicated region
      $region9: #{reg2d_forward.36} parent=5 // pred_check
        _
      $region10: #{reg2d_forward.36} parent=5 // pred_check_branch
        %143 = sbr.rel (%p140) target = $region12
      $region11: #{reg2d_forward.36} parent=5 // pred_region
        %s144 = ssub.s32 %s10, 1
        // Predicated region
        $region13: #{reg2d_forward.36} parent=11 // pred_check
          %p145 = pneg %p31
        $region14: #{reg2d_forward.36} parent=11 // pred_check_branch
          %147 = sbr.rel (%p145) target = $region16
        $region15: #{reg2d_forward.36} parent=11 // pred_region
          _
        $region16: #{reg2d_forward.36} parent=11 // pred_fallthru
          _
        // Predicated region
        $region17: #{reg2d_forward.36} parent=11 // pred_check
          %p148 = pneg %p78
        $region18: #{reg2d_forward.36} parent=11 // pred_check_branch
          %150 = sbr.rel (%p148) target = $region20
        $region19: #{reg2d_forward.36} parent=11 // pred_region
          _
        $region20: #{reg2d_forward.36} parent=11 // pred_fallthru
          _
      $region12: #{reg2d_forward.36} parent=5 // pred_fallthru
        _
      %p151 = scmp.lt.s32.totalorder %s10, 2
      // Predicated region
      $region21: #{reg2d_forward.36} parent=5 // pred_check
        %p152 = pneg %p151
      $region22: #{reg2d_forward.36} parent=5 // pred_check_branch
        %154 = sbr.rel (%p152) target = $region24
      $region23: #{reg2d_forward.36} parent=5 // pred_region
        // Predicated region
        $region25: #{reg2d_forward.36} parent=23 // pred_check
          %p155 = pneg %p51
        $region26: #{reg2d_forward.36} parent=23 // pred_check_branch
          %157 = sbr.rel (%p155) target = $region28
        $region27: #{reg2d_forward.36} parent=23 // pred_region
          %s158 = sand.u32 %s41, 1
          %s159 = sand.u32 %s41, 1
          %s160 = smul.addr %s159, 16
          %s161 = scalar_lea.vmem [#allocation2], %s160
          %s162 = smul.addr %s10, 4
          %s163 = scalar_lea.vmem %s1, %s162
          // Predicated region
          $region29: #{reg2d_forward.36} parent=27 // pred_check
            _
          $region30: #{reg2d_forward.36} parent=27 // pred_check_branch
            %165 = sbr.rel (0) target = $region32
          $region31: #{reg2d_forward.36} parent=27 // pred_region
            // Predicated region
            $region33: #{reg2d_forward.36} parent=31 // pred_check
              _
            $region34: #{reg2d_forward.36} parent=31 // pred_check_branch
              %167 = sbr.rel target = $region36
            $region35: #{reg2d_forward.36} parent=31 // pred_region
              // Predicated region
              $region48: #{reg2d_forward.36} parent=35 // pred_check
                _
              $region49: #{reg2d_forward.36} parent=35 // pred_check_branch
                %189 = sbr.rel (0) target = $region51
              $region50: #{reg2d_forward.36} parent=35 // pred_region
                loop: start=0, step=1, limit=1
                $region52: #{reg2d_forward.36} parent=50 // loop_pre_header
                  _
                $region53: #{reg2d_forward.36} parent=50 // loop_header
                  %s191 = sphi 0, %s195
                  %p192 = scmp.ge.s32.totalorder %s191, 1
                  %s196 = sphi %s163, %s163
                  %s197 = sphi %s161, %s161
                $region54: #{reg2d_forward.36} parent=50 // loop_header_branch
                  %194 = sbr.rel (%p192) target = $region58
                $region55: #{reg2d_forward.36} parent=50 // loop_body
                  _
                $region56: #{reg2d_forward.36} parent=50 // loop_footer
                  %s195 = sadd.s32 1, %s191
                $region57: #{reg2d_forward.36} parent=50 // loop_footer_branch
                  %190 = sbr.rel target = $region53
                $region58: #{reg2d_forward.36} parent=50 // loop_exit
                  _
                %s199 = ssub.s32 16, 1
                loop: start=0, step=1, limit=1
                $region59: #{reg2d_forward.36} parent=50 // loop_pre_header
                  _
                $region60: #{reg2d_forward.36} parent=50 // loop_header
                  %s201 = sphi 0, %s205
                  %p202 = scmp.ge.s32.totalorder %s201, 1
                  %s206 = sphi %s163, %s163
                  %s207 = sphi %s161, %s161
                $region61: #{reg2d_forward.36} parent=50 // loop_header_branch
                  %204 = sbr.rel (%p202) target = $region65
                $region62: #{reg2d_forward.36} parent=50 // loop_body
                  %v208 = vld [vmem:[%s206] sm:%s199]
                  %209 = vst [vmem:[%s207] sm:%s199] %v208
                  %v210 = vld [vmem:[%s206 + $0x8] sm:%s199]
                  %211 = vst [vmem:[%s207 + $0x4] sm:%s199] %v210
                  %v212 = vld [vmem:[%s206 + $0x10] sm:%s199]
                  %213 = vst [vmem:[%s207 + $0x8] sm:%s199] %v212
                  %v214 = vld [vmem:[%s206 + $0x18] sm:%s199]
                  %215 = vst [vmem:[%s207 + $0xc] sm:%s199] %v214
                $region63: #{reg2d_forward.36} parent=50 // loop_footer
                  %s205 = sadd.s32 1, %s201
                $region64: #{reg2d_forward.36} parent=50 // loop_footer_branch
                  %200 = sbr.rel target = $region60
                $region65: #{reg2d_forward.36} parent=50 // loop_exit
                  _
              $region51: #{reg2d_forward.36} parent=35 // pred_fallthru
                _
            $region36: #{reg2d_forward.36} parent=31 // pred_fallthru
              _
            // Predicated region
            $region37: #{reg2d_forward.36} parent=31 // pred_check
              _
            $region38: #{reg2d_forward.36} parent=31 // pred_check_branch
              %169 = sbr.rel (0) target = $region40
            $region39: #{reg2d_forward.36} parent=31 // pred_region
              %s171 = ssub.s32 16, 1
              loop: start=0, step=1, limit=1
              $region41: #{reg2d_forward.36} parent=39 // loop_pre_header
                _
              $region42: #{reg2d_forward.36} parent=39 // loop_header
                %s173 = sphi 0, %s177
                %p174 = scmp.ge.s32.totalorder %s173, 1
                %s178 = sphi %s163, %s163
                %s179 = sphi %s161, %s161
              $region43: #{reg2d_forward.36} parent=39 // loop_header_branch
                %176 = sbr.rel (%p174) target = $region47
              $region44: #{reg2d_forward.36} parent=39 // loop_body
                %v180 = vld [vmem:[%s178] sm:%s171]
                %181 = vst [vmem:[%s179] sm:%s171] %v180
                %v182 = vld [vmem:[%s178 + $0x8] sm:%s171]
                %183 = vst [vmem:[%s179 + $0x4] sm:%s171] %v182
                %v184 = vld [vmem:[%s178 + $0x10] sm:%s171]
                %185 = vst [vmem:[%s179 + $0x8] sm:%s171] %v184
                %v186 = vld [vmem:[%s178 + $0x18] sm:%s171]
                %187 = vst [vmem:[%s179 + $0xc] sm:%s171] %v186
              $region45: #{reg2d_forward.36} parent=39 // loop_footer
                %s177 = sadd.s32 1, %s173
              $region46: #{reg2d_forward.36} parent=39 // loop_footer_branch
                %172 = sbr.rel target = $region42
              $region47: #{reg2d_forward.36} parent=39 // loop_exit
                _
            $region40: #{reg2d_forward.36} parent=31 // pred_fallthru
              _
          $region32: #{reg2d_forward.36} parent=27 // pred_fallthru
            _
          %216 = vnop
        $region28: #{reg2d_forward.36} parent=23 // pred_fallthru
          _
        // Predicated region
        $region66: #{reg2d_forward.36} parent=23 // pred_check
          %p217 = pneg %p98
        $region67: #{reg2d_forward.36} parent=23 // pred_check_branch
          %219 = sbr.rel (%p217) target = $region69
        $region68: #{reg2d_forward.36} parent=23 // pred_region
          %p220 = scmp.lt.s32.totalorder %s10, 1
          %s221 = scalar_select %p220, %s10, 1
          %s222 = smul.addr %s221, 4
          %s223 = scalar_lea.vmem %s3, %s222
        $region69: #{reg2d_forward.36} parent=23 // pred_fallthru
          _
      $region24: #{reg2d_forward.36} parent=5 // pred_fallthru
        _
      %p224 = scmp.le.s32.totalorder 1, %s10
      %p225 = scmp.lt.s32.totalorder %s10, 3
      %p226 = pnand %p224, %p225
      %p227 = pneg %p226
      // Predicated region
      $region70: #{reg2d_forward.36} parent=5 // pred_check
        _
      $region71: #{reg2d_forward.36} parent=5 // pred_check_branch
        %229 = sbr.rel (%p226) target = $region73
      $region72: #{reg2d_forward.36} parent=5 // pred_region
        %s230 = ssub.s32 %s10, 1
        %s231 = sand.u32 %s44, 1
        %s232 = sand.u32 %s44, 1
        %s233 = smul.addr %s232, 16
        %s234 = scalar_lea.vmem [#allocation2], %s233
        // Predicated region
        $region74: #{reg2d_forward.36} parent=72 // pred_check
          %p235 = pneg %p57
        $region75: #{reg2d_forward.36} parent=72 // pred_check_branch
          %237 = sbr.rel (%p235) target = $region77
        $region76: #{reg2d_forward.36} parent=72 // pred_region
          _
        $region77: #{reg2d_forward.36} parent=72 // pred_fallthru
          _
        %p238 = pneg %p31
        %p239 = pneg %p28
        %s240 = sand.u32 %s44, 1
        %s241 = sand.u32 %s44, 1
        %s242 = smul.addr %s241, 16
        %s243 = scalar_lea.vmem [#allocation2], %s242
        %p244 = pneg %p57
        %p245 = pneg %p54
        %p246 = pneg %p78
        %p247 = pneg %p75
        %p248 = scmp.lt.s32.totalorder %s15, 1
        %s249 = scalar_select %p248, %s15, 1
        %s250 = smul.addr %s249, 4
        %s251 = scalar_lea.vmem %s3, %s250
        %p252 = pneg %p104
        %p253 = pneg %p101
        %p254 = pneg %p130
        %p255 = pneg %p127
        %p256 = scmp.lt.s32.totalorder %s15, 1
        %s257 = scalar_select %p256, %s15, 1
        %s258 = smul.addr %s257, 4
        %s259 = scalar_lea.vmem %s4, %s258
        %p260 = scmp.lt.s32.totalorder %s15, 1
        %s261 = scalar_select %p260, %s15, 1
        %s262 = smul.addr %s261, 4
        %s263 = scalar_lea.vmem %s3, %s262
        %p264 = scmp.lt.s32.totalorder %s15, 1
        %s265 = scalar_select %p264, %s15, 1
        %s266 = smul.addr %s265, 4
        %s267 = scalar_lea.vmem %s4, %s266
        %v269 = vld [vmem:[%s0] sm:$0xf]
        %v270 = vld [vmem:[%s234] sm:$0xf]
        %v271 = vld [vmem:[%s234 + $0x4] sm:$0xf]
        %v272 = vld [vmem:[%s234 + $0x8] sm:$0xf]
        %v273 = vld [vmem:[%s234 + $0xc] sm:$0xf]
        %v274 = vld [vmem:[%s2] sm:$0xff]
        %276 = vset.pattern.permute.xlu0 0
        %277 = vperm.xlu0 %276, %v274
        %v278 = vpop.permute.xlu0 %277
        %v284 = vunpack.c.l.b16 %v270
        %v285 = vunpack.c.l.b16 %v271
        %v286 = vunpack.c.l.b16 %v272
        %v287 = vunpack.c.l.b16 %v273
        %v288 = vpack.c.b16 %v285, %v284
        %v289 = vpack.c.b16 %v287, %v286
        %vm292 = vcmask 261120
        %v294 = vsel %vm292, %v269, 0
        %296 = vmatpush.bf16.msra.mxu0 0
        %297 = vmatpush.bf16.msra.mxu0 0
        %298 = vmatpush.bf16.msra.mxu0 0
        %299 = vmatpush.bf16.msra.mxu0 0
        %300 = vmatpush.bf16.msra.mxu0 0
        %301 = vmatpush.bf16.msra.mxu0 0
        %302 = vmatpush.bf16.msra.mxu0 %v289
        %303 = vmatpush.bf16.msra.mxu0 %v288
        %304 = vmatmul.bf16.gmra.mxu0 %v294
        %v305 = vpop.f32.mrf.mxu0
        %v306 = vadd.f32 %v278, %v305
        %v307 = vpop.f32.mrf.mxu0
        %308 = vdwg.mxu0
        %v309 = vmax.f32 %v306, 0.0
        %v310 = vld [vmem:[%s263] sm:$0xf]
        %v311 = vunpack.c.l.bf16 %v310
        %v312 = vadd.f32 %v309, %v311
        %v313 = vpack.c.bf16 %v312, %v312
        %314 = vst [vmem:[%s267] sm:$0xf] %v313
        %p315 = scmp.lt.s32.totalorder %s15, 1
        %s316 = scalar_select %p315, %s15, 1
        %s317 = smul.addr %s316, 4
        %s318 = scalar_lea.vmem %s4, %s317
        // Predicated region
        $region78: #{reg2d_forward.36} parent=72 // pred_check
          %p319 = pneg %p127
        $region79: #{reg2d_forward.36} parent=72 // pred_check_branch
          %321 = sbr.rel (%p319) target = $region81
        $region80: #{reg2d_forward.36} parent=72 // pred_region
          _
        $region81: #{reg2d_forward.36} parent=72 // pred_fallthru
          _
      $region73: #{reg2d_forward.36} parent=5 // pred_fallthru
        _
      %p322 = scmp.le.s32.totalorder 2, %s10
      // Predicated region
      $region82: #{reg2d_forward.36} parent=5 // pred_check
        %p323 = pneg %p322
      $region83: #{reg2d_forward.36} parent=5 // pred_check_branch
        %325 = sbr.rel (%p323) target = $region85
      $region84: #{reg2d_forward.36} parent=5 // pred_region
        %s326 = ssub.s32 %s10, 2
        // Predicated region
        $region86: #{reg2d_forward.36} parent=84 // pred_check
          %p327 = pneg %p133
        $region87: #{reg2d_forward.36} parent=84 // pred_check_branch
          %329 = sbr.rel (%p327) target = $region89
        $region88: #{reg2d_forward.36} parent=84 // pred_region
          %p330 = scmp.lt.s32.totalorder %s16, 1
          %s331 = scalar_select %p330, %s16, 1
          %s332 = smul.addr %s331, 4
          %s333 = scalar_lea.vmem %s4, %s332
        $region89: #{reg2d_forward.36} parent=84 // pred_fallthru
          _
      $region85: #{reg2d_forward.36} parent=5 // pred_fallthru
        _
    $region6: #{reg2d_forward.36} parent=1 // loop_footer
      %s14 = sadd.s32 1, %s10
    $region7: #{reg2d_forward.36} parent=1 // loop_footer_branch
      %9 = sbr.rel target = $region3
    $region8: #{reg2d_forward.36} parent=1 // loop_exit
      _

// kernel: reg2d_forward.38
$region0: #{reg2d_forward.38}
  #allocation0 [shape = 'u32[]', space=smem, size = 0x4, offset = 0x4, fixed_abs, tag = 'smem constant byte address 0x4 - core index']
  #allocation1 [shape = 'u32[72,128]{1,0:T(1,128)}', space=vmem, size = 0x9000, scoped, tag = 'internal scratch']
  %s0 = inlined_call_operand.vmem [shape: bf16[8,64], index: 0, kind: input, shape index: {}]
  %s1 = inlined_call_operand.vmem [shape: bf16[64,256], index: 1, kind: input, shape index: {}]
  %s2 = inlined_call_operand.vmem [shape: f32[8,1], index: 2, kind: input, shape index: {}]
  %s3 = inlined_call_operand.vmem [shape: bf16[8,256], index: 3, kind: input, shape index: {}]
  %s4 = inlined_call_operand.vmem [shape: bf16[8,256], index: 4, kind: output, shape index: {}]
  %s5 = sld [smem:[#allocation0]]
  $region90: #{reg2d_forward.38} parent=0
    _
  %s7 = ssub.s32 1, %s5
  %s8 = scalar_select 0, %s7, %s5
  $region1: #{reg2d_forward.38} parent=0
    #allocation2 [shape = 'u8[32768]{0}', space=vmem, size = 0x8000, scoped, tag = 'input window, operand 1']
    loop: start=0, step=1, limit=4
    $region2: #{reg2d_forward.38} parent=1 // loop_pre_header
      _
    $region3: #{reg2d_forward.38} parent=1 // loop_header
      %s10 = sphi 0, %s14
      %p11 = scmp.ge.s32.totalorder %s10, 4
      %s18 = sphi 0, %s18
      %s20 = sphi 0, %s18
      %s21 = sphi 0, %s20
      %s35 = sphi 0, %s21
      %s41 = sphi 0, %s43
      %s44 = sphi 0, %s41
      %s45 = sphi 0, %s44
      %s61 = sphi 0, %s45
      %s65 = sphi 0, %s65
      %s67 = sphi 0, %s65
      %s68 = sphi 0, %s67
      %s82 = sphi 0, %s68
      %s88 = sphi 0, %s90
      %s91 = sphi 0, %s88
      %s92 = sphi 0, %s91
      %s108 = sphi 0, %s92
      %s114 = sphi 0, %s116
      %s117 = sphi 0, %s114
      %s118 = sphi 0, %s117
      %s134 = sphi 0, %s118
    $region4: #{reg2d_forward.38} parent=1 // loop_header_branch
      %13 = sbr.rel (%p11) target = $region8
    $region5: #{reg2d_forward.38} parent=1 // loop_body
      %s15 = ssub.s32 %s10, 1
      %s16 = ssub.s32 %s10, 2
      %s17 = sadd.s32 %s10, 1
      %s19 = sadd.s32 %s18, 1
      %p22 = scmp.eq.s32.totalorder %s10, 1
      %p23 = scmp.ne.s32.totalorder %s18, %s20
      %p24 = scmp.eq.s32.totalorder %s10, 0
      %p25 = por %p23, %p24
      %p26 = scmp.ne.s32.totalorder %s18, %s20
      %p27 = scmp.eq.s32.totalorder %s15, 1
      %p28 = por %p26, %p27
      %p29 = scmp.ne.s32.totalorder %s20, %s21
      %p30 = scmp.eq.s32.totalorder %s15, 0
      %p31 = por %p29, %p30
      %p32 = scmp.ne.s32.totalorder %s20, %s21
      %p33 = scmp.eq.s32.totalorder %s16, 1
      %p34 = por %p32, %p33
      %p36 = scmp.ne.s32.totalorder %s21, %s35
      %p37 = scmp.eq.s32.totalorder %s16, 0
      %p38 = por %p36, %p37
      %s39 = ssub.s32 %s10, %s17
      %p40 = scmp.eq.s32.totalorder %s39, 0
      %s42 = sadd.s32 %s41, 1
      %s43 = scalar_select %p40, %s41, %s42
      %p46 = pneg %p40
      %p47 = scmp.eq.s32.totalorder %s10, 1
      %p48 = por %p46, %p47
      %p49 = scmp.ne.s32.totalorder %s41, %s44
      %p50 = scmp.eq.s32.totalorder %s10, 0
      %p51 = por %p49, %p50
      %p52 = scmp.ne.s32.totalorder %s41, %s44
      %p53 = scmp.eq.s32.totalorder %s15, 1
      %p54 = por %p52, %p53
      %p55 = scmp.ne.s32.totalorder %s44, %s45
      %p56 = scmp.eq.s32.totalorder %s15, 0
      %p57 = por %p55, %p56
      %p58 = scmp.ne.s32.totalorder %s44, %s45
      %p59 = scmp.eq.s32.totalorder %s16, 1
      %p60 = por %p58, %p59
      %p62 = scmp.ne.s32.totalorder %s45, %s61
      %p63 = scmp.eq.s32.totalorder %s16, 0
      %p64 = por %p62, %p63
      %s66 = sadd.s32 %s65, 1
      %p69 = scmp.eq.s32.totalorder %s10, 1
      %p70 = scmp.ne.s32.totalorder %s65, %s67
      %p71 = scmp.eq.s32.totalorder %s10, 0
      %p72 = por %p70, %p71
      %p73 = scmp.ne.s32.totalorder %s65, %s67
      %p74 = scmp.eq.s32.totalorder %s15, 1
      %p75 = por %p73, %p74
      %p76 = scmp.ne.s32.totalorder %s67, %s68
      %p77 = scmp.eq.s32.totalorder %s15, 0
      %p78 = por %p76, %p77
      %p79 = scmp.ne.s32.totalorder %s67, %s68
      %p80 = scmp.eq.s32.totalorder %s16, 1
      %p81 = por %p79, %p80
      %p83 = scmp.ne.s32.totalorder %s68, %s82
      %p84 = scmp.eq.s32.totalorder %s16, 0
      %p85 = por %p83, %p84
      %s86 = ssub.s32 %s10, %s17
      %p87 = scmp.eq.s32.totalorder %s86, 0
      %s89 = sadd.s32 %s88, 1
      %s90 = scalar_select %p87, %s88, %s89
      %p93 = pneg %p87
      %p94 = scmp.eq.s32.totalorder %s10, 1
      %p95 = por %p93, %p94
      %p96 = scmp.ne.s32.totalorder %s88, %s91
      %p97 = scmp.eq.s32.totalorder %s10, 0
      %p98 = por %p96, %p97
      %p99 = scmp.ne.s32.totalorder %s88, %s91
      %p100 = scmp.eq.s32.totalorder %s15, 1
      %p101 = por %p99, %p100
      %p102 = scmp.ne.s32.totalorder %s91, %s92
      %p103 = scmp.eq.s32.totalorder %s15, 0
      %p104 = por %p102, %p103
      %p105 = scmp.ne.s32.totalorder %s91, %s92
      %p106 = scmp.eq.s32.totalorder %s16, 1
      %p107 = por %p105, %p106
      %p109 = scmp.ne.s32.totalorder %s92, %s108
      %p110 = scmp.eq.s32.totalorder %s16, 0
      %p111 = por %p109, %p110
      %s112 = ssub.s32 %s10, %s17
      %p113 = scmp.eq.s32.totalorder %s112, 0
      %s115 = sadd.s32 %s114, 1
      %s116 = scalar_select %p113, %s114, %s115
      %p119 = pneg %p113
      %p120 = scmp.eq.s32.totalorder %s10, 1
      %p121 = por %p119, %p120
      %p122 = scmp.ne.s32.totalorder %s114, %s117
      %p123 = scmp.eq.s32.totalorder %s10, 0
      %p124 = por %p122, %p123
      %p125 = scmp.ne.s32.totalorder %s114, %s117
      %p126 = scmp.eq.s32.totalorder %s15, 1
      %p127 = por %p125, %p126
      %p128 = scmp.ne.s32.totalorder %s117, %s118
      %p129 = scmp.eq.s32.totalorder %s15, 0
      %p130 = por %p128, %p129
      %p131 = scmp.ne.s32.totalorder %s117, %s118
      %p132 = scmp.eq.s32.totalorder %s16, 1
      %p133 = por %p131, %p132
      %p135 = scmp.ne.s32.totalorder %s118, %s134
      %p136 = scmp.eq.s32.totalorder %s16, 0
      %p137 = por %p135, %p136
      %p138 = scmp.le.s32.totalorder 1, %s10
      %p139 = scmp.lt.s32.totalorder %s10, 3
      %p140 = pnand %p138, %p139
      %p141 = pneg %p140
      // Predicated region
      $region9: #{reg2d_forward.38} parent=5 // pred_check
        _
      $region10: #{reg2d_forward.38} parent=5 // pred_check_branch
        %143 = sbr.rel (%p140) target = $region12
      $region11: #{reg2d_forward.38} parent=5 // pred_region
        %s144 = ssub.s32 %s10, 1
        // Predicated region
        $region13: #{reg2d_forward.38} parent=11 // pred_check
          %p145 = pneg %p31
        $region14: #{reg2d_forward.38} parent=11 // pred_check_branch
          %147 = sbr.rel (%p145) target = $region16
        $region15: #{reg2d_forward.38} parent=11 // pred_region
          _
        $region16: #{reg2d_forward.38} parent=11 // pred_fallthru
          _
        // Predicated region
        $region17: #{reg2d_forward.38} parent=11 // pred_check
          %p148 = pneg %p78
        $region18: #{reg2d_forward.38} parent=11 // pred_check_branch
          %150 = sbr.rel (%p148) target = $region20
        $region19: #{reg2d_forward.38} parent=11 // pred_region
          _
        $region20: #{reg2d_forward.38} parent=11 // pred_fallthru
          _
      $region12: #{reg2d_forward.38} parent=5 // pred_fallthru
        _
      %p151 = scmp.lt.s32.totalorder %s10, 2
      // Predicated region
      $region21: #{reg2d_forward.38} parent=5 // pred_check
        %p152 = pneg %p151
      $region22: #{reg2d_forward.38} parent=5 // pred_check_branch
        %154 = sbr.rel (%p152) target = $region24
      $region23: #{reg2d_forward.38} parent=5 // pred_region
        // Predicated region
        $region25: #{reg2d_forward.38} parent=23 // pred_check
          %p155 = pneg %p51
        $region26: #{reg2d_forward.38} parent=23 // pred_check_branch
          %157 = sbr.rel (%p155) target = $region28
        $region27: #{reg2d_forward.38} parent=23 // pred_region
          %s158 = sand.u32 %s41, 1
          %s159 = sand.u32 %s41, 1
          %s160 = smul.addr %s159, 32
          %s161 = scalar_lea.vmem [#allocation2], %s160
          %s162 = smul.addr %s10, 4
          %s163 = scalar_lea.vmem %s1, %s162
          // Predicated region
          $region29: #{reg2d_forward.38} parent=27 // pred_check
            _
          $region30: #{reg2d_forward.38} parent=27 // pred_check_branch
            %165 = sbr.rel (0) target = $region32
          $region31: #{reg2d_forward.38} parent=27 // pred_region
            // Predicated region
            $region33: #{reg2d_forward.38} parent=31 // pred_check
              _
            $region34: #{reg2d_forward.38} parent=31 // pred_check_branch
              %167 = sbr.rel target = $region36
            $region35: #{reg2d_forward.38} parent=31 // pred_region
              // Predicated region
              $region48: #{reg2d_forward.38} parent=35 // pred_check
                _
              $region49: #{reg2d_forward.38} parent=35 // pred_check_branch
                %197 = sbr.rel (0) target = $region51
              $region50: #{reg2d_forward.38} parent=35 // pred_region
                loop: start=0, step=1, limit=1
                $region52: #{reg2d_forward.38} parent=50 // loop_pre_header
                  _
                $region53: #{reg2d_forward.38} parent=50 // loop_header
                  %s199 = sphi 0, %s203
                  %p200 = scmp.ge.s32.totalorder %s199, 1
                  %s204 = sphi %s163, %s163
                  %s205 = sphi %s161, %s161
                $region54: #{reg2d_forward.38} parent=50 // loop_header_branch
                  %202 = sbr.rel (%p200) target = $region58
                $region55: #{reg2d_forward.38} parent=50 // loop_body
                  _
                $region56: #{reg2d_forward.38} parent=50 // loop_footer
                  %s203 = sadd.s32 1, %s199
                $region57: #{reg2d_forward.38} parent=50 // loop_footer_branch
                  %198 = sbr.rel target = $region53
                $region58: #{reg2d_forward.38} parent=50 // loop_exit
                  _
                %s207 = ssub.s32 16, 1
                loop: start=0, step=1, limit=1
                $region59: #{reg2d_forward.38} parent=50 // loop_pre_header
                  _
                $region60: #{reg2d_forward.38} parent=50 // loop_header
                  %s209 = sphi 0, %s213
                  %p210 = scmp.ge.s32.totalorder %s209, 1
                  %s214 = sphi %s163, %s163
                  %s215 = sphi %s161, %s161
                $region61: #{reg2d_forward.38} parent=50 // loop_header_branch
                  %212 = sbr.rel (%p210) target = $region65
                $region62: #{reg2d_forward.38} parent=50 // loop_body
                  %v216 = vld [vmem:[%s214] sm:%s207]
                  %217 = vst [vmem:[%s215] sm:%s207] %v216
                  %v218 = vld [vmem:[%s214 + $0x8] sm:%s207]
                  %219 = vst [vmem:[%s215 + $0x4] sm:%s207] %v218
                  %v220 = vld [vmem:[%s214 + $0x10] sm:%s207]
                  %221 = vst [vmem:[%s215 + $0x8] sm:%s207] %v220
                  %v222 = vld [vmem:[%s214 + $0x18] sm:%s207]
                  %223 = vst [vmem:[%s215 + $0xc] sm:%s207] %v222
                  %v224 = vld [vmem:[%s214 + $0x20] sm:%s207]
                  %225 = vst [vmem:[%s215 + $0x10] sm:%s207] %v224
                  %v226 = vld [vmem:[%s214 + $0x28] sm:%s207]
                  %227 = vst [vmem:[%s215 + $0x14] sm:%s207] %v226
                  %v228 = vld [vmem:[%s214 + $0x30] sm:%s207]
                  %229 = vst [vmem:[%s215 + $0x18] sm:%s207] %v228
                  %v230 = vld [vmem:[%s214 + $0x38] sm:%s207]
                  %231 = vst [vmem:[%s215 + $0x1c] sm:%s207] %v230
                $region63: #{reg2d_forward.38} parent=50 // loop_footer
                  %s213 = sadd.s32 1, %s209
                $region64: #{reg2d_forward.38} parent=50 // loop_footer_branch
                  %208 = sbr.rel target = $region60
                $region65: #{reg2d_forward.38} parent=50 // loop_exit
                  _
              $region51: #{reg2d_forward.38} parent=35 // pred_fallthru
                _
            $region36: #{reg2d_forward.38} parent=31 // pred_fallthru
              _
            // Predicated region
            $region37: #{reg2d_forward.38} parent=31 // pred_check
              _
            $region38: #{reg2d_forward.38} parent=31 // pred_check_branch
              %169 = sbr.rel (0) target = $region40
            $region39: #{reg2d_forward.38} parent=31 // pred_region
              %s171 = ssub.s32 16, 1
              loop: start=0, step=1, limit=1
              $region41: #{reg2d_forward.38} parent=39 // loop_pre_header
                _
              $region42: #{reg2d_forward.38} parent=39 // loop_header
                %s173 = sphi 0, %s177
                %p174 = scmp.ge.s32.totalorder %s173, 1
                %s178 = sphi %s163, %s163
                %s179 = sphi %s161, %s161
              $region43: #{reg2d_forward.38} parent=39 // loop_header_branch
                %176 = sbr.rel (%p174) target = $region47
              $region44: #{reg2d_forward.38} parent=39 // loop_body
                %v180 = vld [vmem:[%s178] sm:%s171]
                %181 = vst [vmem:[%s179] sm:%s171] %v180
                %v182 = vld [vmem:[%s178 + $0x8] sm:%s171]
                %183 = vst [vmem:[%s179 + $0x4] sm:%s171] %v182
                %v184 = vld [vmem:[%s178 + $0x10] sm:%s171]
                %185 = vst [vmem:[%s179 + $0x8] sm:%s171] %v184
                %v186 = vld [vmem:[%s178 + $0x18] sm:%s171]
                %187 = vst [vmem:[%s179 + $0xc] sm:%s171] %v186
                %v188 = vld [vmem:[%s178 + $0x20] sm:%s171]
                %189 = vst [vmem:[%s179 + $0x10] sm:%s171] %v188
                %v190 = vld [vmem:[%s178 + $0x28] sm:%s171]
                %191 = vst [vmem:[%s179 + $0x14] sm:%s171] %v190
                %v192 = vld [vmem:[%s178 + $0x30] sm:%s171]
                %193 = vst [vmem:[%s179 + $0x18] sm:%s171] %v192
                %v194 = vld [vmem:[%s178 + $0x38] sm:%s171]
                %195 = vst [vmem:[%s179 + $0x1c] sm:%s171] %v194
              $region45: #{reg2d_forward.38} parent=39 // loop_footer
                %s177 = sadd.s32 1, %s173
              $region46: #{reg2d_forward.38} parent=39 // loop_footer_branch
                %172 = sbr.rel target = $region42
              $region47: #{reg2d_forward.38} parent=39 // loop_exit
                _
            $region40: #{reg2d_forward.38} parent=31 // pred_fallthru
              _
          $region32: #{reg2d_forward.38} parent=27 // pred_fallthru
            _
          %232 = vnop
        $region28: #{reg2d_forward.38} parent=23 // pred_fallthru
          _
        // Predicated region
        $region66: #{reg2d_forward.38} parent=23 // pred_check
          %p233 = pneg %p98
        $region67: #{reg2d_forward.38} parent=23 // pred_check_branch
          %235 = sbr.rel (%p233) target = $region69
        $region68: #{reg2d_forward.38} parent=23 // pred_region
          %p236 = scmp.lt.s32.totalorder %s10, 1
          %s237 = scalar_select %p236, %s10, 1
          %s238 = smul.addr %s237, 4
          %s239 = scalar_lea.vmem %s3, %s238
        $region69: #{reg2d_forward.38} parent=23 // pred_fallthru
          _
      $region24: #{reg2d_forward.38} parent=5 // pred_fallthru
        _
      %p240 = scmp.le.s32.totalorder 1, %s10
      %p241 = scmp.lt.s32.totalorder %s10, 3
      %p242 = pnand %p240, %p241
      %p243 = pneg %p242
      // Predicated region
      $region70: #{reg2d_forward.38} parent=5 // pred_check
        _
      $region71: #{reg2d_forward.38} parent=5 // pred_check_branch
        %245 = sbr.rel (%p242) target = $region73
      $region72: #{reg2d_forward.38} parent=5 // pred_region
        %s246 = ssub.s32 %s10, 1
        %s247 = sand.u32 %s44, 1
        %s248 = sand.u32 %s44, 1
        %s249 = smul.addr %s248, 32
        %s250 = scalar_lea.vmem [#allocation2], %s249
        // Predicated region
        $region74: #{reg2d_forward.38} parent=72 // pred_check
          %p251 = pneg %p57
        $region75: #{reg2d_forward.38} parent=72 // pred_check_branch
          %253 = sbr.rel (%p251) target = $region77
        $region76: #{reg2d_forward.38} parent=72 // pred_region
          _
        $region77: #{reg2d_forward.38} parent=72 // pred_fallthru
          _
        %p254 = pneg %p31
        %p255 = pneg %p28
        %s256 = sand.u32 %s44, 1
        %s257 = sand.u32 %s44, 1
        %s258 = smul.addr %s257, 32
        %s259 = scalar_lea.vmem [#allocation2], %s258
        %p260 = pneg %p57
        %p261 = pneg %p54
        %p262 = pneg %p78
        %p263 = pneg %p75
        %p264 = scmp.lt.s32.totalorder %s15, 1
        %s265 = scalar_select %p264, %s15, 1
        %s266 = smul.addr %s265, 4
        %s267 = scalar_lea.vmem %s3, %s266
        %p268 = pneg %p104
        %p269 = pneg %p101
        %p270 = pneg %p130
        %p271 = pneg %p127
        %p272 = scmp.lt.s32.totalorder %s15, 1
        %s273 = scalar_select %p272, %s15, 1
        %s274 = smul.addr %s273, 4
        %s275 = scalar_lea.vmem %s4, %s274
        %p276 = scmp.lt.s32.totalorder %s15, 1
        %s277 = scalar_select %p276, %s15, 1
        %s278 = smul.addr %s277, 4
        %s279 = scalar_lea.vmem %s3, %s278
        %p280 = scmp.lt.s32.totalorder %s15, 1
        %s281 = scalar_select %p280, %s15, 1
        %s282 = smul.addr %s281, 4
        %s283 = scalar_lea.vmem %s4, %s282
        %v285 = vld [vmem:[%s0] sm:$0xf]
        %v286 = vld [vmem:[%s250] sm:$0xf]
        %v287 = vld [vmem:[%s250 + $0x4] sm:$0xf]
        %v288 = vld [vmem:[%s250 + $0x8] sm:$0xf]
        %v289 = vld [vmem:[%s250 + $0xc] sm:$0xf]
        %v290 = vld [vmem:[%s250 + $0x10] sm:$0xf]
        %v291 = vld [vmem:[%s250 + $0x14] sm:$0xf]
        %v292 = vld [vmem:[%s250 + $0x18] sm:$0xf]
        %v293 = vld [vmem:[%s250 + $0x1c] sm:$0xf]
        %v294 = vld [vmem:[%s2] sm:$0xff]
        %296 = vset.pattern.permute.xlu0 0
        %297 = vperm.xlu0 %296, %v294
        %v298 = vpop.permute.xlu0 %297
        %v308 = vunpack.c.l.b16 %v286
        %v309 = vunpack.c.l.b16 %v287
        %v310 = vunpack.c.l.b16 %v288
        %v311 = vunpack.c.l.b16 %v289
        %v312 = vunpack.c.l.b16 %v290
        %v313 = vunpack.c.l.b16 %v291
        %v314 = vunpack.c.l.b16 %v292
        %v315 = vunpack.c.l.b16 %v293
        %v316 = vpack.c.b16 %v309, %v308
        %v317 = vpack.c.b16 %v311, %v310
        %v318 = vpack.c.b16 %v313, %v312
        %v319 = vpack.c.b16 %v315, %v314
        %vm324 = vcmask 523264
        %v326 = vsel %vm324, %v285, 0
        %328 = vmatpush.bf16.msra.mxu0 0
        %329 = vmatpush.bf16.msra.mxu0 0
        %330 = vmatpush.bf16.msra.mxu0 0
        %331 = vmatpush.bf16.msra.mxu0 0
        %332 = vmatpush.bf16.msra.mxu0 %v319
        %333 = vmatpush.bf16.msra.mxu0 %v318
        %334 = vmatpush.bf16.msra.mxu0 %v317
        %335 = vmatpush.bf16.msra.mxu0 %v316
        %336 = vmatmul.bf16.gmra.mxu0 %v326
        %v337 = vpop.f32.mrf.mxu0
        %v338 = vadd.f32 %v298, %v337
        %v339 = vpop.f32.mrf.mxu0
        %340 = vdwg.mxu0
        %v341 = vmax.f32 %v338, 0.0
        %v342 = vld [vmem:[%s279] sm:$0xf]
        %v343 = vunpack.c.l.bf16 %v342
        %v344 = vadd.f32 %v341, %v343
        %v345 = vpack.c.bf16 %v344, %v344
        %346 = vst [vmem:[%s283] sm:$0xf] %v345
        %p347 = scmp.lt.s32.totalorder %s15, 1
        %s348 = scalar_select %p347, %s15, 1
        %s349 = smul.addr %s348, 4
        %s350 = scalar_lea.vmem %s4, %s349
        // Predicated region
        $region78: #{reg2d_forward.38} parent=72 // pred_check
          %p351 = pneg %p127
        $region79: #{reg2d_forward.38} parent=72 // pred_check_branch
          %353 = sbr.rel (%p351) target = $region81
        $region80: #{reg2d_forward.38} parent=72 // pred_region
          _
        $region81: #{reg2d_forward.38} parent=72 // pred_fallthru
          _
      $region73: #{reg2d_forward.38} parent=5 // pred_fallthru
        _
      %p354 = scmp.le.s32.totalorder 2, %s10
      // Predicated region
      $region82: #{reg2d_forward.38} parent=5 // pred_check
        %p355 = pneg %p354
      $region83: #{reg2d_forward.38} parent=5 // pred_check_branch
        %357 = sbr.rel (%p355) target = $region85
      $region84: #{reg2d_forward.38} parent=5 // pred_region
        %s358 = ssub.s32 %s10, 2
        // Predicated region
        $region86: #{reg2d_forward.38} parent=84 // pred_check
          %p359 = pneg %p133
        $region87: #{reg2d_forward.38} parent=84 // pred_check_branch
          %361 = sbr.rel (%p359) target = $region89
        $region88: #{reg2d_forward.38} parent=84 // pred_region
          %p362 = scmp.lt.s32.totalorder %s16, 1
          %s363 = scalar_select %p362, %s16, 1
          %s364 = smul.addr %s363, 4
          %s365 = scalar_lea.vmem %s4, %s364
        $region89: #{reg2d_forward.38} parent=84 // pred_fallthru
          _
      $region85: #{reg2d_forward.38} parent=5 // pred_fallthru
        _
    $region6: #{reg2d_forward.38} parent=1 // loop_footer
      %s14 = sadd.s32 1, %s10
    $region7: #{reg2d_forward.38} parent=1 // loop_footer_branch
      %9 = sbr.rel target = $region3
    $region8: #{reg2d_forward.38} parent=1 // loop_exit
      _

// kernel: reg2d_forward.39
$region0: #{reg2d_forward.39}
  #allocation0 [shape = 'u32[]', space=smem, size = 0x4, offset = 0x4, fixed_abs, tag = 'smem constant byte address 0x4 - core index']
  #allocation1 [shape = 'u32[72,128]{1,0:T(1,128)}', space=vmem, size = 0x9000, scoped, tag = 'internal scratch']
  %s0 = inlined_call_operand.vmem [shape: bf16[8,8], index: 0, kind: input, shape index: {}]
  %s1 = inlined_call_operand.vmem [shape: bf16[8,1024], index: 1, kind: input, shape index: {}]
  %s2 = inlined_call_operand.vmem [shape: f32[8,1], index: 2, kind: input, shape index: {}]
  %s3 = inlined_call_operand.vmem [shape: f32[8,1024], index: 3, kind: output, shape index: {}]
  %s4 = sld [smem:[#allocation0]]
  $region45: #{reg2d_forward.39} parent=0
    _
  %s6 = ssub.s32 1, %s4
  %s7 = scalar_select 0, %s6, %s4
  loop: start=0, step=1, limit=4
  $region2: #{reg2d_forward.39} parent=0 // loop_pre_header
    _
  $region3: #{reg2d_forward.39} parent=0 // loop_header
    %s9 = sphi 0, %s13
    %p10 = scmp.ge.s32.totalorder %s9, 4
    %s17 = sphi 0, %s17
    %s19 = sphi 0, %s17
    %s20 = sphi 0, %s19
    %s34 = sphi 0, %s20
    %s40 = sphi 0, %s42
    %s43 = sphi 0, %s40
    %s44 = sphi 0, %s43
    %s60 = sphi 0, %s44
    %s64 = sphi 0, %s64
    %s66 = sphi 0, %s64
    %s67 = sphi 0, %s66
    %s81 = sphi 0, %s67
    %s87 = sphi 0, %s89
    %s90 = sphi 0, %s87
    %s91 = sphi 0, %s90
    %s107 = sphi 0, %s91
  $region4: #{reg2d_forward.39} parent=0 // loop_header_branch
    %12 = sbr.rel (%p10) target = $region8
  $region5: #{reg2d_forward.39} parent=0 // loop_body
    %s14 = ssub.s32 %s9, 1
    %s15 = ssub.s32 %s9, 2
    %s16 = sadd.s32 %s9, 1
    %s18 = sadd.s32 %s17, 1
    %p21 = scmp.eq.s32.totalorder %s9, 1
    %p22 = scmp.ne.s32.totalorder %s17, %s19
    %p23 = scmp.eq.s32.totalorder %s9, 0
    %p24 = por %p22, %p23
    %p25 = scmp.ne.s32.totalorder %s17, %s19
    %p26 = scmp.eq.s32.totalorder %s14, 1
    %p27 = por %p25, %p26
    %p28 = scmp.ne.s32.totalorder %s19, %s20
    %p29 = scmp.eq.s32.totalorder %s14, 0
    %p30 = por %p28, %p29
    %p31 = scmp.ne.s32.totalorder %s19, %s20
    %p32 = scmp.eq.s32.totalorder %s15, 1
    %p33 = por %p31, %p32
    %p35 = scmp.ne.s32.totalorder %s20, %s34
    %p36 = scmp.eq.s32.totalorder %s15, 0
    %p37 = por %p35, %p36
    %s38 = ssub.s32 %s9, %s16
    %p39 = scmp.eq.s32.totalorder %s38, 0
    %s41 = sadd.s32 %s40, 1
    %s42 = scalar_select %p39, %s40, %s41
    %p45 = pneg %p39
    %p46 = scmp.eq.s32.totalorder %s9, 1
    %p47 = por %p45, %p46
    %p48 = scmp.ne.s32.totalorder %s40, %s43
    %p49 = scmp.eq.s32.totalorder %s9, 0
    %p50 = por %p48, %p49
    %p51 = scmp.ne.s32.totalorder %s40, %s43
    %p52 = scmp.eq.s32.totalorder %s14, 1
    %p53 = por %p51, %p52
    %p54 = scmp.ne.s32.totalorder %s43, %s44
    %p55 = scmp.eq.s32.totalorder %s14, 0
    %p56 = por %p54, %p55
    %p57 = scmp.ne.s32.totalorder %s43, %s44
    %p58 = scmp.eq.s32.totalorder %s15, 1
    %p59 = por %p57, %p58
    %p61 = scmp.ne.s32.totalorder %s44, %s60
    %p62 = scmp.eq.s32.totalorder %s15, 0
    %p63 = por %p61, %p62
    %s65 = sadd.s32 %s64, 1
    %p68 = scmp.eq.s32.totalorder %s9, 1
    %p69 = scmp.ne.s32.totalorder %s64, %s66
    %p70 = scmp.eq.s32.totalorder %s9, 0
    %p71 = por %p69, %p70
    %p72 = scmp.ne.s32.totalorder %s64, %s66
    %p73 = scmp.eq.s32.totalorder %s14, 1
    %p74 = por %p72, %p73
    %p75 = scmp.ne.s32.totalorder %s66, %s67
    %p76 = scmp.eq.s32.totalorder %s14, 0
    %p77 = por %p75, %p76
    %p78 = scmp.ne.s32.totalorder %s66, %s67
    %p79 = scmp.eq.s32.totalorder %s15, 1
    %p80 = por %p78, %p79
    %p82 = scmp.ne.s32.totalorder %s67, %s81
    %p83 = scmp.eq.s32.totalorder %s15, 0
    %p84 = por %p82, %p83
    %s85 = ssub.s32 %s9, %s16
    %p86 = scmp.eq.s32.totalorder %s85, 0
    %s88 = sadd.s32 %s87, 1
    %s89 = scalar_select %p86, %s87, %s88
    %p92 = pneg %p86
    %p93 = scmp.eq.s32.totalorder %s9, 1
    %p94 = por %p92, %p93
    %p95 = scmp.ne.s32.totalorder %s87, %s90
    %p96 = scmp.eq.s32.totalorder %s9, 0
    %p97 = por %p95, %p96
    %p98 = scmp.ne.s32.totalorder %s87, %s90
    %p99 = scmp.eq.s32.totalorder %s14, 1
    %p100 = por %p98, %p99
    %p101 = scmp.ne.s32.totalorder %s90, %s91
    %p102 = scmp.eq.s32.totalorder %s14, 0
    %p103 = por %p101, %p102
    %p104 = scmp.ne.s32.totalorder %s90, %s91
    %p105 = scmp.eq.s32.totalorder %s15, 1
    %p106 = por %p104, %p105
    %p108 = scmp.ne.s32.totalorder %s91, %s107
    %p109 = scmp.eq.s32.totalorder %s15, 0
    %p110 = por %p108, %p109
    %p111 = scmp.le.s32.totalorder 1, %s9
    %p112 = scmp.lt.s32.totalorder %s9, 3
    %p113 = pnand %p111, %p112
    %p114 = pneg %p113
    // Predicated region
    $region9: #{reg2d_forward.39} parent=5 // pred_check
      _
    $region10: #{reg2d_forward.39} parent=5 // pred_check_branch
      %116 = sbr.rel (%p113) target = $region12
    $region11: #{reg2d_forward.39} parent=5 // pred_region
      %s117 = ssub.s32 %s9, 1
      // Predicated region
      $region13: #{reg2d_forward.39} parent=11 // pred_check
        %p118 = pneg %p30
      $region14: #{reg2d_forward.39} parent=11 // pred_check_branch
        %120 = sbr.rel (%p118) target = $region16
      $region15: #{reg2d_forward.39} parent=11 // pred_region
        _
      $region16: #{reg2d_forward.39} parent=11 // pred_fallthru
        _
      // Predicated region
      $region17: #{reg2d_forward.39} parent=11 // pred_check
        %p121 = pneg %p77
      $region18: #{reg2d_forward.39} parent=11 // pred_check_branch
        %123 = sbr.rel (%p121) target = $region20
      $region19: #{reg2d_forward.39} parent=11 // pred_region
        _
      $region20: #{reg2d_forward.39} parent=11 // pred_fallthru
        _
    $region12: #{reg2d_forward.39} parent=5 // pred_fallthru
      _
    %p124 = scmp.lt.s32.totalorder %s9, 2
    // Predicated region
    $region21: #{reg2d_forward.39} parent=5 // pred_check
      %p125 = pneg %p124
    $region22: #{reg2d_forward.39} parent=5 // pred_check_branch
      %127 = sbr.rel (%p125) target = $region24
    $region23: #{reg2d_forward.39} parent=5 // pred_region
      // Predicated region
      $region25: #{reg2d_forward.39} parent=23 // pred_check
        %p128 = pneg %p50
      $region26: #{reg2d_forward.39} parent=23 // pred_check_branch
        %130 = sbr.rel (%p128) target = $region28
      $region27: #{reg2d_forward.39} parent=23 // pred_region
        %s131 = smul.u32 4, %s9
        %p132 = scmp.lt.s32.totalorder %s131, 7
        %s133 = scalar_select %p132, %s131, 7
        %s134 = smul.addr %s133, 4
        %s135 = scalar_lea.vmem %s1, %s134
        %s136 = smul.u32 4, %s9
      $region28: #{reg2d_forward.39} parent=23 // pred_fallthru
        _
    $region24: #{reg2d_forward.39} parent=5 // pred_fallthru
      _
    %p137 = scmp.le.s32.totalorder 1, %s9
    %p138 = scmp.lt.s32.totalorder %s9, 3
    %p139 = pnand %p137, %p138
    %p140 = pneg %p139
    // Predicated region
    $region29: #{reg2d_forward.39} parent=5 // pred_check
      _
    $region30: #{reg2d_forward.39} parent=5 // pred_check_branch
      %142 = sbr.rel (%p139) target = $region32
    $region31: #{reg2d_forward.39} parent=5 // pred_region
      %s143 = ssub.s32 %s9, 1
      %p144 = pneg %p30
      %p145 = pneg %p27
      %s146 = smul.u32 4, %s14
      %p147 = scmp.lt.s32.totalorder %s146, 7
      %s148 = scalar_select %p147, %s146, 7
      %s149 = smul.addr %s148, 4
      %s150 = scalar_lea.vmem %s1, %s149
      %p151 = pneg %p56
      %p152 = pneg %p53
      %p153 = pneg %p77
      %p154 = pneg %p74
      %p155 = pneg %p103
      %p156 = pneg %p100
      %s157 = smul.u32 4, %s14
      %p158 = scmp.lt.s32.totalorder %s157, 7
      %s159 = scalar_select %p158, %s157, 7
      %s160 = smul.addr %s159, 8
      %s161 = scalar_lea.vmem %s3, %s160
      %s162 = smul.u32 4, %s14
      %p163 = scmp.lt.s32.totalorder %s162, 7
      %s164 = scalar_select %p163, %s162, 7
      %s165 = smul.addr %s164, 4
      %s166 = scalar_lea.vmem %s1, %s165
      %s167 = smul.u32 4, %s14
      %s168 = smul.u32 4, %s14
      %p169 = scmp.lt.s32.totalorder %s168, 7
      %s170 = scalar_select %p169, %s168, 7
      %s171 = smul.addr %s170, 8
      %s172 = scalar_lea.vmem %s3, %s171
      %s173 = smul.u32 4, %s14
      %v175 = vld [vmem:[%s0] sm:$0xf]
      %v176 = vld [vmem:[%s166] sm:$0xff]
      %v177 = vld [vmem:[%s166 + $0x8] sm:$0xff]
      %v178 = vld [vmem:[%s2] sm:$0xff]
      %180 = vset.pattern.permute.xlu0 0
      %181 = vperm.xlu0 %180, %v178
      %v182 = vpop.permute.xlu0 %181
      %v186 = vunpack.c.l.b16 %v176
      %v187 = vunpack.c.h.b16 %v176
      %v188 = vunpack.c.l.b16 %v177
      %v189 = vunpack.c.h.b16 %v177
      %v190 = vpack.c.b16 %v186, %v186
      %v191 = vpack.c.b16 %v187, %v187
      %v192 = vpack.c.b16 %v188, %v188
      %v193 = vpack.c.b16 %v189, %v189
      %vm194 = vcmask 64512
      %v196 = vsel %vm194, %v175, 0
      %vm198 = vcmask 1043456
      %v200 = vsel %vm198, %v190, 0
      %v203 = vsel %vm198, %v191, 0
      %v206 = vsel %vm198, %v192, 0
      %v209 = vsel %vm198, %v193, 0
      %211 = vmatpush.bf16.msra.mxu0 0
      %212 = vmatpush.bf16.msra.mxu0 0
      %213 = vmatpush.bf16.msra.mxu0 0
      %214 = vmatpush.bf16.msra.mxu0 0
      %215 = vmatpush.bf16.msra.mxu0 0
      %216 = vmatpush.bf16.msra.mxu0 0
      %217 = vmatpush.bf16.msra.mxu0 0
      %218 = vmatpush.bf16.msra.mxu0 %v200
      %219 = vmatmul.bf16.gmra.mxu0 %v196
      %v220 = vpop.f32.mrf.mxu0
      %v221 = vadd.f32 %v182, %v220
      %v222 = vpop.f32.mrf.mxu0
      %223 = vdwg.mxu0
      %224 = vmatpush.bf16.msra.mxu0 0
      %225 = vmatpush.bf16.msra.mxu0 0
      %226 = vmatpush.bf16.msra.mxu0 0
      %227 = vmatpush.bf16.msra.mxu0 0
      %228 = vmatpush.bf16.msra.mxu0 0
      %229 = vmatpush.bf16.msra.mxu0 0
      %230 = vmatpush.bf16.msra.mxu0 0
      %231 = vmatpush.bf16.msra.mxu0 %v203
      %232 = vmatmul.bf16.gmra.mxu0 %v196
      %v233 = vpop.f32.mrf.mxu0
      %v234 = vadd.f32 %v182, %v233
      %v235 = vpop.f32.mrf.mxu0
      %236 = vdwg.mxu0
      %237 = vmatpush.bf16.msra.mxu0 0
      %238 = vmatpush.bf16.msra.mxu0 0
      %239 = vmatpush.bf16.msra.mxu0 0
      %240 = vmatpush.bf16.msra.mxu0 0
      %241 = vmatpush.bf16.msra.mxu0 0
      %242 = vmatpush.bf16.msra.mxu0 0
      %243 = vmatpush.bf16.msra.mxu0 0
      %244 = vmatpush.bf16.msra.mxu0 %v206
      %245 = vmatmul.bf16.gmra.mxu0 %v196
      %v246 = vpop.f32.mrf.mxu0
      %v247 = vadd.f32 %v182, %v246
      %v248 = vpop.f32.mrf.mxu0
      %249 = vdwg.mxu0
      %250 = vmatpush.bf16.msra.mxu0 0
      %251 = vmatpush.bf16.msra.mxu0 0
      %252 = vmatpush.bf16.msra.mxu0 0
      %253 = vmatpush.bf16.msra.mxu0 0
      %254 = vmatpush.bf16.msra.mxu0 0
      %255 = vmatpush.bf16.msra.mxu0 0
      %256 = vmatpush.bf16.msra.mxu0 0
      %257 = vmatpush.bf16.msra.mxu0 %v209
      %258 = vmatmul.bf16.gmra.mxu0 %v196
      %v259 = vpop.f32.mrf.mxu0
      %v260 = vadd.f32 %v182, %v259
      %v261 = vpop.f32.mrf.mxu0
      %262 = vdwg.mxu0
      %263 = vst [vmem:[%s172] sm:$0xff] %v221
      %264 = vst [vmem:[%s172 + $0x8] sm:$0xff] %v234
      %265 = vst [vmem:[%s172 + $0x10] sm:$0xff] %v247
      %266 = vst [vmem:[%s172 + $0x18] sm:$0xff] %v260
      %s267 = smul.u32 4, %s14
      %p268 = scmp.lt.s32.totalorder %s267, 7
      %s269 = scalar_select %p268, %s267, 7
      %s270 = smul.addr %s269, 8
      %s271 = scalar_lea.vmem %s3, %s270
      // Predicated region
      $region33: #{reg2d_forward.39} parent=31 // pred_check
        %p272 = pneg %p100
      $region34: #{reg2d_forward.39} parent=31 // pred_check_branch
        %274 = sbr.rel (%p272) target = $region36
      $region35: #{reg2d_forward.39} parent=31 // pred_region
        %s275 = smul.u32 4, %s14
      $region36: #{reg2d_forward.39} parent=31 // pred_fallthru
        _
    $region32: #{reg2d_forward.39} parent=5 // pred_fallthru
      _
    %p276 = scmp.le.s32.totalorder 2, %s9
    // Predicated region
    $region37: #{reg2d_forward.39} parent=5 // pred_check
      %p277 = pneg %p276
    $region38: #{reg2d_forward.39} parent=5 // pred_check_branch
      %279 = sbr.rel (%p277) target = $region40
    $region39: #{reg2d_forward.39} parent=5 // pred_region
      %s280 = ssub.s32 %s9, 2
      // Predicated region
      $region41: #{reg2d_forward.39} parent=39 // pred_check
        %p281 = pneg %p106
      $region42: #{reg2d_forward.39} parent=39 // pred_check_branch
        %283 = sbr.rel (%p281) target = $region44
      $region43: #{reg2d_forward.39} parent=39 // pred_region
        %s284 = smul.u32 4, %s15
        %p285 = scmp.lt.s32.totalorder %s284, 7
        %s286 = scalar_select %p285, %s284, 7
        %s287 = smul.addr %s286, 8
        %s288 = scalar_lea.vmem %s3, %s287
      $region44: #{reg2d_forward.39} parent=39 // pred_fallthru
        _
    $region40: #{reg2d_forward.39} parent=5 // pred_fallthru
      _
  $region6: #{reg2d_forward.39} parent=0 // loop_footer
    %s13 = sadd.s32 1, %s9
  $region7: #{reg2d_forward.39} parent=0 // loop_footer_branch
    %8 = sbr.rel target = $region3
  $region8: #{reg2d_forward.39} parent=0 // loop_exit
    _

</llo_original>
